<compile_context>
chip_gen: v7x
topology: tpu7x:2x2x1
jax: 0.10.0
libtpu: 0.0.40
codegen_flags: <defaults>
</compile_context>

<pallas_src>
import functools

import jax
import jax.numpy as jnp
import numpy as np
from jax import lax
from jax.experimental import pallas as pl
from jax.experimental.pallas import tpu as pltpu


# ----------------------------------------------------------------------------- kernel
def _swa_attn_kernel(q_ref, k_ref, v_ref, o_ref):
    """Single-pass softmax attention over the full key axis for G batch-heads.

    q_ref: (G, dh, N)   k_ref, v_ref: (G, dh, L)   o_ref: (G, dh, N)
    """
    q = q_ref[...]
    k = k_ref[...]
    v = v_ref[...]

    # energy[g, n, l] = sum_d q[g, d, n] * k[g, d, l]   (contract dh, batch g)
    s = lax.dot_general(
        q, k,
        dimension_numbers=(((1,), (1,)), ((0,), (0,))),
        preferred_element_type=jnp.float32)                       # (G, N, L) f32

    # softmax statistics in f32 (lane-axis reductions -> XLU).
    m = jnp.max(s, axis=-1, keepdims=True)                        # (G, N, 1)
    # s - m <= 0 on real data; the clamp is a no-op there and guards the
    # lane-padded tail (L is not a multiple of 128) against exp overflow.
    p = jnp.exp(jnp.minimum(s - m, 0.0))                          # (G, N, L)
    denom = jnp.sum(p, axis=-1, keepdims=True)                    # (G, N, 1)
    p = (p * pl.reciprocal(denom, approx=True)).astype(v.dtype)   # (G, N, L) bf16

    # out[g, d, n] = sum_l v[g, d, l] * p[g, n, l]   (contract L, batch g)
    o = lax.dot_general(
        v, p,
        dimension_numbers=(((2,), (2,)), ((0,), (0,))),
        preferred_element_type=jnp.float32)                       # (G, dh, N) f32
    o_ref[...] = o.astype(o_ref.dtype)


def swa_attention_pallas(q, k, v, *, max_energy_bytes=2 * 1024 * 1024):
    """q: (BH, dh, N); k, v: (BH, dh, L). Returns (BH, dh, N) float32."""
    bh, dh, n = q.shape
    l = k.shape[-1]
    assert k.shape == (bh, dh, l) and v.shape == (bh, dh, l)

    # Batch-heads per grid step: largest divisor of bh whose f32 (G, N, L)
    # energy block stays under the budget (keeps VMEM temporaries modest on
    # all generations, incl. v7x's 64 MiB VMEM).
    g = 1
    for cand in range(bh, 0, -1):
        if bh % cand == 0 and cand * n * l * 4 <= max_energy_bytes:
            g = cand
            break

    grid_spec = pltpu.PrefetchScalarGridSpec(
        num_scalar_prefetch=0,
        grid=(bh // g,),
        in_specs=[
            pl.BlockSpec((g, dh, n), lambda i: (i, 0, 0)),   # Q slab
            pl.BlockSpec((g, dh, l), lambda i: (i, 0, 0)),   # full K (lane-dense rows)
            pl.BlockSpec((g, dh, l), lambda i: (i, 0, 0)),   # full V
        ],
        out_specs=pl.BlockSpec((g, dh, n), lambda i: (i, 0, 0)),
    )

    return pl.pallas_call(
        _swa_attn_kernel,
        out_shape=jax.ShapeDtypeStruct((bh, dh, n), jnp.float32),
        grid_spec=grid_spec,
        compiler_params=pltpu.CompilerParams(
            dimension_semantics=("parallel",),
            vmem_limit_bytes=32 * 1024 * 1024),
    )(q, k, v)


# ----------------------------------------------------------------------------- glue
def conv1x1(x, w, b):
    # x: (B, C_in, H, W) NCHW, w: (C_out, C_in), b: (C_out,)
    return jnp.einsum("bchw,oc->bohw", x, w) + b[None, :, None, None]


def unfold_windows(t, ws, h, w):
    # t: (B, C, H+2p, W+2p) -> (B, C, ws, ws, H, W); [b,c,kh,kw,i,j] = t[b,c,i+kh,j+kw]
    rows = []
    for kh in range(ws):
        cols = [t[:, :, kh:kh + h, kw:kw + w] for kw in range(ws)]
        rows.append(jnp.stack(cols, axis=2))        # (B, C, ws, H, W)
    return jnp.stack(rows, axis=2)                  # (B, C, ws, ws, H, W)


def swa_forward(x, params, *, n_heads, window_size, compute_dtype=jnp.bfloat16):
    b, c, h, w = x.shape
    dh = c // n_heads
    n = h * w
    pad = window_size // 2
    l_true = window_size * window_size * n

    padded_x = jnp.pad(x, ((0, 0), (0, 0), (pad, pad), (pad, pad)), mode="reflect")

    q_c = conv1x1(x, params["wq"], params["bq"])                 # (B, C, H, W)
    k_c = conv1x1(padded_x, params["wk"], params["bk"])          # (B, C, H+2p, W+2p)
    v_c = conv1x1(padded_x, params["wv"], params["bv"])

    # torch ordering: key index l = ((kh*ws + kw)*H + i)*W + j.
    # (dh, seq) layout: these are plain reshapes — no transposes needed.
    q_seq = q_c.reshape(b * n_heads, dh, n)
    k_seq = unfold_windows(k_c, window_size, h, w).reshape(b * n_heads, dh, l_true)
    v_seq = unfold_windows(v_c, window_size, h, w).reshape(b * n_heads, dh, l_true)

    o = swa_attention_pallas(q_seq.astype(compute_dtype),
                             k_seq.astype(compute_dtype),
                             v_seq.astype(compute_dtype))        # (BH, dh, N) f32

    out_window = o.reshape(b, c, h, w)   # (dh, N) slabs reshape straight to NCHW
    return params["gamma"] * out_window + x


def swa_reference(x, params, *, n_heads, window_size):
    # pure-JAX reference (mirrors the torch forward exactly, all float32)
    b, c, h, w = x.shape
    dh = c // n_heads
    n = h * w
    pad = window_size // 2
    padded_x = jnp.pad(x, ((0, 0), (0, 0), (pad, pad), (pad, pad)), mode="reflect")
    q = conv1x1(x, params["wq"], params["bq"]).reshape(b, n_heads, dh, n)
    k = unfold_windows(conv1x1(padded_x, params["wk"], params["bk"]),
                       window_size, h, w).reshape(b, n_heads, dh, -1)
    v = unfold_windows(conv1x1(padded_x, params["wv"], params["bv"]),
                       window_size, h, w).reshape(b, n_heads, dh, -1)
    energy = jnp.einsum("bhdq,bhdl->bhql", q, k)
    attn = jax.nn.softmax(energy, axis=-1)
    ow = jnp.einsum("bhql,bhdl->bhqd", attn, v)
    ow = ow.transpose(0, 1, 3, 2).reshape(b, c, h, w)
    return params["gamma"] * ow + x


# ----------------------------------------------------------------------------- main
if __name__ == "__main__":
    B, C, H, W = 2, 32, 8, 8
    N_HEADS, WS = 8, 7

    key = jax.random.PRNGKey(0)
    kx, kq, kk_, kv, kb = jax.random.split(key, 5)

    x = jax.random.normal(kx, (B, C, H, W), dtype=jnp.float32)

    scale = 0.1
    params = {
        "wq": scale * jax.random.normal(kq, (C, C), dtype=jnp.float32),
        "wk": scale * jax.random.normal(kk_, (C, C), dtype=jnp.float32),
        "wv": scale * jax.random.normal(kv, (C, C), dtype=jnp.float32),
        "bq": scale * jax.random.normal(kb, (C,), dtype=jnp.float32),
        "bk": jnp.zeros((C,), dtype=jnp.float32),
        "bv": jnp.zeros((C,), dtype=jnp.float32),
        # nn.Parameter(torch.zeros(1)) in the module; set nonzero so the
        # attention path actually contributes in this synthetic check.
        "gamma": jnp.float32(0.5),
    }

    fwd = jax.jit(functools.partial(swa_forward, n_heads=N_HEADS, window_size=WS))
    out = jax.block_until_ready(fwd(x, params))

    ref = swa_reference(x, params, n_heads=N_HEADS, window_size=WS)
    # tolerance reflects bf16 QK^T / PV operands in the kernel (f32 accumulation
    # and f32 softmax statistics); typical error is ~5e-3.
    np.testing.assert_allclose(np.asarray(out), np.asarray(ref), atol=3e-2, rtol=3e-2)

    print("KERNEL_OK")
</pallas_src>

<mosaic_0001>
module attributes {stable_mosaic.version = 11 : i64} {
  func.func @_swa_attn_kernel(%arg0: i32, %arg1: memref<2x4x64xbf16, #tpu.memory_space<vmem>>, %arg2: memref<2x4x3136xbf16, #tpu.memory_space<vmem>>, %arg3: memref<2x4x3136xbf16, #tpu.memory_space<vmem>>, %arg4: memref<2x4x64xf32, #tpu.memory_space<vmem>>) attributes {dimension_semantics = [#tpu.dimension_semantics<parallel>], iteration_bounds = array<i64: 8>, scalar_prefetch = 0 : i64, scratch_operands = 0 : i64, tpu.core_type = #tpu.core_type<tc>, window_params = [{transform_indices = @transform_0, window_bounds = array<i64: 2, 4, 64>}, {transform_indices = @transform_1, window_bounds = array<i64: 2, 4, 3136>}, {transform_indices = @transform_2, window_bounds = array<i64: 2, 4, 3136>}, {transform_indices = @transform_3, window_bounds = array<i64: 2, 4, 64>}]} {
    %c0 = arith.constant 0 : index
    %c0_0 = arith.constant 0 : index
    %c0_1 = arith.constant 0 : index
    %0 = vector.load %arg1[%c0, %c0_0, %c0_1] : memref<2x4x64xbf16, #tpu.memory_space<vmem>>, vector<2x4x64xbf16>
    %c0_2 = arith.constant 0 : index
    %c0_3 = arith.constant 0 : index
    %c0_4 = arith.constant 0 : index
    %1 = vector.load %arg2[%c0_2, %c0_3, %c0_4] : memref<2x4x3136xbf16, #tpu.memory_space<vmem>>, vector<2x4x3136xbf16>
    %c0_5 = arith.constant 0 : index
    %c0_6 = arith.constant 0 : index
    %c0_7 = arith.constant 0 : index
    %2 = vector.load %arg3[%c0_5, %c0_6, %c0_7] : memref<2x4x3136xbf16, #tpu.memory_space<vmem>>, vector<2x4x3136xbf16>
    %cst = arith.constant dense<0.000000e+00> : vector<2x64x3136xf32>
    %3 = tpu.matmul %0, %1, %cst {dimension_numbers = #tpu.dot_dimension_numbers<[1], [1], [2], [2], [0, 0, 0, 2, 1, 2], [0], [0]>} : vector<2x4x64xbf16>, vector<2x4x3136xbf16>, vector<2x64x3136xf32> -> vector<2x64x3136xf32>
    %cst_8 = arith.constant dense<0xFF800000> : vector<2x64xf32>
    %4 = vector.multi_reduction <maximumf>, %3, %cst_8 [2] : vector<2x64x3136xf32> to vector<2x64xf32>
    %5 = vector.shape_cast %4 : vector<2x64xf32> to vector<2x64x1xf32>
    %6 = vector.broadcast %5 : vector<2x64x1xf32> to vector<2x64x3136xf32>
    %7 = arith.subf %3, %6 : vector<2x64x3136xf32>
    %cst_9 = arith.constant 0.000000e+00 : f32
    %8 = vector.broadcast %cst_9 : f32 to vector<2x64x3136xf32>
    %9 = arith.minimumf %7, %8 : vector<2x64x3136xf32>
    %10 = math.exp %9 : vector<2x64x3136xf32>
    %cst_10 = arith.constant dense<0.000000e+00> : vector<2x64xf32>
    %11 = vector.multi_reduction <add>, %10, %cst_10 [2] : vector<2x64x3136xf32> to vector<2x64xf32>
    %12 = vector.shape_cast %11 : vector<2x64xf32> to vector<2x64x1xf32>
    %13 = tpu.reciprocal %12 {approx = true} : vector<2x64x1xf32> -> vector<2x64x1xf32>
    %14 = vector.broadcast %13 : vector<2x64x1xf32> to vector<2x64x3136xf32>
    %15 = arith.mulf %10, %14 : vector<2x64x3136xf32>
    %16 = arith.truncf %15 : vector<2x64x3136xf32> to vector<2x64x3136xbf16>
    %cst_11 = arith.constant dense<0.000000e+00> : vector<2x4x64xf32>
    %17 = tpu.matmul %2, %16, %cst_11 {dimension_numbers = #tpu.dot_dimension_numbers<[2], [2], [1], [1], [0, 0, 0, 1, 1, 1], [0], [0]>} : vector<2x4x3136xbf16>, vector<2x64x3136xbf16>, vector<2x4x64xf32> -> vector<2x4x64xf32>
    %c0_12 = arith.constant 0 : index
    %c0_13 = arith.constant 0 : index
    %c0_14 = arith.constant 0 : index
    %18 = vector.load %arg4[%c0_12, %c0_13, %c0_14] : memref<2x4x64xf32, #tpu.memory_space<vmem>>, vector<2x4x64xf32>
    tpu.vector_store %arg4[%c0_12, %c0_13, %c0_14], %17 {strides = array<i32>} : memref<2x4x64xf32, #tpu.memory_space<vmem>>, vector<2x4x64xf32>,
    return
  }
  func.func @transform_0(%arg0: i32) -> (i32, i32, i32) {
    %c0_i32 = arith.constant 0 : i32
    %c0_i32_0 = arith.constant 0 : i32
    %c0_i32_1 = arith.constant 0 : i32
    return %arg0, %c0_i32, %c0_i32_0 : i32, i32, i32
  }
  func.func @transform_1(%arg0: i32) -> (i32, i32, i32) {
    %c0_i32 = arith.constant 0 : i32
    %c0_i32_0 = arith.constant 0 : i32
    %c0_i32_1 = arith.constant 0 : i32
    return %arg0, %c0_i32, %c0_i32_0 : i32, i32, i32
  }
  func.func @transform_2(%arg0: i32) -> (i32, i32, i32) {
    %c0_i32 = arith.constant 0 : i32
    %c0_i32_0 = arith.constant 0 : i32
    %c0_i32_1 = arith.constant 0 : i32
    return %arg0, %c0_i32, %c0_i32_0 : i32, i32, i32
  }
  func.func @transform_3(%arg0: i32) -> (i32, i32, i32) {
    %c0_i32 = arith.constant 0 : i32
    %c0_i32_0 = arith.constant 0 : i32
    %c0_i32_1 = arith.constant 0 : i32
    return %arg0, %c0_i32, %c0_i32_0 : i32, i32, i32
  }
}

</mosaic_0001>

<llo_original>
// kernel: swa_forward.1
$region0: #{swa_forward.1}
  #allocation0 [shape = 'u32[]', space=smem, size = 0x4, offset = 0x4, fixed_abs, tag = 'smem constant byte address 0x4 - core index']
  #allocation1 [shape = 'u32[144,128]{1,0:T(1,128)}', space=vmem, size = 0x12000, scoped, tag = 'internal scratch']
  %s0 = inlined_call_operand.vmem [shape: bf16[16,4,64], index: 0, kind: input, shape index: {}]
  %s1 = inlined_call_operand.vmem [shape: bf16[16,4,3136], index: 1, kind: input, shape index: {}]
  %s2 = inlined_call_operand.vmem [shape: bf16[16,4,3136], index: 2, kind: input, shape index: {}]
  %s3 = inlined_call_operand.vmem [shape: f32[16,4,64], index: 3, kind: output, shape index: {}]
  %s4 = sld [smem:[#allocation0]]
  $region45: #{swa_forward.1} parent=0
    _
  %s6 = ssub.s32 1, %s4
  %s7 = scalar_select 0, %s6, %s4
  loop: start=0, step=1, limit=10
  $region2: #{swa_forward.1} parent=0 // loop_pre_header
    _
  $region3: #{swa_forward.1} parent=0 // loop_header
    %s9 = sphi 0, %s13
    %p10 = scmp.ge.s32.totalorder %s9, 10
    %s19 = sphi 0, %s21
    %s22 = sphi 0, %s19
    %s23 = sphi 0, %s22
    %s39 = sphi 0, %s23
    %s45 = sphi 0, %s47
    %s48 = sphi 0, %s45
    %s49 = sphi 0, %s48
    %s65 = sphi 0, %s49
    %s71 = sphi 0, %s73
    %s74 = sphi 0, %s71
    %s75 = sphi 0, %s74
    %s91 = sphi 0, %s75
    %s97 = sphi 0, %s99
    %s100 = sphi 0, %s97
    %s101 = sphi 0, %s100
    %s117 = sphi 0, %s101
  $region4: #{swa_forward.1} parent=0 // loop_header_branch
    %12 = sbr.rel (%p10) target = $region8
  $region5: #{swa_forward.1} parent=0 // loop_body
    %s14 = ssub.s32 %s9, 1
    %s15 = ssub.s32 %s9, 2
    %s16 = sadd.s32 %s9, 1
    %s17 = ssub.s32 %s9, %s16
    %p18 = scmp.eq.s32.totalorder %s17, 0
    %s20 = sadd.s32 %s19, 1
    %s21 = scalar_select %p18, %s19, %s20
    %p24 = pneg %p18
    %p25 = scmp.eq.s32.totalorder %s9, 7
    %p26 = por %p24, %p25
    %p27 = scmp.ne.s32.totalorder %s19, %s22
    %p28 = scmp.eq.s32.totalorder %s9, 0
    %p29 = por %p27, %p28
    %p30 = scmp.ne.s32.totalorder %s19, %s22
    %p31 = scmp.eq.s32.totalorder %s14, 7
    %p32 = por %p30, %p31
    %p33 = scmp.ne.s32.totalorder %s22, %s23
    %p34 = scmp.eq.s32.totalorder %s14, 0
    %p35 = por %p33, %p34
    %p36 = scmp.ne.s32.totalorder %s22, %s23
    %p37 = scmp.eq.s32.totalorder %s15, 7
    %p38 = por %p36, %p37
    %p40 = scmp.ne.s32.totalorder %s23, %s39
    %p41 = scmp.eq.s32.totalorder %s15, 0
    %p42 = por %p40, %p41
    %s43 = ssub.s32 %s9, %s16
    %p44 = scmp.eq.s32.totalorder %s43, 0
    %s46 = sadd.s32 %s45, 1
    %s47 = scalar_select %p44, %s45, %s46
    %p50 = pneg %p44
    %p51 = scmp.eq.s32.totalorder %s9, 7
    %p52 = por %p50, %p51
    %p53 = scmp.ne.s32.totalorder %s45, %s48
    %p54 = scmp.eq.s32.totalorder %s9, 0
    %p55 = por %p53, %p54
    %p56 = scmp.ne.s32.totalorder %s45, %s48
    %p57 = scmp.eq.s32.totalorder %s14, 7
    %p58 = por %p56, %p57
    %p59 = scmp.ne.s32.totalorder %s48, %s49
    %p60 = scmp.eq.s32.totalorder %s14, 0
    %p61 = por %p59, %p60
    %p62 = scmp.ne.s32.totalorder %s48, %s49
    %p63 = scmp.eq.s32.totalorder %s15, 7
    %p64 = por %p62, %p63
    %p66 = scmp.ne.s32.totalorder %s49, %s65
    %p67 = scmp.eq.s32.totalorder %s15, 0
    %p68 = por %p66, %p67
    %s69 = ssub.s32 %s9, %s16
    %p70 = scmp.eq.s32.totalorder %s69, 0
    %s72 = sadd.s32 %s71, 1
    %s73 = scalar_select %p70, %s71, %s72
    %p76 = pneg %p70
    %p77 = scmp.eq.s32.totalorder %s9, 7
    %p78 = por %p76, %p77
    %p79 = scmp.ne.s32.totalorder %s71, %s74
    %p80 = scmp.eq.s32.totalorder %s9, 0
    %p81 = por %p79, %p80
    %p82 = scmp.ne.s32.totalorder %s71, %s74
    %p83 = scmp.eq.s32.totalorder %s14, 7
    %p84 = por %p82, %p83
    %p85 = scmp.ne.s32.totalorder %s74, %s75
    %p86 = scmp.eq.s32.totalorder %s14, 0
    %p87 = por %p85, %p86
    %p88 = scmp.ne.s32.totalorder %s74, %s75
    %p89 = scmp.eq.s32.totalorder %s15, 7
    %p90 = por %p88, %p89
    %p92 = scmp.ne.s32.totalorder %s75, %s91
    %p93 = scmp.eq.s32.totalorder %s15, 0
    %p94 = por %p92, %p93
    %s95 = ssub.s32 %s9, %s16
    %p96 = scmp.eq.s32.totalorder %s95, 0
    %s98 = sadd.s32 %s97, 1
    %s99 = scalar_select %p96, %s97, %s98
    %p102 = pneg %p96
    %p103 = scmp.eq.s32.totalorder %s9, 7
    %p104 = por %p102, %p103
    %p105 = scmp.ne.s32.totalorder %s97, %s100
    %p106 = scmp.eq.s32.totalorder %s9, 0
    %p107 = por %p105, %p106
    %p108 = scmp.ne.s32.totalorder %s97, %s100
    %p109 = scmp.eq.s32.totalorder %s14, 7
    %p110 = por %p108, %p109
    %p111 = scmp.ne.s32.totalorder %s100, %s101
    %p112 = scmp.eq.s32.totalorder %s14, 0
    %p113 = por %p111, %p112
    %p114 = scmp.ne.s32.totalorder %s100, %s101
    %p115 = scmp.eq.s32.totalorder %s15, 7
    %p116 = por %p114, %p115
    %p118 = scmp.ne.s32.totalorder %s101, %s117
    %p119 = scmp.eq.s32.totalorder %s15, 0
    %p120 = por %p118, %p119
    %p121 = scmp.le.s32.totalorder 1, %s9
    %p122 = scmp.lt.s32.totalorder %s9, 9
    %p123 = pnand %p121, %p122
    %p124 = pneg %p123
    // Predicated region
    $region9: #{swa_forward.1} parent=5 // pred_check
      _
    $region10: #{swa_forward.1} parent=5 // pred_check_branch
      %126 = sbr.rel (%p123) target = $region12
    $region11: #{swa_forward.1} parent=5 // pred_region
      %s127 = ssub.s32 %s9, 1
    $region12: #{swa_forward.1} parent=5 // pred_fallthru
      _
    %p128 = scmp.lt.s32.totalorder %s9, 8
    // Predicated region
    $region13: #{swa_forward.1} parent=5 // pred_check
      %p129 = pneg %p128
    $region14: #{swa_forward.1} parent=5 // pred_check_branch
      %131 = sbr.rel (%p129) target = $region16
    $region15: #{swa_forward.1} parent=5 // pred_region
      // Predicated region
      $region17: #{swa_forward.1} parent=15 // pred_check
        %p132 = pneg %p29
      $region18: #{swa_forward.1} parent=15 // pred_check_branch
        %134 = sbr.rel (%p132) target = $region20
      $region19: #{swa_forward.1} parent=15 // pred_region
        %s135 = smul.u32 2, %s9
        %p136 = scmp.lt.s32.totalorder %s135, 15
        %s137 = scalar_select %p136, %s135, 15
        %s138 = smul.addr %s137, 2
        %s139 = scalar_lea.vmem %s0, %s138
        %s140 = smul.u32 2, %s9
      $region20: #{swa_forward.1} parent=15 // pred_fallthru
        _
      // Predicated region
      $region21: #{swa_forward.1} parent=15 // pred_check
        %p141 = pneg %p55
      $region22: #{swa_forward.1} parent=15 // pred_check_branch
        %143 = sbr.rel (%p141) target = $region24
      $region23: #{swa_forward.1} parent=15 // pred_region
        %s144 = smul.u32 2, %s9
        %p145 = scmp.lt.s32.totalorder %s144, 15
        %s146 = scalar_select %p145, %s144, 15
        %s147 = smul.addr %s146, 25
        %s148 = smul.addr %s147, 2
        %s149 = scalar_lea.vmem %s1, %s148
        %s150 = smul.u32 2, %s9
      $region24: #{swa_forward.1} parent=15 // pred_fallthru
        _
      // Predicated region
      $region25: #{swa_forward.1} parent=15 // pred_check
        %p151 = pneg %p81
      $region26: #{swa_forward.1} parent=15 // pred_check_branch
        %153 = sbr.rel (%p151) target = $region28
      $region27: #{swa_forward.1} parent=15 // pred_region
        %s154 = smul.u32 2, %s9
        %p155 = scmp.lt.s32.totalorder %s154, 15
        %s156 = scalar_select %p155, %s154, 15
        %s157 = smul.addr %s156, 25
        %s158 = smul.addr %s157, 2
        %s159 = scalar_lea.vmem %s2, %s158
        %s160 = smul.u32 2, %s9
      $region28: #{swa_forward.1} parent=15 // pred_fallthru
        _
    $region16: #{swa_forward.1} parent=5 // pred_fallthru
      _
    %p161 = scmp.le.s32.totalorder 1, %s9
    %p162 = scmp.lt.s32.totalorder %s9, 9
    %p163 = pnand %p161, %p162
    %p164 = pneg %p163
    // Predicated region
    $region29: #{swa_forward.1} parent=5 // pred_check
      _
    $region30: #{swa_forward.1} parent=5 // pred_check_branch
      %166 = sbr.rel (%p163) target = $region32
    $region31: #{swa_forward.1} parent=5 // pred_region
      %s167 = ssub.s32 %s9, 1
      %s168 = smul.u32 2, %s14
      %p169 = scmp.lt.s32.totalorder %s168, 15
      %s170 = scalar_select %p169, %s168, 15
      %s171 = smul.addr %s170, 2
      %s172 = scalar_lea.vmem %s0, %s171
      %p173 = pneg %p35
      %p174 = pneg %p32
      %s175 = smul.u32 2, %s14
      %p176 = scmp.lt.s32.totalorder %s175, 15
      %s177 = scalar_select %p176, %s175, 15
      %s178 = smul.addr %s177, 25
      %s179 = smul.addr %s178, 2
      %s180 = scalar_lea.vmem %s1, %s179
      %p181 = pneg %p61
      %p182 = pneg %p58
      %s183 = smul.u32 2, %s14
      %p184 = scmp.lt.s32.totalorder %s183, 15
      %s185 = scalar_select %p184, %s183, 15
      %s186 = smul.addr %s185, 25
      %s187 = smul.addr %s186, 2
      %s188 = scalar_lea.vmem %s2, %s187
      %p189 = pneg %p87
      %p190 = pneg %p84
      %p191 = pneg %p113
      %p192 = pneg %p110
      %s193 = smul.u32 2, %s14
      %p194 = scmp.lt.s32.totalorder %s193, 15
      %s195 = scalar_select %p194, %s193, 15
      %s196 = smul.addr %s195, 4
      %s197 = scalar_lea.vmem %s3, %s196
      %s198 = smul.u32 2, %s14
      %p199 = scmp.lt.s32.totalorder %s198, 15
      %s200 = scalar_select %p199, %s198, 15
      %s201 = smul.addr %s200, 2
      %s202 = scalar_lea.vmem %s0, %s201
      %s203 = smul.u32 2, %s14
      %s204 = smul.u32 2, %s14
      %p205 = scmp.lt.s32.totalorder %s204, 15
      %s206 = scalar_select %p205, %s204, 15
      %s207 = smul.addr %s206, 25
      %s208 = smul.addr %s207, 2
      %s209 = scalar_lea.vmem %s1, %s208
      %s210 = smul.u32 2, %s14
      %s211 = smul.u32 2, %s14
      %p212 = scmp.lt.s32.totalorder %s211, 15
      %s213 = scalar_select %p212, %s211, 15
      %s214 = smul.addr %s213, 25
      %s215 = smul.addr %s214, 2
      %s216 = scalar_lea.vmem %s2, %s215
      %s217 = smul.u32 2, %s14
      %s218 = smul.u32 2, %s14
      %p219 = scmp.lt.s32.totalorder %s218, 15
      %s220 = scalar_select %p219, %s218, 15
      %s221 = smul.addr %s220, 4
      %s222 = scalar_lea.vmem %s3, %s221
      %s223 = smul.u32 2, %s14
      %v225 = vld [vmem:[%s202] sm:$0x3]
      %v226 = vld [vmem:[%s202 + $0x2] sm:$0x3]
      %v227 = vld [vmem:[%s209] sm:$0xff]
      %v228 = vld [vmem:[%s209 + $0x8] sm:$0xff]
      %v229 = vld [vmem:[%s209 + $0x10] sm:$0xff]
      %v230 = vld [vmem:[%s209 + $0x18] sm:$0xff]
      %v231 = vld [vmem:[%s209 + $0x20] sm:$0xff]
      %v232 = vld [vmem:[%s209 + $0x28] sm:$0xff]
      %v233 = vld [vmem:[%s209 + $0x30] sm:$0x3]
      %v234 = vld [vmem:[%s209 + $0x32] sm:$0xff]
      %v235 = vld [vmem:[%s209 + $0x3a] sm:$0xff]
      %v236 = vld [vmem:[%s209 + $0x42] sm:$0xff]
      %v237 = vld [vmem:[%s209 + $0x4a] sm:$0xff]
      %v238 = vld [vmem:[%s209 + $0x52] sm:$0xff]
      %v239 = vld [vmem:[%s209 + $0x5a] sm:$0xff]
      %v240 = vld [vmem:[%s209 + $0x62] sm:$0x3]
      %v241 = vld [vmem:[%s216] sm:$0xff]
      %v242 = vld [vmem:[%s216 + $0x8] sm:$0xff]
      %v243 = vld [vmem:[%s216 + $0x10] sm:$0xff]
      %v244 = vld [vmem:[%s216 + $0x18] sm:$0xff]
      %v245 = vld [vmem:[%s216 + $0x20] sm:$0xff]
      %v246 = vld [vmem:[%s216 + $0x28] sm:$0xff]
      %v247 = vld [vmem:[%s216 + $0x30] sm:$0x3]
      %v248 = vld [vmem:[%s216 + $0x32] sm:$0xff]
      %v249 = vld [vmem:[%s216 + $0x3a] sm:$0xff]
      %v250 = vld [vmem:[%s216 + $0x42] sm:$0xff]
      %v251 = vld [vmem:[%s216 + $0x4a] sm:$0xff]
      %v252 = vld [vmem:[%s216 + $0x52] sm:$0xff]
      %v253 = vld [vmem:[%s216 + $0x5a] sm:$0xff]
      %v254 = vld [vmem:[%s216 + $0x62] sm:$0x3]
      %255 = vxpose.xlu0.c.b16.start [1/8] %v225, 128
      %256 = vxpose.xlu0.c.b16.cont [2/8] 0, 128
      %257 = vxpose.xlu0.c.b16.cont [3/8] 0, 128
      %258 = vxpose.xlu0.c.b16.cont [4/8] 0, 128
      %259 = vxpose.xlu0.c.b16.cont [5/8] 0, 128
      %260 = vxpose.xlu0.c.b16.cont [6/8] 0, 128
      %261 = vxpose.xlu0.c.b16.cont [7/8] 0, 128
      %262 = vxpose.xlu0.c.b16.end [8/8] 0, 128
      %v263 = vpop.trf.xlu0
      %v264 = vpop.trf.xlu0
      %v265 = vpop.trf.xlu0
      %v266 = vpop.trf.xlu0
      %v267 = vpop.trf.xlu0
      %v268 = vpop.trf.xlu0
      %v269 = vpop.trf.xlu0
      %v270 = vpop.trf.xlu0
      %v278 = vcombine.high %v227, %v227
      %v280 = vunpack.c.l.s4 1983009808
      %v281 = vunpack.c.0.s8 %v280
      %v282 = vlaneseq
      %v283 = vshrl.u32 %v282, 7
      %v284 = vsub.s32 %v281, %v283
      %v285 = vrot.slane %v227, %v284
      %v287 = vunpack.c.l.s4 1983009808
      %v288 = vunpack.c.0.s8 %v287
      %v289 = vlaneseq
      %v290 = vshrl.u32 %v289, 7
      %v291 = vsub.s32 %v288, %v290
      %v292 = vrot.slane %v278, %v291
      %v293 = vcombine.high %v285, %v285
      %v294 = vcombine.high %v292, %v292
      %v295 = vcombine.high %v228, %v228
      %v297 = vunpack.c.l.s4 1983009808
      %v298 = vunpack.c.0.s8 %v297
      %v299 = vlaneseq
      %v300 = vshrl.u32 %v299, 7
      %v301 = vsub.s32 %v298, %v300
      %v302 = vrot.slane %v228, %v301
      %v304 = vunpack.c.l.s4 1983009808
      %v305 = vunpack.c.0.s8 %v304
      %v306 = vlaneseq
      %v307 = vshrl.u32 %v306, 7
      %v308 = vsub.s32 %v305, %v307
      %v309 = vrot.slane %v295, %v308
      %v310 = vcombine.high %v302, %v302
      %v311 = vcombine.high %v309, %v309
      %v312 = vcombine.high %v229, %v229
      %v314 = vunpack.c.l.s4 1983009808
      %v315 = vunpack.c.0.s8 %v314
      %v316 = vlaneseq
      %v317 = vshrl.u32 %v316, 7
      %v318 = vsub.s32 %v315, %v317
      %v319 = vrot.slane %v229, %v318
      %v321 = vunpack.c.l.s4 1983009808
      %v322 = vunpack.c.0.s8 %v321
      %v323 = vlaneseq
      %v324 = vshrl.u32 %v323, 7
      %v325 = vsub.s32 %v322, %v324
      %v326 = vrot.slane %v312, %v325
      %v327 = vcombine.high %v319, %v319
      %v328 = vcombine.high %v326, %v326
      %v329 = vcombine.high %v230, %v230
      %v331 = vunpack.c.l.s4 1983009808
      %v332 = vunpack.c.0.s8 %v331
      %v333 = vlaneseq
      %v334 = vshrl.u32 %v333, 7
      %v335 = vsub.s32 %v332, %v334
      %v336 = vrot.slane %v230, %v335
      %v338 = vunpack.c.l.s4 1983009808
      %v339 = vunpack.c.0.s8 %v338
      %v340 = vlaneseq
      %v341 = vshrl.u32 %v340, 7
      %v342 = vsub.s32 %v339, %v341
      %v343 = vrot.slane %v329, %v342
      %v344 = vcombine.high %v336, %v336
      %v345 = vcombine.high %v343, %v343
      %v346 = vcombine.high %v231, %v231
      %v348 = vunpack.c.l.s4 1983009808
      %v349 = vunpack.c.0.s8 %v348
      %v350 = vlaneseq
      %v351 = vshrl.u32 %v350, 7
      %v352 = vsub.s32 %v349, %v351
      %v353 = vrot.slane %v231, %v352
      %v355 = vunpack.c.l.s4 1983009808
      %v356 = vunpack.c.0.s8 %v355
      %v357 = vlaneseq
      %v358 = vshrl.u32 %v357, 7
      %v359 = vsub.s32 %v356, %v358
      %v360 = vrot.slane %v346, %v359
      %v361 = vcombine.high %v353, %v353
      %v362 = vcombine.high %v360, %v360
      %v363 = vcombine.high %v232, %v232
      %v365 = vunpack.c.l.s4 1983009808
      %v366 = vunpack.c.0.s8 %v365
      %v367 = vlaneseq
      %v368 = vshrl.u32 %v367, 7
      %v369 = vsub.s32 %v366, %v368
      %v370 = vrot.slane %v232, %v369
      %v372 = vunpack.c.l.s4 1983009808
      %v373 = vunpack.c.0.s8 %v372
      %v374 = vlaneseq
      %v375 = vshrl.u32 %v374, 7
      %v376 = vsub.s32 %v373, %v375
      %v377 = vrot.slane %v363, %v376
      %v378 = vcombine.high %v370, %v370
      %v379 = vcombine.high %v377, %v377
      %v381 = vunpack.c.l.s4 1983009808
      %v382 = vunpack.c.0.s8 %v381
      %v383 = vlaneseq
      %v384 = vshrl.u32 %v383, 7
      %v385 = vsub.s32 %v382, %v384
      %v386 = vrot.slane %v233, %v385
      %vm387 = vcmask 31744
      %v389 = vsel %vm387, %v263, 0
      %v392 = vsel %vm387, %v264, 0
      %v395 = vsel %vm387, %v265, 0
      %v398 = vsel %vm387, %v266, 0
      %vm400 = vcmask 1041408
      %v402 = vsel %vm400, %v285, 0
      %v405 = vsel %vm400, %v293, 0
      %v408 = vsel %vm400, %v292, 0
      %v411 = vsel %vm400, %v294, 0
      %v414 = vsel %vm400, %v302, 0
      %v417 = vsel %vm400, %v310, 0
      %v420 = vsel %vm400, %v309, 0
      %v423 = vsel %vm400, %v311, 0
      %v426 = vsel %vm400, %v319, 0
      %v429 = vsel %vm400, %v327, 0
      %v432 = vsel %vm400, %v326, 0
      %v435 = vsel %vm400, %v328, 0
      %v438 = vsel %vm400, %v336, 0
      %v441 = vsel %vm400, %v344, 0
      %v444 = vsel %vm400, %v343, 0
      %v447 = vsel %vm400, %v345, 0
      %v450 = vsel %vm400, %v353, 0
      %v453 = vsel %vm400, %v361, 0
      %v456 = vsel %vm400, %v360, 0
      %v459 = vsel %vm400, %v362, 0
      %v462 = vsel %vm400, %v370, 0
      %v465 = vsel %vm400, %v378, 0
      %v468 = vsel %vm400, %v377, 0
      %v471 = vsel %vm400, %v379, 0
      %v474 = vsel %vm400, %v386, 0
      %476 = vmatprep.subr.bf16.mxu0 %v405
      %477 = vmatpush1.bf16.msra.mxu0 %v402
      %478 = vmatprep.subr.bf16.mxu0 0
      %479 = vmatpush1.bf16.msra.mxu0 0
      %480 = vmatprep.subr.bf16.mxu0 0
      %481 = vmatpush1.bf16.msra.mxu0 0
      %482 = vmatprep.subr.bf16.mxu0 0
      %483 = vmatpush1.bf16.msra.mxu0 0
      %484 = vmatprep.subr.bf16.mxu0 0
      %485 = vmatpush1.bf16.msra.mxu0 0
      %486 = vmatprep.subr.bf16.mxu0 0
      %487 = vmatpush1.bf16.msra.mxu0 0
      %488 = vmatprep.subr.bf16.mxu0 0
      %489 = vmatpush1.bf16.msra.mxu0 0
      %490 = vmatprep.subr.bf16.mxu0 0
      %491 = vmatpush1.bf16.msra.mxu0 0
      %492 = vmatprep.subr.bf16.mxu0 0
      %493 = vmatpush1.bf16.msra.mxu0 0
      %494 = vmatprep.subr.bf16.mxu0 0
      %495 = vmatpush1.bf16.msra.mxu0 0
      %496 = vmatprep.subr.bf16.mxu0 0
      %497 = vmatpush1.bf16.msra.mxu0 0
      %498 = vmatprep.subr.bf16.mxu0 0
      %499 = vmatpush1.bf16.msra.mxu0 0
      %500 = vmatprep.subr.bf16.mxu0 0
      %501 = vmatpush1.bf16.msra.mxu0 0
      %502 = vmatprep.subr.bf16.mxu0 0
      %503 = vmatpush1.bf16.msra.mxu0 0
      %504 = vmatprep.subr.bf16.mxu0 0
      %505 = vmatpush1.bf16.msra.mxu0 0
      %506 = vmatprep.subr.bf16.mxu0 0
      %507 = vmatpush1.bf16.msra.mxu0 0
      %508 = vmatprep.mubr.bf16.mxu0 0
      %509 = vmatmul.mubr.bf16.gmra.mrb[0].mxu0 %v389
      %v510 = vpop.f32.mrb[0].mxu0
      %v511 = vadd.f32 0.0, %v510
      %v512 = vpop.f32.mrb[0].mxu0
      %v513 = vadd.f32 0.0, %v512
      %v514 = vpop.f32.mrb[0].mxu0
      %v515 = vadd.f32 0.0, %v514
      %v516 = vpop.f32.mrb[0].mxu0
      %v517 = vadd.f32 0.0, %v516
      %518 = vmatprep.mubr.bf16.mxu0 0
      %519 = vmatmul.mubr.bf16.gmra.mrb[0].mxu0 %v392
      %v520 = vpop.f32.mrb[0].mxu0
      %v521 = vadd.f32 0.0, %v520
      %v522 = vpop.f32.mrb[0].mxu0
      %v523 = vadd.f32 0.0, %v522
      %v524 = vpop.f32.mrb[0].mxu0
      %v525 = vadd.f32 0.0, %v524
      %v526 = vpop.f32.mrb[0].mxu0
      %v527 = vadd.f32 0.0, %v526
      %528 = vmatprep.mubr.bf16.mxu0 0
      %529 = vmatmul.mubr.bf16.gmra.mrb[0].mxu0 %v395
      %v530 = vpop.f32.mrb[0].mxu0
      %v531 = vadd.f32 0.0, %v530
      %v532 = vpop.f32.mrb[0].mxu0
      %v533 = vadd.f32 0.0, %v532
      %v534 = vpop.f32.mrb[0].mxu0
      %v535 = vadd.f32 0.0, %v534
      %v536 = vpop.f32.mrb[0].mxu0
      %v537 = vadd.f32 0.0, %v536
      %538 = vmatprep.mubr.bf16.mxu0 0
      %539 = vmatmul.mubr.bf16.gmra.mrb[0].mxu0 %v398
      %v540 = vpop.f32.mrb[0].mxu0
      %v541 = vadd.f32 0.0, %v540
      %v542 = vpop.f32.mrb[0].mxu0
      %v543 = vadd.f32 0.0, %v542
      %v544 = vpop.f32.mrb[0].mxu0
      %v545 = vadd.f32 0.0, %v544
      %v546 = vpop.f32.mrb[0].mxu0
      %v547 = vadd.f32 0.0, %v546
      %548 = vdwg.mxu0
      %549 = vmatprep.subr.bf16.mxu0 %v411
      %550 = vmatpush1.bf16.msra.mxu0 %v408
      %551 = vmatprep.subr.bf16.mxu0 0
      %552 = vmatpush1.bf16.msra.mxu0 0
      %553 = vmatprep.subr.bf16.mxu0 0
      %554 = vmatpush1.bf16.msra.mxu0 0
      %555 = vmatprep.subr.bf16.mxu0 0
      %556 = vmatpush1.bf16.msra.mxu0 0
      %557 = vmatprep.subr.bf16.mxu0 0
      %558 = vmatpush1.bf16.msra.mxu0 0
      %559 = vmatprep.subr.bf16.mxu0 0
      %560 = vmatpush1.bf16.msra.mxu0 0
      %561 = vmatprep.subr.bf16.mxu0 0
      %562 = vmatpush1.bf16.msra.mxu0 0
      %563 = vmatprep.subr.bf16.mxu0 0
      %564 = vmatpush1.bf16.msra.mxu0 0
      %565 = vmatprep.subr.bf16.mxu0 0
      %566 = vmatpush1.bf16.msra.mxu0 0
      %567 = vmatprep.subr.bf16.mxu0 0
      %568 = vmatpush1.bf16.msra.mxu0 0
      %569 = vmatprep.subr.bf16.mxu0 0
      %570 = vmatpush1.bf16.msra.mxu0 0
      %571 = vmatprep.subr.bf16.mxu0 0
      %572 = vmatpush1.bf16.msra.mxu0 0
      %573 = vmatprep.subr.bf16.mxu0 0
      %574 = vmatpush1.bf16.msra.mxu0 0
      %575 = vmatprep.subr.bf16.mxu0 0
      %576 = vmatpush1.bf16.msra.mxu0 0
      %577 = vmatprep.subr.bf16.mxu0 0
      %578 = vmatpush1.bf16.msra.mxu0 0
      %579 = vmatprep.subr.bf16.mxu0 0
      %580 = vmatpush1.bf16.msra.mxu0 0
      %581 = vmatprep.mubr.bf16.mxu0 0
      %582 = vmatmul.mubr.bf16.gmra.mrb[0].mxu0 %v389
      %v583 = vpop.f32.mrb[0].mxu0
      %v584 = vadd.f32 0.0, %v583
      %v585 = vpop.f32.mrb[0].mxu0
      %v586 = vadd.f32 0.0, %v585
      %v587 = vpop.f32.mrb[0].mxu0
      %v588 = vadd.f32 0.0, %v587
      %v589 = vpop.f32.mrb[0].mxu0
      %v590 = vadd.f32 0.0, %v589
      %591 = vmatprep.mubr.bf16.mxu0 0
      %592 = vmatmul.mubr.bf16.gmra.mrb[0].mxu0 %v392
      %v593 = vpop.f32.mrb[0].mxu0
      %v594 = vadd.f32 0.0, %v593
      %v595 = vpop.f32.mrb[0].mxu0
      %v596 = vadd.f32 0.0, %v595
      %v597 = vpop.f32.mrb[0].mxu0
      %v598 = vadd.f32 0.0, %v597
      %v599 = vpop.f32.mrb[0].mxu0
      %v600 = vadd.f32 0.0, %v599
      %601 = vmatprep.mubr.bf16.mxu0 0
      %602 = vmatmul.mubr.bf16.gmra.mrb[0].mxu0 %v395
      %v603 = vpop.f32.mrb[0].mxu0
      %v604 = vadd.f32 0.0, %v603
      %v605 = vpop.f32.mrb[0].mxu0
      %v606 = vadd.f32 0.0, %v605
      %v607 = vpop.f32.mrb[0].mxu0
      %v608 = vadd.f32 0.0, %v607
      %v609 = vpop.f32.mrb[0].mxu0
      %v610 = vadd.f32 0.0, %v609
      %611 = vmatprep.mubr.bf16.mxu0 0
      %612 = vmatmul.mubr.bf16.gmra.mrb[0].mxu0 %v398
      %v613 = vpop.f32.mrb[0].mxu0
      %v614 = vadd.f32 0.0, %v613
      %v615 = vpop.f32.mrb[0].mxu0
      %v616 = vadd.f32 0.0, %v615
      %v617 = vpop.f32.mrb[0].mxu0
      %v618 = vadd.f32 0.0, %v617
      %v619 = vpop.f32.mrb[0].mxu0
      %v620 = vadd.f32 0.0, %v619
      %621 = vdwg.mxu0
      %622 = vmatprep.subr.bf16.mxu0 %v417
      %623 = vmatpush1.bf16.msra.mxu0 %v414
      %624 = vmatprep.subr.bf16.mxu0 0
      %625 = vmatpush1.bf16.msra.mxu0 0
      %626 = vmatprep.subr.bf16.mxu0 0
      %627 = vmatpush1.bf16.msra.mxu0 0
      %628 = vmatprep.subr.bf16.mxu0 0
      %629 = vmatpush1.bf16.msra.mxu0 0
      %630 = vmatprep.subr.bf16.mxu0 0
      %631 = vmatpush1.bf16.msra.mxu0 0
      %632 = vmatprep.subr.bf16.mxu0 0
      %633 = vmatpush1.bf16.msra.mxu0 0
      %634 = vmatprep.subr.bf16.mxu0 0
      %635 = vmatpush1.bf16.msra.mxu0 0
      %636 = vmatprep.subr.bf16.mxu0 0
      %637 = vmatpush1.bf16.msra.mxu0 0
      %638 = vmatprep.subr.bf16.mxu0 0
      %639 = vmatpush1.bf16.msra.mxu0 0
      %640 = vmatprep.subr.bf16.mxu0 0
      %641 = vmatpush1.bf16.msra.mxu0 0
      %642 = vmatprep.subr.bf16.mxu0 0
      %643 = vmatpush1.bf16.msra.mxu0 0
      %644 = vmatprep.subr.bf16.mxu0 0
      %645 = vmatpush1.bf16.msra.mxu0 0
      %646 = vmatprep.subr.bf16.mxu0 0
      %647 = vmatpush1.bf16.msra.mxu0 0
      %648 = vmatprep.subr.bf16.mxu0 0
      %649 = vmatpush1.bf16.msra.mxu0 0
      %650 = vmatprep.subr.bf16.mxu0 0
      %651 = vmatpush1.bf16.msra.mxu0 0
      %652 = vmatprep.subr.bf16.mxu0 0
      %653 = vmatpush1.bf16.msra.mxu0 0
      %654 = vmatprep.mubr.bf16.mxu0 0
      %655 = vmatmul.mubr.bf16.gmra.mrb[0].mxu0 %v389
      %v656 = vpop.f32.mrb[0].mxu0
      %v657 = vadd.f32 0.0, %v656
      %v658 = vpop.f32.mrb[0].mxu0
      %v659 = vadd.f32 0.0, %v658
      %v660 = vpop.f32.mrb[0].mxu0
      %v661 = vadd.f32 0.0, %v660
      %v662 = vpop.f32.mrb[0].mxu0
      %v663 = vadd.f32 0.0, %v662
      %664 = vmatprep.mubr.bf16.mxu0 0
      %665 = vmatmul.mubr.bf16.gmra.mrb[0].mxu0 %v392
      %v666 = vpop.f32.mrb[0].mxu0
      %v667 = vadd.f32 0.0, %v666
      %v668 = vpop.f32.mrb[0].mxu0
      %v669 = vadd.f32 0.0, %v668
      %v670 = vpop.f32.mrb[0].mxu0
      %v671 = vadd.f32 0.0, %v670
      %v672 = vpop.f32.mrb[0].mxu0
      %v673 = vadd.f32 0.0, %v672
      %674 = vmatprep.mubr.bf16.mxu0 0
      %675 = vmatmul.mubr.bf16.gmra.mrb[0].mxu0 %v395
      %v676 = vpop.f32.mrb[0].mxu0
      %v677 = vadd.f32 0.0, %v676
      %v678 = vpop.f32.mrb[0].mxu0
      %v679 = vadd.f32 0.0, %v678
      %v680 = vpop.f32.mrb[0].mxu0
      %v681 = vadd.f32 0.0, %v680
      %v682 = vpop.f32.mrb[0].mxu0
      %v683 = vadd.f32 0.0, %v682
      %684 = vmatprep.mubr.bf16.mxu0 0
      %685 = vmatmul.mubr.bf16.gmra.mrb[0].mxu0 %v398
      %v686 = vpop.f32.mrb[0].mxu0
      %v687 = vadd.f32 0.0, %v686
      %v688 = vpop.f32.mrb[0].mxu0
      %v689 = vadd.f32 0.0, %v688
      %v690 = vpop.f32.mrb[0].mxu0
      %v691 = vadd.f32 0.0, %v690
      %v692 = vpop.f32.mrb[0].mxu0
      %v693 = vadd.f32 0.0, %v692
      %694 = vdwg.mxu0
      %695 = vmatprep.subr.bf16.mxu0 %v423
      %696 = vmatpush1.bf16.msra.mxu0 %v420
      %697 = vmatprep.subr.bf16.mxu0 0
      %698 = vmatpush1.bf16.msra.mxu0 0
      %699 = vmatprep.subr.bf16.mxu0 0
      %700 = vmatpush1.bf16.msra.mxu0 0
      %701 = vmatprep.subr.bf16.mxu0 0
      %702 = vmatpush1.bf16.msra.mxu0 0
      %703 = vmatprep.subr.bf16.mxu0 0
      %704 = vmatpush1.bf16.msra.mxu0 0
      %705 = vmatprep.subr.bf16.mxu0 0
      %706 = vmatpush1.bf16.msra.mxu0 0
      %707 = vmatprep.subr.bf16.mxu0 0
      %708 = vmatpush1.bf16.msra.mxu0 0
      %709 = vmatprep.subr.bf16.mxu0 0
      %710 = vmatpush1.bf16.msra.mxu0 0
      %711 = vmatprep.subr.bf16.mxu0 0
      %712 = vmatpush1.bf16.msra.mxu0 0
      %713 = vmatprep.subr.bf16.mxu0 0
      %714 = vmatpush1.bf16.msra.mxu0 0
      %715 = vmatprep.subr.bf16.mxu0 0
      %716 = vmatpush1.bf16.msra.mxu0 0
      %717 = vmatprep.subr.bf16.mxu0 0
      %718 = vmatpush1.bf16.msra.mxu0 0
      %719 = vmatprep.subr.bf16.mxu0 0
      %720 = vmatpush1.bf16.msra.mxu0 0
      %721 = vmatprep.subr.bf16.mxu0 0
      %722 = vmatpush1.bf16.msra.mxu0 0
      %723 = vmatprep.subr.bf16.mxu0 0
      %724 = vmatpush1.bf16.msra.mxu0 0
      %725 = vmatprep.subr.bf16.mxu0 0
      %726 = vmatpush1.bf16.msra.mxu0 0
      %727 = vmatprep.mubr.bf16.mxu0 0
      %728 = vmatmul.mubr.bf16.gmra.mrb[0].mxu0 %v389
      %v729 = vpop.f32.mrb[0].mxu0
      %v730 = vadd.f32 0.0, %v729
      %v731 = vpop.f32.mrb[0].mxu0
      %v732 = vadd.f32 0.0, %v731
      %v733 = vpop.f32.mrb[0].mxu0
      %v734 = vadd.f32 0.0, %v733
      %v735 = vpop.f32.mrb[0].mxu0
      %v736 = vadd.f32 0.0, %v735
      %737 = vmatprep.mubr.bf16.mxu0 0
      %738 = vmatmul.mubr.bf16.gmra.mrb[0].mxu0 %v392
      %v739 = vpop.f32.mrb[0].mxu0
      %v740 = vadd.f32 0.0, %v739
      %v741 = vpop.f32.mrb[0].mxu0
      %v742 = vadd.f32 0.0, %v741
      %v743 = vpop.f32.mrb[0].mxu0
      %v744 = vadd.f32 0.0, %v743
      %v745 = vpop.f32.mrb[0].mxu0
      %v746 = vadd.f32 0.0, %v745
      %747 = vmatprep.mubr.bf16.mxu0 0
      %748 = vmatmul.mubr.bf16.gmra.mrb[0].mxu0 %v395
      %v749 = vpop.f32.mrb[0].mxu0
      %v750 = vadd.f32 0.0, %v749
      %v751 = vpop.f32.mrb[0].mxu0
      %v752 = vadd.f32 0.0, %v751
      %v753 = vpop.f32.mrb[0].mxu0
      %v754 = vadd.f32 0.0, %v753
      %v755 = vpop.f32.mrb[0].mxu0
      %v756 = vadd.f32 0.0, %v755
      %757 = vmatprep.mubr.bf16.mxu0 0
      %758 = vmatmul.mubr.bf16.gmra.mrb[0].mxu0 %v398
      %v759 = vpop.f32.mrb[0].mxu0
      %v760 = vadd.f32 0.0, %v759
      %v761 = vpop.f32.mrb[0].mxu0
      %v762 = vadd.f32 0.0, %v761
      %v763 = vpop.f32.mrb[0].mxu0
      %v764 = vadd.f32 0.0, %v763
      %v765 = vpop.f32.mrb[0].mxu0
      %v766 = vadd.f32 0.0, %v765
      %767 = vdwg.mxu0
      %768 = vmatprep.subr.bf16.mxu0 %v429
      %769 = vmatpush1.bf16.msra.mxu0 %v426
      %770 = vmatprep.subr.bf16.mxu0 0
      %771 = vmatpush1.bf16.msra.mxu0 0
      %772 = vmatprep.subr.bf16.mxu0 0
      %773 = vmatpush1.bf16.msra.mxu0 0
      %774 = vmatprep.subr.bf16.mxu0 0
      %775 = vmatpush1.bf16.msra.mxu0 0
      %776 = vmatprep.subr.bf16.mxu0 0
      %777 = vmatpush1.bf16.msra.mxu0 0
      %778 = vmatprep.subr.bf16.mxu0 0
      %779 = vmatpush1.bf16.msra.mxu0 0
      %780 = vmatprep.subr.bf16.mxu0 0
      %781 = vmatpush1.bf16.msra.mxu0 0
      %782 = vmatprep.subr.bf16.mxu0 0
      %783 = vmatpush1.bf16.msra.mxu0 0
      %784 = vmatprep.subr.bf16.mxu0 0
      %785 = vmatpush1.bf16.msra.mxu0 0
      %786 = vmatprep.subr.bf16.mxu0 0
      %787 = vmatpush1.bf16.msra.mxu0 0
      %788 = vmatprep.subr.bf16.mxu0 0
      %789 = vmatpush1.bf16.msra.mxu0 0
      %790 = vmatprep.subr.bf16.mxu0 0
      %791 = vmatpush1.bf16.msra.mxu0 0
      %792 = vmatprep.subr.bf16.mxu0 0
      %793 = vmatpush1.bf16.msra.mxu0 0
      %794 = vmatprep.subr.bf16.mxu0 0
      %795 = vmatpush1.bf16.msra.mxu0 0
      %796 = vmatprep.subr.bf16.mxu0 0
      %797 = vmatpush1.bf16.msra.mxu0 0
      %798 = vmatprep.subr.bf16.mxu0 0
      %799 = vmatpush1.bf16.msra.mxu0 0
      %800 = vmatprep.mubr.bf16.mxu0 0
      %801 = vmatmul.mubr.bf16.gmra.mrb[0].mxu0 %v389
      %v802 = vpop.f32.mrb[0].mxu0
      %v803 = vadd.f32 0.0, %v802
      %v804 = vpop.f32.mrb[0].mxu0
      %v805 = vadd.f32 0.0, %v804
      %v806 = vpop.f32.mrb[0].mxu0
      %v807 = vadd.f32 0.0, %v806
      %v808 = vpop.f32.mrb[0].mxu0
      %v809 = vadd.f32 0.0, %v808
      %810 = vmatprep.mubr.bf16.mxu0 0
      %811 = vmatmul.mubr.bf16.gmra.mrb[0].mxu0 %v392
      %v812 = vpop.f32.mrb[0].mxu0
      %v813 = vadd.f32 0.0, %v812
      %v814 = vpop.f32.mrb[0].mxu0
      %v815 = vadd.f32 0.0, %v814
      %v816 = vpop.f32.mrb[0].mxu0
      %v817 = vadd.f32 0.0, %v816
      %v818 = vpop.f32.mrb[0].mxu0
      %v819 = vadd.f32 0.0, %v818
      %820 = vmatprep.mubr.bf16.mxu0 0
      %821 = vmatmul.mubr.bf16.gmra.mrb[0].mxu0 %v395
      %v822 = vpop.f32.mrb[0].mxu0
      %v823 = vadd.f32 0.0, %v822
      %v824 = vpop.f32.mrb[0].mxu0
      %v825 = vadd.f32 0.0, %v824
      %v826 = vpop.f32.mrb[0].mxu0
      %v827 = vadd.f32 0.0, %v826
      %v828 = vpop.f32.mrb[0].mxu0
      %v829 = vadd.f32 0.0, %v828
      %830 = vmatprep.mubr.bf16.mxu0 0
      %831 = vmatmul.mubr.bf16.gmra.mrb[0].mxu0 %v398
      %v832 = vpop.f32.mrb[0].mxu0
      %v833 = vadd.f32 0.0, %v832
      %v834 = vpop.f32.mrb[0].mxu0
      %v835 = vadd.f32 0.0, %v834
      %v836 = vpop.f32.mrb[0].mxu0
      %v837 = vadd.f32 0.0, %v836
      %v838 = vpop.f32.mrb[0].mxu0
      %v839 = vadd.f32 0.0, %v838
      %840 = vdwg.mxu0
      %841 = vmatprep.subr.bf16.mxu0 %v435
      %842 = vmatpush1.bf16.msra.mxu0 %v432
      %843 = vmatprep.subr.bf16.mxu0 0
      %844 = vmatpush1.bf16.msra.mxu0 0
      %845 = vmatprep.subr.bf16.mxu0 0
      %846 = vmatpush1.bf16.msra.mxu0 0
      %847 = vmatprep.subr.bf16.mxu0 0
      %848 = vmatpush1.bf16.msra.mxu0 0
      %849 = vmatprep.subr.bf16.mxu0 0
      %850 = vmatpush1.bf16.msra.mxu0 0
      %851 = vmatprep.subr.bf16.mxu0 0
      %852 = vmatpush1.bf16.msra.mxu0 0
      %853 = vmatprep.subr.bf16.mxu0 0
      %854 = vmatpush1.bf16.msra.mxu0 0
      %855 = vmatprep.subr.bf16.mxu0 0
      %856 = vmatpush1.bf16.msra.mxu0 0
      %857 = vmatprep.subr.bf16.mxu0 0
      %858 = vmatpush1.bf16.msra.mxu0 0
      %859 = vmatprep.subr.bf16.mxu0 0
      %860 = vmatpush1.bf16.msra.mxu0 0
      %861 = vmatprep.subr.bf16.mxu0 0
      %862 = vmatpush1.bf16.msra.mxu0 0
      %863 = vmatprep.subr.bf16.mxu0 0
      %864 = vmatpush1.bf16.msra.mxu0 0
      %865 = vmatprep.subr.bf16.mxu0 0
      %866 = vmatpush1.bf16.msra.mxu0 0
      %867 = vmatprep.subr.bf16.mxu0 0
      %868 = vmatpush1.bf16.msra.mxu0 0
      %869 = vmatprep.subr.bf16.mxu0 0
      %870 = vmatpush1.bf16.msra.mxu0 0
      %871 = vmatprep.subr.bf16.mxu0 0
      %872 = vmatpush1.bf16.msra.mxu0 0
      %873 = vmatprep.mubr.bf16.mxu0 0
      %874 = vmatmul.mubr.bf16.gmra.mrb[0].mxu0 %v389
      %v875 = vpop.f32.mrb[0].mxu0
      %v876 = vadd.f32 0.0, %v875
      %v877 = vpop.f32.mrb[0].mxu0
      %v878 = vadd.f32 0.0, %v877
      %v879 = vpop.f32.mrb[0].mxu0
      %v880 = vadd.f32 0.0, %v879
      %v881 = vpop.f32.mrb[0].mxu0
      %v882 = vadd.f32 0.0, %v881
      %883 = vmatprep.mubr.bf16.mxu0 0
      %884 = vmatmul.mubr.bf16.gmra.mrb[0].mxu0 %v392
      %v885 = vpop.f32.mrb[0].mxu0
      %v886 = vadd.f32 0.0, %v885
      %v887 = vpop.f32.mrb[0].mxu0
      %v888 = vadd.f32 0.0, %v887
      %v889 = vpop.f32.mrb[0].mxu0
      %v890 = vadd.f32 0.0, %v889
      %v891 = vpop.f32.mrb[0].mxu0
      %v892 = vadd.f32 0.0, %v891
      %893 = vmatprep.mubr.bf16.mxu0 0
      %894 = vmatmul.mubr.bf16.gmra.mrb[0].mxu0 %v395
      %v895 = vpop.f32.mrb[0].mxu0
      %v896 = vadd.f32 0.0, %v895
      %v897 = vpop.f32.mrb[0].mxu0
      %v898 = vadd.f32 0.0, %v897
      %v899 = vpop.f32.mrb[0].mxu0
      %v900 = vadd.f32 0.0, %v899
      %v901 = vpop.f32.mrb[0].mxu0
      %v902 = vadd.f32 0.0, %v901
      %903 = vmatprep.mubr.bf16.mxu0 0
      %904 = vmatmul.mubr.bf16.gmra.mrb[0].mxu0 %v398
      %v905 = vpop.f32.mrb[0].mxu0
      %v906 = vadd.f32 0.0, %v905
      %v907 = vpop.f32.mrb[0].mxu0
      %v908 = vadd.f32 0.0, %v907
      %v909 = vpop.f32.mrb[0].mxu0
      %v910 = vadd.f32 0.0, %v909
      %v911 = vpop.f32.mrb[0].mxu0
      %v912 = vadd.f32 0.0, %v911
      %913 = vdwg.mxu0
      %914 = vmatprep.subr.bf16.mxu0 %v441
      %915 = vmatpush1.bf16.msra.mxu0 %v438
      %916 = vmatprep.subr.bf16.mxu0 0
      %917 = vmatpush1.bf16.msra.mxu0 0
      %918 = vmatprep.subr.bf16.mxu0 0
      %919 = vmatpush1.bf16.msra.mxu0 0
      %920 = vmatprep.subr.bf16.mxu0 0
      %921 = vmatpush1.bf16.msra.mxu0 0
      %922 = vmatprep.subr.bf16.mxu0 0
      %923 = vmatpush1.bf16.msra.mxu0 0
      %924 = vmatprep.subr.bf16.mxu0 0
      %925 = vmatpush1.bf16.msra.mxu0 0
      %926 = vmatprep.subr.bf16.mxu0 0
      %927 = vmatpush1.bf16.msra.mxu0 0
      %928 = vmatprep.subr.bf16.mxu0 0
      %929 = vmatpush1.bf16.msra.mxu0 0
      %930 = vmatprep.subr.bf16.mxu0 0
      %931 = vmatpush1.bf16.msra.mxu0 0
      %932 = vmatprep.subr.bf16.mxu0 0
      %933 = vmatpush1.bf16.msra.mxu0 0
      %934 = vmatprep.subr.bf16.mxu0 0
      %935 = vmatpush1.bf16.msra.mxu0 0
      %936 = vmatprep.subr.bf16.mxu0 0
      %937 = vmatpush1.bf16.msra.mxu0 0
      %938 = vmatprep.subr.bf16.mxu0 0
      %939 = vmatpush1.bf16.msra.mxu0 0
      %940 = vmatprep.subr.bf16.mxu0 0
      %941 = vmatpush1.bf16.msra.mxu0 0
      %942 = vmatprep.subr.bf16.mxu0 0
      %943 = vmatpush1.bf16.msra.mxu0 0
      %944 = vmatprep.subr.bf16.mxu0 0
      %945 = vmatpush1.bf16.msra.mxu0 0
      %946 = vmatprep.mubr.bf16.mxu0 0
      %947 = vmatmul.mubr.bf16.gmra.mrb[0].mxu0 %v389
      %v948 = vpop.f32.mrb[0].mxu0
      %v949 = vadd.f32 0.0, %v948
      %v950 = vpop.f32.mrb[0].mxu0
      %v951 = vadd.f32 0.0, %v950
      %v952 = vpop.f32.mrb[0].mxu0
      %v953 = vadd.f32 0.0, %v952
      %v954 = vpop.f32.mrb[0].mxu0
      %v955 = vadd.f32 0.0, %v954
      %956 = vmatprep.mubr.bf16.mxu0 0
      %957 = vmatmul.mubr.bf16.gmra.mrb[0].mxu0 %v392
      %v958 = vpop.f32.mrb[0].mxu0
      %v959 = vadd.f32 0.0, %v958
      %v960 = vpop.f32.mrb[0].mxu0
      %v961 = vadd.f32 0.0, %v960
      %v962 = vpop.f32.mrb[0].mxu0
      %v963 = vadd.f32 0.0, %v962
      %v964 = vpop.f32.mrb[0].mxu0
      %v965 = vadd.f32 0.0, %v964
      %966 = vmatprep.mubr.bf16.mxu0 0
      %967 = vmatmul.mubr.bf16.gmra.mrb[0].mxu0 %v395
      %v968 = vpop.f32.mrb[0].mxu0
      %v969 = vadd.f32 0.0, %v968
      %v970 = vpop.f32.mrb[0].mxu0
      %v971 = vadd.f32 0.0, %v970
      %v972 = vpop.f32.mrb[0].mxu0
      %v973 = vadd.f32 0.0, %v972
      %v974 = vpop.f32.mrb[0].mxu0
      %v975 = vadd.f32 0.0, %v974
      %976 = vmatprep.mubr.bf16.mxu0 0
      %977 = vmatmul.mubr.bf16.gmra.mrb[0].mxu0 %v398
      %v978 = vpop.f32.mrb[0].mxu0
      %v979 = vadd.f32 0.0, %v978
      %v980 = vpop.f32.mrb[0].mxu0
      %v981 = vadd.f32 0.0, %v980
      %v982 = vpop.f32.mrb[0].mxu0
      %v983 = vadd.f32 0.0, %v982
      %v984 = vpop.f32.mrb[0].mxu0
      %v985 = vadd.f32 0.0, %v984
      %986 = vdwg.mxu0
      %987 = vmatprep.subr.bf16.mxu0 %v447
      %988 = vmatpush1.bf16.msra.mxu0 %v444
      %989 = vmatprep.subr.bf16.mxu0 0
      %990 = vmatpush1.bf16.msra.mxu0 0
      %991 = vmatprep.subr.bf16.mxu0 0
      %992 = vmatpush1.bf16.msra.mxu0 0
      %993 = vmatprep.subr.bf16.mxu0 0
      %994 = vmatpush1.bf16.msra.mxu0 0
      %995 = vmatprep.subr.bf16.mxu0 0
      %996 = vmatpush1.bf16.msra.mxu0 0
      %997 = vmatprep.subr.bf16.mxu0 0
      %998 = vmatpush1.bf16.msra.mxu0 0
      %999 = vmatprep.subr.bf16.mxu0 0
      %1000 = vmatpush1.bf16.msra.mxu0 0
      %1001 = vmatprep.subr.bf16.mxu0 0
      %1002 = vmatpush1.bf16.msra.mxu0 0
      %1003 = vmatprep.subr.bf16.mxu0 0
      %1004 = vmatpush1.bf16.msra.mxu0 0
      %1005 = vmatprep.subr.bf16.mxu0 0
      %1006 = vmatpush1.bf16.msra.mxu0 0
      %1007 = vmatprep.subr.bf16.mxu0 0
      %1008 = vmatpush1.bf16.msra.mxu0 0
      %1009 = vmatprep.subr.bf16.mxu0 0
      %1010 = vmatpush1.bf16.msra.mxu0 0
      %1011 = vmatprep.subr.bf16.mxu0 0
      %1012 = vmatpush1.bf16.msra.mxu0 0
      %1013 = vmatprep.subr.bf16.mxu0 0
      %1014 = vmatpush1.bf16.msra.mxu0 0
      %1015 = vmatprep.subr.bf16.mxu0 0
      %1016 = vmatpush1.bf16.msra.mxu0 0
      %1017 = vmatprep.subr.bf16.mxu0 0
      %1018 = vmatpush1.bf16.msra.mxu0 0
      %1019 = vmatprep.mubr.bf16.mxu0 0
      %1020 = vmatmul.mubr.bf16.gmra.mrb[0].mxu0 %v389
      %v1021 = vpop.f32.mrb[0].mxu0
      %v1022 = vadd.f32 0.0, %v1021
      %v1023 = vpop.f32.mrb[0].mxu0
      %v1024 = vadd.f32 0.0, %v1023
      %v1025 = vpop.f32.mrb[0].mxu0
      %v1026 = vadd.f32 0.0, %v1025
      %v1027 = vpop.f32.mrb[0].mxu0
      %v1028 = vadd.f32 0.0, %v1027
      %1029 = vmatprep.mubr.bf16.mxu0 0
      %1030 = vmatmul.mubr.bf16.gmra.mrb[0].mxu0 %v392
      %v1031 = vpop.f32.mrb[0].mxu0
      %v1032 = vadd.f32 0.0, %v1031
      %v1033 = vpop.f32.mrb[0].mxu0
      %v1034 = vadd.f32 0.0, %v1033
      %v1035 = vpop.f32.mrb[0].mxu0
      %v1036 = vadd.f32 0.0, %v1035
      %v1037 = vpop.f32.mrb[0].mxu0
      %v1038 = vadd.f32 0.0, %v1037
      %1039 = vmatprep.mubr.bf16.mxu0 0
      %1040 = vmatmul.mubr.bf16.gmra.mrb[0].mxu0 %v395
      %v1041 = vpop.f32.mrb[0].mxu0
      %v1042 = vadd.f32 0.0, %v1041
      %v1043 = vpop.f32.mrb[0].mxu0
      %v1044 = vadd.f32 0.0, %v1043
      %v1045 = vpop.f32.mrb[0].mxu0
      %v1046 = vadd.f32 0.0, %v1045
      %v1047 = vpop.f32.mrb[0].mxu0
      %v1048 = vadd.f32 0.0, %v1047
      %1049 = vmatprep.mubr.bf16.mxu0 0
      %1050 = vmatmul.mubr.bf16.gmra.mrb[0].mxu0 %v398
      %v1051 = vpop.f32.mrb[0].mxu0
      %v1052 = vadd.f32 0.0, %v1051
      %v1053 = vpop.f32.mrb[0].mxu0
      %v1054 = vadd.f32 0.0, %v1053
      %v1055 = vpop.f32.mrb[0].mxu0
      %v1056 = vadd.f32 0.0, %v1055
      %v1057 = vpop.f32.mrb[0].mxu0
      %v1058 = vadd.f32 0.0, %v1057
      %1059 = vdwg.mxu0
      %1060 = vmatprep.subr.bf16.mxu0 %v453
      %1061 = vmatpush1.bf16.msra.mxu0 %v450
      %1062 = vmatprep.subr.bf16.mxu0 0
      %1063 = vmatpush1.bf16.msra.mxu0 0
      %1064 = vmatprep.subr.bf16.mxu0 0
      %1065 = vmatpush1.bf16.msra.mxu0 0
      %1066 = vmatprep.subr.bf16.mxu0 0
      %1067 = vmatpush1.bf16.msra.mxu0 0
      %1068 = vmatprep.subr.bf16.mxu0 0
      %1069 = vmatpush1.bf16.msra.mxu0 0
      %1070 = vmatprep.subr.bf16.mxu0 0
      %1071 = vmatpush1.bf16.msra.mxu0 0
      %1072 = vmatprep.subr.bf16.mxu0 0
      %1073 = vmatpush1.bf16.msra.mxu0 0
      %1074 = vmatprep.subr.bf16.mxu0 0
      %1075 = vmatpush1.bf16.msra.mxu0 0
      %1076 = vmatprep.subr.bf16.mxu0 0
      %1077 = vmatpush1.bf16.msra.mxu0 0
      %1078 = vmatprep.subr.bf16.mxu0 0
      %1079 = vmatpush1.bf16.msra.mxu0 0
      %1080 = vmatprep.subr.bf16.mxu0 0
      %1081 = vmatpush1.bf16.msra.mxu0 0
      %1082 = vmatprep.subr.bf16.mxu0 0
      %1083 = vmatpush1.bf16.msra.mxu0 0
      %1084 = vmatprep.subr.bf16.mxu0 0
      %1085 = vmatpush1.bf16.msra.mxu0 0
      %1086 = vmatprep.subr.bf16.mxu0 0
      %1087 = vmatpush1.bf16.msra.mxu0 0
      %1088 = vmatprep.subr.bf16.mxu0 0
      %1089 = vmatpush1.bf16.msra.mxu0 0
      %1090 = vmatprep.subr.bf16.mxu0 0
      %1091 = vmatpush1.bf16.msra.mxu0 0
      %1092 = vmatprep.mubr.bf16.mxu0 0
      %1093 = vmatmul.mubr.bf16.gmra.mrb[0].mxu0 %v389
      %v1094 = vpop.f32.mrb[0].mxu0
      %v1095 = vadd.f32 0.0, %v1094
      %v1096 = vpop.f32.mrb[0].mxu0
      %v1097 = vadd.f32 0.0, %v1096
      %v1098 = vpop.f32.mrb[0].mxu0
      %v1099 = vadd.f32 0.0, %v1098
      %v1100 = vpop.f32.mrb[0].mxu0
      %v1101 = vadd.f32 0.0, %v1100
      %1102 = vmatprep.mubr.bf16.mxu0 0
      %1103 = vmatmul.mubr.bf16.gmra.mrb[0].mxu0 %v392
      %v1104 = vpop.f32.mrb[0].mxu0
      %v1105 = vadd.f32 0.0, %v1104
      %v1106 = vpop.f32.mrb[0].mxu0
      %v1107 = vadd.f32 0.0, %v1106
      %v1108 = vpop.f32.mrb[0].mxu0
      %v1109 = vadd.f32 0.0, %v1108
      %v1110 = vpop.f32.mrb[0].mxu0
      %v1111 = vadd.f32 0.0, %v1110
      %1112 = vmatprep.mubr.bf16.mxu0 0
      %1113 = vmatmul.mubr.bf16.gmra.mrb[0].mxu0 %v395
      %v1114 = vpop.f32.mrb[0].mxu0
      %v1115 = vadd.f32 0.0, %v1114
      %v1116 = vpop.f32.mrb[0].mxu0
      %v1117 = vadd.f32 0.0, %v1116
      %v1118 = vpop.f32.mrb[0].mxu0
      %v1119 = vadd.f32 0.0, %v1118
      %v1120 = vpop.f32.mrb[0].mxu0
      %v1121 = vadd.f32 0.0, %v1120
      %1122 = vmatprep.mubr.bf16.mxu0 0
      %1123 = vmatmul.mubr.bf16.gmra.mrb[0].mxu0 %v398
      %v1124 = vpop.f32.mrb[0].mxu0
      %v1125 = vadd.f32 0.0, %v1124
      %v1126 = vpop.f32.mrb[0].mxu0
      %v1127 = vadd.f32 0.0, %v1126
      %v1128 = vpop.f32.mrb[0].mxu0
      %v1129 = vadd.f32 0.0, %v1128
      %v1130 = vpop.f32.mrb[0].mxu0
      %v1131 = vadd.f32 0.0, %v1130
      %1132 = vdwg.mxu0
      %1133 = vmatprep.subr.bf16.mxu0 %v459
      %1134 = vmatpush1.bf16.msra.mxu0 %v456
      %1135 = vmatprep.subr.bf16.mxu0 0
      %1136 = vmatpush1.bf16.msra.mxu0 0
      %1137 = vmatprep.subr.bf16.mxu0 0
      %1138 = vmatpush1.bf16.msra.mxu0 0
      %1139 = vmatprep.subr.bf16.mxu0 0
      %1140 = vmatpush1.bf16.msra.mxu0 0
      %1141 = vmatprep.subr.bf16.mxu0 0
      %1142 = vmatpush1.bf16.msra.mxu0 0
      %1143 = vmatprep.subr.bf16.mxu0 0
      %1144 = vmatpush1.bf16.msra.mxu0 0
      %1145 = vmatprep.subr.bf16.mxu0 0
      %1146 = vmatpush1.bf16.msra.mxu0 0
      %1147 = vmatprep.subr.bf16.mxu0 0
      %1148 = vmatpush1.bf16.msra.mxu0 0
      %1149 = vmatprep.subr.bf16.mxu0 0
      %1150 = vmatpush1.bf16.msra.mxu0 0
      %1151 = vmatprep.subr.bf16.mxu0 0
      %1152 = vmatpush1.bf16.msra.mxu0 0
      %1153 = vmatprep.subr.bf16.mxu0 0
      %1154 = vmatpush1.bf16.msra.mxu0 0
      %1155 = vmatprep.subr.bf16.mxu0 0
      %1156 = vmatpush1.bf16.msra.mxu0 0
      %1157 = vmatprep.subr.bf16.mxu0 0
      %1158 = vmatpush1.bf16.msra.mxu0 0
      %1159 = vmatprep.subr.bf16.mxu0 0
      %1160 = vmatpush1.bf16.msra.mxu0 0
      %1161 = vmatprep.subr.bf16.mxu0 0
      %1162 = vmatpush1.bf16.msra.mxu0 0
      %1163 = vmatprep.subr.bf16.mxu0 0
      %1164 = vmatpush1.bf16.msra.mxu0 0
      %1165 = vmatprep.mubr.bf16.mxu0 0
      %1166 = vmatmul.mubr.bf16.gmra.mrb[0].mxu0 %v389
      %v1167 = vpop.f32.mrb[0].mxu0
      %v1168 = vadd.f32 0.0, %v1167
      %v1169 = vpop.f32.mrb[0].mxu0
      %v1170 = vadd.f32 0.0, %v1169
      %v1171 = vpop.f32.mrb[0].mxu0
      %v1172 = vadd.f32 0.0, %v1171
      %v1173 = vpop.f32.mrb[0].mxu0
      %v1174 = vadd.f32 0.0, %v1173
      %1175 = vmatprep.mubr.bf16.mxu0 0
      %1176 = vmatmul.mubr.bf16.gmra.mrb[0].mxu0 %v392
      %v1177 = vpop.f32.mrb[0].mxu0
      %v1178 = vadd.f32 0.0, %v1177
      %v1179 = vpop.f32.mrb[0].mxu0
      %v1180 = vadd.f32 0.0, %v1179
      %v1181 = vpop.f32.mrb[0].mxu0
      %v1182 = vadd.f32 0.0, %v1181
      %v1183 = vpop.f32.mrb[0].mxu0
      %v1184 = vadd.f32 0.0, %v1183
      %1185 = vmatprep.mubr.bf16.mxu0 0
      %1186 = vmatmul.mubr.bf16.gmra.mrb[0].mxu0 %v395
      %v1187 = vpop.f32.mrb[0].mxu0
      %v1188 = vadd.f32 0.0, %v1187
      %v1189 = vpop.f32.mrb[0].mxu0
      %v1190 = vadd.f32 0.0, %v1189
      %v1191 = vpop.f32.mrb[0].mxu0
      %v1192 = vadd.f32 0.0, %v1191
      %v1193 = vpop.f32.mrb[0].mxu0
      %v1194 = vadd.f32 0.0, %v1193
      %1195 = vmatprep.mubr.bf16.mxu0 0
      %1196 = vmatmul.mubr.bf16.gmra.mrb[0].mxu0 %v398
      %v1197 = vpop.f32.mrb[0].mxu0
      %v1198 = vadd.f32 0.0, %v1197
      %v1199 = vpop.f32.mrb[0].mxu0
      %v1200 = vadd.f32 0.0, %v1199
      %v1201 = vpop.f32.mrb[0].mxu0
      %v1202 = vadd.f32 0.0, %v1201
      %v1203 = vpop.f32.mrb[0].mxu0
      %v1204 = vadd.f32 0.0, %v1203
      %1205 = vdwg.mxu0
      %1206 = vmatprep.subr.bf16.mxu0 %v465
      %1207 = vmatpush1.bf16.msra.mxu0 %v462
      %1208 = vmatprep.subr.bf16.mxu0 0
      %1209 = vmatpush1.bf16.msra.mxu0 0
      %1210 = vmatprep.subr.bf16.mxu0 0
      %1211 = vmatpush1.bf16.msra.mxu0 0
      %1212 = vmatprep.subr.bf16.mxu0 0
      %1213 = vmatpush1.bf16.msra.mxu0 0
      %1214 = vmatprep.subr.bf16.mxu0 0
      %1215 = vmatpush1.bf16.msra.mxu0 0
      %1216 = vmatprep.subr.bf16.mxu0 0
      %1217 = vmatpush1.bf16.msra.mxu0 0
      %1218 = vmatprep.subr.bf16.mxu0 0
      %1219 = vmatpush1.bf16.msra.mxu0 0
      %1220 = vmatprep.subr.bf16.mxu0 0
      %1221 = vmatpush1.bf16.msra.mxu0 0
      %1222 = vmatprep.subr.bf16.mxu0 0
      %1223 = vmatpush1.bf16.msra.mxu0 0
      %1224 = vmatprep.subr.bf16.mxu0 0
      %1225 = vmatpush1.bf16.msra.mxu0 0
      %1226 = vmatprep.subr.bf16.mxu0 0
      %1227 = vmatpush1.bf16.msra.mxu0 0
      %1228 = vmatprep.subr.bf16.mxu0 0
      %1229 = vmatpush1.bf16.msra.mxu0 0
      %1230 = vmatprep.subr.bf16.mxu0 0
      %1231 = vmatpush1.bf16.msra.mxu0 0
      %1232 = vmatprep.subr.bf16.mxu0 0
      %1233 = vmatpush1.bf16.msra.mxu0 0
      %1234 = vmatprep.subr.bf16.mxu0 0
      %1235 = vmatpush1.bf16.msra.mxu0 0
      %1236 = vmatprep.subr.bf16.mxu0 0
      %1237 = vmatpush1.bf16.msra.mxu0 0
      %1238 = vmatprep.mubr.bf16.mxu0 0
      %1239 = vmatmul.mubr.bf16.gmra.mrb[0].mxu0 %v389
      %v1240 = vpop.f32.mrb[0].mxu0
      %v1241 = vadd.f32 0.0, %v1240
      %v1242 = vpop.f32.mrb[0].mxu0
      %v1243 = vadd.f32 0.0, %v1242
      %v1244 = vpop.f32.mrb[0].mxu0
      %v1245 = vadd.f32 0.0, %v1244
      %v1246 = vpop.f32.mrb[0].mxu0
      %v1247 = vadd.f32 0.0, %v1246
      %1248 = vmatprep.mubr.bf16.mxu0 0
      %1249 = vmatmul.mubr.bf16.gmra.mrb[0].mxu0 %v392
      %v1250 = vpop.f32.mrb[0].mxu0
      %v1251 = vadd.f32 0.0, %v1250
      %v1252 = vpop.f32.mrb[0].mxu0
      %v1253 = vadd.f32 0.0, %v1252
      %v1254 = vpop.f32.mrb[0].mxu0
      %v1255 = vadd.f32 0.0, %v1254
      %v1256 = vpop.f32.mrb[0].mxu0
      %v1257 = vadd.f32 0.0, %v1256
      %1258 = vmatprep.mubr.bf16.mxu0 0
      %1259 = vmatmul.mubr.bf16.gmra.mrb[0].mxu0 %v395
      %v1260 = vpop.f32.mrb[0].mxu0
      %v1261 = vadd.f32 0.0, %v1260
      %v1262 = vpop.f32.mrb[0].mxu0
      %v1263 = vadd.f32 0.0, %v1262
      %v1264 = vpop.f32.mrb[0].mxu0
      %v1265 = vadd.f32 0.0, %v1264
      %v1266 = vpop.f32.mrb[0].mxu0
      %v1267 = vadd.f32 0.0, %v1266
      %1268 = vmatprep.mubr.bf16.mxu0 0
      %1269 = vmatmul.mubr.bf16.gmra.mrb[0].mxu0 %v398
      %v1270 = vpop.f32.mrb[0].mxu0
      %v1271 = vadd.f32 0.0, %v1270
      %v1272 = vpop.f32.mrb[0].mxu0
      %v1273 = vadd.f32 0.0, %v1272
      %v1274 = vpop.f32.mrb[0].mxu0
      %v1275 = vadd.f32 0.0, %v1274
      %v1276 = vpop.f32.mrb[0].mxu0
      %v1277 = vadd.f32 0.0, %v1276
      %1278 = vdwg.mxu0
      %1279 = vmatprep.subr.bf16.mxu0 %v471
      %1280 = vmatpush1.bf16.msra.mxu0 %v468
      %1281 = vmatprep.subr.bf16.mxu0 0
      %1282 = vmatpush1.bf16.msra.mxu0 0
      %1283 = vmatprep.subr.bf16.mxu0 0
      %1284 = vmatpush1.bf16.msra.mxu0 0
      %1285 = vmatprep.subr.bf16.mxu0 0
      %1286 = vmatpush1.bf16.msra.mxu0 0
      %1287 = vmatprep.subr.bf16.mxu0 0
      %1288 = vmatpush1.bf16.msra.mxu0 0
      %1289 = vmatprep.subr.bf16.mxu0 0
      %1290 = vmatpush1.bf16.msra.mxu0 0
      %1291 = vmatprep.subr.bf16.mxu0 0
      %1292 = vmatpush1.bf16.msra.mxu0 0
      %1293 = vmatprep.subr.bf16.mxu0 0
      %1294 = vmatpush1.bf16.msra.mxu0 0
      %1295 = vmatprep.subr.bf16.mxu0 0
      %1296 = vmatpush1.bf16.msra.mxu0 0
      %1297 = vmatprep.subr.bf16.mxu0 0
      %1298 = vmatpush1.bf16.msra.mxu0 0
      %1299 = vmatprep.subr.bf16.mxu0 0
      %1300 = vmatpush1.bf16.msra.mxu0 0
      %1301 = vmatprep.subr.bf16.mxu0 0
      %1302 = vmatpush1.bf16.msra.mxu0 0
      %1303 = vmatprep.subr.bf16.mxu0 0
      %1304 = vmatpush1.bf16.msra.mxu0 0
      %1305 = vmatprep.subr.bf16.mxu0 0
      %1306 = vmatpush1.bf16.msra.mxu0 0
      %1307 = vmatprep.subr.bf16.mxu0 0
      %1308 = vmatpush1.bf16.msra.mxu0 0
      %1309 = vmatprep.subr.bf16.mxu0 0
      %1310 = vmatpush1.bf16.msra.mxu0 0
      %1311 = vmatprep.mubr.bf16.mxu0 0
      %1312 = vmatmul.mubr.bf16.gmra.mrb[0].mxu0 %v389
      %v1313 = vpop.f32.mrb[0].mxu0
      %v1314 = vadd.f32 0.0, %v1313
      %v1315 = vpop.f32.mrb[0].mxu0
      %v1316 = vadd.f32 0.0, %v1315
      %v1317 = vpop.f32.mrb[0].mxu0
      %v1318 = vadd.f32 0.0, %v1317
      %v1319 = vpop.f32.mrb[0].mxu0
      %v1320 = vadd.f32 0.0, %v1319
      %1321 = vmatprep.mubr.bf16.mxu0 0
      %1322 = vmatmul.mubr.bf16.gmra.mrb[0].mxu0 %v392
      %v1323 = vpop.f32.mrb[0].mxu0
      %v1324 = vadd.f32 0.0, %v1323
      %v1325 = vpop.f32.mrb[0].mxu0
      %v1326 = vadd.f32 0.0, %v1325
      %v1327 = vpop.f32.mrb[0].mxu0
      %v1328 = vadd.f32 0.0, %v1327
      %v1329 = vpop.f32.mrb[0].mxu0
      %v1330 = vadd.f32 0.0, %v1329
      %1331 = vmatprep.mubr.bf16.mxu0 0
      %1332 = vmatmul.mubr.bf16.gmra.mrb[0].mxu0 %v395
      %v1333 = vpop.f32.mrb[0].mxu0
      %v1334 = vadd.f32 0.0, %v1333
      %v1335 = vpop.f32.mrb[0].mxu0
      %v1336 = vadd.f32 0.0, %v1335
      %v1337 = vpop.f32.mrb[0].mxu0
      %v1338 = vadd.f32 0.0, %v1337
      %v1339 = vpop.f32.mrb[0].mxu0
      %v1340 = vadd.f32 0.0, %v1339
      %1341 = vmatprep.mubr.bf16.mxu0 0
      %1342 = vmatmul.mubr.bf16.gmra.mrb[0].mxu0 %v398
      %v1343 = vpop.f32.mrb[0].mxu0
      %v1344 = vadd.f32 0.0, %v1343
      %v1345 = vpop.f32.mrb[0].mxu0
      %v1346 = vadd.f32 0.0, %v1345
      %v1347 = vpop.f32.mrb[0].mxu0
      %v1348 = vadd.f32 0.0, %v1347
      %v1349 = vpop.f32.mrb[0].mxu0
      %v1350 = vadd.f32 0.0, %v1349
      %1351 = vdwg.mxu0
      %1352 = vmatprep.subr.bf16.mxu0 0
      %1353 = vmatpush1.bf16.msra.mxu0 %v474
      %1354 = vmatprep.subr.bf16.mxu0 0
      %1355 = vmatpush1.bf16.msra.mxu0 0
      %1356 = vmatprep.subr.bf16.mxu0 0
      %1357 = vmatpush1.bf16.msra.mxu0 0
      %1358 = vmatprep.subr.bf16.mxu0 0
      %1359 = vmatpush1.bf16.msra.mxu0 0
      %1360 = vmatprep.subr.bf16.mxu0 0
      %1361 = vmatpush1.bf16.msra.mxu0 0
      %1362 = vmatprep.subr.bf16.mxu0 0
      %1363 = vmatpush1.bf16.msra.mxu0 0
      %1364 = vmatprep.subr.bf16.mxu0 0
      %1365 = vmatpush1.bf16.msra.mxu0 0
      %1366 = vmatprep.subr.bf16.mxu0 0
      %1367 = vmatpush1.bf16.msra.mxu0 0
      %1368 = vmatprep.subr.bf16.mxu0 0
      %1369 = vmatpush1.bf16.msra.mxu0 0
      %1370 = vmatprep.subr.bf16.mxu0 0
      %1371 = vmatpush1.bf16.msra.mxu0 0
      %1372 = vmatprep.subr.bf16.mxu0 0
      %1373 = vmatpush1.bf16.msra.mxu0 0
      %1374 = vmatprep.subr.bf16.mxu0 0
      %1375 = vmatpush1.bf16.msra.mxu0 0
      %1376 = vmatprep.subr.bf16.mxu0 0
      %1377 = vmatpush1.bf16.msra.mxu0 0
      %1378 = vmatprep.subr.bf16.mxu0 0
      %1379 = vmatpush1.bf16.msra.mxu0 0
      %1380 = vmatprep.subr.bf16.mxu0 0
      %1381 = vmatpush1.bf16.msra.mxu0 0
      %1382 = vmatprep.subr.bf16.mxu0 0
      %1383 = vmatpush1.bf16.msra.mxu0 0
      %1384 = vmatprep.mubr.bf16.mxu0 0
      %1385 = vmatmul.mubr.bf16.gmra.mrb[0].mxu0 %v389
      %v1386 = vpop.f32.mrb[0].mxu0
      %v1387 = vadd.f32 0.0, %v1386
      %v1388 = vpop.f32.mrb[0].mxu0
      %v1389 = vpop.f32.mrb[0].mxu0
      %v1390 = vadd.f32 0.0, %v1389
      %v1391 = vpop.f32.mrb[0].mxu0
      %1392 = vmatprep.mubr.bf16.mxu0 0
      %1393 = vmatmul.mubr.bf16.gmra.mrb[0].mxu0 %v392
      %v1394 = vpop.f32.mrb[0].mxu0
      %v1395 = vadd.f32 0.0, %v1394
      %v1396 = vpop.f32.mrb[0].mxu0
      %v1397 = vpop.f32.mrb[0].mxu0
      %v1398 = vadd.f32 0.0, %v1397
      %v1399 = vpop.f32.mrb[0].mxu0
      %1400 = vmatprep.mubr.bf16.mxu0 0
      %1401 = vmatmul.mubr.bf16.gmra.mrb[0].mxu0 %v395
      %v1402 = vpop.f32.mrb[0].mxu0
      %v1403 = vadd.f32 0.0, %v1402
      %v1404 = vpop.f32.mrb[0].mxu0
      %v1405 = vpop.f32.mrb[0].mxu0
      %v1406 = vadd.f32 0.0, %v1405
      %v1407 = vpop.f32.mrb[0].mxu0
      %1408 = vmatprep.mubr.bf16.mxu0 0
      %1409 = vmatmul.mubr.bf16.gmra.mrb[0].mxu0 %v398
      %v1410 = vpop.f32.mrb[0].mxu0
      %v1411 = vadd.f32 0.0, %v1410
      %v1412 = vpop.f32.mrb[0].mxu0
      %v1413 = vpop.f32.mrb[0].mxu0
      %v1414 = vadd.f32 0.0, %v1413
      %v1415 = vpop.f32.mrb[0].mxu0
      %1416 = vdwg.mxu0
      %1417 = vxpose.xlu0.c.b16.start [1/8] %v226, 128
      %1418 = vxpose.xlu0.c.b16.cont [2/8] 0, 128
      %1419 = vxpose.xlu0.c.b16.cont [3/8] 0, 128
      %1420 = vxpose.xlu0.c.b16.cont [4/8] 0, 128
      %1421 = vxpose.xlu0.c.b16.cont [5/8] 0, 128
      %1422 = vxpose.xlu0.c.b16.cont [6/8] 0, 128
      %1423 = vxpose.xlu0.c.b16.cont [7/8] 0, 128
      %1424 = vxpose.xlu0.c.b16.end [8/8] 0, 128
      %v1425 = vpop.trf.xlu0
      %v1426 = vpop.trf.xlu0
      %v1427 = vpop.trf.xlu0
      %v1428 = vpop.trf.xlu0
      %v1429 = vpop.trf.xlu0
      %v1430 = vpop.trf.xlu0
      %v1431 = vpop.trf.xlu0
      %v1432 = vpop.trf.xlu0
      %v1440 = vcombine.high %v234, %v234
      %v1442 = vunpack.c.l.s4 1983009808
      %v1443 = vunpack.c.0.s8 %v1442
      %v1444 = vlaneseq
      %v1445 = vshrl.u32 %v1444, 7
      %v1446 = vsub.s32 %v1443, %v1445
      %v1447 = vrot.slane %v234, %v1446
      %v1449 = vunpack.c.l.s4 1983009808
      %v1450 = vunpack.c.0.s8 %v1449
      %v1451 = vlaneseq
      %v1452 = vshrl.u32 %v1451, 7
      %v1453 = vsub.s32 %v1450, %v1452
      %v1454 = vrot.slane %v1440, %v1453
      %v1455 = vcombine.high %v1447, %v1447
      %v1456 = vcombine.high %v1454, %v1454
      %v1457 = vcombine.high %v235, %v235
      %v1459 = vunpack.c.l.s4 1983009808
      %v1460 = vunpack.c.0.s8 %v1459
      %v1461 = vlaneseq
      %v1462 = vshrl.u32 %v1461, 7
      %v1463 = vsub.s32 %v1460, %v1462
      %v1464 = vrot.slane %v235, %v1463
      %v1466 = vunpack.c.l.s4 1983009808
      %v1467 = vunpack.c.0.s8 %v1466
      %v1468 = vlaneseq
      %v1469 = vshrl.u32 %v1468, 7
      %v1470 = vsub.s32 %v1467, %v1469
      %v1471 = vrot.slane %v1457, %v1470
      %v1472 = vcombine.high %v1464, %v1464
      %v1473 = vcombine.high %v1471, %v1471
      %v1474 = vcombine.high %v236, %v236
      %v1476 = vunpack.c.l.s4 1983009808
      %v1477 = vunpack.c.0.s8 %v1476
      %v1478 = vlaneseq
      %v1479 = vshrl.u32 %v1478, 7
      %v1480 = vsub.s32 %v1477, %v1479
      %v1481 = vrot.slane %v236, %v1480
      %v1483 = vunpack.c.l.s4 1983009808
      %v1484 = vunpack.c.0.s8 %v1483
      %v1485 = vlaneseq
      %v1486 = vshrl.u32 %v1485, 7
      %v1487 = vsub.s32 %v1484, %v1486
      %v1488 = vrot.slane %v1474, %v1487
      %v1489 = vcombine.high %v1481, %v1481
      %v1490 = vcombine.high %v1488, %v1488
      %v1491 = vcombine.high %v237, %v237
      %v1493 = vunpack.c.l.s4 1983009808
      %v1494 = vunpack.c.0.s8 %v1493
      %v1495 = vlaneseq
      %v1496 = vshrl.u32 %v1495, 7
      %v1497 = vsub.s32 %v1494, %v1496
      %v1498 = vrot.slane %v237, %v1497
      %v1500 = vunpack.c.l.s4 1983009808
      %v1501 = vunpack.c.0.s8 %v1500
      %v1502 = vlaneseq
      %v1503 = vshrl.u32 %v1502, 7
      %v1504 = vsub.s32 %v1501, %v1503
      %v1505 = vrot.slane %v1491, %v1504
      %v1506 = vcombine.high %v1498, %v1498
      %v1507 = vcombine.high %v1505, %v1505
      %v1508 = vcombine.high %v238, %v238
      %v1510 = vunpack.c.l.s4 1983009808
      %v1511 = vunpack.c.0.s8 %v1510
      %v1512 = vlaneseq
      %v1513 = vshrl.u32 %v1512, 7
      %v1514 = vsub.s32 %v1511, %v1513
      %v1515 = vrot.slane %v238, %v1514
      %v1517 = vunpack.c.l.s4 1983009808
      %v1518 = vunpack.c.0.s8 %v1517
      %v1519 = vlaneseq
      %v1520 = vshrl.u32 %v1519, 7
      %v1521 = vsub.s32 %v1518, %v1520
      %v1522 = vrot.slane %v1508, %v1521
      %v1523 = vcombine.high %v1515, %v1515
      %v1524 = vcombine.high %v1522, %v1522
      %v1525 = vcombine.high %v239, %v239
      %v1527 = vunpack.c.l.s4 1983009808
      %v1528 = vunpack.c.0.s8 %v1527
      %v1529 = vlaneseq
      %v1530 = vshrl.u32 %v1529, 7
      %v1531 = vsub.s32 %v1528, %v1530
      %v1532 = vrot.slane %v239, %v1531
      %v1534 = vunpack.c.l.s4 1983009808
      %v1535 = vunpack.c.0.s8 %v1534
      %v1536 = vlaneseq
      %v1537 = vshrl.u32 %v1536, 7
      %v1538 = vsub.s32 %v1535, %v1537
      %v1539 = vrot.slane %v1525, %v1538
      %v1540 = vcombine.high %v1532, %v1532
      %v1541 = vcombine.high %v1539, %v1539
      %v1543 = vunpack.c.l.s4 1983009808
      %v1544 = vunpack.c.0.s8 %v1543
      %v1545 = vlaneseq
      %v1546 = vshrl.u32 %v1545, 7
      %v1547 = vsub.s32 %v1544, %v1546
      %v1548 = vrot.slane %v240, %v1547
      %v1550 = vsel %vm387, %v1425, 0
      %v1553 = vsel %vm387, %v1426, 0
      %v1556 = vsel %vm387, %v1427, 0
      %v1559 = vsel %vm387, %v1428, 0
      %v1562 = vsel %vm400, %v1447, 0
      %v1565 = vsel %vm400, %v1455, 0
      %v1568 = vsel %vm400, %v1454, 0
      %v1571 = vsel %vm400, %v1456, 0
      %v1574 = vsel %vm400, %v1464, 0
      %v1577 = vsel %vm400, %v1472, 0
      %v1580 = vsel %vm400, %v1471, 0
      %v1583 = vsel %vm400, %v1473, 0
      %v1586 = vsel %vm400, %v1481, 0
      %v1589 = vsel %vm400, %v1489, 0
      %v1592 = vsel %vm400, %v1488, 0
      %v1595 = vsel %vm400, %v1490, 0
      %v1598 = vsel %vm400, %v1498, 0
      %v1601 = vsel %vm400, %v1506, 0
      %v1604 = vsel %vm400, %v1505, 0
      %v1607 = vsel %vm400, %v1507, 0
      %v1610 = vsel %vm400, %v1515, 0
      %v1613 = vsel %vm400, %v1523, 0
      %v1616 = vsel %vm400, %v1522, 0
      %v1619 = vsel %vm400, %v1524, 0
      %v1622 = vsel %vm400, %v1532, 0
      %v1625 = vsel %vm400, %v1540, 0
      %v1628 = vsel %vm400, %v1539, 0
      %v1631 = vsel %vm400, %v1541, 0
      %v1634 = vsel %vm400, %v1548, 0
      %1636 = vmatprep.subr.bf16.mxu0 %v1565
      %1637 = vmatpush1.bf16.msra.mxu0 %v1562
      %1638 = vmatprep.subr.bf16.mxu0 0
      %1639 = vmatpush1.bf16.msra.mxu0 0
      %1640 = vmatprep.subr.bf16.mxu0 0
      %1641 = vmatpush1.bf16.msra.mxu0 0
      %1642 = vmatprep.subr.bf16.mxu0 0
      %1643 = vmatpush1.bf16.msra.mxu0 0
      %1644 = vmatprep.subr.bf16.mxu0 0
      %1645 = vmatpush1.bf16.msra.mxu0 0
      %1646 = vmatprep.subr.bf16.mxu0 0
      %1647 = vmatpush1.bf16.msra.mxu0 0
      %1648 = vmatprep.subr.bf16.mxu0 0
      %1649 = vmatpush1.bf16.msra.mxu0 0
      %1650 = vmatprep.subr.bf16.mxu0 0
      %1651 = vmatpush1.bf16.msra.mxu0 0
      %1652 = vmatprep.subr.bf16.mxu0 0
      %1653 = vmatpush1.bf16.msra.mxu0 0
      %1654 = vmatprep.subr.bf16.mxu0 0
      %1655 = vmatpush1.bf16.msra.mxu0 0
      %1656 = vmatprep.subr.bf16.mxu0 0
      %1657 = vmatpush1.bf16.msra.mxu0 0
      %1658 = vmatprep.subr.bf16.mxu0 0
      %1659 = vmatpush1.bf16.msra.mxu0 0
      %1660 = vmatprep.subr.bf16.mxu0 0
      %1661 = vmatpush1.bf16.msra.mxu0 0
      %1662 = vmatprep.subr.bf16.mxu0 0
      %1663 = vmatpush1.bf16.msra.mxu0 0
      %1664 = vmatprep.subr.bf16.mxu0 0
      %1665 = vmatpush1.bf16.msra.mxu0 0
      %1666 = vmatprep.subr.bf16.mxu0 0
      %1667 = vmatpush1.bf16.msra.mxu0 0
      %1668 = vmatprep.mubr.bf16.mxu0 0
      %1669 = vmatmul.mubr.bf16.gmra.mrb[0].mxu0 %v1550
      %v1670 = vpop.f32.mrb[0].mxu0
      %v1671 = vadd.f32 0.0, %v1670
      %v1672 = vpop.f32.mrb[0].mxu0
      %v1673 = vadd.f32 0.0, %v1672
      %v1674 = vpop.f32.mrb[0].mxu0
      %v1675 = vadd.f32 0.0, %v1674
      %v1676 = vpop.f32.mrb[0].mxu0
      %v1677 = vadd.f32 0.0, %v1676
      %1678 = vmatprep.mubr.bf16.mxu0 0
      %1679 = vmatmul.mubr.bf16.gmra.mrb[0].mxu0 %v1553
      %v1680 = vpop.f32.mrb[0].mxu0
      %v1681 = vadd.f32 0.0, %v1680
      %v1682 = vpop.f32.mrb[0].mxu0
      %v1683 = vadd.f32 0.0, %v1682
      %v1684 = vpop.f32.mrb[0].mxu0
      %v1685 = vadd.f32 0.0, %v1684
      %v1686 = vpop.f32.mrb[0].mxu0
      %v1687 = vadd.f32 0.0, %v1686
      %1688 = vmatprep.mubr.bf16.mxu0 0
      %1689 = vmatmul.mubr.bf16.gmra.mrb[0].mxu0 %v1556
      %v1690 = vpop.f32.mrb[0].mxu0
      %v1691 = vadd.f32 0.0, %v1690
      %v1692 = vpop.f32.mrb[0].mxu0
      %v1693 = vadd.f32 0.0, %v1692
      %v1694 = vpop.f32.mrb[0].mxu0
      %v1695 = vadd.f32 0.0, %v1694
      %v1696 = vpop.f32.mrb[0].mxu0
      %v1697 = vadd.f32 0.0, %v1696
      %1698 = vmatprep.mubr.bf16.mxu0 0
      %1699 = vmatmul.mubr.bf16.gmra.mrb[0].mxu0 %v1559
      %v1700 = vpop.f32.mrb[0].mxu0
      %v1701 = vadd.f32 0.0, %v1700
      %v1702 = vpop.f32.mrb[0].mxu0
      %v1703 = vadd.f32 0.0, %v1702
      %v1704 = vpop.f32.mrb[0].mxu0
      %v1705 = vadd.f32 0.0, %v1704
      %v1706 = vpop.f32.mrb[0].mxu0
      %v1707 = vadd.f32 0.0, %v1706
      %1708 = vdwg.mxu0
      %1709 = vmatprep.subr.bf16.mxu0 %v1571
      %1710 = vmatpush1.bf16.msra.mxu0 %v1568
      %1711 = vmatprep.subr.bf16.mxu0 0
      %1712 = vmatpush1.bf16.msra.mxu0 0
      %1713 = vmatprep.subr.bf16.mxu0 0
      %1714 = vmatpush1.bf16.msra.mxu0 0
      %1715 = vmatprep.subr.bf16.mxu0 0
      %1716 = vmatpush1.bf16.msra.mxu0 0
      %1717 = vmatprep.subr.bf16.mxu0 0
      %1718 = vmatpush1.bf16.msra.mxu0 0
      %1719 = vmatprep.subr.bf16.mxu0 0
      %1720 = vmatpush1.bf16.msra.mxu0 0
      %1721 = vmatprep.subr.bf16.mxu0 0
      %1722 = vmatpush1.bf16.msra.mxu0 0
      %1723 = vmatprep.subr.bf16.mxu0 0
      %1724 = vmatpush1.bf16.msra.mxu0 0
      %1725 = vmatprep.subr.bf16.mxu0 0
      %1726 = vmatpush1.bf16.msra.mxu0 0
      %1727 = vmatprep.subr.bf16.mxu0 0
      %1728 = vmatpush1.bf16.msra.mxu0 0
      %1729 = vmatprep.subr.bf16.mxu0 0
      %1730 = vmatpush1.bf16.msra.mxu0 0
      %1731 = vmatprep.subr.bf16.mxu0 0
      %1732 = vmatpush1.bf16.msra.mxu0 0
      %1733 = vmatprep.subr.bf16.mxu0 0
      %1734 = vmatpush1.bf16.msra.mxu0 0
      %1735 = vmatprep.subr.bf16.mxu0 0
      %1736 = vmatpush1.bf16.msra.mxu0 0
      %1737 = vmatprep.subr.bf16.mxu0 0
      %1738 = vmatpush1.bf16.msra.mxu0 0
      %1739 = vmatprep.subr.bf16.mxu0 0
      %1740 = vmatpush1.bf16.msra.mxu0 0
      %1741 = vmatprep.mubr.bf16.mxu0 0
      %1742 = vmatmul.mubr.bf16.gmra.mrb[0].mxu0 %v1550
      %v1743 = vpop.f32.mrb[0].mxu0
      %v1744 = vadd.f32 0.0, %v1743
      %v1745 = vpop.f32.mrb[0].mxu0
      %v1746 = vadd.f32 0.0, %v1745
      %v1747 = vpop.f32.mrb[0].mxu0
      %v1748 = vadd.f32 0.0, %v1747
      %v1749 = vpop.f32.mrb[0].mxu0
      %v1750 = vadd.f32 0.0, %v1749
      %1751 = vmatprep.mubr.bf16.mxu0 0
      %1752 = vmatmul.mubr.bf16.gmra.mrb[0].mxu0 %v1553
      %v1753 = vpop.f32.mrb[0].mxu0
      %v1754 = vadd.f32 0.0, %v1753
      %v1755 = vpop.f32.mrb[0].mxu0
      %v1756 = vadd.f32 0.0, %v1755
      %v1757 = vpop.f32.mrb[0].mxu0
      %v1758 = vadd.f32 0.0, %v1757
      %v1759 = vpop.f32.mrb[0].mxu0
      %v1760 = vadd.f32 0.0, %v1759
      %1761 = vmatprep.mubr.bf16.mxu0 0
      %1762 = vmatmul.mubr.bf16.gmra.mrb[0].mxu0 %v1556
      %v1763 = vpop.f32.mrb[0].mxu0
      %v1764 = vadd.f32 0.0, %v1763
      %v1765 = vpop.f32.mrb[0].mxu0
      %v1766 = vadd.f32 0.0, %v1765
      %v1767 = vpop.f32.mrb[0].mxu0
      %v1768 = vadd.f32 0.0, %v1767
      %v1769 = vpop.f32.mrb[0].mxu0
      %v1770 = vadd.f32 0.0, %v1769
      %1771 = vmatprep.mubr.bf16.mxu0 0
      %1772 = vmatmul.mubr.bf16.gmra.mrb[0].mxu0 %v1559
      %v1773 = vpop.f32.mrb[0].mxu0
      %v1774 = vadd.f32 0.0, %v1773
      %v1775 = vpop.f32.mrb[0].mxu0
      %v1776 = vadd.f32 0.0, %v1775
      %v1777 = vpop.f32.mrb[0].mxu0
      %v1778 = vadd.f32 0.0, %v1777
      %v1779 = vpop.f32.mrb[0].mxu0
      %v1780 = vadd.f32 0.0, %v1779
      %1781 = vdwg.mxu0
      %1782 = vmatprep.subr.bf16.mxu0 %v1577
      %1783 = vmatpush1.bf16.msra.mxu0 %v1574
      %1784 = vmatprep.subr.bf16.mxu0 0
      %1785 = vmatpush1.bf16.msra.mxu0 0
      %1786 = vmatprep.subr.bf16.mxu0 0
      %1787 = vmatpush1.bf16.msra.mxu0 0
      %1788 = vmatprep.subr.bf16.mxu0 0
      %1789 = vmatpush1.bf16.msra.mxu0 0
      %1790 = vmatprep.subr.bf16.mxu0 0
      %1791 = vmatpush1.bf16.msra.mxu0 0
      %1792 = vmatprep.subr.bf16.mxu0 0
      %1793 = vmatpush1.bf16.msra.mxu0 0
      %1794 = vmatprep.subr.bf16.mxu0 0
      %1795 = vmatpush1.bf16.msra.mxu0 0
      %1796 = vmatprep.subr.bf16.mxu0 0
      %1797 = vmatpush1.bf16.msra.mxu0 0
      %1798 = vmatprep.subr.bf16.mxu0 0
      %1799 = vmatpush1.bf16.msra.mxu0 0
      %1800 = vmatprep.subr.bf16.mxu0 0
      %1801 = vmatpush1.bf16.msra.mxu0 0
      %1802 = vmatprep.subr.bf16.mxu0 0
      %1803 = vmatpush1.bf16.msra.mxu0 0
      %1804 = vmatprep.subr.bf16.mxu0 0
      %1805 = vmatpush1.bf16.msra.mxu0 0
      %1806 = vmatprep.subr.bf16.mxu0 0
      %1807 = vmatpush1.bf16.msra.mxu0 0
      %1808 = vmatprep.subr.bf16.mxu0 0
      %1809 = vmatpush1.bf16.msra.mxu0 0
      %1810 = vmatprep.subr.bf16.mxu0 0
      %1811 = vmatpush1.bf16.msra.mxu0 0
      %1812 = vmatprep.subr.bf16.mxu0 0
      %1813 = vmatpush1.bf16.msra.mxu0 0
      %1814 = vmatprep.mubr.bf16.mxu0 0
      %1815 = vmatmul.mubr.bf16.gmra.mrb[0].mxu0 %v1550
      %v1816 = vpop.f32.mrb[0].mxu0
      %v1817 = vadd.f32 0.0, %v1816
      %v1818 = vpop.f32.mrb[0].mxu0
      %v1819 = vadd.f32 0.0, %v1818
      %v1820 = vpop.f32.mrb[0].mxu0
      %v1821 = vadd.f32 0.0, %v1820
      %v1822 = vpop.f32.mrb[0].mxu0
      %v1823 = vadd.f32 0.0, %v1822
      %1824 = vmatprep.mubr.bf16.mxu0 0
      %1825 = vmatmul.mubr.bf16.gmra.mrb[0].mxu0 %v1553
      %v1826 = vpop.f32.mrb[0].mxu0
      %v1827 = vadd.f32 0.0, %v1826
      %v1828 = vpop.f32.mrb[0].mxu0
      %v1829 = vadd.f32 0.0, %v1828
      %v1830 = vpop.f32.mrb[0].mxu0
      %v1831 = vadd.f32 0.0, %v1830
      %v1832 = vpop.f32.mrb[0].mxu0
      %v1833 = vadd.f32 0.0, %v1832
      %1834 = vmatprep.mubr.bf16.mxu0 0
      %1835 = vmatmul.mubr.bf16.gmra.mrb[0].mxu0 %v1556
      %v1836 = vpop.f32.mrb[0].mxu0
      %v1837 = vadd.f32 0.0, %v1836
      %v1838 = vpop.f32.mrb[0].mxu0
      %v1839 = vadd.f32 0.0, %v1838
      %v1840 = vpop.f32.mrb[0].mxu0
      %v1841 = vadd.f32 0.0, %v1840
      %v1842 = vpop.f32.mrb[0].mxu0
      %v1843 = vadd.f32 0.0, %v1842
      %1844 = vmatprep.mubr.bf16.mxu0 0
      %1845 = vmatmul.mubr.bf16.gmra.mrb[0].mxu0 %v1559
      %v1846 = vpop.f32.mrb[0].mxu0
      %v1847 = vadd.f32 0.0, %v1846
      %v1848 = vpop.f32.mrb[0].mxu0
      %v1849 = vadd.f32 0.0, %v1848
      %v1850 = vpop.f32.mrb[0].mxu0
      %v1851 = vadd.f32 0.0, %v1850
      %v1852 = vpop.f32.mrb[0].mxu0
      %v1853 = vadd.f32 0.0, %v1852
      %1854 = vdwg.mxu0
      %1855 = vmatprep.subr.bf16.mxu0 %v1583
      %1856 = vmatpush1.bf16.msra.mxu0 %v1580
      %1857 = vmatprep.subr.bf16.mxu0 0
      %1858 = vmatpush1.bf16.msra.mxu0 0
      %1859 = vmatprep.subr.bf16.mxu0 0
      %1860 = vmatpush1.bf16.msra.mxu0 0
      %1861 = vmatprep.subr.bf16.mxu0 0
      %1862 = vmatpush1.bf16.msra.mxu0 0
      %1863 = vmatprep.subr.bf16.mxu0 0
      %1864 = vmatpush1.bf16.msra.mxu0 0
      %1865 = vmatprep.subr.bf16.mxu0 0
      %1866 = vmatpush1.bf16.msra.mxu0 0
      %1867 = vmatprep.subr.bf16.mxu0 0
      %1868 = vmatpush1.bf16.msra.mxu0 0
      %1869 = vmatprep.subr.bf16.mxu0 0
      %1870 = vmatpush1.bf16.msra.mxu0 0
      %1871 = vmatprep.subr.bf16.mxu0 0
      %1872 = vmatpush1.bf16.msra.mxu0 0
      %1873 = vmatprep.subr.bf16.mxu0 0
      %1874 = vmatpush1.bf16.msra.mxu0 0
      %1875 = vmatprep.subr.bf16.mxu0 0
      %1876 = vmatpush1.bf16.msra.mxu0 0
      %1877 = vmatprep.subr.bf16.mxu0 0
      %1878 = vmatpush1.bf16.msra.mxu0 0
      %1879 = vmatprep.subr.bf16.mxu0 0
      %1880 = vmatpush1.bf16.msra.mxu0 0
      %1881 = vmatprep.subr.bf16.mxu0 0
      %1882 = vmatpush1.bf16.msra.mxu0 0
      %1883 = vmatprep.subr.bf16.mxu0 0
      %1884 = vmatpush1.bf16.msra.mxu0 0
      %1885 = vmatprep.subr.bf16.mxu0 0
      %1886 = vmatpush1.bf16.msra.mxu0 0
      %1887 = vmatprep.mubr.bf16.mxu0 0
      %1888 = vmatmul.mubr.bf16.gmra.mrb[0].mxu0 %v1550
      %v1889 = vpop.f32.mrb[0].mxu0
      %v1890 = vadd.f32 0.0, %v1889
      %v1891 = vpop.f32.mrb[0].mxu0
      %v1892 = vadd.f32 0.0, %v1891
      %v1893 = vpop.f32.mrb[0].mxu0
      %v1894 = vadd.f32 0.0, %v1893
      %v1895 = vpop.f32.mrb[0].mxu0
      %v1896 = vadd.f32 0.0, %v1895
      %1897 = vmatprep.mubr.bf16.mxu0 0
      %1898 = vmatmul.mubr.bf16.gmra.mrb[0].mxu0 %v1553
      %v1899 = vpop.f32.mrb[0].mxu0
      %v1900 = vadd.f32 0.0, %v1899
      %v1901 = vpop.f32.mrb[0].mxu0
      %v1902 = vadd.f32 0.0, %v1901
      %v1903 = vpop.f32.mrb[0].mxu0
      %v1904 = vadd.f32 0.0, %v1903
      %v1905 = vpop.f32.mrb[0].mxu0
      %v1906 = vadd.f32 0.0, %v1905
      %1907 = vmatprep.mubr.bf16.mxu0 0
      %1908 = vmatmul.mubr.bf16.gmra.mrb[0].mxu0 %v1556
      %v1909 = vpop.f32.mrb[0].mxu0
      %v1910 = vadd.f32 0.0, %v1909
      %v1911 = vpop.f32.mrb[0].mxu0
      %v1912 = vadd.f32 0.0, %v1911
      %v1913 = vpop.f32.mrb[0].mxu0
      %v1914 = vadd.f32 0.0, %v1913
      %v1915 = vpop.f32.mrb[0].mxu0
      %v1916 = vadd.f32 0.0, %v1915
      %1917 = vmatprep.mubr.bf16.mxu0 0
      %1918 = vmatmul.mubr.bf16.gmra.mrb[0].mxu0 %v1559
      %v1919 = vpop.f32.mrb[0].mxu0
      %v1920 = vadd.f32 0.0, %v1919
      %v1921 = vpop.f32.mrb[0].mxu0
      %v1922 = vadd.f32 0.0, %v1921
      %v1923 = vpop.f32.mrb[0].mxu0
      %v1924 = vadd.f32 0.0, %v1923
      %v1925 = vpop.f32.mrb[0].mxu0
      %v1926 = vadd.f32 0.0, %v1925
      %1927 = vdwg.mxu0
      %1928 = vmatprep.subr.bf16.mxu0 %v1589
      %1929 = vmatpush1.bf16.msra.mxu0 %v1586
      %1930 = vmatprep.subr.bf16.mxu0 0
      %1931 = vmatpush1.bf16.msra.mxu0 0
      %1932 = vmatprep.subr.bf16.mxu0 0
      %1933 = vmatpush1.bf16.msra.mxu0 0
      %1934 = vmatprep.subr.bf16.mxu0 0
      %1935 = vmatpush1.bf16.msra.mxu0 0
      %1936 = vmatprep.subr.bf16.mxu0 0
      %1937 = vmatpush1.bf16.msra.mxu0 0
      %1938 = vmatprep.subr.bf16.mxu0 0
      %1939 = vmatpush1.bf16.msra.mxu0 0
      %1940 = vmatprep.subr.bf16.mxu0 0
      %1941 = vmatpush1.bf16.msra.mxu0 0
      %1942 = vmatprep.subr.bf16.mxu0 0
      %1943 = vmatpush1.bf16.msra.mxu0 0
      %1944 = vmatprep.subr.bf16.mxu0 0
      %1945 = vmatpush1.bf16.msra.mxu0 0
      %1946 = vmatprep.subr.bf16.mxu0 0
      %1947 = vmatpush1.bf16.msra.mxu0 0
      %1948 = vmatprep.subr.bf16.mxu0 0
      %1949 = vmatpush1.bf16.msra.mxu0 0
      %1950 = vmatprep.subr.bf16.mxu0 0
      %1951 = vmatpush1.bf16.msra.mxu0 0
      %1952 = vmatprep.subr.bf16.mxu0 0
      %1953 = vmatpush1.bf16.msra.mxu0 0
      %1954 = vmatprep.subr.bf16.mxu0 0
      %1955 = vmatpush1.bf16.msra.mxu0 0
      %1956 = vmatprep.subr.bf16.mxu0 0
      %1957 = vmatpush1.bf16.msra.mxu0 0
      %1958 = vmatprep.subr.bf16.mxu0 0
      %1959 = vmatpush1.bf16.msra.mxu0 0
      %1960 = vmatprep.mubr.bf16.mxu0 0
      %1961 = vmatmul.mubr.bf16.gmra.mrb[0].mxu0 %v1550
      %v1962 = vpop.f32.mrb[0].mxu0
      %v1963 = vadd.f32 0.0, %v1962
      %v1964 = vpop.f32.mrb[0].mxu0
      %v1965 = vadd.f32 0.0, %v1964
      %v1966 = vpop.f32.mrb[0].mxu0
      %v1967 = vadd.f32 0.0, %v1966
      %v1968 = vpop.f32.mrb[0].mxu0
      %v1969 = vadd.f32 0.0, %v1968
      %1970 = vmatprep.mubr.bf16.mxu0 0
      %1971 = vmatmul.mubr.bf16.gmra.mrb[0].mxu0 %v1553
      %v1972 = vpop.f32.mrb[0].mxu0
      %v1973 = vadd.f32 0.0, %v1972
      %v1974 = vpop.f32.mrb[0].mxu0
      %v1975 = vadd.f32 0.0, %v1974
      %v1976 = vpop.f32.mrb[0].mxu0
      %v1977 = vadd.f32 0.0, %v1976
      %v1978 = vpop.f32.mrb[0].mxu0
      %v1979 = vadd.f32 0.0, %v1978
      %1980 = vmatprep.mubr.bf16.mxu0 0
      %1981 = vmatmul.mubr.bf16.gmra.mrb[0].mxu0 %v1556
      %v1982 = vpop.f32.mrb[0].mxu0
      %v1983 = vadd.f32 0.0, %v1982
      %v1984 = vpop.f32.mrb[0].mxu0
      %v1985 = vadd.f32 0.0, %v1984
      %v1986 = vpop.f32.mrb[0].mxu0
      %v1987 = vadd.f32 0.0, %v1986
      %v1988 = vpop.f32.mrb[0].mxu0
      %v1989 = vadd.f32 0.0, %v1988
      %1990 = vmatprep.mubr.bf16.mxu0 0
      %1991 = vmatmul.mubr.bf16.gmra.mrb[0].mxu0 %v1559
      %v1992 = vpop.f32.mrb[0].mxu0
      %v1993 = vadd.f32 0.0, %v1992
      %v1994 = vpop.f32.mrb[0].mxu0
      %v1995 = vadd.f32 0.0, %v1994
      %v1996 = vpop.f32.mrb[0].mxu0
      %v1997 = vadd.f32 0.0, %v1996
      %v1998 = vpop.f32.mrb[0].mxu0
      %v1999 = vadd.f32 0.0, %v1998
      %2000 = vdwg.mxu0
      %2001 = vmatprep.subr.bf16.mxu0 %v1595
      %2002 = vmatpush1.bf16.msra.mxu0 %v1592
      %2003 = vmatprep.subr.bf16.mxu0 0
      %2004 = vmatpush1.bf16.msra.mxu0 0
      %2005 = vmatprep.subr.bf16.mxu0 0
      %2006 = vmatpush1.bf16.msra.mxu0 0
      %2007 = vmatprep.subr.bf16.mxu0 0
      %2008 = vmatpush1.bf16.msra.mxu0 0
      %2009 = vmatprep.subr.bf16.mxu0 0
      %2010 = vmatpush1.bf16.msra.mxu0 0
      %2011 = vmatprep.subr.bf16.mxu0 0
      %2012 = vmatpush1.bf16.msra.mxu0 0
      %2013 = vmatprep.subr.bf16.mxu0 0
      %2014 = vmatpush1.bf16.msra.mxu0 0
      %2015 = vmatprep.subr.bf16.mxu0 0
      %2016 = vmatpush1.bf16.msra.mxu0 0
      %2017 = vmatprep.subr.bf16.mxu0 0
      %2018 = vmatpush1.bf16.msra.mxu0 0
      %2019 = vmatprep.subr.bf16.mxu0 0
      %2020 = vmatpush1.bf16.msra.mxu0 0
      %2021 = vmatprep.subr.bf16.mxu0 0
      %2022 = vmatpush1.bf16.msra.mxu0 0
      %2023 = vmatprep.subr.bf16.mxu0 0
      %2024 = vmatpush1.bf16.msra.mxu0 0
      %2025 = vmatprep.subr.bf16.mxu0 0
      %2026 = vmatpush1.bf16.msra.mxu0 0
      %2027 = vmatprep.subr.bf16.mxu0 0
      %2028 = vmatpush1.bf16.msra.mxu0 0
      %2029 = vmatprep.subr.bf16.mxu0 0
      %2030 = vmatpush1.bf16.msra.mxu0 0
      %2031 = vmatprep.subr.bf16.mxu0 0
      %2032 = vmatpush1.bf16.msra.mxu0 0
      %2033 = vmatprep.mubr.bf16.mxu0 0
      %2034 = vmatmul.mubr.bf16.gmra.mrb[0].mxu0 %v1550
      %v2035 = vpop.f32.mrb[0].mxu0
      %v2036 = vadd.f32 0.0, %v2035
      %v2037 = vpop.f32.mrb[0].mxu0
      %v2038 = vadd.f32 0.0, %v2037
      %v2039 = vpop.f32.mrb[0].mxu0
      %v2040 = vadd.f32 0.0, %v2039
      %v2041 = vpop.f32.mrb[0].mxu0
      %v2042 = vadd.f32 0.0, %v2041
      %2043 = vmatprep.mubr.bf16.mxu0 0
      %2044 = vmatmul.mubr.bf16.gmra.mrb[0].mxu0 %v1553
      %v2045 = vpop.f32.mrb[0].mxu0
      %v2046 = vadd.f32 0.0, %v2045
      %v2047 = vpop.f32.mrb[0].mxu0
      %v2048 = vadd.f32 0.0, %v2047
      %v2049 = vpop.f32.mrb[0].mxu0
      %v2050 = vadd.f32 0.0, %v2049
      %v2051 = vpop.f32.mrb[0].mxu0
      %v2052 = vadd.f32 0.0, %v2051
      %2053 = vmatprep.mubr.bf16.mxu0 0
      %2054 = vmatmul.mubr.bf16.gmra.mrb[0].mxu0 %v1556
      %v2055 = vpop.f32.mrb[0].mxu0
      %v2056 = vadd.f32 0.0, %v2055
      %v2057 = vpop.f32.mrb[0].mxu0
      %v2058 = vadd.f32 0.0, %v2057
      %v2059 = vpop.f32.mrb[0].mxu0
      %v2060 = vadd.f32 0.0, %v2059
      %v2061 = vpop.f32.mrb[0].mxu0
      %v2062 = vadd.f32 0.0, %v2061
      %2063 = vmatprep.mubr.bf16.mxu0 0
      %2064 = vmatmul.mubr.bf16.gmra.mrb[0].mxu0 %v1559
      %v2065 = vpop.f32.mrb[0].mxu0
      %v2066 = vadd.f32 0.0, %v2065
      %v2067 = vpop.f32.mrb[0].mxu0
      %v2068 = vadd.f32 0.0, %v2067
      %v2069 = vpop.f32.mrb[0].mxu0
      %v2070 = vadd.f32 0.0, %v2069
      %v2071 = vpop.f32.mrb[0].mxu0
      %v2072 = vadd.f32 0.0, %v2071
      %2073 = vdwg.mxu0
      %2074 = vmatprep.subr.bf16.mxu0 %v1601
      %2075 = vmatpush1.bf16.msra.mxu0 %v1598
      %2076 = vmatprep.subr.bf16.mxu0 0
      %2077 = vmatpush1.bf16.msra.mxu0 0
      %2078 = vmatprep.subr.bf16.mxu0 0
      %2079 = vmatpush1.bf16.msra.mxu0 0
      %2080 = vmatprep.subr.bf16.mxu0 0
      %2081 = vmatpush1.bf16.msra.mxu0 0
      %2082 = vmatprep.subr.bf16.mxu0 0
      %2083 = vmatpush1.bf16.msra.mxu0 0
      %2084 = vmatprep.subr.bf16.mxu0 0
      %2085 = vmatpush1.bf16.msra.mxu0 0
      %2086 = vmatprep.subr.bf16.mxu0 0
      %2087 = vmatpush1.bf16.msra.mxu0 0
      %2088 = vmatprep.subr.bf16.mxu0 0
      %2089 = vmatpush1.bf16.msra.mxu0 0
      %2090 = vmatprep.subr.bf16.mxu0 0
      %2091 = vmatpush1.bf16.msra.mxu0 0
      %2092 = vmatprep.subr.bf16.mxu0 0
      %2093 = vmatpush1.bf16.msra.mxu0 0
      %2094 = vmatprep.subr.bf16.mxu0 0
      %2095 = vmatpush1.bf16.msra.mxu0 0
      %2096 = vmatprep.subr.bf16.mxu0 0
      %2097 = vmatpush1.bf16.msra.mxu0 0
      %2098 = vmatprep.subr.bf16.mxu0 0
      %2099 = vmatpush1.bf16.msra.mxu0 0
      %2100 = vmatprep.subr.bf16.mxu0 0
      %2101 = vmatpush1.bf16.msra.mxu0 0
      %2102 = vmatprep.subr.bf16.mxu0 0
      %2103 = vmatpush1.bf16.msra.mxu0 0
      %2104 = vmatprep.subr.bf16.mxu0 0
      %2105 = vmatpush1.bf16.msra.mxu0 0
      %2106 = vmatprep.mubr.bf16.mxu0 0
      %2107 = vmatmul.mubr.bf16.gmra.mrb[0].mxu0 %v1550
      %v2108 = vpop.f32.mrb[0].mxu0
      %v2109 = vadd.f32 0.0, %v2108
      %v2110 = vpop.f32.mrb[0].mxu0
      %v2111 = vadd.f32 0.0, %v2110
      %v2112 = vpop.f32.mrb[0].mxu0
      %v2113 = vadd.f32 0.0, %v2112
      %v2114 = vpop.f32.mrb[0].mxu0
      %v2115 = vadd.f32 0.0, %v2114
      %2116 = vmatprep.mubr.bf16.mxu0 0
      %2117 = vmatmul.mubr.bf16.gmra.mrb[0].mxu0 %v1553
      %v2118 = vpop.f32.mrb[0].mxu0
      %v2119 = vadd.f32 0.0, %v2118
      %v2120 = vpop.f32.mrb[0].mxu0
      %v2121 = vadd.f32 0.0, %v2120
      %v2122 = vpop.f32.mrb[0].mxu0
      %v2123 = vadd.f32 0.0, %v2122
      %v2124 = vpop.f32.mrb[0].mxu0
      %v2125 = vadd.f32 0.0, %v2124
      %2126 = vmatprep.mubr.bf16.mxu0 0
      %2127 = vmatmul.mubr.bf16.gmra.mrb[0].mxu0 %v1556
      %v2128 = vpop.f32.mrb[0].mxu0
      %v2129 = vadd.f32 0.0, %v2128
      %v2130 = vpop.f32.mrb[0].mxu0
      %v2131 = vadd.f32 0.0, %v2130
      %v2132 = vpop.f32.mrb[0].mxu0
      %v2133 = vadd.f32 0.0, %v2132
      %v2134 = vpop.f32.mrb[0].mxu0
      %v2135 = vadd.f32 0.0, %v2134
      %2136 = vmatprep.mubr.bf16.mxu0 0
      %2137 = vmatmul.mubr.bf16.gmra.mrb[0].mxu0 %v1559
      %v2138 = vpop.f32.mrb[0].mxu0
      %v2139 = vadd.f32 0.0, %v2138
      %v2140 = vpop.f32.mrb[0].mxu0
      %v2141 = vadd.f32 0.0, %v2140
      %v2142 = vpop.f32.mrb[0].mxu0
      %v2143 = vadd.f32 0.0, %v2142
      %v2144 = vpop.f32.mrb[0].mxu0
      %v2145 = vadd.f32 0.0, %v2144
      %2146 = vdwg.mxu0
      %2147 = vmatprep.subr.bf16.mxu0 %v1607
      %2148 = vmatpush1.bf16.msra.mxu0 %v1604
      %2149 = vmatprep.subr.bf16.mxu0 0
      %2150 = vmatpush1.bf16.msra.mxu0 0
      %2151 = vmatprep.subr.bf16.mxu0 0
      %2152 = vmatpush1.bf16.msra.mxu0 0
      %2153 = vmatprep.subr.bf16.mxu0 0
      %2154 = vmatpush1.bf16.msra.mxu0 0
      %2155 = vmatprep.subr.bf16.mxu0 0
      %2156 = vmatpush1.bf16.msra.mxu0 0
      %2157 = vmatprep.subr.bf16.mxu0 0
      %2158 = vmatpush1.bf16.msra.mxu0 0
      %2159 = vmatprep.subr.bf16.mxu0 0
      %2160 = vmatpush1.bf16.msra.mxu0 0
      %2161 = vmatprep.subr.bf16.mxu0 0
      %2162 = vmatpush1.bf16.msra.mxu0 0
      %2163 = vmatprep.subr.bf16.mxu0 0
      %2164 = vmatpush1.bf16.msra.mxu0 0
      %2165 = vmatprep.subr.bf16.mxu0 0
      %2166 = vmatpush1.bf16.msra.mxu0 0
      %2167 = vmatprep.subr.bf16.mxu0 0
      %2168 = vmatpush1.bf16.msra.mxu0 0
      %2169 = vmatprep.subr.bf16.mxu0 0
      %2170 = vmatpush1.bf16.msra.mxu0 0
      %2171 = vmatprep.subr.bf16.mxu0 0
      %2172 = vmatpush1.bf16.msra.mxu0 0
      %2173 = vmatprep.subr.bf16.mxu0 0
      %2174 = vmatpush1.bf16.msra.mxu0 0
      %2175 = vmatprep.subr.bf16.mxu0 0
      %2176 = vmatpush1.bf16.msra.mxu0 0
      %2177 = vmatprep.subr.bf16.mxu0 0
      %2178 = vmatpush1.bf16.msra.mxu0 0
      %2179 = vmatprep.mubr.bf16.mxu0 0
      %2180 = vmatmul.mubr.bf16.gmra.mrb[0].mxu0 %v1550
      %v2181 = vpop.f32.mrb[0].mxu0
      %v2182 = vadd.f32 0.0, %v2181
      %v2183 = vpop.f32.mrb[0].mxu0
      %v2184 = vadd.f32 0.0, %v2183
      %v2185 = vpop.f32.mrb[0].mxu0
      %v2186 = vadd.f32 0.0, %v2185
      %v2187 = vpop.f32.mrb[0].mxu0
      %v2188 = vadd.f32 0.0, %v2187
      %2189 = vmatprep.mubr.bf16.mxu0 0
      %2190 = vmatmul.mubr.bf16.gmra.mrb[0].mxu0 %v1553
      %v2191 = vpop.f32.mrb[0].mxu0
      %v2192 = vadd.f32 0.0, %v2191
      %v2193 = vpop.f32.mrb[0].mxu0
      %v2194 = vadd.f32 0.0, %v2193
      %v2195 = vpop.f32.mrb[0].mxu0
      %v2196 = vadd.f32 0.0, %v2195
      %v2197 = vpop.f32.mrb[0].mxu0
      %v2198 = vadd.f32 0.0, %v2197
      %2199 = vmatprep.mubr.bf16.mxu0 0
      %2200 = vmatmul.mubr.bf16.gmra.mrb[0].mxu0 %v1556
      %v2201 = vpop.f32.mrb[0].mxu0
      %v2202 = vadd.f32 0.0, %v2201
      %v2203 = vpop.f32.mrb[0].mxu0
      %v2204 = vadd.f32 0.0, %v2203
      %v2205 = vpop.f32.mrb[0].mxu0
      %v2206 = vadd.f32 0.0, %v2205
      %v2207 = vpop.f32.mrb[0].mxu0
      %v2208 = vadd.f32 0.0, %v2207
      %2209 = vmatprep.mubr.bf16.mxu0 0
      %2210 = vmatmul.mubr.bf16.gmra.mrb[0].mxu0 %v1559
      %v2211 = vpop.f32.mrb[0].mxu0
      %v2212 = vadd.f32 0.0, %v2211
      %v2213 = vpop.f32.mrb[0].mxu0
      %v2214 = vadd.f32 0.0, %v2213
      %v2215 = vpop.f32.mrb[0].mxu0
      %v2216 = vadd.f32 0.0, %v2215
      %v2217 = vpop.f32.mrb[0].mxu0
      %v2218 = vadd.f32 0.0, %v2217
      %2219 = vdwg.mxu0
      %2220 = vmatprep.subr.bf16.mxu0 %v1613
      %2221 = vmatpush1.bf16.msra.mxu0 %v1610
      %2222 = vmatprep.subr.bf16.mxu0 0
      %2223 = vmatpush1.bf16.msra.mxu0 0
      %2224 = vmatprep.subr.bf16.mxu0 0
      %2225 = vmatpush1.bf16.msra.mxu0 0
      %2226 = vmatprep.subr.bf16.mxu0 0
      %2227 = vmatpush1.bf16.msra.mxu0 0
      %2228 = vmatprep.subr.bf16.mxu0 0
      %2229 = vmatpush1.bf16.msra.mxu0 0
      %2230 = vmatprep.subr.bf16.mxu0 0
      %2231 = vmatpush1.bf16.msra.mxu0 0
      %2232 = vmatprep.subr.bf16.mxu0 0
      %2233 = vmatpush1.bf16.msra.mxu0 0
      %2234 = vmatprep.subr.bf16.mxu0 0
      %2235 = vmatpush1.bf16.msra.mxu0 0
      %2236 = vmatprep.subr.bf16.mxu0 0
      %2237 = vmatpush1.bf16.msra.mxu0 0
      %2238 = vmatprep.subr.bf16.mxu0 0
      %2239 = vmatpush1.bf16.msra.mxu0 0
      %2240 = vmatprep.subr.bf16.mxu0 0
      %2241 = vmatpush1.bf16.msra.mxu0 0
      %2242 = vmatprep.subr.bf16.mxu0 0
      %2243 = vmatpush1.bf16.msra.mxu0 0
      %2244 = vmatprep.subr.bf16.mxu0 0
      %2245 = vmatpush1.bf16.msra.mxu0 0
      %2246 = vmatprep.subr.bf16.mxu0 0
      %2247 = vmatpush1.bf16.msra.mxu0 0
      %2248 = vmatprep.subr.bf16.mxu0 0
      %2249 = vmatpush1.bf16.msra.mxu0 0
      %2250 = vmatprep.subr.bf16.mxu0 0
      %2251 = vmatpush1.bf16.msra.mxu0 0
      %2252 = vmatprep.mubr.bf16.mxu0 0
      %2253 = vmatmul.mubr.bf16.gmra.mrb[0].mxu0 %v1550
      %v2254 = vpop.f32.mrb[0].mxu0
      %v2255 = vadd.f32 0.0, %v2254
      %v2256 = vpop.f32.mrb[0].mxu0
      %v2257 = vadd.f32 0.0, %v2256
      %v2258 = vpop.f32.mrb[0].mxu0
      %v2259 = vadd.f32 0.0, %v2258
      %v2260 = vpop.f32.mrb[0].mxu0
      %v2261 = vadd.f32 0.0, %v2260
      %2262 = vmatprep.mubr.bf16.mxu0 0
      %2263 = vmatmul.mubr.bf16.gmra.mrb[0].mxu0 %v1553
      %v2264 = vpop.f32.mrb[0].mxu0
      %v2265 = vadd.f32 0.0, %v2264
      %v2266 = vpop.f32.mrb[0].mxu0
      %v2267 = vadd.f32 0.0, %v2266
      %v2268 = vpop.f32.mrb[0].mxu0
      %v2269 = vadd.f32 0.0, %v2268
      %v2270 = vpop.f32.mrb[0].mxu0
      %v2271 = vadd.f32 0.0, %v2270
      %2272 = vmatprep.mubr.bf16.mxu0 0
      %2273 = vmatmul.mubr.bf16.gmra.mrb[0].mxu0 %v1556
      %v2274 = vpop.f32.mrb[0].mxu0
      %v2275 = vadd.f32 0.0, %v2274
      %v2276 = vpop.f32.mrb[0].mxu0
      %v2277 = vadd.f32 0.0, %v2276
      %v2278 = vpop.f32.mrb[0].mxu0
      %v2279 = vadd.f32 0.0, %v2278
      %v2280 = vpop.f32.mrb[0].mxu0
      %v2281 = vadd.f32 0.0, %v2280
      %2282 = vmatprep.mubr.bf16.mxu0 0
      %2283 = vmatmul.mubr.bf16.gmra.mrb[0].mxu0 %v1559
      %v2284 = vpop.f32.mrb[0].mxu0
      %v2285 = vadd.f32 0.0, %v2284
      %v2286 = vpop.f32.mrb[0].mxu0
      %v2287 = vadd.f32 0.0, %v2286
      %v2288 = vpop.f32.mrb[0].mxu0
      %v2289 = vadd.f32 0.0, %v2288
      %v2290 = vpop.f32.mrb[0].mxu0
      %v2291 = vadd.f32 0.0, %v2290
      %2292 = vdwg.mxu0
      %2293 = vmatprep.subr.bf16.mxu0 %v1619
      %2294 = vmatpush1.bf16.msra.mxu0 %v1616
      %2295 = vmatprep.subr.bf16.mxu0 0
      %2296 = vmatpush1.bf16.msra.mxu0 0
      %2297 = vmatprep.subr.bf16.mxu0 0
      %2298 = vmatpush1.bf16.msra.mxu0 0
      %2299 = vmatprep.subr.bf16.mxu0 0
      %2300 = vmatpush1.bf16.msra.mxu0 0
      %2301 = vmatprep.subr.bf16.mxu0 0
      %2302 = vmatpush1.bf16.msra.mxu0 0
      %2303 = vmatprep.subr.bf16.mxu0 0
      %2304 = vmatpush1.bf16.msra.mxu0 0
      %2305 = vmatprep.subr.bf16.mxu0 0
      %2306 = vmatpush1.bf16.msra.mxu0 0
      %2307 = vmatprep.subr.bf16.mxu0 0
      %2308 = vmatpush1.bf16.msra.mxu0 0
      %2309 = vmatprep.subr.bf16.mxu0 0
      %2310 = vmatpush1.bf16.msra.mxu0 0
      %2311 = vmatprep.subr.bf16.mxu0 0
      %2312 = vmatpush1.bf16.msra.mxu0 0
      %2313 = vmatprep.subr.bf16.mxu0 0
      %2314 = vmatpush1.bf16.msra.mxu0 0
      %2315 = vmatprep.subr.bf16.mxu0 0
      %2316 = vmatpush1.bf16.msra.mxu0 0
      %2317 = vmatprep.subr.bf16.mxu0 0
      %2318 = vmatpush1.bf16.msra.mxu0 0
      %2319 = vmatprep.subr.bf16.mxu0 0
      %2320 = vmatpush1.bf16.msra.mxu0 0
      %2321 = vmatprep.subr.bf16.mxu0 0
      %2322 = vmatpush1.bf16.msra.mxu0 0
      %2323 = vmatprep.subr.bf16.mxu0 0
      %2324 = vmatpush1.bf16.msra.mxu0 0
      %2325 = vmatprep.mubr.bf16.mxu0 0
      %2326 = vmatmul.mubr.bf16.gmra.mrb[0].mxu0 %v1550
      %v2327 = vpop.f32.mrb[0].mxu0
      %v2328 = vadd.f32 0.0, %v2327
      %v2329 = vpop.f32.mrb[0].mxu0
      %v2330 = vadd.f32 0.0, %v2329
      %v2331 = vpop.f32.mrb[0].mxu0
      %v2332 = vadd.f32 0.0, %v2331
      %v2333 = vpop.f32.mrb[0].mxu0
      %v2334 = vadd.f32 0.0, %v2333
      %2335 = vmatprep.mubr.bf16.mxu0 0
      %2336 = vmatmul.mubr.bf16.gmra.mrb[0].mxu0 %v1553
      %v2337 = vpop.f32.mrb[0].mxu0
      %v2338 = vadd.f32 0.0, %v2337
      %v2339 = vpop.f32.mrb[0].mxu0
      %v2340 = vadd.f32 0.0, %v2339
      %v2341 = vpop.f32.mrb[0].mxu0
      %v2342 = vadd.f32 0.0, %v2341
      %v2343 = vpop.f32.mrb[0].mxu0
      %v2344 = vadd.f32 0.0, %v2343
      %2345 = vmatprep.mubr.bf16.mxu0 0
      %2346 = vmatmul.mubr.bf16.gmra.mrb[0].mxu0 %v1556
      %v2347 = vpop.f32.mrb[0].mxu0
      %v2348 = vadd.f32 0.0, %v2347
      %v2349 = vpop.f32.mrb[0].mxu0
      %v2350 = vadd.f32 0.0, %v2349
      %v2351 = vpop.f32.mrb[0].mxu0
      %v2352 = vadd.f32 0.0, %v2351
      %v2353 = vpop.f32.mrb[0].mxu0
      %v2354 = vadd.f32 0.0, %v2353
      %2355 = vmatprep.mubr.bf16.mxu0 0
      %2356 = vmatmul.mubr.bf16.gmra.mrb[0].mxu0 %v1559
      %v2357 = vpop.f32.mrb[0].mxu0
      %v2358 = vadd.f32 0.0, %v2357
      %v2359 = vpop.f32.mrb[0].mxu0
      %v2360 = vadd.f32 0.0, %v2359
      %v2361 = vpop.f32.mrb[0].mxu0
      %v2362 = vadd.f32 0.0, %v2361
      %v2363 = vpop.f32.mrb[0].mxu0
      %v2364 = vadd.f32 0.0, %v2363
      %2365 = vdwg.mxu0
      %2366 = vmatprep.subr.bf16.mxu0 %v1625
      %2367 = vmatpush1.bf16.msra.mxu0 %v1622
      %2368 = vmatprep.subr.bf16.mxu0 0
      %2369 = vmatpush1.bf16.msra.mxu0 0
      %2370 = vmatprep.subr.bf16.mxu0 0
      %2371 = vmatpush1.bf16.msra.mxu0 0
      %2372 = vmatprep.subr.bf16.mxu0 0
      %2373 = vmatpush1.bf16.msra.mxu0 0
      %2374 = vmatprep.subr.bf16.mxu0 0
      %2375 = vmatpush1.bf16.msra.mxu0 0
      %2376 = vmatprep.subr.bf16.mxu0 0
      %2377 = vmatpush1.bf16.msra.mxu0 0
      %2378 = vmatprep.subr.bf16.mxu0 0
      %2379 = vmatpush1.bf16.msra.mxu0 0
      %2380 = vmatprep.subr.bf16.mxu0 0
      %2381 = vmatpush1.bf16.msra.mxu0 0
      %2382 = vmatprep.subr.bf16.mxu0 0
      %2383 = vmatpush1.bf16.msra.mxu0 0
      %2384 = vmatprep.subr.bf16.mxu0 0
      %2385 = vmatpush1.bf16.msra.mxu0 0
      %2386 = vmatprep.subr.bf16.mxu0 0
      %2387 = vmatpush1.bf16.msra.mxu0 0
      %2388 = vmatprep.subr.bf16.mxu0 0
      %2389 = vmatpush1.bf16.msra.mxu0 0
      %2390 = vmatprep.subr.bf16.mxu0 0
      %2391 = vmatpush1.bf16.msra.mxu0 0
      %2392 = vmatprep.subr.bf16.mxu0 0
      %2393 = vmatpush1.bf16.msra.mxu0 0
      %2394 = vmatprep.subr.bf16.mxu0 0
      %2395 = vmatpush1.bf16.msra.mxu0 0
      %2396 = vmatprep.subr.bf16.mxu0 0
      %2397 = vmatpush1.bf16.msra.mxu0 0
      %2398 = vmatprep.mubr.bf16.mxu0 0
      %2399 = vmatmul.mubr.bf16.gmra.mrb[0].mxu0 %v1550
      %v2400 = vpop.f32.mrb[0].mxu0
      %v2401 = vadd.f32 0.0, %v2400
      %v2402 = vpop.f32.mrb[0].mxu0
      %v2403 = vadd.f32 0.0, %v2402
      %v2404 = vpop.f32.mrb[0].mxu0
      %v2405 = vadd.f32 0.0, %v2404
      %v2406 = vpop.f32.mrb[0].mxu0
      %v2407 = vadd.f32 0.0, %v2406
      %2408 = vmatprep.mubr.bf16.mxu0 0
      %2409 = vmatmul.mubr.bf16.gmra.mrb[0].mxu0 %v1553
      %v2410 = vpop.f32.mrb[0].mxu0
      %v2411 = vadd.f32 0.0, %v2410
      %v2412 = vpop.f32.mrb[0].mxu0
      %v2413 = vadd.f32 0.0, %v2412
      %v2414 = vpop.f32.mrb[0].mxu0
      %v2415 = vadd.f32 0.0, %v2414
      %v2416 = vpop.f32.mrb[0].mxu0
      %v2417 = vadd.f32 0.0, %v2416
      %2418 = vmatprep.mubr.bf16.mxu0 0
      %2419 = vmatmul.mubr.bf16.gmra.mrb[0].mxu0 %v1556
      %v2420 = vpop.f32.mrb[0].mxu0
      %v2421 = vadd.f32 0.0, %v2420
      %v2422 = vpop.f32.mrb[0].mxu0
      %v2423 = vadd.f32 0.0, %v2422
      %v2424 = vpop.f32.mrb[0].mxu0
      %v2425 = vadd.f32 0.0, %v2424
      %v2426 = vpop.f32.mrb[0].mxu0
      %v2427 = vadd.f32 0.0, %v2426
      %2428 = vmatprep.mubr.bf16.mxu0 0
      %2429 = vmatmul.mubr.bf16.gmra.mrb[0].mxu0 %v1559
      %v2430 = vpop.f32.mrb[0].mxu0
      %v2431 = vadd.f32 0.0, %v2430
      %v2432 = vpop.f32.mrb[0].mxu0
      %v2433 = vadd.f32 0.0, %v2432
      %v2434 = vpop.f32.mrb[0].mxu0
      %v2435 = vadd.f32 0.0, %v2434
      %v2436 = vpop.f32.mrb[0].mxu0
      %v2437 = vadd.f32 0.0, %v2436
      %2438 = vdwg.mxu0
      %2439 = vmatprep.subr.bf16.mxu0 %v1631
      %2440 = vmatpush1.bf16.msra.mxu0 %v1628
      %2441 = vmatprep.subr.bf16.mxu0 0
      %2442 = vmatpush1.bf16.msra.mxu0 0
      %2443 = vmatprep.subr.bf16.mxu0 0
      %2444 = vmatpush1.bf16.msra.mxu0 0
      %2445 = vmatprep.subr.bf16.mxu0 0
      %2446 = vmatpush1.bf16.msra.mxu0 0
      %2447 = vmatprep.subr.bf16.mxu0 0
      %2448 = vmatpush1.bf16.msra.mxu0 0
      %2449 = vmatprep.subr.bf16.mxu0 0
      %2450 = vmatpush1.bf16.msra.mxu0 0
      %2451 = vmatprep.subr.bf16.mxu0 0
      %2452 = vmatpush1.bf16.msra.mxu0 0
      %2453 = vmatprep.subr.bf16.mxu0 0
      %2454 = vmatpush1.bf16.msra.mxu0 0
      %2455 = vmatprep.subr.bf16.mxu0 0
      %2456 = vmatpush1.bf16.msra.mxu0 0
      %2457 = vmatprep.subr.bf16.mxu0 0
      %2458 = vmatpush1.bf16.msra.mxu0 0
      %2459 = vmatprep.subr.bf16.mxu0 0
      %2460 = vmatpush1.bf16.msra.mxu0 0
      %2461 = vmatprep.subr.bf16.mxu0 0
      %2462 = vmatpush1.bf16.msra.mxu0 0
      %2463 = vmatprep.subr.bf16.mxu0 0
      %2464 = vmatpush1.bf16.msra.mxu0 0
      %2465 = vmatprep.subr.bf16.mxu0 0
      %2466 = vmatpush1.bf16.msra.mxu0 0
      %2467 = vmatprep.subr.bf16.mxu0 0
      %2468 = vmatpush1.bf16.msra.mxu0 0
      %2469 = vmatprep.subr.bf16.mxu0 0
      %2470 = vmatpush1.bf16.msra.mxu0 0
      %2471 = vmatprep.mubr.bf16.mxu0 0
      %2472 = vmatmul.mubr.bf16.gmra.mrb[0].mxu0 %v1550
      %v2473 = vpop.f32.mrb[0].mxu0
      %v2474 = vadd.f32 0.0, %v2473
      %v2475 = vpop.f32.mrb[0].mxu0
      %v2476 = vadd.f32 0.0, %v2475
      %v2477 = vpop.f32.mrb[0].mxu0
      %v2478 = vadd.f32 0.0, %v2477
      %v2479 = vpop.f32.mrb[0].mxu0
      %v2480 = vadd.f32 0.0, %v2479
      %2481 = vmatprep.mubr.bf16.mxu0 0
      %2482 = vmatmul.mubr.bf16.gmra.mrb[0].mxu0 %v1553
      %v2483 = vpop.f32.mrb[0].mxu0
      %v2484 = vadd.f32 0.0, %v2483
      %v2485 = vpop.f32.mrb[0].mxu0
      %v2486 = vadd.f32 0.0, %v2485
      %v2487 = vpop.f32.mrb[0].mxu0
      %v2488 = vadd.f32 0.0, %v2487
      %v2489 = vpop.f32.mrb[0].mxu0
      %v2490 = vadd.f32 0.0, %v2489
      %2491 = vmatprep.mubr.bf16.mxu0 0
      %2492 = vmatmul.mubr.bf16.gmra.mrb[0].mxu0 %v1556
      %v2493 = vpop.f32.mrb[0].mxu0
      %v2494 = vadd.f32 0.0, %v2493
      %v2495 = vpop.f32.mrb[0].mxu0
      %v2496 = vadd.f32 0.0, %v2495
      %v2497 = vpop.f32.mrb[0].mxu0
      %v2498 = vadd.f32 0.0, %v2497
      %v2499 = vpop.f32.mrb[0].mxu0
      %v2500 = vadd.f32 0.0, %v2499
      %2501 = vmatprep.mubr.bf16.mxu0 0
      %2502 = vmatmul.mubr.bf16.gmra.mrb[0].mxu0 %v1559
      %v2503 = vpop.f32.mrb[0].mxu0
      %v2504 = vadd.f32 0.0, %v2503
      %v2505 = vpop.f32.mrb[0].mxu0
      %v2506 = vadd.f32 0.0, %v2505
      %v2507 = vpop.f32.mrb[0].mxu0
      %v2508 = vadd.f32 0.0, %v2507
      %v2509 = vpop.f32.mrb[0].mxu0
      %v2510 = vadd.f32 0.0, %v2509
      %2511 = vdwg.mxu0
      %2512 = vmatprep.subr.bf16.mxu0 0
      %2513 = vmatpush1.bf16.msra.mxu0 %v1634
      %2514 = vmatprep.subr.bf16.mxu0 0
      %2515 = vmatpush1.bf16.msra.mxu0 0
      %2516 = vmatprep.subr.bf16.mxu0 0
      %2517 = vmatpush1.bf16.msra.mxu0 0
      %2518 = vmatprep.subr.bf16.mxu0 0
      %2519 = vmatpush1.bf16.msra.mxu0 0
      %2520 = vmatprep.subr.bf16.mxu0 0
      %2521 = vmatpush1.bf16.msra.mxu0 0
      %2522 = vmatprep.subr.bf16.mxu0 0
      %2523 = vmatpush1.bf16.msra.mxu0 0
      %2524 = vmatprep.subr.bf16.mxu0 0
      %2525 = vmatpush1.bf16.msra.mxu0 0
      %2526 = vmatprep.subr.bf16.mxu0 0
      %2527 = vmatpush1.bf16.msra.mxu0 0
      %2528 = vmatprep.subr.bf16.mxu0 0
      %2529 = vmatpush1.bf16.msra.mxu0 0
      %2530 = vmatprep.subr.bf16.mxu0 0
      %2531 = vmatpush1.bf16.msra.mxu0 0
      %2532 = vmatprep.subr.bf16.mxu0 0
      %2533 = vmatpush1.bf16.msra.mxu0 0
      %2534 = vmatprep.subr.bf16.mxu0 0
      %2535 = vmatpush1.bf16.msra.mxu0 0
      %2536 = vmatprep.subr.bf16.mxu0 0
      %2537 = vmatpush1.bf16.msra.mxu0 0
      %2538 = vmatprep.subr.bf16.mxu0 0
      %2539 = vmatpush1.bf16.msra.mxu0 0
      %2540 = vmatprep.subr.bf16.mxu0 0
      %2541 = vmatpush1.bf16.msra.mxu0 0
      %2542 = vmatprep.subr.bf16.mxu0 0
      %2543 = vmatpush1.bf16.msra.mxu0 0
      %2544 = vmatprep.mubr.bf16.mxu0 0
      %2545 = vmatmul.mubr.bf16.gmra.mrb[0].mxu0 %v1550
      %v2546 = vpop.f32.mrb[0].mxu0
      %v2547 = vadd.f32 0.0, %v2546
      %v2548 = vpop.f32.mrb[0].mxu0
      %v2549 = vpop.f32.mrb[0].mxu0
      %v2550 = vadd.f32 0.0, %v2549
      %v2551 = vpop.f32.mrb[0].mxu0
      %2552 = vmatprep.mubr.bf16.mxu0 0
      %2553 = vmatmul.mubr.bf16.gmra.mrb[0].mxu0 %v1553
      %v2554 = vpop.f32.mrb[0].mxu0
      %v2555 = vadd.f32 0.0, %v2554
      %v2556 = vpop.f32.mrb[0].mxu0
      %v2557 = vpop.f32.mrb[0].mxu0
      %v2558 = vadd.f32 0.0, %v2557
      %v2559 = vpop.f32.mrb[0].mxu0
      %2560 = vmatprep.mubr.bf16.mxu0 0
      %2561 = vmatmul.mubr.bf16.gmra.mrb[0].mxu0 %v1556
      %v2562 = vpop.f32.mrb[0].mxu0
      %v2563 = vadd.f32 0.0, %v2562
      %v2564 = vpop.f32.mrb[0].mxu0
      %v2565 = vpop.f32.mrb[0].mxu0
      %v2566 = vadd.f32 0.0, %v2565
      %v2567 = vpop.f32.mrb[0].mxu0
      %2568 = vmatprep.mubr.bf16.mxu0 0
      %2569 = vmatmul.mubr.bf16.gmra.mrb[0].mxu0 %v1559
      %v2570 = vpop.f32.mrb[0].mxu0
      %v2571 = vadd.f32 0.0, %v2570
      %v2572 = vpop.f32.mrb[0].mxu0
      %v2573 = vpop.f32.mrb[0].mxu0
      %v2574 = vadd.f32 0.0, %v2573
      %v2575 = vpop.f32.mrb[0].mxu0
      %2576 = vdwg.mxu0
      %v2577 = vmax.f32 %v511, %v513
      %v2578 = vmax.f32 %v2577, %v584
      %v2579 = vmax.f32 %v2578, %v586
      %v2580 = vmax.f32 %v2579, %v657
      %v2581 = vmax.f32 %v2580, %v659
      %v2582 = vmax.f32 %v2581, %v730
      %v2583 = vmax.f32 %v2582, %v732
      %v2584 = vmax.f32 %v2583, %v803
      %v2585 = vmax.f32 %v2584, %v805
      %v2586 = vmax.f32 %v2585, %v876
      %v2587 = vmax.f32 %v2586, %v878
      %v2588 = vmax.f32 %v2587, %v949
      %v2589 = vmax.f32 %v2588, %v951
      %v2590 = vmax.f32 %v2589, %v1022
      %v2591 = vmax.f32 %v2590, %v1024
      %v2592 = vmax.f32 %v2591, %v1095
      %v2593 = vmax.f32 %v2592, %v1097
      %v2594 = vmax.f32 %v2593, %v1168
      %v2595 = vmax.f32 %v2594, %v1170
      %v2596 = vmax.f32 %v2595, %v1241
      %v2597 = vmax.f32 %v2596, %v1243
      %v2598 = vmax.f32 %v2597, %v1314
      %v2599 = vmax.f32 %v2598, %v1316
      %vm2600 = vcmask 523264
      %v2601 = vsel %vm2600, %v1387, -inf
      %v2602 = vmax.f32 %v2599, %v2601
      %2603 = vmax.xlane.f32.xlu0 %v2602
      %v2604 = vpop.xlane.xlu0 %2603
      %v2605 = vmax.f32 %v515, %v517
      %v2606 = vmax.f32 %v2605, %v588
      %v2607 = vmax.f32 %v2606, %v590
      %v2608 = vmax.f32 %v2607, %v661
      %v2609 = vmax.f32 %v2608, %v663
      %v2610 = vmax.f32 %v2609, %v734
      %v2611 = vmax.f32 %v2610, %v736
      %v2612 = vmax.f32 %v2611, %v807
      %v2613 = vmax.f32 %v2612, %v809
      %v2614 = vmax.f32 %v2613, %v880
      %v2615 = vmax.f32 %v2614, %v882
      %v2616 = vmax.f32 %v2615, %v953
      %v2617 = vmax.f32 %v2616, %v955
      %v2618 = vmax.f32 %v2617, %v1026
      %v2619 = vmax.f32 %v2618, %v1028
      %v2620 = vmax.f32 %v2619, %v1099
      %v2621 = vmax.f32 %v2620, %v1101
      %v2622 = vmax.f32 %v2621, %v1172
      %v2623 = vmax.f32 %v2622, %v1174
      %v2624 = vmax.f32 %v2623, %v1245
      %v2625 = vmax.f32 %v2624, %v1247
      %v2626 = vmax.f32 %v2625, %v1318
      %v2627 = vmax.f32 %v2626, %v1320
      %v2628 = vsel %vm2600, %v1390, -inf
      %v2629 = vmax.f32 %v2627, %v2628
      %2630 = vmax.xlane.f32.xlu0 %v2629
      %v2631 = vpop.xlane.xlu0 %2630
      %v2632 = vmax.f32 %v521, %v523
      %v2633 = vmax.f32 %v2632, %v594
      %v2634 = vmax.f32 %v2633, %v596
      %v2635 = vmax.f32 %v2634, %v667
      %v2636 = vmax.f32 %v2635, %v669
      %v2637 = vmax.f32 %v2636, %v740
      %v2638 = vmax.f32 %v2637, %v742
      %v2639 = vmax.f32 %v2638, %v813
      %v2640 = vmax.f32 %v2639, %v815
      %v2641 = vmax.f32 %v2640, %v886
      %v2642 = vmax.f32 %v2641, %v888
      %v2643 = vmax.f32 %v2642, %v959
      %v2644 = vmax.f32 %v2643, %v961
      %v2645 = vmax.f32 %v2644, %v1032
      %v2646 = vmax.f32 %v2645, %v1034
      %v2647 = vmax.f32 %v2646, %v1105
      %v2648 = vmax.f32 %v2647, %v1107
      %v2649 = vmax.f32 %v2648, %v1178
      %v2650 = vmax.f32 %v2649, %v1180
      %v2651 = vmax.f32 %v2650, %v1251
      %v2652 = vmax.f32 %v2651, %v1253
      %v2653 = vmax.f32 %v2652, %v1324
      %v2654 = vmax.f32 %v2653, %v1326
      %v2655 = vsel %vm2600, %v1395, -inf
      %v2656 = vmax.f32 %v2654, %v2655
      %2657 = vmax.xlane.f32.xlu0 %v2656
      %v2658 = vpop.xlane.xlu0 %2657
      %v2659 = vmax.f32 %v525, %v527
      %v2660 = vmax.f32 %v2659, %v598
      %v2661 = vmax.f32 %v2660, %v600
      %v2662 = vmax.f32 %v2661, %v671
      %v2663 = vmax.f32 %v2662, %v673
      %v2664 = vmax.f32 %v2663, %v744
      %v2665 = vmax.f32 %v2664, %v746
      %v2666 = vmax.f32 %v2665, %v817
      %v2667 = vmax.f32 %v2666, %v819
      %v2668 = vmax.f32 %v2667, %v890
      %v2669 = vmax.f32 %v2668, %v892
      %v2670 = vmax.f32 %v2669, %v963
      %v2671 = vmax.f32 %v2670, %v965
      %v2672 = vmax.f32 %v2671, %v1036
      %v2673 = vmax.f32 %v2672, %v1038
      %v2674 = vmax.f32 %v2673, %v1109
      %v2675 = vmax.f32 %v2674, %v1111
      %v2676 = vmax.f32 %v2675, %v1182
      %v2677 = vmax.f32 %v2676, %v1184
      %v2678 = vmax.f32 %v2677, %v1255
      %v2679 = vmax.f32 %v2678, %v1257
      %v2680 = vmax.f32 %v2679, %v1328
      %v2681 = vmax.f32 %v2680, %v1330
      %v2682 = vsel %vm2600, %v1398, -inf
      %v2683 = vmax.f32 %v2681, %v2682
      %2684 = vmax.xlane.f32.xlu0 %v2683
      %v2685 = vpop.xlane.xlu0 %2684
      %v2686 = vmax.f32 %v531, %v533
      %v2687 = vmax.f32 %v2686, %v604
      %v2688 = vmax.f32 %v2687, %v606
      %v2689 = vmax.f32 %v2688, %v677
      %v2690 = vmax.f32 %v2689, %v679
      %v2691 = vmax.f32 %v2690, %v750
      %v2692 = vmax.f32 %v2691, %v752
      %v2693 = vmax.f32 %v2692, %v823
      %v2694 = vmax.f32 %v2693, %v825
      %v2695 = vmax.f32 %v2694, %v896
      %v2696 = vmax.f32 %v2695, %v898
      %v2697 = vmax.f32 %v2696, %v969
      %v2698 = vmax.f32 %v2697, %v971
      %v2699 = vmax.f32 %v2698, %v1042
      %v2700 = vmax.f32 %v2699, %v1044
      %v2701 = vmax.f32 %v2700, %v1115
      %v2702 = vmax.f32 %v2701, %v1117
      %v2703 = vmax.f32 %v2702, %v1188
      %v2704 = vmax.f32 %v2703, %v1190
      %v2705 = vmax.f32 %v2704, %v1261
      %v2706 = vmax.f32 %v2705, %v1263
      %v2707 = vmax.f32 %v2706, %v1334
      %v2708 = vmax.f32 %v2707, %v1336
      %v2709 = vsel %vm2600, %v1403, -inf
      %v2710 = vmax.f32 %v2708, %v2709
      %2711 = vmax.xlane.f32.xlu0 %v2710
      %v2712 = vpop.xlane.xlu0 %2711
      %v2713 = vmax.f32 %v535, %v537
      %v2714 = vmax.f32 %v2713, %v608
      %v2715 = vmax.f32 %v2714, %v610
      %v2716 = vmax.f32 %v2715, %v681
      %v2717 = vmax.f32 %v2716, %v683
      %v2718 = vmax.f32 %v2717, %v754
      %v2719 = vmax.f32 %v2718, %v756
      %v2720 = vmax.f32 %v2719, %v827
      %v2721 = vmax.f32 %v2720, %v829
      %v2722 = vmax.f32 %v2721, %v900
      %v2723 = vmax.f32 %v2722, %v902
      %v2724 = vmax.f32 %v2723, %v973
      %v2725 = vmax.f32 %v2724, %v975
      %v2726 = vmax.f32 %v2725, %v1046
      %v2727 = vmax.f32 %v2726, %v1048
      %v2728 = vmax.f32 %v2727, %v1119
      %v2729 = vmax.f32 %v2728, %v1121
      %v2730 = vmax.f32 %v2729, %v1192
      %v2731 = vmax.f32 %v2730, %v1194
      %v2732 = vmax.f32 %v2731, %v1265
      %v2733 = vmax.f32 %v2732, %v1267
      %v2734 = vmax.f32 %v2733, %v1338
      %v2735 = vmax.f32 %v2734, %v1340
      %v2736 = vsel %vm2600, %v1406, -inf
      %v2737 = vmax.f32 %v2735, %v2736
      %2738 = vmax.xlane.f32.xlu0 %v2737
      %v2739 = vpop.xlane.xlu0 %2738
      %v2740 = vmax.f32 %v541, %v543
      %v2741 = vmax.f32 %v2740, %v614
      %v2742 = vmax.f32 %v2741, %v616
      %v2743 = vmax.f32 %v2742, %v687
      %v2744 = vmax.f32 %v2743, %v689
      %v2745 = vmax.f32 %v2744, %v760
      %v2746 = vmax.f32 %v2745, %v762
      %v2747 = vmax.f32 %v2746, %v833
      %v2748 = vmax.f32 %v2747, %v835
      %v2749 = vmax.f32 %v2748, %v906
      %v2750 = vmax.f32 %v2749, %v908
      %v2751 = vmax.f32 %v2750, %v979
      %v2752 = vmax.f32 %v2751, %v981
      %v2753 = vmax.f32 %v2752, %v1052
      %v2754 = vmax.f32 %v2753, %v1054
      %v2755 = vmax.f32 %v2754, %v1125
      %v2756 = vmax.f32 %v2755, %v1127
      %v2757 = vmax.f32 %v2756, %v1198
      %v2758 = vmax.f32 %v2757, %v1200
      %v2759 = vmax.f32 %v2758, %v1271
      %v2760 = vmax.f32 %v2759, %v1273
      %v2761 = vmax.f32 %v2760, %v1344
      %v2762 = vmax.f32 %v2761, %v1346
      %v2763 = vsel %vm2600, %v1411, -inf
      %v2764 = vmax.f32 %v2762, %v2763
      %2765 = vmax.xlane.f32.xlu0 %v2764
      %v2766 = vpop.xlane.xlu0 %2765
      %v2767 = vmax.f32 %v545, %v547
      %v2768 = vmax.f32 %v2767, %v618
      %v2769 = vmax.f32 %v2768, %v620
      %v2770 = vmax.f32 %v2769, %v691
      %v2771 = vmax.f32 %v2770, %v693
      %v2772 = vmax.f32 %v2771, %v764
      %v2773 = vmax.f32 %v2772, %v766
      %v2774 = vmax.f32 %v2773, %v837
      %v2775 = vmax.f32 %v2774, %v839
      %v2776 = vmax.f32 %v2775, %v910
      %v2777 = vmax.f32 %v2776, %v912
      %v2778 = vmax.f32 %v2777, %v983
      %v2779 = vmax.f32 %v2778, %v985
      %v2780 = vmax.f32 %v2779, %v1056
      %v2781 = vmax.f32 %v2780, %v1058
      %v2782 = vmax.f32 %v2781, %v1129
      %v2783 = vmax.f32 %v2782, %v1131
      %v2784 = vmax.f32 %v2783, %v1202
      %v2785 = vmax.f32 %v2784, %v1204
      %v2786 = vmax.f32 %v2785, %v1275
      %v2787 = vmax.f32 %v2786, %v1277
      %v2788 = vmax.f32 %v2787, %v1348
      %v2789 = vmax.f32 %v2788, %v1350
      %v2790 = vsel %vm2600, %v1414, -inf
      %v2791 = vmax.f32 %v2789, %v2790
      %2792 = vmax.xlane.f32.xlu0 %v2791
      %v2793 = vpop.xlane.xlu0 %2792
      %v2794 = vmax.f32 %v1671, %v1673
      %v2795 = vmax.f32 %v2794, %v1744
      %v2796 = vmax.f32 %v2795, %v1746
      %v2797 = vmax.f32 %v2796, %v1817
      %v2798 = vmax.f32 %v2797, %v1819
      %v2799 = vmax.f32 %v2798, %v1890
      %v2800 = vmax.f32 %v2799, %v1892
      %v2801 = vmax.f32 %v2800, %v1963
      %v2802 = vmax.f32 %v2801, %v1965
      %v2803 = vmax.f32 %v2802, %v2036
      %v2804 = vmax.f32 %v2803, %v2038
      %v2805 = vmax.f32 %v2804, %v2109
      %v2806 = vmax.f32 %v2805, %v2111
      %v2807 = vmax.f32 %v2806, %v2182
      %v2808 = vmax.f32 %v2807, %v2184
      %v2809 = vmax.f32 %v2808, %v2255
      %v2810 = vmax.f32 %v2809, %v2257
      %v2811 = vmax.f32 %v2810, %v2328
      %v2812 = vmax.f32 %v2811, %v2330
      %v2813 = vmax.f32 %v2812, %v2401
      %v2814 = vmax.f32 %v2813, %v2403
      %v2815 = vmax.f32 %v2814, %v2474
      %v2816 = vmax.f32 %v2815, %v2476
      %v2817 = vsel %vm2600, %v2547, -inf
      %v2818 = vmax.f32 %v2816, %v2817
      %2819 = vmax.xlane.f32.xlu0 %v2818
      %v2820 = vpop.xlane.xlu0 %2819
      %v2821 = vmax.f32 %v1675, %v1677
      %v2822 = vmax.f32 %v2821, %v1748
      %v2823 = vmax.f32 %v2822, %v1750
      %v2824 = vmax.f32 %v2823, %v1821
      %v2825 = vmax.f32 %v2824, %v1823
      %v2826 = vmax.f32 %v2825, %v1894
      %v2827 = vmax.f32 %v2826, %v1896
      %v2828 = vmax.f32 %v2827, %v1967
      %v2829 = vmax.f32 %v2828, %v1969
      %v2830 = vmax.f32 %v2829, %v2040
      %v2831 = vmax.f32 %v2830, %v2042
      %v2832 = vmax.f32 %v2831, %v2113
      %v2833 = vmax.f32 %v2832, %v2115
      %v2834 = vmax.f32 %v2833, %v2186
      %v2835 = vmax.f32 %v2834, %v2188
      %v2836 = vmax.f32 %v2835, %v2259
      %v2837 = vmax.f32 %v2836, %v2261
      %v2838 = vmax.f32 %v2837, %v2332
      %v2839 = vmax.f32 %v2838, %v2334
      %v2840 = vmax.f32 %v2839, %v2405
      %v2841 = vmax.f32 %v2840, %v2407
      %v2842 = vmax.f32 %v2841, %v2478
      %v2843 = vmax.f32 %v2842, %v2480
      %v2844 = vsel %vm2600, %v2550, -inf
      %v2845 = vmax.f32 %v2843, %v2844
      %2846 = vmax.xlane.f32.xlu0 %v2845
      %v2847 = vpop.xlane.xlu0 %2846
      %v2848 = vmax.f32 %v1681, %v1683
      %v2849 = vmax.f32 %v2848, %v1754
      %v2850 = vmax.f32 %v2849, %v1756
      %v2851 = vmax.f32 %v2850, %v1827
      %v2852 = vmax.f32 %v2851, %v1829
      %v2853 = vmax.f32 %v2852, %v1900
      %v2854 = vmax.f32 %v2853, %v1902
      %v2855 = vmax.f32 %v2854, %v1973
      %v2856 = vmax.f32 %v2855, %v1975
      %v2857 = vmax.f32 %v2856, %v2046
      %v2858 = vmax.f32 %v2857, %v2048
      %v2859 = vmax.f32 %v2858, %v2119
      %v2860 = vmax.f32 %v2859, %v2121
      %v2861 = vmax.f32 %v2860, %v2192
      %v2862 = vmax.f32 %v2861, %v2194
      %v2863 = vmax.f32 %v2862, %v2265
      %v2864 = vmax.f32 %v2863, %v2267
      %v2865 = vmax.f32 %v2864, %v2338
      %v2866 = vmax.f32 %v2865, %v2340
      %v2867 = vmax.f32 %v2866, %v2411
      %v2868 = vmax.f32 %v2867, %v2413
      %v2869 = vmax.f32 %v2868, %v2484
      %v2870 = vmax.f32 %v2869, %v2486
      %v2871 = vsel %vm2600, %v2555, -inf
      %v2872 = vmax.f32 %v2870, %v2871
      %2873 = vmax.xlane.f32.xlu0 %v2872
      %v2874 = vpop.xlane.xlu0 %2873
      %v2875 = vmax.f32 %v1685, %v1687
      %v2876 = vmax.f32 %v2875, %v1758
      %v2877 = vmax.f32 %v2876, %v1760
      %v2878 = vmax.f32 %v2877, %v1831
      %v2879 = vmax.f32 %v2878, %v1833
      %v2880 = vmax.f32 %v2879, %v1904
      %v2881 = vmax.f32 %v2880, %v1906
      %v2882 = vmax.f32 %v2881, %v1977
      %v2883 = vmax.f32 %v2882, %v1979
      %v2884 = vmax.f32 %v2883, %v2050
      %v2885 = vmax.f32 %v2884, %v2052
      %v2886 = vmax.f32 %v2885, %v2123
      %v2887 = vmax.f32 %v2886, %v2125
      %v2888 = vmax.f32 %v2887, %v2196
      %v2889 = vmax.f32 %v2888, %v2198
      %v2890 = vmax.f32 %v2889, %v2269
      %v2891 = vmax.f32 %v2890, %v2271
      %v2892 = vmax.f32 %v2891, %v2342
      %v2893 = vmax.f32 %v2892, %v2344
      %v2894 = vmax.f32 %v2893, %v2415
      %v2895 = vmax.f32 %v2894, %v2417
      %v2896 = vmax.f32 %v2895, %v2488
      %v2897 = vmax.f32 %v2896, %v2490
      %v2898 = vsel %vm2600, %v2558, -inf
      %v2899 = vmax.f32 %v2897, %v2898
      %2900 = vmax.xlane.f32.xlu0 %v2899
      %v2901 = vpop.xlane.xlu0 %2900
      %v2902 = vmax.f32 %v1691, %v1693
      %v2903 = vmax.f32 %v2902, %v1764
      %v2904 = vmax.f32 %v2903, %v1766
      %v2905 = vmax.f32 %v2904, %v1837
      %v2906 = vmax.f32 %v2905, %v1839
      %v2907 = vmax.f32 %v2906, %v1910
      %v2908 = vmax.f32 %v2907, %v1912
      %v2909 = vmax.f32 %v2908, %v1983
      %v2910 = vmax.f32 %v2909, %v1985
      %v2911 = vmax.f32 %v2910, %v2056
      %v2912 = vmax.f32 %v2911, %v2058
      %v2913 = vmax.f32 %v2912, %v2129
      %v2914 = vmax.f32 %v2913, %v2131
      %v2915 = vmax.f32 %v2914, %v2202
      %v2916 = vmax.f32 %v2915, %v2204
      %v2917 = vmax.f32 %v2916, %v2275
      %v2918 = vmax.f32 %v2917, %v2277
      %v2919 = vmax.f32 %v2918, %v2348
      %v2920 = vmax.f32 %v2919, %v2350
      %v2921 = vmax.f32 %v2920, %v2421
      %v2922 = vmax.f32 %v2921, %v2423
      %v2923 = vmax.f32 %v2922, %v2494
      %v2924 = vmax.f32 %v2923, %v2496
      %v2925 = vsel %vm2600, %v2563, -inf
      %v2926 = vmax.f32 %v2924, %v2925
      %2927 = vmax.xlane.f32.xlu0 %v2926
      %v2928 = vpop.xlane.xlu0 %2927
      %v2929 = vmax.f32 %v1695, %v1697
      %v2930 = vmax.f32 %v2929, %v1768
      %v2931 = vmax.f32 %v2930, %v1770
      %v2932 = vmax.f32 %v2931, %v1841
      %v2933 = vmax.f32 %v2932, %v1843
      %v2934 = vmax.f32 %v2933, %v1914
      %v2935 = vmax.f32 %v2934, %v1916
      %v2936 = vmax.f32 %v2935, %v1987
      %v2937 = vmax.f32 %v2936, %v1989
      %v2938 = vmax.f32 %v2937, %v2060
      %v2939 = vmax.f32 %v2938, %v2062
      %v2940 = vmax.f32 %v2939, %v2133
      %v2941 = vmax.f32 %v2940, %v2135
      %v2942 = vmax.f32 %v2941, %v2206
      %v2943 = vmax.f32 %v2942, %v2208
      %v2944 = vmax.f32 %v2943, %v2279
      %v2945 = vmax.f32 %v2944, %v2281
      %v2946 = vmax.f32 %v2945, %v2352
      %v2947 = vmax.f32 %v2946, %v2354
      %v2948 = vmax.f32 %v2947, %v2425
      %v2949 = vmax.f32 %v2948, %v2427
      %v2950 = vmax.f32 %v2949, %v2498
      %v2951 = vmax.f32 %v2950, %v2500
      %v2952 = vsel %vm2600, %v2566, -inf
      %v2953 = vmax.f32 %v2951, %v2952
      %2954 = vmax.xlane.f32.xlu0 %v2953
      %v2955 = vpop.xlane.xlu0 %2954
      %v2956 = vmax.f32 %v1701, %v1703
      %v2957 = vmax.f32 %v2956, %v1774
      %v2958 = vmax.f32 %v2957, %v1776
      %v2959 = vmax.f32 %v2958, %v1847
      %v2960 = vmax.f32 %v2959, %v1849
      %v2961 = vmax.f32 %v2960, %v1920
      %v2962 = vmax.f32 %v2961, %v1922
      %v2963 = vmax.f32 %v2962, %v1993
      %v2964 = vmax.f32 %v2963, %v1995
      %v2965 = vmax.f32 %v2964, %v2066
      %v2966 = vmax.f32 %v2965, %v2068
      %v2967 = vmax.f32 %v2966, %v2139
      %v2968 = vmax.f32 %v2967, %v2141
      %v2969 = vmax.f32 %v2968, %v2212
      %v2970 = vmax.f32 %v2969, %v2214
      %v2971 = vmax.f32 %v2970, %v2285
      %v2972 = vmax.f32 %v2971, %v2287
      %v2973 = vmax.f32 %v2972, %v2358
      %v2974 = vmax.f32 %v2973, %v2360
      %v2975 = vmax.f32 %v2974, %v2431
      %v2976 = vmax.f32 %v2975, %v2433
      %v2977 = vmax.f32 %v2976, %v2504
      %v2978 = vmax.f32 %v2977, %v2506
      %v2979 = vsel %vm2600, %v2571, -inf
      %v2980 = vmax.f32 %v2978, %v2979
      %2981 = vmax.xlane.f32.xlu0 %v2980
      %v2982 = vpop.xlane.xlu0 %2981
      %v2983 = vmax.f32 %v1705, %v1707
      %v2984 = vmax.f32 %v2983, %v1778
      %v2985 = vmax.f32 %v2984, %v1780
      %v2986 = vmax.f32 %v2985, %v1851
      %v2987 = vmax.f32 %v2986, %v1853
      %v2988 = vmax.f32 %v2987, %v1924
      %v2989 = vmax.f32 %v2988, %v1926
      %v2990 = vmax.f32 %v2989, %v1997
      %v2991 = vmax.f32 %v2990, %v1999
      %v2992 = vmax.f32 %v2991, %v2070
      %v2993 = vmax.f32 %v2992, %v2072
      %v2994 = vmax.f32 %v2993, %v2143
      %v2995 = vmax.f32 %v2994, %v2145
      %v2996 = vmax.f32 %v2995, %v2216
      %v2997 = vmax.f32 %v2996, %v2218
      %v2998 = vmax.f32 %v2997, %v2289
      %v2999 = vmax.f32 %v2998, %v2291
      %v3000 = vmax.f32 %v2999, %v2362
      %v3001 = vmax.f32 %v3000, %v2364
      %v3002 = vmax.f32 %v3001, %v2435
      %v3003 = vmax.f32 %v3002, %v2437
      %v3004 = vmax.f32 %v3003, %v2508
      %v3005 = vmax.f32 %v3004, %v2510
      %v3006 = vsel %vm2600, %v2574, -inf
      %v3007 = vmax.f32 %v3005, %v3006
      %3008 = vmax.xlane.f32.xlu0 %v3007
      %v3009 = vpop.xlane.xlu0 %3008
      %v3010 = vsub.f32 %v511, %v2604
      %v3011 = vsub.f32 %v513, %v2604
      %v3012 = vsub.f32 %v584, %v2604
      %v3013 = vsub.f32 %v586, %v2604
      %v3014 = vsub.f32 %v657, %v2604
      %v3015 = vsub.f32 %v659, %v2604
      %v3016 = vsub.f32 %v730, %v2604
      %v3017 = vsub.f32 %v732, %v2604
      %v3018 = vsub.f32 %v803, %v2604
      %v3019 = vsub.f32 %v805, %v2604
      %v3020 = vsub.f32 %v876, %v2604
      %v3021 = vsub.f32 %v878, %v2604
      %v3022 = vsub.f32 %v949, %v2604
      %v3023 = vsub.f32 %v951, %v2604
      %v3024 = vsub.f32 %v1022, %v2604
      %v3025 = vsub.f32 %v1024, %v2604
      %v3026 = vsub.f32 %v1095, %v2604
      %v3027 = vsub.f32 %v1097, %v2604
      %v3028 = vsub.f32 %v1168, %v2604
      %v3029 = vsub.f32 %v1170, %v2604
      %v3030 = vsub.f32 %v1241, %v2604
      %v3031 = vsub.f32 %v1243, %v2604
      %v3032 = vsub.f32 %v1314, %v2604
      %v3033 = vsub.f32 %v1316, %v2604
      %v3034 = vsub.f32 %v1387, %v2604
      %v3035 = vsub.f32 %v515, %v2631
      %v3036 = vsub.f32 %v517, %v2631
      %v3037 = vsub.f32 %v588, %v2631
      %v3038 = vsub.f32 %v590, %v2631
      %v3039 = vsub.f32 %v661, %v2631
      %v3040 = vsub.f32 %v663, %v2631
      %v3041 = vsub.f32 %v734, %v2631
      %v3042 = vsub.f32 %v736, %v2631
      %v3043 = vsub.f32 %v807, %v2631
      %v3044 = vsub.f32 %v809, %v2631
      %v3045 = vsub.f32 %v880, %v2631
      %v3046 = vsub.f32 %v882, %v2631
      %v3047 = vsub.f32 %v953, %v2631
      %v3048 = vsub.f32 %v955, %v2631
      %v3049 = vsub.f32 %v1026, %v2631
      %v3050 = vsub.f32 %v1028, %v2631
      %v3051 = vsub.f32 %v1099, %v2631
      %v3052 = vsub.f32 %v1101, %v2631
      %v3053 = vsub.f32 %v1172, %v2631
      %v3054 = vsub.f32 %v1174, %v2631
      %v3055 = vsub.f32 %v1245, %v2631
      %v3056 = vsub.f32 %v1247, %v2631
      %v3057 = vsub.f32 %v1318, %v2631
      %v3058 = vsub.f32 %v1320, %v2631
      %v3059 = vsub.f32 %v1390, %v2631
      %v3060 = vsub.f32 %v521, %v2658
      %v3061 = vsub.f32 %v523, %v2658
      %v3062 = vsub.f32 %v594, %v2658
      %v3063 = vsub.f32 %v596, %v2658
      %v3064 = vsub.f32 %v667, %v2658
      %v3065 = vsub.f32 %v669, %v2658
      %v3066 = vsub.f32 %v740, %v2658
      %v3067 = vsub.f32 %v742, %v2658
      %v3068 = vsub.f32 %v813, %v2658
      %v3069 = vsub.f32 %v815, %v2658
      %v3070 = vsub.f32 %v886, %v2658
      %v3071 = vsub.f32 %v888, %v2658
      %v3072 = vsub.f32 %v959, %v2658
      %v3073 = vsub.f32 %v961, %v2658
      %v3074 = vsub.f32 %v1032, %v2658
      %v3075 = vsub.f32 %v1034, %v2658
      %v3076 = vsub.f32 %v1105, %v2658
      %v3077 = vsub.f32 %v1107, %v2658
      %v3078 = vsub.f32 %v1178, %v2658
      %v3079 = vsub.f32 %v1180, %v2658
      %v3080 = vsub.f32 %v1251, %v2658
      %v3081 = vsub.f32 %v1253, %v2658
      %v3082 = vsub.f32 %v1324, %v2658
      %v3083 = vsub.f32 %v1326, %v2658
      %v3084 = vsub.f32 %v1395, %v2658
      %v3085 = vsub.f32 %v525, %v2685
      %v3086 = vsub.f32 %v527, %v2685
      %v3087 = vsub.f32 %v598, %v2685
      %v3088 = vsub.f32 %v600, %v2685
      %v3089 = vsub.f32 %v671, %v2685
      %v3090 = vsub.f32 %v673, %v2685
      %v3091 = vsub.f32 %v744, %v2685
      %v3092 = vsub.f32 %v746, %v2685
      %v3093 = vsub.f32 %v817, %v2685
      %v3094 = vsub.f32 %v819, %v2685
      %v3095 = vsub.f32 %v890, %v2685
      %v3096 = vsub.f32 %v892, %v2685
      %v3097 = vsub.f32 %v963, %v2685
      %v3098 = vsub.f32 %v965, %v2685
      %v3099 = vsub.f32 %v1036, %v2685
      %v3100 = vsub.f32 %v1038, %v2685
      %v3101 = vsub.f32 %v1109, %v2685
      %v3102 = vsub.f32 %v1111, %v2685
      %v3103 = vsub.f32 %v1182, %v2685
      %v3104 = vsub.f32 %v1184, %v2685
      %v3105 = vsub.f32 %v1255, %v2685
      %v3106 = vsub.f32 %v1257, %v2685
      %v3107 = vsub.f32 %v1328, %v2685
      %v3108 = vsub.f32 %v1330, %v2685
      %v3109 = vsub.f32 %v1398, %v2685
      %v3110 = vsub.f32 %v531, %v2712
      %v3111 = vsub.f32 %v533, %v2712
      %v3112 = vsub.f32 %v604, %v2712
      %v3113 = vsub.f32 %v606, %v2712
      %v3114 = vsub.f32 %v677, %v2712
      %v3115 = vsub.f32 %v679, %v2712
      %v3116 = vsub.f32 %v750, %v2712
      %v3117 = vsub.f32 %v752, %v2712
      %v3118 = vsub.f32 %v823, %v2712
      %v3119 = vsub.f32 %v825, %v2712
      %v3120 = vsub.f32 %v896, %v2712
      %v3121 = vsub.f32 %v898, %v2712
      %v3122 = vsub.f32 %v969, %v2712
      %v3123 = vsub.f32 %v971, %v2712
      %v3124 = vsub.f32 %v1042, %v2712
      %v3125 = vsub.f32 %v1044, %v2712
      %v3126 = vsub.f32 %v1115, %v2712
      %v3127 = vsub.f32 %v1117, %v2712
      %v3128 = vsub.f32 %v1188, %v2712
      %v3129 = vsub.f32 %v1190, %v2712
      %v3130 = vsub.f32 %v1261, %v2712
      %v3131 = vsub.f32 %v1263, %v2712
      %v3132 = vsub.f32 %v1334, %v2712
      %v3133 = vsub.f32 %v1336, %v2712
      %v3134 = vsub.f32 %v1403, %v2712
      %v3135 = vsub.f32 %v535, %v2739
      %v3136 = vsub.f32 %v537, %v2739
      %v3137 = vsub.f32 %v608, %v2739
      %v3138 = vsub.f32 %v610, %v2739
      %v3139 = vsub.f32 %v681, %v2739
      %v3140 = vsub.f32 %v683, %v2739
      %v3141 = vsub.f32 %v754, %v2739
      %v3142 = vsub.f32 %v756, %v2739
      %v3143 = vsub.f32 %v827, %v2739
      %v3144 = vsub.f32 %v829, %v2739
      %v3145 = vsub.f32 %v900, %v2739
      %v3146 = vsub.f32 %v902, %v2739
      %v3147 = vsub.f32 %v973, %v2739
      %v3148 = vsub.f32 %v975, %v2739
      %v3149 = vsub.f32 %v1046, %v2739
      %v3150 = vsub.f32 %v1048, %v2739
      %v3151 = vsub.f32 %v1119, %v2739
      %v3152 = vsub.f32 %v1121, %v2739
      %v3153 = vsub.f32 %v1192, %v2739
      %v3154 = vsub.f32 %v1194, %v2739
      %v3155 = vsub.f32 %v1265, %v2739
      %v3156 = vsub.f32 %v1267, %v2739
      %v3157 = vsub.f32 %v1338, %v2739
      %v3158 = vsub.f32 %v1340, %v2739
      %v3159 = vsub.f32 %v1406, %v2739
      %v3160 = vsub.f32 %v541, %v2766
      %v3161 = vsub.f32 %v543, %v2766
      %v3162 = vsub.f32 %v614, %v2766
      %v3163 = vsub.f32 %v616, %v2766
      %v3164 = vsub.f32 %v687, %v2766
      %v3165 = vsub.f32 %v689, %v2766
      %v3166 = vsub.f32 %v760, %v2766
      %v3167 = vsub.f32 %v762, %v2766
      %v3168 = vsub.f32 %v833, %v2766
      %v3169 = vsub.f32 %v835, %v2766
      %v3170 = vsub.f32 %v906, %v2766
      %v3171 = vsub.f32 %v908, %v2766
      %v3172 = vsub.f32 %v979, %v2766
      %v3173 = vsub.f32 %v981, %v2766
      %v3174 = vsub.f32 %v1052, %v2766
      %v3175 = vsub.f32 %v1054, %v2766
      %v3176 = vsub.f32 %v1125, %v2766
      %v3177 = vsub.f32 %v1127, %v2766
      %v3178 = vsub.f32 %v1198, %v2766
      %v3179 = vsub.f32 %v1200, %v2766
      %v3180 = vsub.f32 %v1271, %v2766
      %v3181 = vsub.f32 %v1273, %v2766
      %v3182 = vsub.f32 %v1344, %v2766
      %v3183 = vsub.f32 %v1346, %v2766
      %v3184 = vsub.f32 %v1411, %v2766
      %v3185 = vsub.f32 %v545, %v2793
      %v3186 = vsub.f32 %v547, %v2793
      %v3187 = vsub.f32 %v618, %v2793
      %v3188 = vsub.f32 %v620, %v2793
      %v3189 = vsub.f32 %v691, %v2793
      %v3190 = vsub.f32 %v693, %v2793
      %v3191 = vsub.f32 %v764, %v2793
      %v3192 = vsub.f32 %v766, %v2793
      %v3193 = vsub.f32 %v837, %v2793
      %v3194 = vsub.f32 %v839, %v2793
      %v3195 = vsub.f32 %v910, %v2793
      %v3196 = vsub.f32 %v912, %v2793
      %v3197 = vsub.f32 %v983, %v2793
      %v3198 = vsub.f32 %v985, %v2793
      %v3199 = vsub.f32 %v1056, %v2793
      %v3200 = vsub.f32 %v1058, %v2793
      %v3201 = vsub.f32 %v1129, %v2793
      %v3202 = vsub.f32 %v1131, %v2793
      %v3203 = vsub.f32 %v1202, %v2793
      %v3204 = vsub.f32 %v1204, %v2793
      %v3205 = vsub.f32 %v1275, %v2793
      %v3206 = vsub.f32 %v1277, %v2793
      %v3207 = vsub.f32 %v1348, %v2793
      %v3208 = vsub.f32 %v1350, %v2793
      %v3209 = vsub.f32 %v1414, %v2793
      %v3210 = vsub.f32 %v1671, %v2820
      %v3211 = vsub.f32 %v1673, %v2820
      %v3212 = vsub.f32 %v1744, %v2820
      %v3213 = vsub.f32 %v1746, %v2820
      %v3214 = vsub.f32 %v1817, %v2820
      %v3215 = vsub.f32 %v1819, %v2820
      %v3216 = vsub.f32 %v1890, %v2820
      %v3217 = vsub.f32 %v1892, %v2820
      %v3218 = vsub.f32 %v1963, %v2820
      %v3219 = vsub.f32 %v1965, %v2820
      %v3220 = vsub.f32 %v2036, %v2820
      %v3221 = vsub.f32 %v2038, %v2820
      %v3222 = vsub.f32 %v2109, %v2820
      %v3223 = vsub.f32 %v2111, %v2820
      %v3224 = vsub.f32 %v2182, %v2820
      %v3225 = vsub.f32 %v2184, %v2820
      %v3226 = vsub.f32 %v2255, %v2820
      %v3227 = vsub.f32 %v2257, %v2820
      %v3228 = vsub.f32 %v2328, %v2820
      %v3229 = vsub.f32 %v2330, %v2820
      %v3230 = vsub.f32 %v2401, %v2820
      %v3231 = vsub.f32 %v2403, %v2820
      %v3232 = vsub.f32 %v2474, %v2820
      %v3233 = vsub.f32 %v2476, %v2820
      %v3234 = vsub.f32 %v2547, %v2820
      %v3235 = vsub.f32 %v1675, %v2847
      %v3236 = vsub.f32 %v1677, %v2847
      %v3237 = vsub.f32 %v1748, %v2847
      %v3238 = vsub.f32 %v1750, %v2847
      %v3239 = vsub.f32 %v1821, %v2847
      %v3240 = vsub.f32 %v1823, %v2847
      %v3241 = vsub.f32 %v1894, %v2847
      %v3242 = vsub.f32 %v1896, %v2847
      %v3243 = vsub.f32 %v1967, %v2847
      %v3244 = vsub.f32 %v1969, %v2847
      %v3245 = vsub.f32 %v2040, %v2847
      %v3246 = vsub.f32 %v2042, %v2847
      %v3247 = vsub.f32 %v2113, %v2847
      %v3248 = vsub.f32 %v2115, %v2847
      %v3249 = vsub.f32 %v2186, %v2847
      %v3250 = vsub.f32 %v2188, %v2847
      %v3251 = vsub.f32 %v2259, %v2847
      %v3252 = vsub.f32 %v2261, %v2847
      %v3253 = vsub.f32 %v2332, %v2847
      %v3254 = vsub.f32 %v2334, %v2847
      %v3255 = vsub.f32 %v2405, %v2847
      %v3256 = vsub.f32 %v2407, %v2847
      %v3257 = vsub.f32 %v2478, %v2847
      %v3258 = vsub.f32 %v2480, %v2847
      %v3259 = vsub.f32 %v2550, %v2847
      %v3260 = vsub.f32 %v1681, %v2874
      %v3261 = vsub.f32 %v1683, %v2874
      %v3262 = vsub.f32 %v1754, %v2874
      %v3263 = vsub.f32 %v1756, %v2874
      %v3264 = vsub.f32 %v1827, %v2874
      %v3265 = vsub.f32 %v1829, %v2874
      %v3266 = vsub.f32 %v1900, %v2874
      %v3267 = vsub.f32 %v1902, %v2874
      %v3268 = vsub.f32 %v1973, %v2874
      %v3269 = vsub.f32 %v1975, %v2874
      %v3270 = vsub.f32 %v2046, %v2874
      %v3271 = vsub.f32 %v2048, %v2874
      %v3272 = vsub.f32 %v2119, %v2874
      %v3273 = vsub.f32 %v2121, %v2874
      %v3274 = vsub.f32 %v2192, %v2874
      %v3275 = vsub.f32 %v2194, %v2874
      %v3276 = vsub.f32 %v2265, %v2874
      %v3277 = vsub.f32 %v2267, %v2874
      %v3278 = vsub.f32 %v2338, %v2874
      %v3279 = vsub.f32 %v2340, %v2874
      %v3280 = vsub.f32 %v2411, %v2874
      %v3281 = vsub.f32 %v2413, %v2874
      %v3282 = vsub.f32 %v2484, %v2874
      %v3283 = vsub.f32 %v2486, %v2874
      %v3284 = vsub.f32 %v2555, %v2874
      %v3285 = vsub.f32 %v1685, %v2901
      %v3286 = vsub.f32 %v1687, %v2901
      %v3287 = vsub.f32 %v1758, %v2901
      %v3288 = vsub.f32 %v1760, %v2901
      %v3289 = vsub.f32 %v1831, %v2901
      %v3290 = vsub.f32 %v1833, %v2901
      %v3291 = vsub.f32 %v1904, %v2901
      %v3292 = vsub.f32 %v1906, %v2901
      %v3293 = vsub.f32 %v1977, %v2901
      %v3294 = vsub.f32 %v1979, %v2901
      %v3295 = vsub.f32 %v2050, %v2901
      %v3296 = vsub.f32 %v2052, %v2901
      %v3297 = vsub.f32 %v2123, %v2901
      %v3298 = vsub.f32 %v2125, %v2901
      %v3299 = vsub.f32 %v2196, %v2901
      %v3300 = vsub.f32 %v2198, %v2901
      %v3301 = vsub.f32 %v2269, %v2901
      %v3302 = vsub.f32 %v2271, %v2901
      %v3303 = vsub.f32 %v2342, %v2901
      %v3304 = vsub.f32 %v2344, %v2901
      %v3305 = vsub.f32 %v2415, %v2901
      %v3306 = vsub.f32 %v2417, %v2901
      %v3307 = vsub.f32 %v2488, %v2901
      %v3308 = vsub.f32 %v2490, %v2901
      %v3309 = vsub.f32 %v2558, %v2901
      %v3310 = vsub.f32 %v1691, %v2928
      %v3311 = vsub.f32 %v1693, %v2928
      %v3312 = vsub.f32 %v1764, %v2928
      %v3313 = vsub.f32 %v1766, %v2928
      %v3314 = vsub.f32 %v1837, %v2928
      %v3315 = vsub.f32 %v1839, %v2928
      %v3316 = vsub.f32 %v1910, %v2928
      %v3317 = vsub.f32 %v1912, %v2928
      %v3318 = vsub.f32 %v1983, %v2928
      %v3319 = vsub.f32 %v1985, %v2928
      %v3320 = vsub.f32 %v2056, %v2928
      %v3321 = vsub.f32 %v2058, %v2928
      %v3322 = vsub.f32 %v2129, %v2928
      %v3323 = vsub.f32 %v2131, %v2928
      %v3324 = vsub.f32 %v2202, %v2928
      %v3325 = vsub.f32 %v2204, %v2928
      %v3326 = vsub.f32 %v2275, %v2928
      %v3327 = vsub.f32 %v2277, %v2928
      %v3328 = vsub.f32 %v2348, %v2928
      %v3329 = vsub.f32 %v2350, %v2928
      %v3330 = vsub.f32 %v2421, %v2928
      %v3331 = vsub.f32 %v2423, %v2928
      %v3332 = vsub.f32 %v2494, %v2928
      %v3333 = vsub.f32 %v2496, %v2928
      %v3334 = vsub.f32 %v2563, %v2928
      %v3335 = vsub.f32 %v1695, %v2955
      %v3336 = vsub.f32 %v1697, %v2955
      %v3337 = vsub.f32 %v1768, %v2955
      %v3338 = vsub.f32 %v1770, %v2955
      %v3339 = vsub.f32 %v1841, %v2955
      %v3340 = vsub.f32 %v1843, %v2955
      %v3341 = vsub.f32 %v1914, %v2955
      %v3342 = vsub.f32 %v1916, %v2955
      %v3343 = vsub.f32 %v1987, %v2955
      %v3344 = vsub.f32 %v1989, %v2955
      %v3345 = vsub.f32 %v2060, %v2955
      %v3346 = vsub.f32 %v2062, %v2955
      %v3347 = vsub.f32 %v2133, %v2955
      %v3348 = vsub.f32 %v2135, %v2955
      %v3349 = vsub.f32 %v2206, %v2955
      %v3350 = vsub.f32 %v2208, %v2955
      %v3351 = vsub.f32 %v2279, %v2955
      %v3352 = vsub.f32 %v2281, %v2955
      %v3353 = vsub.f32 %v2352, %v2955
      %v3354 = vsub.f32 %v2354, %v2955
      %v3355 = vsub.f32 %v2425, %v2955
      %v3356 = vsub.f32 %v2427, %v2955
      %v3357 = vsub.f32 %v2498, %v2955
      %v3358 = vsub.f32 %v2500, %v2955
      %v3359 = vsub.f32 %v2566, %v2955
      %v3360 = vsub.f32 %v1701, %v2982
      %v3361 = vsub.f32 %v1703, %v2982
      %v3362 = vsub.f32 %v1774, %v2982
      %v3363 = vsub.f32 %v1776, %v2982
      %v3364 = vsub.f32 %v1847, %v2982
      %v3365 = vsub.f32 %v1849, %v2982
      %v3366 = vsub.f32 %v1920, %v2982
      %v3367 = vsub.f32 %v1922, %v2982
      %v3368 = vsub.f32 %v1993, %v2982
      %v3369 = vsub.f32 %v1995, %v2982
      %v3370 = vsub.f32 %v2066, %v2982
      %v3371 = vsub.f32 %v2068, %v2982
      %v3372 = vsub.f32 %v2139, %v2982
      %v3373 = vsub.f32 %v2141, %v2982
      %v3374 = vsub.f32 %v2212, %v2982
      %v3375 = vsub.f32 %v2214, %v2982
      %v3376 = vsub.f32 %v2285, %v2982
      %v3377 = vsub.f32 %v2287, %v2982
      %v3378 = vsub.f32 %v2358, %v2982
      %v3379 = vsub.f32 %v2360, %v2982
      %v3380 = vsub.f32 %v2431, %v2982
      %v3381 = vsub.f32 %v2433, %v2982
      %v3382 = vsub.f32 %v2504, %v2982
      %v3383 = vsub.f32 %v2506, %v2982
      %v3384 = vsub.f32 %v2571, %v2982
      %v3385 = vsub.f32 %v1705, %v3009
      %v3386 = vsub.f32 %v1707, %v3009
      %v3387 = vsub.f32 %v1778, %v3009
      %v3388 = vsub.f32 %v1780, %v3009
      %v3389 = vsub.f32 %v1851, %v3009
      %v3390 = vsub.f32 %v1853, %v3009
      %v3391 = vsub.f32 %v1924, %v3009
      %v3392 = vsub.f32 %v1926, %v3009
      %v3393 = vsub.f32 %v1997, %v3009
      %v3394 = vsub.f32 %v1999, %v3009
      %v3395 = vsub.f32 %v2070, %v3009
      %v3396 = vsub.f32 %v2072, %v3009
      %v3397 = vsub.f32 %v2143, %v3009
      %v3398 = vsub.f32 %v2145, %v3009
      %v3399 = vsub.f32 %v2216, %v3009
      %v3400 = vsub.f32 %v2218, %v3009
      %v3401 = vsub.f32 %v2289, %v3009
      %v3402 = vsub.f32 %v2291, %v3009
      %v3403 = vsub.f32 %v2362, %v3009
      %v3404 = vsub.f32 %v2364, %v3009
      %v3405 = vsub.f32 %v2435, %v3009
      %v3406 = vsub.f32 %v2437, %v3009
      %v3407 = vsub.f32 %v2508, %v3009
      %v3408 = vsub.f32 %v2510, %v3009
      %v3409 = vsub.f32 %v2574, %v3009
      %v3410 = vmin.f32 %v3010, 0.0
      %v3411 = vmin.f32 %v3011, 0.0
      %v3412 = vmin.f32 %v3012, 0.0
      %v3413 = vmin.f32 %v3013, 0.0
      %v3414 = vmin.f32 %v3014, 0.0
      %v3415 = vmin.f32 %v3015, 0.0
      %v3416 = vmin.f32 %v3016, 0.0
      %v3417 = vmin.f32 %v3017, 0.0
      %v3418 = vmin.f32 %v3018, 0.0
      %v3419 = vmin.f32 %v3019, 0.0
      %v3420 = vmin.f32 %v3020, 0.0
      %v3421 = vmin.f32 %v3021, 0.0
      %v3422 = vmin.f32 %v3022, 0.0
      %v3423 = vmin.f32 %v3023, 0.0
      %v3424 = vmin.f32 %v3024, 0.0
      %v3425 = vmin.f32 %v3025, 0.0
      %v3426 = vmin.f32 %v3026, 0.0
      %v3427 = vmin.f32 %v3027, 0.0
      %v3428 = vmin.f32 %v3028, 0.0
      %v3429 = vmin.f32 %v3029, 0.0
      %v3430 = vmin.f32 %v3030, 0.0
      %v3431 = vmin.f32 %v3031, 0.0
      %v3432 = vmin.f32 %v3032, 0.0
      %v3433 = vmin.f32 %v3033, 0.0
      %v3434 = vmin.f32 %v3034, 0.0
      %v3435 = vmin.f32 %v3035, 0.0
      %v3436 = vmin.f32 %v3036, 0.0
      %v3437 = vmin.f32 %v3037, 0.0
      %v3438 = vmin.f32 %v3038, 0.0
      %v3439 = vmin.f32 %v3039, 0.0
      %v3440 = vmin.f32 %v3040, 0.0
      %v3441 = vmin.f32 %v3041, 0.0
      %v3442 = vmin.f32 %v3042, 0.0
      %v3443 = vmin.f32 %v3043, 0.0
      %v3444 = vmin.f32 %v3044, 0.0
      %v3445 = vmin.f32 %v3045, 0.0
      %v3446 = vmin.f32 %v3046, 0.0
      %v3447 = vmin.f32 %v3047, 0.0
      %v3448 = vmin.f32 %v3048, 0.0
      %v3449 = vmin.f32 %v3049, 0.0
      %v3450 = vmin.f32 %v3050, 0.0
      %v3451 = vmin.f32 %v3051, 0.0
      %v3452 = vmin.f32 %v3052, 0.0
      %v3453 = vmin.f32 %v3053, 0.0
      %v3454 = vmin.f32 %v3054, 0.0
      %v3455 = vmin.f32 %v3055, 0.0
      %v3456 = vmin.f32 %v3056, 0.0
      %v3457 = vmin.f32 %v3057, 0.0
      %v3458 = vmin.f32 %v3058, 0.0
      %v3459 = vmin.f32 %v3059, 0.0
      %v3460 = vmin.f32 %v3060, 0.0
      %v3461 = vmin.f32 %v3061, 0.0
      %v3462 = vmin.f32 %v3062, 0.0
      %v3463 = vmin.f32 %v3063, 0.0
      %v3464 = vmin.f32 %v3064, 0.0
      %v3465 = vmin.f32 %v3065, 0.0
      %v3466 = vmin.f32 %v3066, 0.0
      %v3467 = vmin.f32 %v3067, 0.0
      %v3468 = vmin.f32 %v3068, 0.0
      %v3469 = vmin.f32 %v3069, 0.0
      %v3470 = vmin.f32 %v3070, 0.0
      %v3471 = vmin.f32 %v3071, 0.0
      %v3472 = vmin.f32 %v3072, 0.0
      %v3473 = vmin.f32 %v3073, 0.0
      %v3474 = vmin.f32 %v3074, 0.0
      %v3475 = vmin.f32 %v3075, 0.0
      %v3476 = vmin.f32 %v3076, 0.0
      %v3477 = vmin.f32 %v3077, 0.0
      %v3478 = vmin.f32 %v3078, 0.0
      %v3479 = vmin.f32 %v3079, 0.0
      %v3480 = vmin.f32 %v3080, 0.0
      %v3481 = vmin.f32 %v3081, 0.0
      %v3482 = vmin.f32 %v3082, 0.0
      %v3483 = vmin.f32 %v3083, 0.0
      %v3484 = vmin.f32 %v3084, 0.0
      %v3485 = vmin.f32 %v3085, 0.0
      %v3486 = vmin.f32 %v3086, 0.0
      %v3487 = vmin.f32 %v3087, 0.0
      %v3488 = vmin.f32 %v3088, 0.0
      %v3489 = vmin.f32 %v3089, 0.0
      %v3490 = vmin.f32 %v3090, 0.0
      %v3491 = vmin.f32 %v3091, 0.0
      %v3492 = vmin.f32 %v3092, 0.0
      %v3493 = vmin.f32 %v3093, 0.0
      %v3494 = vmin.f32 %v3094, 0.0
      %v3495 = vmin.f32 %v3095, 0.0
      %v3496 = vmin.f32 %v3096, 0.0
      %v3497 = vmin.f32 %v3097, 0.0
      %v3498 = vmin.f32 %v3098, 0.0
      %v3499 = vmin.f32 %v3099, 0.0
      %v3500 = vmin.f32 %v3100, 0.0
      %v3501 = vmin.f32 %v3101, 0.0
      %v3502 = vmin.f32 %v3102, 0.0
      %v3503 = vmin.f32 %v3103, 0.0
      %v3504 = vmin.f32 %v3104, 0.0
      %v3505 = vmin.f32 %v3105, 0.0
      %v3506 = vmin.f32 %v3106, 0.0
      %v3507 = vmin.f32 %v3107, 0.0
      %v3508 = vmin.f32 %v3108, 0.0
      %v3509 = vmin.f32 %v3109, 0.0
      %v3510 = vmin.f32 %v3110, 0.0
      %v3511 = vmin.f32 %v3111, 0.0
      %v3512 = vmin.f32 %v3112, 0.0
      %v3513 = vmin.f32 %v3113, 0.0
      %v3514 = vmin.f32 %v3114, 0.0
      %v3515 = vmin.f32 %v3115, 0.0
      %v3516 = vmin.f32 %v3116, 0.0
      %v3517 = vmin.f32 %v3117, 0.0
      %v3518 = vmin.f32 %v3118, 0.0
      %v3519 = vmin.f32 %v3119, 0.0
      %v3520 = vmin.f32 %v3120, 0.0
      %v3521 = vmin.f32 %v3121, 0.0
      %v3522 = vmin.f32 %v3122, 0.0
      %v3523 = vmin.f32 %v3123, 0.0
      %v3524 = vmin.f32 %v3124, 0.0
      %v3525 = vmin.f32 %v3125, 0.0
      %v3526 = vmin.f32 %v3126, 0.0
      %v3527 = vmin.f32 %v3127, 0.0
      %v3528 = vmin.f32 %v3128, 0.0
      %v3529 = vmin.f32 %v3129, 0.0
      %v3530 = vmin.f32 %v3130, 0.0
      %v3531 = vmin.f32 %v3131, 0.0
      %v3532 = vmin.f32 %v3132, 0.0
      %v3533 = vmin.f32 %v3133, 0.0
      %v3534 = vmin.f32 %v3134, 0.0
      %v3535 = vmin.f32 %v3135, 0.0
      %v3536 = vmin.f32 %v3136, 0.0
      %v3537 = vmin.f32 %v3137, 0.0
      %v3538 = vmin.f32 %v3138, 0.0
      %v3539 = vmin.f32 %v3139, 0.0
      %v3540 = vmin.f32 %v3140, 0.0
      %v3541 = vmin.f32 %v3141, 0.0
      %v3542 = vmin.f32 %v3142, 0.0
      %v3543 = vmin.f32 %v3143, 0.0
      %v3544 = vmin.f32 %v3144, 0.0
      %v3545 = vmin.f32 %v3145, 0.0
      %v3546 = vmin.f32 %v3146, 0.0
      %v3547 = vmin.f32 %v3147, 0.0
      %v3548 = vmin.f32 %v3148, 0.0
      %v3549 = vmin.f32 %v3149, 0.0
      %v3550 = vmin.f32 %v3150, 0.0
      %v3551 = vmin.f32 %v3151, 0.0
      %v3552 = vmin.f32 %v3152, 0.0
      %v3553 = vmin.f32 %v3153, 0.0
      %v3554 = vmin.f32 %v3154, 0.0
      %v3555 = vmin.f32 %v3155, 0.0
      %v3556 = vmin.f32 %v3156, 0.0
      %v3557 = vmin.f32 %v3157, 0.0
      %v3558 = vmin.f32 %v3158, 0.0
      %v3559 = vmin.f32 %v3159, 0.0
      %v3560 = vmin.f32 %v3160, 0.0
      %v3561 = vmin.f32 %v3161, 0.0
      %v3562 = vmin.f32 %v3162, 0.0
      %v3563 = vmin.f32 %v3163, 0.0
      %v3564 = vmin.f32 %v3164, 0.0
      %v3565 = vmin.f32 %v3165, 0.0
      %v3566 = vmin.f32 %v3166, 0.0
      %v3567 = vmin.f32 %v3167, 0.0
      %v3568 = vmin.f32 %v3168, 0.0
      %v3569 = vmin.f32 %v3169, 0.0
      %v3570 = vmin.f32 %v3170, 0.0
      %v3571 = vmin.f32 %v3171, 0.0
      %v3572 = vmin.f32 %v3172, 0.0
      %v3573 = vmin.f32 %v3173, 0.0
      %v3574 = vmin.f32 %v3174, 0.0
      %v3575 = vmin.f32 %v3175, 0.0
      %v3576 = vmin.f32 %v3176, 0.0
      %v3577 = vmin.f32 %v3177, 0.0
      %v3578 = vmin.f32 %v3178, 0.0
      %v3579 = vmin.f32 %v3179, 0.0
      %v3580 = vmin.f32 %v3180, 0.0
      %v3581 = vmin.f32 %v3181, 0.0
      %v3582 = vmin.f32 %v3182, 0.0
      %v3583 = vmin.f32 %v3183, 0.0
      %v3584 = vmin.f32 %v3184, 0.0
      %v3585 = vmin.f32 %v3185, 0.0
      %v3586 = vmin.f32 %v3186, 0.0
      %v3587 = vmin.f32 %v3187, 0.0
      %v3588 = vmin.f32 %v3188, 0.0
      %v3589 = vmin.f32 %v3189, 0.0
      %v3590 = vmin.f32 %v3190, 0.0
      %v3591 = vmin.f32 %v3191, 0.0
      %v3592 = vmin.f32 %v3192, 0.0
      %v3593 = vmin.f32 %v3193, 0.0
      %v3594 = vmin.f32 %v3194, 0.0
      %v3595 = vmin.f32 %v3195, 0.0
      %v3596 = vmin.f32 %v3196, 0.0
      %v3597 = vmin.f32 %v3197, 0.0
      %v3598 = vmin.f32 %v3198, 0.0
      %v3599 = vmin.f32 %v3199, 0.0
      %v3600 = vmin.f32 %v3200, 0.0
      %v3601 = vmin.f32 %v3201, 0.0
      %v3602 = vmin.f32 %v3202, 0.0
      %v3603 = vmin.f32 %v3203, 0.0
      %v3604 = vmin.f32 %v3204, 0.0
      %v3605 = vmin.f32 %v3205, 0.0
      %v3606 = vmin.f32 %v3206, 0.0
      %v3607 = vmin.f32 %v3207, 0.0
      %v3608 = vmin.f32 %v3208, 0.0
      %v3609 = vmin.f32 %v3209, 0.0
      %v3610 = vmin.f32 %v3210, 0.0
      %v3611 = vmin.f32 %v3211, 0.0
      %v3612 = vmin.f32 %v3212, 0.0
      %v3613 = vmin.f32 %v3213, 0.0
      %v3614 = vmin.f32 %v3214, 0.0
      %v3615 = vmin.f32 %v3215, 0.0
      %v3616 = vmin.f32 %v3216, 0.0
      %v3617 = vmin.f32 %v3217, 0.0
      %v3618 = vmin.f32 %v3218, 0.0
      %v3619 = vmin.f32 %v3219, 0.0
      %v3620 = vmin.f32 %v3220, 0.0
      %v3621 = vmin.f32 %v3221, 0.0
      %v3622 = vmin.f32 %v3222, 0.0
      %v3623 = vmin.f32 %v3223, 0.0
      %v3624 = vmin.f32 %v3224, 0.0
      %v3625 = vmin.f32 %v3225, 0.0
      %v3626 = vmin.f32 %v3226, 0.0
      %v3627 = vmin.f32 %v3227, 0.0
      %v3628 = vmin.f32 %v3228, 0.0
      %v3629 = vmin.f32 %v3229, 0.0
      %v3630 = vmin.f32 %v3230, 0.0
      %v3631 = vmin.f32 %v3231, 0.0
      %v3632 = vmin.f32 %v3232, 0.0
      %v3633 = vmin.f32 %v3233, 0.0
      %v3634 = vmin.f32 %v3234, 0.0
      %v3635 = vmin.f32 %v3235, 0.0
      %v3636 = vmin.f32 %v3236, 0.0
      %v3637 = vmin.f32 %v3237, 0.0
      %v3638 = vmin.f32 %v3238, 0.0
      %v3639 = vmin.f32 %v3239, 0.0
      %v3640 = vmin.f32 %v3240, 0.0
      %v3641 = vmin.f32 %v3241, 0.0
      %v3642 = vmin.f32 %v3242, 0.0
      %v3643 = vmin.f32 %v3243, 0.0
      %v3644 = vmin.f32 %v3244, 0.0
      %v3645 = vmin.f32 %v3245, 0.0
      %v3646 = vmin.f32 %v3246, 0.0
      %v3647 = vmin.f32 %v3247, 0.0
      %v3648 = vmin.f32 %v3248, 0.0
      %v3649 = vmin.f32 %v3249, 0.0
      %v3650 = vmin.f32 %v3250, 0.0
      %v3651 = vmin.f32 %v3251, 0.0
      %v3652 = vmin.f32 %v3252, 0.0
      %v3653 = vmin.f32 %v3253, 0.0
      %v3654 = vmin.f32 %v3254, 0.0
      %v3655 = vmin.f32 %v3255, 0.0
      %v3656 = vmin.f32 %v3256, 0.0
      %v3657 = vmin.f32 %v3257, 0.0
      %v3658 = vmin.f32 %v3258, 0.0
      %v3659 = vmin.f32 %v3259, 0.0
      %v3660 = vmin.f32 %v3260, 0.0
      %v3661 = vmin.f32 %v3261, 0.0
      %v3662 = vmin.f32 %v3262, 0.0
      %v3663 = vmin.f32 %v3263, 0.0
      %v3664 = vmin.f32 %v3264, 0.0
      %v3665 = vmin.f32 %v3265, 0.0
      %v3666 = vmin.f32 %v3266, 0.0
      %v3667 = vmin.f32 %v3267, 0.0
      %v3668 = vmin.f32 %v3268, 0.0
      %v3669 = vmin.f32 %v3269, 0.0
      %v3670 = vmin.f32 %v3270, 0.0
      %v3671 = vmin.f32 %v3271, 0.0
      %v3672 = vmin.f32 %v3272, 0.0
      %v3673 = vmin.f32 %v3273, 0.0
      %v3674 = vmin.f32 %v3274, 0.0
      %v3675 = vmin.f32 %v3275, 0.0
      %v3676 = vmin.f32 %v3276, 0.0
      %v3677 = vmin.f32 %v3277, 0.0
      %v3678 = vmin.f32 %v3278, 0.0
      %v3679 = vmin.f32 %v3279, 0.0
      %v3680 = vmin.f32 %v3280, 0.0
      %v3681 = vmin.f32 %v3281, 0.0
      %v3682 = vmin.f32 %v3282, 0.0
      %v3683 = vmin.f32 %v3283, 0.0
      %v3684 = vmin.f32 %v3284, 0.0
      %v3685 = vmin.f32 %v3285, 0.0
      %v3686 = vmin.f32 %v3286, 0.0
      %v3687 = vmin.f32 %v3287, 0.0
      %v3688 = vmin.f32 %v3288, 0.0
      %v3689 = vmin.f32 %v3289, 0.0
      %v3690 = vmin.f32 %v3290, 0.0
      %v3691 = vmin.f32 %v3291, 0.0
      %v3692 = vmin.f32 %v3292, 0.0
      %v3693 = vmin.f32 %v3293, 0.0
      %v3694 = vmin.f32 %v3294, 0.0
      %v3695 = vmin.f32 %v3295, 0.0
      %v3696 = vmin.f32 %v3296, 0.0
      %v3697 = vmin.f32 %v3297, 0.0
      %v3698 = vmin.f32 %v3298, 0.0
      %v3699 = vmin.f32 %v3299, 0.0
      %v3700 = vmin.f32 %v3300, 0.0
      %v3701 = vmin.f32 %v3301, 0.0
      %v3702 = vmin.f32 %v3302, 0.0
      %v3703 = vmin.f32 %v3303, 0.0
      %v3704 = vmin.f32 %v3304, 0.0
      %v3705 = vmin.f32 %v3305, 0.0
      %v3706 = vmin.f32 %v3306, 0.0
      %v3707 = vmin.f32 %v3307, 0.0
      %v3708 = vmin.f32 %v3308, 0.0
      %v3709 = vmin.f32 %v3309, 0.0
      %v3710 = vmin.f32 %v3310, 0.0
      %v3711 = vmin.f32 %v3311, 0.0
      %v3712 = vmin.f32 %v3312, 0.0
      %v3713 = vmin.f32 %v3313, 0.0
      %v3714 = vmin.f32 %v3314, 0.0
      %v3715 = vmin.f32 %v3315, 0.0
      %v3716 = vmin.f32 %v3316, 0.0
      %v3717 = vmin.f32 %v3317, 0.0
      %v3718 = vmin.f32 %v3318, 0.0
      %v3719 = vmin.f32 %v3319, 0.0
      %v3720 = vmin.f32 %v3320, 0.0
      %v3721 = vmin.f32 %v3321, 0.0
      %v3722 = vmin.f32 %v3322, 0.0
      %v3723 = vmin.f32 %v3323, 0.0
      %v3724 = vmin.f32 %v3324, 0.0
      %v3725 = vmin.f32 %v3325, 0.0
      %v3726 = vmin.f32 %v3326, 0.0
      %v3727 = vmin.f32 %v3327, 0.0
      %v3728 = vmin.f32 %v3328, 0.0
      %v3729 = vmin.f32 %v3329, 0.0
      %v3730 = vmin.f32 %v3330, 0.0
      %v3731 = vmin.f32 %v3331, 0.0
      %v3732 = vmin.f32 %v3332, 0.0
      %v3733 = vmin.f32 %v3333, 0.0
      %v3734 = vmin.f32 %v3334, 0.0
      %v3735 = vmin.f32 %v3335, 0.0
      %v3736 = vmin.f32 %v3336, 0.0
      %v3737 = vmin.f32 %v3337, 0.0
      %v3738 = vmin.f32 %v3338, 0.0
      %v3739 = vmin.f32 %v3339, 0.0
      %v3740 = vmin.f32 %v3340, 0.0
      %v3741 = vmin.f32 %v3341, 0.0
      %v3742 = vmin.f32 %v3342, 0.0
      %v3743 = vmin.f32 %v3343, 0.0
      %v3744 = vmin.f32 %v3344, 0.0
      %v3745 = vmin.f32 %v3345, 0.0
      %v3746 = vmin.f32 %v3346, 0.0
      %v3747 = vmin.f32 %v3347, 0.0
      %v3748 = vmin.f32 %v3348, 0.0
      %v3749 = vmin.f32 %v3349, 0.0
      %v3750 = vmin.f32 %v3350, 0.0
      %v3751 = vmin.f32 %v3351, 0.0
      %v3752 = vmin.f32 %v3352, 0.0
      %v3753 = vmin.f32 %v3353, 0.0
      %v3754 = vmin.f32 %v3354, 0.0
      %v3755 = vmin.f32 %v3355, 0.0
      %v3756 = vmin.f32 %v3356, 0.0
      %v3757 = vmin.f32 %v3357, 0.0
      %v3758 = vmin.f32 %v3358, 0.0
      %v3759 = vmin.f32 %v3359, 0.0
      %v3760 = vmin.f32 %v3360, 0.0
      %v3761 = vmin.f32 %v3361, 0.0
      %v3762 = vmin.f32 %v3362, 0.0
      %v3763 = vmin.f32 %v3363, 0.0
      %v3764 = vmin.f32 %v3364, 0.0
      %v3765 = vmin.f32 %v3365, 0.0
      %v3766 = vmin.f32 %v3366, 0.0
      %v3767 = vmin.f32 %v3367, 0.0
      %v3768 = vmin.f32 %v3368, 0.0
      %v3769 = vmin.f32 %v3369, 0.0
      %v3770 = vmin.f32 %v3370, 0.0
      %v3771 = vmin.f32 %v3371, 0.0
      %v3772 = vmin.f32 %v3372, 0.0
      %v3773 = vmin.f32 %v3373, 0.0
      %v3774 = vmin.f32 %v3374, 0.0
      %v3775 = vmin.f32 %v3375, 0.0
      %v3776 = vmin.f32 %v3376, 0.0
      %v3777 = vmin.f32 %v3377, 0.0
      %v3778 = vmin.f32 %v3378, 0.0
      %v3779 = vmin.f32 %v3379, 0.0
      %v3780 = vmin.f32 %v3380, 0.0
      %v3781 = vmin.f32 %v3381, 0.0
      %v3782 = vmin.f32 %v3382, 0.0
      %v3783 = vmin.f32 %v3383, 0.0
      %v3784 = vmin.f32 %v3384, 0.0
      %v3785 = vmin.f32 %v3385, 0.0
      %v3786 = vmin.f32 %v3386, 0.0
      %v3787 = vmin.f32 %v3387, 0.0
      %v3788 = vmin.f32 %v3388, 0.0
      %v3789 = vmin.f32 %v3389, 0.0
      %v3790 = vmin.f32 %v3390, 0.0
      %v3791 = vmin.f32 %v3391, 0.0
      %v3792 = vmin.f32 %v3392, 0.0
      %v3793 = vmin.f32 %v3393, 0.0
      %v3794 = vmin.f32 %v3394, 0.0
      %v3795 = vmin.f32 %v3395, 0.0
      %v3796 = vmin.f32 %v3396, 0.0
      %v3797 = vmin.f32 %v3397, 0.0
      %v3798 = vmin.f32 %v3398, 0.0
      %v3799 = vmin.f32 %v3399, 0.0
      %v3800 = vmin.f32 %v3400, 0.0
      %v3801 = vmin.f32 %v3401, 0.0
      %v3802 = vmin.f32 %v3402, 0.0
      %v3803 = vmin.f32 %v3403, 0.0
      %v3804 = vmin.f32 %v3404, 0.0
      %v3805 = vmin.f32 %v3405, 0.0
      %v3806 = vmin.f32 %v3406, 0.0
      %v3807 = vmin.f32 %v3407, 0.0
      %v3808 = vmin.f32 %v3408, 0.0
      %v3809 = vmin.f32 %v3409, 0.0
      %v3810 = vmul.f32 %v3410, 1.442695
      %v3811 = vpow.pop %v3810
      %v3812 = vmul.f32 %v3411, 1.442695
      %v3813 = vpow.pop %v3812
      %v3814 = vmul.f32 %v3412, 1.442695
      %v3815 = vpow.pop %v3814
      %v3816 = vmul.f32 %v3413, 1.442695
      %v3817 = vpow.pop %v3816
      %v3818 = vmul.f32 %v3414, 1.442695
      %v3819 = vpow.pop %v3818
      %v3820 = vmul.f32 %v3415, 1.442695
      %v3821 = vpow.pop %v3820
      %v3822 = vmul.f32 %v3416, 1.442695
      %v3823 = vpow.pop %v3822
      %v3824 = vmul.f32 %v3417, 1.442695
      %v3825 = vpow.pop %v3824
      %v3826 = vmul.f32 %v3418, 1.442695
      %v3827 = vpow.pop %v3826
      %v3828 = vmul.f32 %v3419, 1.442695
      %v3829 = vpow.pop %v3828
      %v3830 = vmul.f32 %v3420, 1.442695
      %v3831 = vpow.pop %v3830
      %v3832 = vmul.f32 %v3421, 1.442695
      %v3833 = vpow.pop %v3832
      %v3834 = vmul.f32 %v3422, 1.442695
      %v3835 = vpow.pop %v3834
      %v3836 = vmul.f32 %v3423, 1.442695
      %v3837 = vpow.pop %v3836
      %v3838 = vmul.f32 %v3424, 1.442695
      %v3839 = vpow.pop %v3838
      %v3840 = vmul.f32 %v3425, 1.442695
      %v3841 = vpow.pop %v3840
      %v3842 = vmul.f32 %v3426, 1.442695
      %v3843 = vpow.pop %v3842
      %v3844 = vmul.f32 %v3427, 1.442695
      %v3845 = vpow.pop %v3844
      %v3846 = vmul.f32 %v3428, 1.442695
      %v3847 = vpow.pop %v3846
      %v3848 = vmul.f32 %v3429, 1.442695
      %v3849 = vpow.pop %v3848
      %v3850 = vmul.f32 %v3430, 1.442695
      %v3851 = vpow.pop %v3850
      %v3852 = vmul.f32 %v3431, 1.442695
      %v3853 = vpow.pop %v3852
      %v3854 = vmul.f32 %v3432, 1.442695
      %v3855 = vpow.pop %v3854
      %v3856 = vmul.f32 %v3433, 1.442695
      %v3857 = vpow.pop %v3856
      %v3858 = vmul.f32 %v3434, 1.442695
      %v3859 = vpow.pop %v3858
      %v3860 = vmul.f32 %v3435, 1.442695
      %v3861 = vpow.pop %v3860
      %v3862 = vmul.f32 %v3436, 1.442695
      %v3863 = vpow.pop %v3862
      %v3864 = vmul.f32 %v3437, 1.442695
      %v3865 = vpow.pop %v3864
      %v3866 = vmul.f32 %v3438, 1.442695
      %v3867 = vpow.pop %v3866
      %v3868 = vmul.f32 %v3439, 1.442695
      %v3869 = vpow.pop %v3868
      %v3870 = vmul.f32 %v3440, 1.442695
      %v3871 = vpow.pop %v3870
      %v3872 = vmul.f32 %v3441, 1.442695
      %v3873 = vpow.pop %v3872
      %v3874 = vmul.f32 %v3442, 1.442695
      %v3875 = vpow.pop %v3874
      %v3876 = vmul.f32 %v3443, 1.442695
      %v3877 = vpow.pop %v3876
      %v3878 = vmul.f32 %v3444, 1.442695
      %v3879 = vpow.pop %v3878
      %v3880 = vmul.f32 %v3445, 1.442695
      %v3881 = vpow.pop %v3880
      %v3882 = vmul.f32 %v3446, 1.442695
      %v3883 = vpow.pop %v3882
      %v3884 = vmul.f32 %v3447, 1.442695
      %v3885 = vpow.pop %v3884
      %v3886 = vmul.f32 %v3448, 1.442695
      %v3887 = vpow.pop %v3886
      %v3888 = vmul.f32 %v3449, 1.442695
      %v3889 = vpow.pop %v3888
      %v3890 = vmul.f32 %v3450, 1.442695
      %v3891 = vpow.pop %v3890
      %v3892 = vmul.f32 %v3451, 1.442695
      %v3893 = vpow.pop %v3892
      %v3894 = vmul.f32 %v3452, 1.442695
      %v3895 = vpow.pop %v3894
      %v3896 = vmul.f32 %v3453, 1.442695
      %v3897 = vpow.pop %v3896
      %v3898 = vmul.f32 %v3454, 1.442695
      %v3899 = vpow.pop %v3898
      %v3900 = vmul.f32 %v3455, 1.442695
      %v3901 = vpow.pop %v3900
      %v3902 = vmul.f32 %v3456, 1.442695
      %v3903 = vpow.pop %v3902
      %v3904 = vmul.f32 %v3457, 1.442695
      %v3905 = vpow.pop %v3904
      %v3906 = vmul.f32 %v3458, 1.442695
      %v3907 = vpow.pop %v3906
      %v3908 = vmul.f32 %v3459, 1.442695
      %v3909 = vpow.pop %v3908
      %v3910 = vmul.f32 %v3460, 1.442695
      %v3911 = vpow.pop %v3910
      %v3912 = vmul.f32 %v3461, 1.442695
      %v3913 = vpow.pop %v3912
      %v3914 = vmul.f32 %v3462, 1.442695
      %v3915 = vpow.pop %v3914
      %v3916 = vmul.f32 %v3463, 1.442695
      %v3917 = vpow.pop %v3916
      %v3918 = vmul.f32 %v3464, 1.442695
      %v3919 = vpow.pop %v3918
      %v3920 = vmul.f32 %v3465, 1.442695
      %v3921 = vpow.pop %v3920
      %v3922 = vmul.f32 %v3466, 1.442695
      %v3923 = vpow.pop %v3922
      %v3924 = vmul.f32 %v3467, 1.442695
      %v3925 = vpow.pop %v3924
      %v3926 = vmul.f32 %v3468, 1.442695
      %v3927 = vpow.pop %v3926
      %v3928 = vmul.f32 %v3469, 1.442695
      %v3929 = vpow.pop %v3928
      %v3930 = vmul.f32 %v3470, 1.442695
      %v3931 = vpow.pop %v3930
      %v3932 = vmul.f32 %v3471, 1.442695
      %v3933 = vpow.pop %v3932
      %v3934 = vmul.f32 %v3472, 1.442695
      %v3935 = vpow.pop %v3934
      %v3936 = vmul.f32 %v3473, 1.442695
      %v3937 = vpow.pop %v3936
      %v3938 = vmul.f32 %v3474, 1.442695
      %v3939 = vpow.pop %v3938
      %v3940 = vmul.f32 %v3475, 1.442695
      %v3941 = vpow.pop %v3940
      %v3942 = vmul.f32 %v3476, 1.442695
      %v3943 = vpow.pop %v3942
      %v3944 = vmul.f32 %v3477, 1.442695
      %v3945 = vpow.pop %v3944
      %v3946 = vmul.f32 %v3478, 1.442695
      %v3947 = vpow.pop %v3946
      %v3948 = vmul.f32 %v3479, 1.442695
      %v3949 = vpow.pop %v3948
      %v3950 = vmul.f32 %v3480, 1.442695
      %v3951 = vpow.pop %v3950
      %v3952 = vmul.f32 %v3481, 1.442695
      %v3953 = vpow.pop %v3952
      %v3954 = vmul.f32 %v3482, 1.442695
      %v3955 = vpow.pop %v3954
      %v3956 = vmul.f32 %v3483, 1.442695
      %v3957 = vpow.pop %v3956
      %v3958 = vmul.f32 %v3484, 1.442695
      %v3959 = vpow.pop %v3958
      %v3960 = vmul.f32 %v3485, 1.442695
      %v3961 = vpow.pop %v3960
      %v3962 = vmul.f32 %v3486, 1.442695
      %v3963 = vpow.pop %v3962
      %v3964 = vmul.f32 %v3487, 1.442695
      %v3965 = vpow.pop %v3964
      %v3966 = vmul.f32 %v3488, 1.442695
      %v3967 = vpow.pop %v3966
      %v3968 = vmul.f32 %v3489, 1.442695
      %v3969 = vpow.pop %v3968
      %v3970 = vmul.f32 %v3490, 1.442695
      %v3971 = vpow.pop %v3970
      %v3972 = vmul.f32 %v3491, 1.442695
      %v3973 = vpow.pop %v3972
      %v3974 = vmul.f32 %v3492, 1.442695
      %v3975 = vpow.pop %v3974
      %v3976 = vmul.f32 %v3493, 1.442695
      %v3977 = vpow.pop %v3976
      %v3978 = vmul.f32 %v3494, 1.442695
      %v3979 = vpow.pop %v3978
      %v3980 = vmul.f32 %v3495, 1.442695
      %v3981 = vpow.pop %v3980
      %v3982 = vmul.f32 %v3496, 1.442695
      %v3983 = vpow.pop %v3982
      %v3984 = vmul.f32 %v3497, 1.442695
      %v3985 = vpow.pop %v3984
      %v3986 = vmul.f32 %v3498, 1.442695
      %v3987 = vpow.pop %v3986
      %v3988 = vmul.f32 %v3499, 1.442695
      %v3989 = vpow.pop %v3988
      %v3990 = vmul.f32 %v3500, 1.442695
      %v3991 = vpow.pop %v3990
      %v3992 = vmul.f32 %v3501, 1.442695
      %v3993 = vpow.pop %v3992
      %v3994 = vmul.f32 %v3502, 1.442695
      %v3995 = vpow.pop %v3994
      %v3996 = vmul.f32 %v3503, 1.442695
      %v3997 = vpow.pop %v3996
      %v3998 = vmul.f32 %v3504, 1.442695
      %v3999 = vpow.pop %v3998
      %v4000 = vmul.f32 %v3505, 1.442695
      %v4001 = vpow.pop %v4000
      %v4002 = vmul.f32 %v3506, 1.442695
      %v4003 = vpow.pop %v4002
      %v4004 = vmul.f32 %v3507, 1.442695
      %v4005 = vpow.pop %v4004
      %v4006 = vmul.f32 %v3508, 1.442695
      %v4007 = vpow.pop %v4006
      %v4008 = vmul.f32 %v3509, 1.442695
      %v4009 = vpow.pop %v4008
      %v4010 = vmul.f32 %v3510, 1.442695
      %v4011 = vpow.pop %v4010
      %v4012 = vmul.f32 %v3511, 1.442695
      %v4013 = vpow.pop %v4012
      %v4014 = vmul.f32 %v3512, 1.442695
      %v4015 = vpow.pop %v4014
      %v4016 = vmul.f32 %v3513, 1.442695
      %v4017 = vpow.pop %v4016
      %v4018 = vmul.f32 %v3514, 1.442695
      %v4019 = vpow.pop %v4018
      %v4020 = vmul.f32 %v3515, 1.442695
      %v4021 = vpow.pop %v4020
      %v4022 = vmul.f32 %v3516, 1.442695
      %v4023 = vpow.pop %v4022
      %v4024 = vmul.f32 %v3517, 1.442695
      %v4025 = vpow.pop %v4024
      %v4026 = vmul.f32 %v3518, 1.442695
      %v4027 = vpow.pop %v4026
      %v4028 = vmul.f32 %v3519, 1.442695
      %v4029 = vpow.pop %v4028
      %v4030 = vmul.f32 %v3520, 1.442695
      %v4031 = vpow.pop %v4030
      %v4032 = vmul.f32 %v3521, 1.442695
      %v4033 = vpow.pop %v4032
      %v4034 = vmul.f32 %v3522, 1.442695
      %v4035 = vpow.pop %v4034
      %v4036 = vmul.f32 %v3523, 1.442695
      %v4037 = vpow.pop %v4036
      %v4038 = vmul.f32 %v3524, 1.442695
      %v4039 = vpow.pop %v4038
      %v4040 = vmul.f32 %v3525, 1.442695
      %v4041 = vpow.pop %v4040
      %v4042 = vmul.f32 %v3526, 1.442695
      %v4043 = vpow.pop %v4042
      %v4044 = vmul.f32 %v3527, 1.442695
      %v4045 = vpow.pop %v4044
      %v4046 = vmul.f32 %v3528, 1.442695
      %v4047 = vpow.pop %v4046
      %v4048 = vmul.f32 %v3529, 1.442695
      %v4049 = vpow.pop %v4048
      %v4050 = vmul.f32 %v3530, 1.442695
      %v4051 = vpow.pop %v4050
      %v4052 = vmul.f32 %v3531, 1.442695
      %v4053 = vpow.pop %v4052
      %v4054 = vmul.f32 %v3532, 1.442695
      %v4055 = vpow.pop %v4054
      %v4056 = vmul.f32 %v3533, 1.442695
      %v4057 = vpow.pop %v4056
      %v4058 = vmul.f32 %v3534, 1.442695
      %v4059 = vpow.pop %v4058
      %v4060 = vmul.f32 %v3535, 1.442695
      %v4061 = vpow.pop %v4060
      %v4062 = vmul.f32 %v3536, 1.442695
      %v4063 = vpow.pop %v4062
      %v4064 = vmul.f32 %v3537, 1.442695
      %v4065 = vpow.pop %v4064
      %v4066 = vmul.f32 %v3538, 1.442695
      %v4067 = vpow.pop %v4066
      %v4068 = vmul.f32 %v3539, 1.442695
      %v4069 = vpow.pop %v4068
      %v4070 = vmul.f32 %v3540, 1.442695
      %v4071 = vpow.pop %v4070
      %v4072 = vmul.f32 %v3541, 1.442695
      %v4073 = vpow.pop %v4072
      %v4074 = vmul.f32 %v3542, 1.442695
      %v4075 = vpow.pop %v4074
      %v4076 = vmul.f32 %v3543, 1.442695
      %v4077 = vpow.pop %v4076
      %v4078 = vmul.f32 %v3544, 1.442695
      %v4079 = vpow.pop %v4078
      %v4080 = vmul.f32 %v3545, 1.442695
      %v4081 = vpow.pop %v4080
      %v4082 = vmul.f32 %v3546, 1.442695
      %v4083 = vpow.pop %v4082
      %v4084 = vmul.f32 %v3547, 1.442695
      %v4085 = vpow.pop %v4084
      %v4086 = vmul.f32 %v3548, 1.442695
      %v4087 = vpow.pop %v4086
      %v4088 = vmul.f32 %v3549, 1.442695
      %v4089 = vpow.pop %v4088
      %v4090 = vmul.f32 %v3550, 1.442695
      %v4091 = vpow.pop %v4090
      %v4092 = vmul.f32 %v3551, 1.442695
      %v4093 = vpow.pop %v4092
      %v4094 = vmul.f32 %v3552, 1.442695
      %v4095 = vpow.pop %v4094
      %v4096 = vmul.f32 %v3553, 1.442695
      %v4097 = vpow.pop %v4096
      %v4098 = vmul.f32 %v3554, 1.442695
      %v4099 = vpow.pop %v4098
      %v4100 = vmul.f32 %v3555, 1.442695
      %v4101 = vpow.pop %v4100
      %v4102 = vmul.f32 %v3556, 1.442695
      %v4103 = vpow.pop %v4102
      %v4104 = vmul.f32 %v3557, 1.442695
      %v4105 = vpow.pop %v4104
      %v4106 = vmul.f32 %v3558, 1.442695
      %v4107 = vpow.pop %v4106
      %v4108 = vmul.f32 %v3559, 1.442695
      %v4109 = vpow.pop %v4108
      %v4110 = vmul.f32 %v3560, 1.442695
      %v4111 = vpow.pop %v4110
      %v4112 = vmul.f32 %v3561, 1.442695
      %v4113 = vpow.pop %v4112
      %v4114 = vmul.f32 %v3562, 1.442695
      %v4115 = vpow.pop %v4114
      %v4116 = vmul.f32 %v3563, 1.442695
      %v4117 = vpow.pop %v4116
      %v4118 = vmul.f32 %v3564, 1.442695
      %v4119 = vpow.pop %v4118
      %v4120 = vmul.f32 %v3565, 1.442695
      %v4121 = vpow.pop %v4120
      %v4122 = vmul.f32 %v3566, 1.442695
      %v4123 = vpow.pop %v4122
      %v4124 = vmul.f32 %v3567, 1.442695
      %v4125 = vpow.pop %v4124
      %v4126 = vmul.f32 %v3568, 1.442695
      %v4127 = vpow.pop %v4126
      %v4128 = vmul.f32 %v3569, 1.442695
      %v4129 = vpow.pop %v4128
      %v4130 = vmul.f32 %v3570, 1.442695
      %v4131 = vpow.pop %v4130
      %v4132 = vmul.f32 %v3571, 1.442695
      %v4133 = vpow.pop %v4132
      %v4134 = vmul.f32 %v3572, 1.442695
      %v4135 = vpow.pop %v4134
      %v4136 = vmul.f32 %v3573, 1.442695
      %v4137 = vpow.pop %v4136
      %v4138 = vmul.f32 %v3574, 1.442695
      %v4139 = vpow.pop %v4138
      %v4140 = vmul.f32 %v3575, 1.442695
      %v4141 = vpow.pop %v4140
      %v4142 = vmul.f32 %v3576, 1.442695
      %v4143 = vpow.pop %v4142
      %v4144 = vmul.f32 %v3577, 1.442695
      %v4145 = vpow.pop %v4144
      %v4146 = vmul.f32 %v3578, 1.442695
      %v4147 = vpow.pop %v4146
      %v4148 = vmul.f32 %v3579, 1.442695
      %v4149 = vpow.pop %v4148
      %v4150 = vmul.f32 %v3580, 1.442695
      %v4151 = vpow.pop %v4150
      %v4152 = vmul.f32 %v3581, 1.442695
      %v4153 = vpow.pop %v4152
      %v4154 = vmul.f32 %v3582, 1.442695
      %v4155 = vpow.pop %v4154
      %v4156 = vmul.f32 %v3583, 1.442695
      %v4157 = vpow.pop %v4156
      %v4158 = vmul.f32 %v3584, 1.442695
      %v4159 = vpow.pop %v4158
      %v4160 = vmul.f32 %v3585, 1.442695
      %v4161 = vpow.pop %v4160
      %v4162 = vmul.f32 %v3586, 1.442695
      %v4163 = vpow.pop %v4162
      %v4164 = vmul.f32 %v3587, 1.442695
      %v4165 = vpow.pop %v4164
      %v4166 = vmul.f32 %v3588, 1.442695
      %v4167 = vpow.pop %v4166
      %v4168 = vmul.f32 %v3589, 1.442695
      %v4169 = vpow.pop %v4168
      %v4170 = vmul.f32 %v3590, 1.442695
      %v4171 = vpow.pop %v4170
      %v4172 = vmul.f32 %v3591, 1.442695
      %v4173 = vpow.pop %v4172
      %v4174 = vmul.f32 %v3592, 1.442695
      %v4175 = vpow.pop %v4174
      %v4176 = vmul.f32 %v3593, 1.442695
      %v4177 = vpow.pop %v4176
      %v4178 = vmul.f32 %v3594, 1.442695
      %v4179 = vpow.pop %v4178
      %v4180 = vmul.f32 %v3595, 1.442695
      %v4181 = vpow.pop %v4180
      %v4182 = vmul.f32 %v3596, 1.442695
      %v4183 = vpow.pop %v4182
      %v4184 = vmul.f32 %v3597, 1.442695
      %v4185 = vpow.pop %v4184
      %v4186 = vmul.f32 %v3598, 1.442695
      %v4187 = vpow.pop %v4186
      %v4188 = vmul.f32 %v3599, 1.442695
      %v4189 = vpow.pop %v4188
      %v4190 = vmul.f32 %v3600, 1.442695
      %v4191 = vpow.pop %v4190
      %v4192 = vmul.f32 %v3601, 1.442695
      %v4193 = vpow.pop %v4192
      %v4194 = vmul.f32 %v3602, 1.442695
      %v4195 = vpow.pop %v4194
      %v4196 = vmul.f32 %v3603, 1.442695
      %v4197 = vpow.pop %v4196
      %v4198 = vmul.f32 %v3604, 1.442695
      %v4199 = vpow.pop %v4198
      %v4200 = vmul.f32 %v3605, 1.442695
      %v4201 = vpow.pop %v4200
      %v4202 = vmul.f32 %v3606, 1.442695
      %v4203 = vpow.pop %v4202
      %v4204 = vmul.f32 %v3607, 1.442695
      %v4205 = vpow.pop %v4204
      %v4206 = vmul.f32 %v3608, 1.442695
      %v4207 = vpow.pop %v4206
      %v4208 = vmul.f32 %v3609, 1.442695
      %v4209 = vpow.pop %v4208
      %v4210 = vmul.f32 %v3610, 1.442695
      %v4211 = vpow.pop %v4210
      %v4212 = vmul.f32 %v3611, 1.442695
      %v4213 = vpow.pop %v4212
      %v4214 = vmul.f32 %v3612, 1.442695
      %v4215 = vpow.pop %v4214
      %v4216 = vmul.f32 %v3613, 1.442695
      %v4217 = vpow.pop %v4216
      %v4218 = vmul.f32 %v3614, 1.442695
      %v4219 = vpow.pop %v4218
      %v4220 = vmul.f32 %v3615, 1.442695
      %v4221 = vpow.pop %v4220
      %v4222 = vmul.f32 %v3616, 1.442695
      %v4223 = vpow.pop %v4222
      %v4224 = vmul.f32 %v3617, 1.442695
      %v4225 = vpow.pop %v4224
      %v4226 = vmul.f32 %v3618, 1.442695
      %v4227 = vpow.pop %v4226
      %v4228 = vmul.f32 %v3619, 1.442695
      %v4229 = vpow.pop %v4228
      %v4230 = vmul.f32 %v3620, 1.442695
      %v4231 = vpow.pop %v4230
      %v4232 = vmul.f32 %v3621, 1.442695
      %v4233 = vpow.pop %v4232
      %v4234 = vmul.f32 %v3622, 1.442695
      %v4235 = vpow.pop %v4234
      %v4236 = vmul.f32 %v3623, 1.442695
      %v4237 = vpow.pop %v4236
      %v4238 = vmul.f32 %v3624, 1.442695
      %v4239 = vpow.pop %v4238
      %v4240 = vmul.f32 %v3625, 1.442695
      %v4241 = vpow.pop %v4240
      %v4242 = vmul.f32 %v3626, 1.442695
      %v4243 = vpow.pop %v4242
      %v4244 = vmul.f32 %v3627, 1.442695
      %v4245 = vpow.pop %v4244
      %v4246 = vmul.f32 %v3628, 1.442695
      %v4247 = vpow.pop %v4246
      %v4248 = vmul.f32 %v3629, 1.442695
      %v4249 = vpow.pop %v4248
      %v4250 = vmul.f32 %v3630, 1.442695
      %v4251 = vpow.pop %v4250
      %v4252 = vmul.f32 %v3631, 1.442695
      %v4253 = vpow.pop %v4252
      %v4254 = vmul.f32 %v3632, 1.442695
      %v4255 = vpow.pop %v4254
      %v4256 = vmul.f32 %v3633, 1.442695
      %v4257 = vpow.pop %v4256
      %v4258 = vmul.f32 %v3634, 1.442695
      %v4259 = vpow.pop %v4258
      %v4260 = vmul.f32 %v3635, 1.442695
      %v4261 = vpow.pop %v4260
      %v4262 = vmul.f32 %v3636, 1.442695
      %v4263 = vpow.pop %v4262
      %v4264 = vmul.f32 %v3637, 1.442695
      %v4265 = vpow.pop %v4264
      %v4266 = vmul.f32 %v3638, 1.442695
      %v4267 = vpow.pop %v4266
      %v4268 = vmul.f32 %v3639, 1.442695
      %v4269 = vpow.pop %v4268
      %v4270 = vmul.f32 %v3640, 1.442695
      %v4271 = vpow.pop %v4270
      %v4272 = vmul.f32 %v3641, 1.442695
      %v4273 = vpow.pop %v4272
      %v4274 = vmul.f32 %v3642, 1.442695
      %v4275 = vpow.pop %v4274
      %v4276 = vmul.f32 %v3643, 1.442695
      %v4277 = vpow.pop %v4276
      %v4278 = vmul.f32 %v3644, 1.442695
      %v4279 = vpow.pop %v4278
      %v4280 = vmul.f32 %v3645, 1.442695
      %v4281 = vpow.pop %v4280
      %v4282 = vmul.f32 %v3646, 1.442695
      %v4283 = vpow.pop %v4282
      %v4284 = vmul.f32 %v3647, 1.442695
      %v4285 = vpow.pop %v4284
      %v4286 = vmul.f32 %v3648, 1.442695
      %v4287 = vpow.pop %v4286
      %v4288 = vmul.f32 %v3649, 1.442695
      %v4289 = vpow.pop %v4288
      %v4290 = vmul.f32 %v3650, 1.442695
      %v4291 = vpow.pop %v4290
      %v4292 = vmul.f32 %v3651, 1.442695
      %v4293 = vpow.pop %v4292
      %v4294 = vmul.f32 %v3652, 1.442695
      %v4295 = vpow.pop %v4294
      %v4296 = vmul.f32 %v3653, 1.442695
      %v4297 = vpow.pop %v4296
      %v4298 = vmul.f32 %v3654, 1.442695
      %v4299 = vpow.pop %v4298
      %v4300 = vmul.f32 %v3655, 1.442695
      %v4301 = vpow.pop %v4300
      %v4302 = vmul.f32 %v3656, 1.442695
      %v4303 = vpow.pop %v4302
      %v4304 = vmul.f32 %v3657, 1.442695
      %v4305 = vpow.pop %v4304
      %v4306 = vmul.f32 %v3658, 1.442695
      %v4307 = vpow.pop %v4306
      %v4308 = vmul.f32 %v3659, 1.442695
      %v4309 = vpow.pop %v4308
      %v4310 = vmul.f32 %v3660, 1.442695
      %v4311 = vpow.pop %v4310
      %v4312 = vmul.f32 %v3661, 1.442695
      %v4313 = vpow.pop %v4312
      %v4314 = vmul.f32 %v3662, 1.442695
      %v4315 = vpow.pop %v4314
      %v4316 = vmul.f32 %v3663, 1.442695
      %v4317 = vpow.pop %v4316
      %v4318 = vmul.f32 %v3664, 1.442695
      %v4319 = vpow.pop %v4318
      %v4320 = vmul.f32 %v3665, 1.442695
      %v4321 = vpow.pop %v4320
      %v4322 = vmul.f32 %v3666, 1.442695
      %v4323 = vpow.pop %v4322
      %v4324 = vmul.f32 %v3667, 1.442695
      %v4325 = vpow.pop %v4324
      %v4326 = vmul.f32 %v3668, 1.442695
      %v4327 = vpow.pop %v4326
      %v4328 = vmul.f32 %v3669, 1.442695
      %v4329 = vpow.pop %v4328
      %v4330 = vmul.f32 %v3670, 1.442695
      %v4331 = vpow.pop %v4330
      %v4332 = vmul.f32 %v3671, 1.442695
      %v4333 = vpow.pop %v4332
      %v4334 = vmul.f32 %v3672, 1.442695
      %v4335 = vpow.pop %v4334
      %v4336 = vmul.f32 %v3673, 1.442695
      %v4337 = vpow.pop %v4336
      %v4338 = vmul.f32 %v3674, 1.442695
      %v4339 = vpow.pop %v4338
      %v4340 = vmul.f32 %v3675, 1.442695
      %v4341 = vpow.pop %v4340
      %v4342 = vmul.f32 %v3676, 1.442695
      %v4343 = vpow.pop %v4342
      %v4344 = vmul.f32 %v3677, 1.442695
      %v4345 = vpow.pop %v4344
      %v4346 = vmul.f32 %v3678, 1.442695
      %v4347 = vpow.pop %v4346
      %v4348 = vmul.f32 %v3679, 1.442695
      %v4349 = vpow.pop %v4348
      %v4350 = vmul.f32 %v3680, 1.442695
      %v4351 = vpow.pop %v4350
      %v4352 = vmul.f32 %v3681, 1.442695
      %v4353 = vpow.pop %v4352
      %v4354 = vmul.f32 %v3682, 1.442695
      %v4355 = vpow.pop %v4354
      %v4356 = vmul.f32 %v3683, 1.442695
      %v4357 = vpow.pop %v4356
      %v4358 = vmul.f32 %v3684, 1.442695
      %v4359 = vpow.pop %v4358
      %v4360 = vmul.f32 %v3685, 1.442695
      %v4361 = vpow.pop %v4360
      %v4362 = vmul.f32 %v3686, 1.442695
      %v4363 = vpow.pop %v4362
      %v4364 = vmul.f32 %v3687, 1.442695
      %v4365 = vpow.pop %v4364
      %v4366 = vmul.f32 %v3688, 1.442695
      %v4367 = vpow.pop %v4366
      %v4368 = vmul.f32 %v3689, 1.442695
      %v4369 = vpow.pop %v4368
      %v4370 = vmul.f32 %v3690, 1.442695
      %v4371 = vpow.pop %v4370
      %v4372 = vmul.f32 %v3691, 1.442695
      %v4373 = vpow.pop %v4372
      %v4374 = vmul.f32 %v3692, 1.442695
      %v4375 = vpow.pop %v4374
      %v4376 = vmul.f32 %v3693, 1.442695
      %v4377 = vpow.pop %v4376
      %v4378 = vmul.f32 %v3694, 1.442695
      %v4379 = vpow.pop %v4378
      %v4380 = vmul.f32 %v3695, 1.442695
      %v4381 = vpow.pop %v4380
      %v4382 = vmul.f32 %v3696, 1.442695
      %v4383 = vpow.pop %v4382
      %v4384 = vmul.f32 %v3697, 1.442695
      %v4385 = vpow.pop %v4384
      %v4386 = vmul.f32 %v3698, 1.442695
      %v4387 = vpow.pop %v4386
      %v4388 = vmul.f32 %v3699, 1.442695
      %v4389 = vpow.pop %v4388
      %v4390 = vmul.f32 %v3700, 1.442695
      %v4391 = vpow.pop %v4390
      %v4392 = vmul.f32 %v3701, 1.442695
      %v4393 = vpow.pop %v4392
      %v4394 = vmul.f32 %v3702, 1.442695
      %v4395 = vpow.pop %v4394
      %v4396 = vmul.f32 %v3703, 1.442695
      %v4397 = vpow.pop %v4396
      %v4398 = vmul.f32 %v3704, 1.442695
      %v4399 = vpow.pop %v4398
      %v4400 = vmul.f32 %v3705, 1.442695
      %v4401 = vpow.pop %v4400
      %v4402 = vmul.f32 %v3706, 1.442695
      %v4403 = vpow.pop %v4402
      %v4404 = vmul.f32 %v3707, 1.442695
      %v4405 = vpow.pop %v4404
      %v4406 = vmul.f32 %v3708, 1.442695
      %v4407 = vpow.pop %v4406
      %v4408 = vmul.f32 %v3709, 1.442695
      %v4409 = vpow.pop %v4408
      %v4410 = vmul.f32 %v3710, 1.442695
      %v4411 = vpow.pop %v4410
      %v4412 = vmul.f32 %v3711, 1.442695
      %v4413 = vpow.pop %v4412
      %v4414 = vmul.f32 %v3712, 1.442695
      %v4415 = vpow.pop %v4414
      %v4416 = vmul.f32 %v3713, 1.442695
      %v4417 = vpow.pop %v4416
      %v4418 = vmul.f32 %v3714, 1.442695
      %v4419 = vpow.pop %v4418
      %v4420 = vmul.f32 %v3715, 1.442695
      %v4421 = vpow.pop %v4420
      %v4422 = vmul.f32 %v3716, 1.442695
      %v4423 = vpow.pop %v4422
      %v4424 = vmul.f32 %v3717, 1.442695
      %v4425 = vpow.pop %v4424
      %v4426 = vmul.f32 %v3718, 1.442695
      %v4427 = vpow.pop %v4426
      %v4428 = vmul.f32 %v3719, 1.442695
      %v4429 = vpow.pop %v4428
      %v4430 = vmul.f32 %v3720, 1.442695
      %v4431 = vpow.pop %v4430
      %v4432 = vmul.f32 %v3721, 1.442695
      %v4433 = vpow.pop %v4432
      %v4434 = vmul.f32 %v3722, 1.442695
      %v4435 = vpow.pop %v4434
      %v4436 = vmul.f32 %v3723, 1.442695
      %v4437 = vpow.pop %v4436
      %v4438 = vmul.f32 %v3724, 1.442695
      %v4439 = vpow.pop %v4438
      %v4440 = vmul.f32 %v3725, 1.442695
      %v4441 = vpow.pop %v4440
      %v4442 = vmul.f32 %v3726, 1.442695
      %v4443 = vpow.pop %v4442
      %v4444 = vmul.f32 %v3727, 1.442695
      %v4445 = vpow.pop %v4444
      %v4446 = vmul.f32 %v3728, 1.442695
      %v4447 = vpow.pop %v4446
      %v4448 = vmul.f32 %v3729, 1.442695
      %v4449 = vpow.pop %v4448
      %v4450 = vmul.f32 %v3730, 1.442695
      %v4451 = vpow.pop %v4450
      %v4452 = vmul.f32 %v3731, 1.442695
      %v4453 = vpow.pop %v4452
      %v4454 = vmul.f32 %v3732, 1.442695
      %v4455 = vpow.pop %v4454
      %v4456 = vmul.f32 %v3733, 1.442695
      %v4457 = vpow.pop %v4456
      %v4458 = vmul.f32 %v3734, 1.442695
      %v4459 = vpow.pop %v4458
      %v4460 = vmul.f32 %v3735, 1.442695
      %v4461 = vpow.pop %v4460
      %v4462 = vmul.f32 %v3736, 1.442695
      %v4463 = vpow.pop %v4462
      %v4464 = vmul.f32 %v3737, 1.442695
      %v4465 = vpow.pop %v4464
      %v4466 = vmul.f32 %v3738, 1.442695
      %v4467 = vpow.pop %v4466
      %v4468 = vmul.f32 %v3739, 1.442695
      %v4469 = vpow.pop %v4468
      %v4470 = vmul.f32 %v3740, 1.442695
      %v4471 = vpow.pop %v4470
      %v4472 = vmul.f32 %v3741, 1.442695
      %v4473 = vpow.pop %v4472
      %v4474 = vmul.f32 %v3742, 1.442695
      %v4475 = vpow.pop %v4474
      %v4476 = vmul.f32 %v3743, 1.442695
      %v4477 = vpow.pop %v4476
      %v4478 = vmul.f32 %v3744, 1.442695
      %v4479 = vpow.pop %v4478
      %v4480 = vmul.f32 %v3745, 1.442695
      %v4481 = vpow.pop %v4480
      %v4482 = vmul.f32 %v3746, 1.442695
      %v4483 = vpow.pop %v4482
      %v4484 = vmul.f32 %v3747, 1.442695
      %v4485 = vpow.pop %v4484
      %v4486 = vmul.f32 %v3748, 1.442695
      %v4487 = vpow.pop %v4486
      %v4488 = vmul.f32 %v3749, 1.442695
      %v4489 = vpow.pop %v4488
      %v4490 = vmul.f32 %v3750, 1.442695
      %v4491 = vpow.pop %v4490
      %v4492 = vmul.f32 %v3751, 1.442695
      %v4493 = vpow.pop %v4492
      %v4494 = vmul.f32 %v3752, 1.442695
      %v4495 = vpow.pop %v4494
      %v4496 = vmul.f32 %v3753, 1.442695
      %v4497 = vpow.pop %v4496
      %v4498 = vmul.f32 %v3754, 1.442695
      %v4499 = vpow.pop %v4498
      %v4500 = vmul.f32 %v3755, 1.442695
      %v4501 = vpow.pop %v4500
      %v4502 = vmul.f32 %v3756, 1.442695
      %v4503 = vpow.pop %v4502
      %v4504 = vmul.f32 %v3757, 1.442695
      %v4505 = vpow.pop %v4504
      %v4506 = vmul.f32 %v3758, 1.442695
      %v4507 = vpow.pop %v4506
      %v4508 = vmul.f32 %v3759, 1.442695
      %v4509 = vpow.pop %v4508
      %v4510 = vmul.f32 %v3760, 1.442695
      %v4511 = vpow.pop %v4510
      %v4512 = vmul.f32 %v3761, 1.442695
      %v4513 = vpow.pop %v4512
      %v4514 = vmul.f32 %v3762, 1.442695
      %v4515 = vpow.pop %v4514
      %v4516 = vmul.f32 %v3763, 1.442695
      %v4517 = vpow.pop %v4516
      %v4518 = vmul.f32 %v3764, 1.442695
      %v4519 = vpow.pop %v4518
      %v4520 = vmul.f32 %v3765, 1.442695
      %v4521 = vpow.pop %v4520
      %v4522 = vmul.f32 %v3766, 1.442695
      %v4523 = vpow.pop %v4522
      %v4524 = vmul.f32 %v3767, 1.442695
      %v4525 = vpow.pop %v4524
      %v4526 = vmul.f32 %v3768, 1.442695
      %v4527 = vpow.pop %v4526
      %v4528 = vmul.f32 %v3769, 1.442695
      %v4529 = vpow.pop %v4528
      %v4530 = vmul.f32 %v3770, 1.442695
      %v4531 = vpow.pop %v4530
      %v4532 = vmul.f32 %v3771, 1.442695
      %v4533 = vpow.pop %v4532
      %v4534 = vmul.f32 %v3772, 1.442695
      %v4535 = vpow.pop %v4534
      %v4536 = vmul.f32 %v3773, 1.442695
      %v4537 = vpow.pop %v4536
      %v4538 = vmul.f32 %v3774, 1.442695
      %v4539 = vpow.pop %v4538
      %v4540 = vmul.f32 %v3775, 1.442695
      %v4541 = vpow.pop %v4540
      %v4542 = vmul.f32 %v3776, 1.442695
      %v4543 = vpow.pop %v4542
      %v4544 = vmul.f32 %v3777, 1.442695
      %v4545 = vpow.pop %v4544
      %v4546 = vmul.f32 %v3778, 1.442695
      %v4547 = vpow.pop %v4546
      %v4548 = vmul.f32 %v3779, 1.442695
      %v4549 = vpow.pop %v4548
      %v4550 = vmul.f32 %v3780, 1.442695
      %v4551 = vpow.pop %v4550
      %v4552 = vmul.f32 %v3781, 1.442695
      %v4553 = vpow.pop %v4552
      %v4554 = vmul.f32 %v3782, 1.442695
      %v4555 = vpow.pop %v4554
      %v4556 = vmul.f32 %v3783, 1.442695
      %v4557 = vpow.pop %v4556
      %v4558 = vmul.f32 %v3784, 1.442695
      %v4559 = vpow.pop %v4558
      %v4560 = vmul.f32 %v3785, 1.442695
      %v4561 = vpow.pop %v4560
      %v4562 = vmul.f32 %v3786, 1.442695
      %v4563 = vpow.pop %v4562
      %v4564 = vmul.f32 %v3787, 1.442695
      %v4565 = vpow.pop %v4564
      %v4566 = vmul.f32 %v3788, 1.442695
      %v4567 = vpow.pop %v4566
      %v4568 = vmul.f32 %v3789, 1.442695
      %v4569 = vpow.pop %v4568
      %v4570 = vmul.f32 %v3790, 1.442695
      %v4571 = vpow.pop %v4570
      %v4572 = vmul.f32 %v3791, 1.442695
      %v4573 = vpow.pop %v4572
      %v4574 = vmul.f32 %v3792, 1.442695
      %v4575 = vpow.pop %v4574
      %v4576 = vmul.f32 %v3793, 1.442695
      %v4577 = vpow.pop %v4576
      %v4578 = vmul.f32 %v3794, 1.442695
      %v4579 = vpow.pop %v4578
      %v4580 = vmul.f32 %v3795, 1.442695
      %v4581 = vpow.pop %v4580
      %v4582 = vmul.f32 %v3796, 1.442695
      %v4583 = vpow.pop %v4582
      %v4584 = vmul.f32 %v3797, 1.442695
      %v4585 = vpow.pop %v4584
      %v4586 = vmul.f32 %v3798, 1.442695
      %v4587 = vpow.pop %v4586
      %v4588 = vmul.f32 %v3799, 1.442695
      %v4589 = vpow.pop %v4588
      %v4590 = vmul.f32 %v3800, 1.442695
      %v4591 = vpow.pop %v4590
      %v4592 = vmul.f32 %v3801, 1.442695
      %v4593 = vpow.pop %v4592
      %v4594 = vmul.f32 %v3802, 1.442695
      %v4595 = vpow.pop %v4594
      %v4596 = vmul.f32 %v3803, 1.442695
      %v4597 = vpow.pop %v4596
      %v4598 = vmul.f32 %v3804, 1.442695
      %v4599 = vpow.pop %v4598
      %v4600 = vmul.f32 %v3805, 1.442695
      %v4601 = vpow.pop %v4600
      %v4602 = vmul.f32 %v3806, 1.442695
      %v4603 = vpow.pop %v4602
      %v4604 = vmul.f32 %v3807, 1.442695
      %v4605 = vpow.pop %v4604
      %v4606 = vmul.f32 %v3808, 1.442695
      %v4607 = vpow.pop %v4606
      %v4608 = vmul.f32 %v3809, 1.442695
      %v4609 = vpow.pop %v4608
      %v4610 = vadd.f32 %v3811, %v3813
      %v4611 = vadd.f32 %v4610, %v3815
      %v4612 = vadd.f32 %v4611, %v3817
      %v4613 = vadd.f32 %v4612, %v3819
      %v4614 = vadd.f32 %v4613, %v3821
      %v4615 = vadd.f32 %v4614, %v3823
      %v4616 = vadd.f32 %v4615, %v3825
      %v4617 = vadd.f32 %v4616, %v3827
      %v4618 = vadd.f32 %v4617, %v3829
      %v4619 = vadd.f32 %v4618, %v3831
      %v4620 = vadd.f32 %v4619, %v3833
      %v4621 = vadd.f32 %v4620, %v3835
      %v4622 = vadd.f32 %v4621, %v3837
      %v4623 = vadd.f32 %v4622, %v3839
      %v4624 = vadd.f32 %v4623, %v3841
      %v4625 = vadd.f32 %v4624, %v3843
      %v4626 = vadd.f32 %v4625, %v3845
      %v4627 = vadd.f32 %v4626, %v3847
      %v4628 = vadd.f32 %v4627, %v3849
      %v4629 = vadd.f32 %v4628, %v3851
      %v4630 = vadd.f32 %v4629, %v3853
      %v4631 = vadd.f32 %v4630, %v3855
      %v4632 = vadd.f32 %v4631, %v3857
      %v4633 = vsel %vm2600, %v3859, 0.0
      %v4634 = vadd.f32 %v4632, %v4633
      %4635 = vadd.xlane.f32.xlu0 %v4634
      %v4636 = vpop.xlane.xlu0 %4635
      %v4637 = vadd.f32 %v3861, %v3863
      %v4638 = vadd.f32 %v4637, %v3865
      %v4639 = vadd.f32 %v4638, %v3867
      %v4640 = vadd.f32 %v4639, %v3869
      %v4641 = vadd.f32 %v4640, %v3871
      %v4642 = vadd.f32 %v4641, %v3873
      %v4643 = vadd.f32 %v4642, %v3875
      %v4644 = vadd.f32 %v4643, %v3877
      %v4645 = vadd.f32 %v4644, %v3879
      %v4646 = vadd.f32 %v4645, %v3881
      %v4647 = vadd.f32 %v4646, %v3883
      %v4648 = vadd.f32 %v4647, %v3885
      %v4649 = vadd.f32 %v4648, %v3887
      %v4650 = vadd.f32 %v4649, %v3889
      %v4651 = vadd.f32 %v4650, %v3891
      %v4652 = vadd.f32 %v4651, %v3893
      %v4653 = vadd.f32 %v4652, %v3895
      %v4654 = vadd.f32 %v4653, %v3897
      %v4655 = vadd.f32 %v4654, %v3899
      %v4656 = vadd.f32 %v4655, %v3901
      %v4657 = vadd.f32 %v4656, %v3903
      %v4658 = vadd.f32 %v4657, %v3905
      %v4659 = vadd.f32 %v4658, %v3907
      %v4660 = vsel %vm2600, %v3909, 0.0
      %v4661 = vadd.f32 %v4659, %v4660
      %4662 = vadd.xlane.f32.xlu0 %v4661
      %v4663 = vpop.xlane.xlu0 %4662
      %v4664 = vadd.f32 %v3911, %v3913
      %v4665 = vadd.f32 %v4664, %v3915
      %v4666 = vadd.f32 %v4665, %v3917
      %v4667 = vadd.f32 %v4666, %v3919
      %v4668 = vadd.f32 %v4667, %v3921
      %v4669 = vadd.f32 %v4668, %v3923
      %v4670 = vadd.f32 %v4669, %v3925
      %v4671 = vadd.f32 %v4670, %v3927
      %v4672 = vadd.f32 %v4671, %v3929
      %v4673 = vadd.f32 %v4672, %v3931
      %v4674 = vadd.f32 %v4673, %v3933
      %v4675 = vadd.f32 %v4674, %v3935
      %v4676 = vadd.f32 %v4675, %v3937
      %v4677 = vadd.f32 %v4676, %v3939
      %v4678 = vadd.f32 %v4677, %v3941
      %v4679 = vadd.f32 %v4678, %v3943
      %v4680 = vadd.f32 %v4679, %v3945
      %v4681 = vadd.f32 %v4680, %v3947
      %v4682 = vadd.f32 %v4681, %v3949
      %v4683 = vadd.f32 %v4682, %v3951
      %v4684 = vadd.f32 %v4683, %v3953
      %v4685 = vadd.f32 %v4684, %v3955
      %v4686 = vadd.f32 %v4685, %v3957
      %v4687 = vsel %vm2600, %v3959, 0.0
      %v4688 = vadd.f32 %v4686, %v4687
      %4689 = vadd.xlane.f32.xlu0 %v4688
      %v4690 = vpop.xlane.xlu0 %4689
      %v4691 = vadd.f32 %v3961, %v3963
      %v4692 = vadd.f32 %v4691, %v3965
      %v4693 = vadd.f32 %v4692, %v3967
      %v4694 = vadd.f32 %v4693, %v3969
      %v4695 = vadd.f32 %v4694, %v3971
      %v4696 = vadd.f32 %v4695, %v3973
      %v4697 = vadd.f32 %v4696, %v3975
      %v4698 = vadd.f32 %v4697, %v3977
      %v4699 = vadd.f32 %v4698, %v3979
      %v4700 = vadd.f32 %v4699, %v3981
      %v4701 = vadd.f32 %v4700, %v3983
      %v4702 = vadd.f32 %v4701, %v3985
      %v4703 = vadd.f32 %v4702, %v3987
      %v4704 = vadd.f32 %v4703, %v3989
      %v4705 = vadd.f32 %v4704, %v3991
      %v4706 = vadd.f32 %v4705, %v3993
      %v4707 = vadd.f32 %v4706, %v3995
      %v4708 = vadd.f32 %v4707, %v3997
      %v4709 = vadd.f32 %v4708, %v3999
      %v4710 = vadd.f32 %v4709, %v4001
      %v4711 = vadd.f32 %v4710, %v4003
      %v4712 = vadd.f32 %v4711, %v4005
      %v4713 = vadd.f32 %v4712, %v4007
      %v4714 = vsel %vm2600, %v4009, 0.0
      %v4715 = vadd.f32 %v4713, %v4714
      %4716 = vadd.xlane.f32.xlu0 %v4715
      %v4717 = vpop.xlane.xlu0 %4716
      %v4718 = vadd.f32 %v4011, %v4013
      %v4719 = vadd.f32 %v4718, %v4015
      %v4720 = vadd.f32 %v4719, %v4017
      %v4721 = vadd.f32 %v4720, %v4019
      %v4722 = vadd.f32 %v4721, %v4021
      %v4723 = vadd.f32 %v4722, %v4023
      %v4724 = vadd.f32 %v4723, %v4025
      %v4725 = vadd.f32 %v4724, %v4027
      %v4726 = vadd.f32 %v4725, %v4029
      %v4727 = vadd.f32 %v4726, %v4031
      %v4728 = vadd.f32 %v4727, %v4033
      %v4729 = vadd.f32 %v4728, %v4035
      %v4730 = vadd.f32 %v4729, %v4037
      %v4731 = vadd.f32 %v4730, %v4039
      %v4732 = vadd.f32 %v4731, %v4041
      %v4733 = vadd.f32 %v4732, %v4043
      %v4734 = vadd.f32 %v4733, %v4045
      %v4735 = vadd.f32 %v4734, %v4047
      %v4736 = vadd.f32 %v4735, %v4049
      %v4737 = vadd.f32 %v4736, %v4051
      %v4738 = vadd.f32 %v4737, %v4053
      %v4739 = vadd.f32 %v4738, %v4055
      %v4740 = vadd.f32 %v4739, %v4057
      %v4741 = vsel %vm2600, %v4059, 0.0
      %v4742 = vadd.f32 %v4740, %v4741
      %4743 = vadd.xlane.f32.xlu0 %v4742
      %v4744 = vpop.xlane.xlu0 %4743
      %v4745 = vadd.f32 %v4061, %v4063
      %v4746 = vadd.f32 %v4745, %v4065
      %v4747 = vadd.f32 %v4746, %v4067
      %v4748 = vadd.f32 %v4747, %v4069
      %v4749 = vadd.f32 %v4748, %v4071
      %v4750 = vadd.f32 %v4749, %v4073
      %v4751 = vadd.f32 %v4750, %v4075
      %v4752 = vadd.f32 %v4751, %v4077
      %v4753 = vadd.f32 %v4752, %v4079
      %v4754 = vadd.f32 %v4753, %v4081
      %v4755 = vadd.f32 %v4754, %v4083
      %v4756 = vadd.f32 %v4755, %v4085
      %v4757 = vadd.f32 %v4756, %v4087
      %v4758 = vadd.f32 %v4757, %v4089
      %v4759 = vadd.f32 %v4758, %v4091
      %v4760 = vadd.f32 %v4759, %v4093
      %v4761 = vadd.f32 %v4760, %v4095
      %v4762 = vadd.f32 %v4761, %v4097
      %v4763 = vadd.f32 %v4762, %v4099
      %v4764 = vadd.f32 %v4763, %v4101
      %v4765 = vadd.f32 %v4764, %v4103
      %v4766 = vadd.f32 %v4765, %v4105
      %v4767 = vadd.f32 %v4766, %v4107
      %v4768 = vsel %vm2600, %v4109, 0.0
      %v4769 = vadd.f32 %v4767, %v4768
      %4770 = vadd.xlane.f32.xlu0 %v4769
      %v4771 = vpop.xlane.xlu0 %4770
      %v4772 = vadd.f32 %v4111, %v4113
      %v4773 = vadd.f32 %v4772, %v4115
      %v4774 = vadd.f32 %v4773, %v4117
      %v4775 = vadd.f32 %v4774, %v4119
      %v4776 = vadd.f32 %v4775, %v4121
      %v4777 = vadd.f32 %v4776, %v4123
      %v4778 = vadd.f32 %v4777, %v4125
      %v4779 = vadd.f32 %v4778, %v4127
      %v4780 = vadd.f32 %v4779, %v4129
      %v4781 = vadd.f32 %v4780, %v4131
      %v4782 = vadd.f32 %v4781, %v4133
      %v4783 = vadd.f32 %v4782, %v4135
      %v4784 = vadd.f32 %v4783, %v4137
      %v4785 = vadd.f32 %v4784, %v4139
      %v4786 = vadd.f32 %v4785, %v4141
      %v4787 = vadd.f32 %v4786, %v4143
      %v4788 = vadd.f32 %v4787, %v4145
      %v4789 = vadd.f32 %v4788, %v4147
      %v4790 = vadd.f32 %v4789, %v4149
      %v4791 = vadd.f32 %v4790, %v4151
      %v4792 = vadd.f32 %v4791, %v4153
      %v4793 = vadd.f32 %v4792, %v4155
      %v4794 = vadd.f32 %v4793, %v4157
      %v4795 = vsel %vm2600, %v4159, 0.0
      %v4796 = vadd.f32 %v4794, %v4795
      %4797 = vadd.xlane.f32.xlu0 %v4796
      %v4798 = vpop.xlane.xlu0 %4797
      %v4799 = vadd.f32 %v4161, %v4163
      %v4800 = vadd.f32 %v4799, %v4165
      %v4801 = vadd.f32 %v4800, %v4167
      %v4802 = vadd.f32 %v4801, %v4169
      %v4803 = vadd.f32 %v4802, %v4171
      %v4804 = vadd.f32 %v4803, %v4173
      %v4805 = vadd.f32 %v4804, %v4175
      %v4806 = vadd.f32 %v4805, %v4177
      %v4807 = vadd.f32 %v4806, %v4179
      %v4808 = vadd.f32 %v4807, %v4181
      %v4809 = vadd.f32 %v4808, %v4183
      %v4810 = vadd.f32 %v4809, %v4185
      %v4811 = vadd.f32 %v4810, %v4187
      %v4812 = vadd.f32 %v4811, %v4189
      %v4813 = vadd.f32 %v4812, %v4191
      %v4814 = vadd.f32 %v4813, %v4193
      %v4815 = vadd.f32 %v4814, %v4195
      %v4816 = vadd.f32 %v4815, %v4197
      %v4817 = vadd.f32 %v4816, %v4199
      %v4818 = vadd.f32 %v4817, %v4201
      %v4819 = vadd.f32 %v4818, %v4203
      %v4820 = vadd.f32 %v4819, %v4205
      %v4821 = vadd.f32 %v4820, %v4207
      %v4822 = vsel %vm2600, %v4209, 0.0
      %v4823 = vadd.f32 %v4821, %v4822
      %4824 = vadd.xlane.f32.xlu0 %v4823
      %v4825 = vpop.xlane.xlu0 %4824
      %v4826 = vadd.f32 %v4211, %v4213
      %v4827 = vadd.f32 %v4826, %v4215
      %v4828 = vadd.f32 %v4827, %v4217
      %v4829 = vadd.f32 %v4828, %v4219
      %v4830 = vadd.f32 %v4829, %v4221
      %v4831 = vadd.f32 %v4830, %v4223
      %v4832 = vadd.f32 %v4831, %v4225
      %v4833 = vadd.f32 %v4832, %v4227
      %v4834 = vadd.f32 %v4833, %v4229
      %v4835 = vadd.f32 %v4834, %v4231
      %v4836 = vadd.f32 %v4835, %v4233
      %v4837 = vadd.f32 %v4836, %v4235
      %v4838 = vadd.f32 %v4837, %v4237
      %v4839 = vadd.f32 %v4838, %v4239
      %v4840 = vadd.f32 %v4839, %v4241
      %v4841 = vadd.f32 %v4840, %v4243
      %v4842 = vadd.f32 %v4841, %v4245
      %v4843 = vadd.f32 %v4842, %v4247
      %v4844 = vadd.f32 %v4843, %v4249
      %v4845 = vadd.f32 %v4844, %v4251
      %v4846 = vadd.f32 %v4845, %v4253
      %v4847 = vadd.f32 %v4846, %v4255
      %v4848 = vadd.f32 %v4847, %v4257
      %v4849 = vsel %vm2600, %v4259, 0.0
      %v4850 = vadd.f32 %v4848, %v4849
      %4851 = vadd.xlane.f32.xlu0 %v4850
      %v4852 = vpop.xlane.xlu0 %4851
      %v4853 = vadd.f32 %v4261, %v4263
      %v4854 = vadd.f32 %v4853, %v4265
      %v4855 = vadd.f32 %v4854, %v4267
      %v4856 = vadd.f32 %v4855, %v4269
      %v4857 = vadd.f32 %v4856, %v4271
      %v4858 = vadd.f32 %v4857, %v4273
      %v4859 = vadd.f32 %v4858, %v4275
      %v4860 = vadd.f32 %v4859, %v4277
      %v4861 = vadd.f32 %v4860, %v4279
      %v4862 = vadd.f32 %v4861, %v4281
      %v4863 = vadd.f32 %v4862, %v4283
      %v4864 = vadd.f32 %v4863, %v4285
      %v4865 = vadd.f32 %v4864, %v4287
      %v4866 = vadd.f32 %v4865, %v4289
      %v4867 = vadd.f32 %v4866, %v4291
      %v4868 = vadd.f32 %v4867, %v4293
      %v4869 = vadd.f32 %v4868, %v4295
      %v4870 = vadd.f32 %v4869, %v4297
      %v4871 = vadd.f32 %v4870, %v4299
      %v4872 = vadd.f32 %v4871, %v4301
      %v4873 = vadd.f32 %v4872, %v4303
      %v4874 = vadd.f32 %v4873, %v4305
      %v4875 = vadd.f32 %v4874, %v4307
      %v4876 = vsel %vm2600, %v4309, 0.0
      %v4877 = vadd.f32 %v4875, %v4876
      %4878 = vadd.xlane.f32.xlu0 %v4877
      %v4879 = vpop.xlane.xlu0 %4878
      %v4880 = vadd.f32 %v4311, %v4313
      %v4881 = vadd.f32 %v4880, %v4315
      %v4882 = vadd.f32 %v4881, %v4317
      %v4883 = vadd.f32 %v4882, %v4319
      %v4884 = vadd.f32 %v4883, %v4321
      %v4885 = vadd.f32 %v4884, %v4323
      %v4886 = vadd.f32 %v4885, %v4325
      %v4887 = vadd.f32 %v4886, %v4327
      %v4888 = vadd.f32 %v4887, %v4329
      %v4889 = vadd.f32 %v4888, %v4331
      %v4890 = vadd.f32 %v4889, %v4333
      %v4891 = vadd.f32 %v4890, %v4335
      %v4892 = vadd.f32 %v4891, %v4337
      %v4893 = vadd.f32 %v4892, %v4339
      %v4894 = vadd.f32 %v4893, %v4341
      %v4895 = vadd.f32 %v4894, %v4343
      %v4896 = vadd.f32 %v4895, %v4345
      %v4897 = vadd.f32 %v4896, %v4347
      %v4898 = vadd.f32 %v4897, %v4349
      %v4899 = vadd.f32 %v4898, %v4351
      %v4900 = vadd.f32 %v4899, %v4353
      %v4901 = vadd.f32 %v4900, %v4355
      %v4902 = vadd.f32 %v4901, %v4357
      %v4903 = vsel %vm2600, %v4359, 0.0
      %v4904 = vadd.f32 %v4902, %v4903
      %4905 = vadd.xlane.f32.xlu0 %v4904
      %v4906 = vpop.xlane.xlu0 %4905
      %v4907 = vadd.f32 %v4361, %v4363
      %v4908 = vadd.f32 %v4907, %v4365
      %v4909 = vadd.f32 %v4908, %v4367
      %v4910 = vadd.f32 %v4909, %v4369
      %v4911 = vadd.f32 %v4910, %v4371
      %v4912 = vadd.f32 %v4911, %v4373
      %v4913 = vadd.f32 %v4912, %v4375
      %v4914 = vadd.f32 %v4913, %v4377
      %v4915 = vadd.f32 %v4914, %v4379
      %v4916 = vadd.f32 %v4915, %v4381
      %v4917 = vadd.f32 %v4916, %v4383
      %v4918 = vadd.f32 %v4917, %v4385
      %v4919 = vadd.f32 %v4918, %v4387
      %v4920 = vadd.f32 %v4919, %v4389
      %v4921 = vadd.f32 %v4920, %v4391
      %v4922 = vadd.f32 %v4921, %v4393
      %v4923 = vadd.f32 %v4922, %v4395
      %v4924 = vadd.f32 %v4923, %v4397
      %v4925 = vadd.f32 %v4924, %v4399
      %v4926 = vadd.f32 %v4925, %v4401
      %v4927 = vadd.f32 %v4926, %v4403
      %v4928 = vadd.f32 %v4927, %v4405
      %v4929 = vadd.f32 %v4928, %v4407
      %v4930 = vsel %vm2600, %v4409, 0.0
      %v4931 = vadd.f32 %v4929, %v4930
      %4932 = vadd.xlane.f32.xlu0 %v4931
      %v4933 = vpop.xlane.xlu0 %4932
      %v4934 = vadd.f32 %v4411, %v4413
      %v4935 = vadd.f32 %v4934, %v4415
      %v4936 = vadd.f32 %v4935, %v4417
      %v4937 = vadd.f32 %v4936, %v4419
      %v4938 = vadd.f32 %v4937, %v4421
      %v4939 = vadd.f32 %v4938, %v4423
      %v4940 = vadd.f32 %v4939, %v4425
      %v4941 = vadd.f32 %v4940, %v4427
      %v4942 = vadd.f32 %v4941, %v4429
      %v4943 = vadd.f32 %v4942, %v4431
      %v4944 = vadd.f32 %v4943, %v4433
      %v4945 = vadd.f32 %v4944, %v4435
      %v4946 = vadd.f32 %v4945, %v4437
      %v4947 = vadd.f32 %v4946, %v4439
      %v4948 = vadd.f32 %v4947, %v4441
      %v4949 = vadd.f32 %v4948, %v4443
      %v4950 = vadd.f32 %v4949, %v4445
      %v4951 = vadd.f32 %v4950, %v4447
      %v4952 = vadd.f32 %v4951, %v4449
      %v4953 = vadd.f32 %v4952, %v4451
      %v4954 = vadd.f32 %v4953, %v4453
      %v4955 = vadd.f32 %v4954, %v4455
      %v4956 = vadd.f32 %v4955, %v4457
      %v4957 = vsel %vm2600, %v4459, 0.0
      %v4958 = vadd.f32 %v4956, %v4957
      %4959 = vadd.xlane.f32.xlu0 %v4958
      %v4960 = vpop.xlane.xlu0 %4959
      %v4961 = vadd.f32 %v4461, %v4463
      %v4962 = vadd.f32 %v4961, %v4465
      %v4963 = vadd.f32 %v4962, %v4467
      %v4964 = vadd.f32 %v4963, %v4469
      %v4965 = vadd.f32 %v4964, %v4471
      %v4966 = vadd.f32 %v4965, %v4473
      %v4967 = vadd.f32 %v4966, %v4475
      %v4968 = vadd.f32 %v4967, %v4477
      %v4969 = vadd.f32 %v4968, %v4479
      %v4970 = vadd.f32 %v4969, %v4481
      %v4971 = vadd.f32 %v4970, %v4483
      %v4972 = vadd.f32 %v4971, %v4485
      %v4973 = vadd.f32 %v4972, %v4487
      %v4974 = vadd.f32 %v4973, %v4489
      %v4975 = vadd.f32 %v4974, %v4491
      %v4976 = vadd.f32 %v4975, %v4493
      %v4977 = vadd.f32 %v4976, %v4495
      %v4978 = vadd.f32 %v4977, %v4497
      %v4979 = vadd.f32 %v4978, %v4499
      %v4980 = vadd.f32 %v4979, %v4501
      %v4981 = vadd.f32 %v4980, %v4503
      %v4982 = vadd.f32 %v4981, %v4505
      %v4983 = vadd.f32 %v4982, %v4507
      %v4984 = vsel %vm2600, %v4509, 0.0
      %v4985 = vadd.f32 %v4983, %v4984
      %4986 = vadd.xlane.f32.xlu0 %v4985
      %v4987 = vpop.xlane.xlu0 %4986
      %v4988 = vadd.f32 %v4511, %v4513
      %v4989 = vadd.f32 %v4988, %v4515
      %v4990 = vadd.f32 %v4989, %v4517
      %v4991 = vadd.f32 %v4990, %v4519
      %v4992 = vadd.f32 %v4991, %v4521
      %v4993 = vadd.f32 %v4992, %v4523
      %v4994 = vadd.f32 %v4993, %v4525
      %v4995 = vadd.f32 %v4994, %v4527
      %v4996 = vadd.f32 %v4995, %v4529
      %v4997 = vadd.f32 %v4996, %v4531
      %v4998 = vadd.f32 %v4997, %v4533
      %v4999 = vadd.f32 %v4998, %v4535
      %v5000 = vadd.f32 %v4999, %v4537
      %v5001 = vadd.f32 %v5000, %v4539
      %v5002 = vadd.f32 %v5001, %v4541
      %v5003 = vadd.f32 %v5002, %v4543
      %v5004 = vadd.f32 %v5003, %v4545
      %v5005 = vadd.f32 %v5004, %v4547
      %v5006 = vadd.f32 %v5005, %v4549
      %v5007 = vadd.f32 %v5006, %v4551
      %v5008 = vadd.f32 %v5007, %v4553
      %v5009 = vadd.f32 %v5008, %v4555
      %v5010 = vadd.f32 %v5009, %v4557
      %v5011 = vsel %vm2600, %v4559, 0.0
      %v5012 = vadd.f32 %v5010, %v5011
      %5013 = vadd.xlane.f32.xlu0 %v5012
      %v5014 = vpop.xlane.xlu0 %5013
      %v5015 = vadd.f32 %v4561, %v4563
      %v5016 = vadd.f32 %v5015, %v4565
      %v5017 = vadd.f32 %v5016, %v4567
      %v5018 = vadd.f32 %v5017, %v4569
      %v5019 = vadd.f32 %v5018, %v4571
      %v5020 = vadd.f32 %v5019, %v4573
      %v5021 = vadd.f32 %v5020, %v4575
      %v5022 = vadd.f32 %v5021, %v4577
      %v5023 = vadd.f32 %v5022, %v4579
      %v5024 = vadd.f32 %v5023, %v4581
      %v5025 = vadd.f32 %v5024, %v4583
      %v5026 = vadd.f32 %v5025, %v4585
      %v5027 = vadd.f32 %v5026, %v4587
      %v5028 = vadd.f32 %v5027, %v4589
      %v5029 = vadd.f32 %v5028, %v4591
      %v5030 = vadd.f32 %v5029, %v4593
      %v5031 = vadd.f32 %v5030, %v4595
      %v5032 = vadd.f32 %v5031, %v4597
      %v5033 = vadd.f32 %v5032, %v4599
      %v5034 = vadd.f32 %v5033, %v4601
      %v5035 = vadd.f32 %v5034, %v4603
      %v5036 = vadd.f32 %v5035, %v4605
      %v5037 = vadd.f32 %v5036, %v4607
      %v5038 = vsel %vm2600, %v4609, 0.0
      %v5039 = vadd.f32 %v5037, %v5038
      %5040 = vadd.xlane.f32.xlu0 %v5039
      %v5041 = vpop.xlane.xlu0 %5040
      %v5042 = vrcp.pop %v4636
      %v5043 = vrcp.pop %v4663
      %v5044 = vrcp.pop %v4690
      %v5045 = vrcp.pop %v4717
      %v5046 = vrcp.pop %v4744
      %v5047 = vrcp.pop %v4771
      %v5048 = vrcp.pop %v4798
      %v5049 = vrcp.pop %v4825
      %v5050 = vrcp.pop %v4852
      %v5051 = vrcp.pop %v4879
      %v5052 = vrcp.pop %v4906
      %v5053 = vrcp.pop %v4933
      %v5054 = vrcp.pop %v4960
      %v5055 = vrcp.pop %v4987
      %v5056 = vrcp.pop %v5014
      %v5057 = vrcp.pop %v5041
      %v5058 = vmul.f32 %v3811, %v5042
      %v5059 = vmul.f32 %v3813, %v5042
      %v5060 = vmul.f32 %v3815, %v5042
      %v5061 = vmul.f32 %v3817, %v5042
      %v5062 = vmul.f32 %v3819, %v5042
      %v5063 = vmul.f32 %v3821, %v5042
      %v5064 = vmul.f32 %v3823, %v5042
      %v5065 = vmul.f32 %v3825, %v5042
      %v5066 = vmul.f32 %v3827, %v5042
      %v5067 = vmul.f32 %v3829, %v5042
      %v5068 = vmul.f32 %v3831, %v5042
      %v5069 = vmul.f32 %v3833, %v5042
      %v5070 = vmul.f32 %v3835, %v5042
      %v5071 = vmul.f32 %v3837, %v5042
      %v5072 = vmul.f32 %v3839, %v5042
      %v5073 = vmul.f32 %v3841, %v5042
      %v5074 = vmul.f32 %v3843, %v5042
      %v5075 = vmul.f32 %v3845, %v5042
      %v5076 = vmul.f32 %v3847, %v5042
      %v5077 = vmul.f32 %v3849, %v5042
      %v5078 = vmul.f32 %v3851, %v5042
      %v5079 = vmul.f32 %v3853, %v5042
      %v5080 = vmul.f32 %v3855, %v5042
      %v5081 = vmul.f32 %v3857, %v5042
      %v5082 = vmul.f32 %v3859, %v5042
      %v5083 = vmul.f32 %v3861, %v5043
      %v5084 = vmul.f32 %v3863, %v5043
      %v5085 = vmul.f32 %v3865, %v5043
      %v5086 = vmul.f32 %v3867, %v5043
      %v5087 = vmul.f32 %v3869, %v5043
      %v5088 = vmul.f32 %v3871, %v5043
      %v5089 = vmul.f32 %v3873, %v5043
      %v5090 = vmul.f32 %v3875, %v5043
      %v5091 = vmul.f32 %v3877, %v5043
      %v5092 = vmul.f32 %v3879, %v5043
      %v5093 = vmul.f32 %v3881, %v5043
      %v5094 = vmul.f32 %v3883, %v5043
      %v5095 = vmul.f32 %v3885, %v5043
      %v5096 = vmul.f32 %v3887, %v5043
      %v5097 = vmul.f32 %v3889, %v5043
      %v5098 = vmul.f32 %v3891, %v5043
      %v5099 = vmul.f32 %v3893, %v5043
      %v5100 = vmul.f32 %v3895, %v5043
      %v5101 = vmul.f32 %v3897, %v5043
      %v5102 = vmul.f32 %v3899, %v5043
      %v5103 = vmul.f32 %v3901, %v5043
      %v5104 = vmul.f32 %v3903, %v5043
      %v5105 = vmul.f32 %v3905, %v5043
      %v5106 = vmul.f32 %v3907, %v5043
      %v5107 = vmul.f32 %v3909, %v5043
      %v5108 = vmul.f32 %v3911, %v5044
      %v5109 = vmul.f32 %v3913, %v5044
      %v5110 = vmul.f32 %v3915, %v5044
      %v5111 = vmul.f32 %v3917, %v5044
      %v5112 = vmul.f32 %v3919, %v5044
      %v5113 = vmul.f32 %v3921, %v5044
      %v5114 = vmul.f32 %v3923, %v5044
      %v5115 = vmul.f32 %v3925, %v5044
      %v5116 = vmul.f32 %v3927, %v5044
      %v5117 = vmul.f32 %v3929, %v5044
      %v5118 = vmul.f32 %v3931, %v5044
      %v5119 = vmul.f32 %v3933, %v5044
      %v5120 = vmul.f32 %v3935, %v5044
      %v5121 = vmul.f32 %v3937, %v5044
      %v5122 = vmul.f32 %v3939, %v5044
      %v5123 = vmul.f32 %v3941, %v5044
      %v5124 = vmul.f32 %v3943, %v5044
      %v5125 = vmul.f32 %v3945, %v5044
      %v5126 = vmul.f32 %v3947, %v5044
      %v5127 = vmul.f32 %v3949, %v5044
      %v5128 = vmul.f32 %v3951, %v5044
      %v5129 = vmul.f32 %v3953, %v5044
      %v5130 = vmul.f32 %v3955, %v5044
      %v5131 = vmul.f32 %v3957, %v5044
      %v5132 = vmul.f32 %v3959, %v5044
      %v5133 = vmul.f32 %v3961, %v5045
      %v5134 = vmul.f32 %v3963, %v5045
      %v5135 = vmul.f32 %v3965, %v5045
      %v5136 = vmul.f32 %v3967, %v5045
      %v5137 = vmul.f32 %v3969, %v5045
      %v5138 = vmul.f32 %v3971, %v5045
      %v5139 = vmul.f32 %v3973, %v5045
      %v5140 = vmul.f32 %v3975, %v5045
      %v5141 = vmul.f32 %v3977, %v5045
      %v5142 = vmul.f32 %v3979, %v5045
      %v5143 = vmul.f32 %v3981, %v5045
      %v5144 = vmul.f32 %v3983, %v5045
      %v5145 = vmul.f32 %v3985, %v5045
      %v5146 = vmul.f32 %v3987, %v5045
      %v5147 = vmul.f32 %v3989, %v5045
      %v5148 = vmul.f32 %v3991, %v5045
      %v5149 = vmul.f32 %v3993, %v5045
      %v5150 = vmul.f32 %v3995, %v5045
      %v5151 = vmul.f32 %v3997, %v5045
      %v5152 = vmul.f32 %v3999, %v5045
      %v5153 = vmul.f32 %v4001, %v5045
      %v5154 = vmul.f32 %v4003, %v5045
      %v5155 = vmul.f32 %v4005, %v5045
      %v5156 = vmul.f32 %v4007, %v5045
      %v5157 = vmul.f32 %v4009, %v5045
      %v5158 = vmul.f32 %v4011, %v5046
      %v5159 = vmul.f32 %v4013, %v5046
      %v5160 = vmul.f32 %v4015, %v5046
      %v5161 = vmul.f32 %v4017, %v5046
      %v5162 = vmul.f32 %v4019, %v5046
      %v5163 = vmul.f32 %v4021, %v5046
      %v5164 = vmul.f32 %v4023, %v5046
      %v5165 = vmul.f32 %v4025, %v5046
      %v5166 = vmul.f32 %v4027, %v5046
      %v5167 = vmul.f32 %v4029, %v5046
      %v5168 = vmul.f32 %v4031, %v5046
      %v5169 = vmul.f32 %v4033, %v5046
      %v5170 = vmul.f32 %v4035, %v5046
      %v5171 = vmul.f32 %v4037, %v5046
      %v5172 = vmul.f32 %v4039, %v5046
      %v5173 = vmul.f32 %v4041, %v5046
      %v5174 = vmul.f32 %v4043, %v5046
      %v5175 = vmul.f32 %v4045, %v5046
      %v5176 = vmul.f32 %v4047, %v5046
      %v5177 = vmul.f32 %v4049, %v5046
      %v5178 = vmul.f32 %v4051, %v5046
      %v5179 = vmul.f32 %v4053, %v5046
      %v5180 = vmul.f32 %v4055, %v5046
      %v5181 = vmul.f32 %v4057, %v5046
      %v5182 = vmul.f32 %v4059, %v5046
      %v5183 = vmul.f32 %v4061, %v5047
      %v5184 = vmul.f32 %v4063, %v5047
      %v5185 = vmul.f32 %v4065, %v5047
      %v5186 = vmul.f32 %v4067, %v5047
      %v5187 = vmul.f32 %v4069, %v5047
      %v5188 = vmul.f32 %v4071, %v5047
      %v5189 = vmul.f32 %v4073, %v5047
      %v5190 = vmul.f32 %v4075, %v5047
      %v5191 = vmul.f32 %v4077, %v5047
      %v5192 = vmul.f32 %v4079, %v5047
      %v5193 = vmul.f32 %v4081, %v5047
      %v5194 = vmul.f32 %v4083, %v5047
      %v5195 = vmul.f32 %v4085, %v5047
      %v5196 = vmul.f32 %v4087, %v5047
      %v5197 = vmul.f32 %v4089, %v5047
      %v5198 = vmul.f32 %v4091, %v5047
      %v5199 = vmul.f32 %v4093, %v5047
      %v5200 = vmul.f32 %v4095, %v5047
      %v5201 = vmul.f32 %v4097, %v5047
      %v5202 = vmul.f32 %v4099, %v5047
      %v5203 = vmul.f32 %v4101, %v5047
      %v5204 = vmul.f32 %v4103, %v5047
      %v5205 = vmul.f32 %v4105, %v5047
      %v5206 = vmul.f32 %v4107, %v5047
      %v5207 = vmul.f32 %v4109, %v5047
      %v5208 = vmul.f32 %v4111, %v5048
      %v5209 = vmul.f32 %v4113, %v5048
      %v5210 = vmul.f32 %v4115, %v5048
      %v5211 = vmul.f32 %v4117, %v5048
      %v5212 = vmul.f32 %v4119, %v5048
      %v5213 = vmul.f32 %v4121, %v5048
      %v5214 = vmul.f32 %v4123, %v5048
      %v5215 = vmul.f32 %v4125, %v5048
      %v5216 = vmul.f32 %v4127, %v5048
      %v5217 = vmul.f32 %v4129, %v5048
      %v5218 = vmul.f32 %v4131, %v5048
      %v5219 = vmul.f32 %v4133, %v5048
      %v5220 = vmul.f32 %v4135, %v5048
      %v5221 = vmul.f32 %v4137, %v5048
      %v5222 = vmul.f32 %v4139, %v5048
      %v5223 = vmul.f32 %v4141, %v5048
      %v5224 = vmul.f32 %v4143, %v5048
      %v5225 = vmul.f32 %v4145, %v5048
      %v5226 = vmul.f32 %v4147, %v5048
      %v5227 = vmul.f32 %v4149, %v5048
      %v5228 = vmul.f32 %v4151, %v5048
      %v5229 = vmul.f32 %v4153, %v5048
      %v5230 = vmul.f32 %v4155, %v5048
      %v5231 = vmul.f32 %v4157, %v5048
      %v5232 = vmul.f32 %v4159, %v5048
      %v5233 = vmul.f32 %v4161, %v5049
      %v5234 = vmul.f32 %v4163, %v5049
      %v5235 = vmul.f32 %v4165, %v5049
      %v5236 = vmul.f32 %v4167, %v5049
      %v5237 = vmul.f32 %v4169, %v5049
      %v5238 = vmul.f32 %v4171, %v5049
      %v5239 = vmul.f32 %v4173, %v5049
      %v5240 = vmul.f32 %v4175, %v5049
      %v5241 = vmul.f32 %v4177, %v5049
      %v5242 = vmul.f32 %v4179, %v5049
      %v5243 = vmul.f32 %v4181, %v5049
      %v5244 = vmul.f32 %v4183, %v5049
      %v5245 = vmul.f32 %v4185, %v5049
      %v5246 = vmul.f32 %v4187, %v5049
      %v5247 = vmul.f32 %v4189, %v5049
      %v5248 = vmul.f32 %v4191, %v5049
      %v5249 = vmul.f32 %v4193, %v5049
      %v5250 = vmul.f32 %v4195, %v5049
      %v5251 = vmul.f32 %v4197, %v5049
      %v5252 = vmul.f32 %v4199, %v5049
      %v5253 = vmul.f32 %v4201, %v5049
      %v5254 = vmul.f32 %v4203, %v5049
      %v5255 = vmul.f32 %v4205, %v5049
      %v5256 = vmul.f32 %v4207, %v5049
      %v5257 = vmul.f32 %v4209, %v5049
      %v5258 = vmul.f32 %v4211, %v5050
      %v5259 = vmul.f32 %v4213, %v5050
      %v5260 = vmul.f32 %v4215, %v5050
      %v5261 = vmul.f32 %v4217, %v5050
      %v5262 = vmul.f32 %v4219, %v5050
      %v5263 = vmul.f32 %v4221, %v5050
      %v5264 = vmul.f32 %v4223, %v5050
      %v5265 = vmul.f32 %v4225, %v5050
      %v5266 = vmul.f32 %v4227, %v5050
      %v5267 = vmul.f32 %v4229, %v5050
      %v5268 = vmul.f32 %v4231, %v5050
      %v5269 = vmul.f32 %v4233, %v5050
      %v5270 = vmul.f32 %v4235, %v5050
      %v5271 = vmul.f32 %v4237, %v5050
      %v5272 = vmul.f32 %v4239, %v5050
      %v5273 = vmul.f32 %v4241, %v5050
      %v5274 = vmul.f32 %v4243, %v5050
      %v5275 = vmul.f32 %v4245, %v5050
      %v5276 = vmul.f32 %v4247, %v5050
      %v5277 = vmul.f32 %v4249, %v5050
      %v5278 = vmul.f32 %v4251, %v5050
      %v5279 = vmul.f32 %v4253, %v5050
      %v5280 = vmul.f32 %v4255, %v5050
      %v5281 = vmul.f32 %v4257, %v5050
      %v5282 = vmul.f32 %v4259, %v5050
      %v5283 = vmul.f32 %v4261, %v5051
      %v5284 = vmul.f32 %v4263, %v5051
      %v5285 = vmul.f32 %v4265, %v5051
      %v5286 = vmul.f32 %v4267, %v5051
      %v5287 = vmul.f32 %v4269, %v5051
      %v5288 = vmul.f32 %v4271, %v5051
      %v5289 = vmul.f32 %v4273, %v5051
      %v5290 = vmul.f32 %v4275, %v5051
      %v5291 = vmul.f32 %v4277, %v5051
      %v5292 = vmul.f32 %v4279, %v5051
      %v5293 = vmul.f32 %v4281, %v5051
      %v5294 = vmul.f32 %v4283, %v5051
      %v5295 = vmul.f32 %v4285, %v5051
      %v5296 = vmul.f32 %v4287, %v5051
      %v5297 = vmul.f32 %v4289, %v5051
      %v5298 = vmul.f32 %v4291, %v5051
      %v5299 = vmul.f32 %v4293, %v5051
      %v5300 = vmul.f32 %v4295, %v5051
      %v5301 = vmul.f32 %v4297, %v5051
      %v5302 = vmul.f32 %v4299, %v5051
      %v5303 = vmul.f32 %v4301, %v5051
      %v5304 = vmul.f32 %v4303, %v5051
      %v5305 = vmul.f32 %v4305, %v5051
      %v5306 = vmul.f32 %v4307, %v5051
      %v5307 = vmul.f32 %v4309, %v5051
      %v5308 = vmul.f32 %v4311, %v5052
      %v5309 = vmul.f32 %v4313, %v5052
      %v5310 = vmul.f32 %v4315, %v5052
      %v5311 = vmul.f32 %v4317, %v5052
      %v5312 = vmul.f32 %v4319, %v5052
      %v5313 = vmul.f32 %v4321, %v5052
      %v5314 = vmul.f32 %v4323, %v5052
      %v5315 = vmul.f32 %v4325, %v5052
      %v5316 = vmul.f32 %v4327, %v5052
      %v5317 = vmul.f32 %v4329, %v5052
      %v5318 = vmul.f32 %v4331, %v5052
      %v5319 = vmul.f32 %v4333, %v5052
      %v5320 = vmul.f32 %v4335, %v5052
      %v5321 = vmul.f32 %v4337, %v5052
      %v5322 = vmul.f32 %v4339, %v5052
      %v5323 = vmul.f32 %v4341, %v5052
      %v5324 = vmul.f32 %v4343, %v5052
      %v5325 = vmul.f32 %v4345, %v5052
      %v5326 = vmul.f32 %v4347, %v5052
      %v5327 = vmul.f32 %v4349, %v5052
      %v5328 = vmul.f32 %v4351, %v5052
      %v5329 = vmul.f32 %v4353, %v5052
      %v5330 = vmul.f32 %v4355, %v5052
      %v5331 = vmul.f32 %v4357, %v5052
      %v5332 = vmul.f32 %v4359, %v5052
      %v5333 = vmul.f32 %v4361, %v5053
      %v5334 = vmul.f32 %v4363, %v5053
      %v5335 = vmul.f32 %v4365, %v5053
      %v5336 = vmul.f32 %v4367, %v5053
      %v5337 = vmul.f32 %v4369, %v5053
      %v5338 = vmul.f32 %v4371, %v5053
      %v5339 = vmul.f32 %v4373, %v5053
      %v5340 = vmul.f32 %v4375, %v5053
      %v5341 = vmul.f32 %v4377, %v5053
      %v5342 = vmul.f32 %v4379, %v5053
      %v5343 = vmul.f32 %v4381, %v5053
      %v5344 = vmul.f32 %v4383, %v5053
      %v5345 = vmul.f32 %v4385, %v5053
      %v5346 = vmul.f32 %v4387, %v5053
      %v5347 = vmul.f32 %v4389, %v5053
      %v5348 = vmul.f32 %v4391, %v5053
      %v5349 = vmul.f32 %v4393, %v5053
      %v5350 = vmul.f32 %v4395, %v5053
      %v5351 = vmul.f32 %v4397, %v5053
      %v5352 = vmul.f32 %v4399, %v5053
      %v5353 = vmul.f32 %v4401, %v5053
      %v5354 = vmul.f32 %v4403, %v5053
      %v5355 = vmul.f32 %v4405, %v5053
      %v5356 = vmul.f32 %v4407, %v5053
      %v5357 = vmul.f32 %v4409, %v5053
      %v5358 = vmul.f32 %v4411, %v5054
      %v5359 = vmul.f32 %v4413, %v5054
      %v5360 = vmul.f32 %v4415, %v5054
      %v5361 = vmul.f32 %v4417, %v5054
      %v5362 = vmul.f32 %v4419, %v5054
      %v5363 = vmul.f32 %v4421, %v5054
      %v5364 = vmul.f32 %v4423, %v5054
      %v5365 = vmul.f32 %v4425, %v5054
      %v5366 = vmul.f32 %v4427, %v5054
      %v5367 = vmul.f32 %v4429, %v5054
      %v5368 = vmul.f32 %v4431, %v5054
      %v5369 = vmul.f32 %v4433, %v5054
      %v5370 = vmul.f32 %v4435, %v5054
      %v5371 = vmul.f32 %v4437, %v5054
      %v5372 = vmul.f32 %v4439, %v5054
      %v5373 = vmul.f32 %v4441, %v5054
      %v5374 = vmul.f32 %v4443, %v5054
      %v5375 = vmul.f32 %v4445, %v5054
      %v5376 = vmul.f32 %v4447, %v5054
      %v5377 = vmul.f32 %v4449, %v5054
      %v5378 = vmul.f32 %v4451, %v5054
      %v5379 = vmul.f32 %v4453, %v5054
      %v5380 = vmul.f32 %v4455, %v5054
      %v5381 = vmul.f32 %v4457, %v5054
      %v5382 = vmul.f32 %v4459, %v5054
      %v5383 = vmul.f32 %v4461, %v5055
      %v5384 = vmul.f32 %v4463, %v5055
      %v5385 = vmul.f32 %v4465, %v5055
      %v5386 = vmul.f32 %v4467, %v5055
      %v5387 = vmul.f32 %v4469, %v5055
      %v5388 = vmul.f32 %v4471, %v5055
      %v5389 = vmul.f32 %v4473, %v5055
      %v5390 = vmul.f32 %v4475, %v5055
      %v5391 = vmul.f32 %v4477, %v5055
      %v5392 = vmul.f32 %v4479, %v5055
      %v5393 = vmul.f32 %v4481, %v5055
      %v5394 = vmul.f32 %v4483, %v5055
      %v5395 = vmul.f32 %v4485, %v5055
      %v5396 = vmul.f32 %v4487, %v5055
      %v5397 = vmul.f32 %v4489, %v5055
      %v5398 = vmul.f32 %v4491, %v5055
      %v5399 = vmul.f32 %v4493, %v5055
      %v5400 = vmul.f32 %v4495, %v5055
      %v5401 = vmul.f32 %v4497, %v5055
      %v5402 = vmul.f32 %v4499, %v5055
      %v5403 = vmul.f32 %v4501, %v5055
      %v5404 = vmul.f32 %v4503, %v5055
      %v5405 = vmul.f32 %v4505, %v5055
      %v5406 = vmul.f32 %v4507, %v5055
      %v5407 = vmul.f32 %v4509, %v5055
      %v5408 = vmul.f32 %v4511, %v5056
      %v5409 = vmul.f32 %v4513, %v5056
      %v5410 = vmul.f32 %v4515, %v5056
      %v5411 = vmul.f32 %v4517, %v5056
      %v5412 = vmul.f32 %v4519, %v5056
      %v5413 = vmul.f32 %v4521, %v5056
      %v5414 = vmul.f32 %v4523, %v5056
      %v5415 = vmul.f32 %v4525, %v5056
      %v5416 = vmul.f32 %v4527, %v5056
      %v5417 = vmul.f32 %v4529, %v5056
      %v5418 = vmul.f32 %v4531, %v5056
      %v5419 = vmul.f32 %v4533, %v5056
      %v5420 = vmul.f32 %v4535, %v5056
      %v5421 = vmul.f32 %v4537, %v5056
      %v5422 = vmul.f32 %v4539, %v5056
      %v5423 = vmul.f32 %v4541, %v5056
      %v5424 = vmul.f32 %v4543, %v5056
      %v5425 = vmul.f32 %v4545, %v5056
      %v5426 = vmul.f32 %v4547, %v5056
      %v5427 = vmul.f32 %v4549, %v5056
      %v5428 = vmul.f32 %v4551, %v5056
      %v5429 = vmul.f32 %v4553, %v5056
      %v5430 = vmul.f32 %v4555, %v5056
      %v5431 = vmul.f32 %v4557, %v5056
      %v5432 = vmul.f32 %v4559, %v5056
      %v5433 = vmul.f32 %v4561, %v5057
      %v5434 = vmul.f32 %v4563, %v5057
      %v5435 = vmul.f32 %v4565, %v5057
      %v5436 = vmul.f32 %v4567, %v5057
      %v5437 = vmul.f32 %v4569, %v5057
      %v5438 = vmul.f32 %v4571, %v5057
      %v5439 = vmul.f32 %v4573, %v5057
      %v5440 = vmul.f32 %v4575, %v5057
      %v5441 = vmul.f32 %v4577, %v5057
      %v5442 = vmul.f32 %v4579, %v5057
      %v5443 = vmul.f32 %v4581, %v5057
      %v5444 = vmul.f32 %v4583, %v5057
      %v5445 = vmul.f32 %v4585, %v5057
      %v5446 = vmul.f32 %v4587, %v5057
      %v5447 = vmul.f32 %v4589, %v5057
      %v5448 = vmul.f32 %v4591, %v5057
      %v5449 = vmul.f32 %v4593, %v5057
      %v5450 = vmul.f32 %v4595, %v5057
      %v5451 = vmul.f32 %v4597, %v5057
      %v5452 = vmul.f32 %v4599, %v5057
      %v5453 = vmul.f32 %v4601, %v5057
      %v5454 = vmul.f32 %v4603, %v5057
      %v5455 = vmul.f32 %v4605, %v5057
      %v5456 = vmul.f32 %v4607, %v5057
      %v5457 = vmul.f32 %v4609, %v5057
      %v5458 = vpack.c.bf16 %v5083, %v5058
      %v5459 = vpack.c.bf16 %v5084, %v5059
      %v5460 = vpack.c.bf16 %v5085, %v5060
      %v5461 = vpack.c.bf16 %v5086, %v5061
      %v5462 = vpack.c.bf16 %v5087, %v5062
      %v5463 = vpack.c.bf16 %v5088, %v5063
      %v5464 = vpack.c.bf16 %v5089, %v5064
      %v5465 = vpack.c.bf16 %v5090, %v5065
      %v5466 = vpack.c.bf16 %v5091, %v5066
      %v5467 = vpack.c.bf16 %v5092, %v5067
      %v5468 = vpack.c.bf16 %v5093, %v5068
      %v5469 = vpack.c.bf16 %v5094, %v5069
      %v5470 = vpack.c.bf16 %v5095, %v5070
      %v5471 = vpack.c.bf16 %v5096, %v5071
      %v5472 = vpack.c.bf16 %v5097, %v5072
      %v5473 = vpack.c.bf16 %v5098, %v5073
      %v5474 = vpack.c.bf16 %v5099, %v5074
      %v5475 = vpack.c.bf16 %v5100, %v5075
      %v5476 = vpack.c.bf16 %v5101, %v5076
      %v5477 = vpack.c.bf16 %v5102, %v5077
      %v5478 = vpack.c.bf16 %v5103, %v5078
      %v5479 = vpack.c.bf16 %v5104, %v5079
      %v5480 = vpack.c.bf16 %v5105, %v5080
      %v5481 = vpack.c.bf16 %v5106, %v5081
      %v5482 = vpack.c.bf16 %v5107, %v5082
      %v5483 = vpack.c.bf16 %v5133, %v5108
      %v5484 = vpack.c.bf16 %v5134, %v5109
      %v5485 = vpack.c.bf16 %v5135, %v5110
      %v5486 = vpack.c.bf16 %v5136, %v5111
      %v5487 = vpack.c.bf16 %v5137, %v5112
      %v5488 = vpack.c.bf16 %v5138, %v5113
      %v5489 = vpack.c.bf16 %v5139, %v5114
      %v5490 = vpack.c.bf16 %v5140, %v5115
      %v5491 = vpack.c.bf16 %v5141, %v5116
      %v5492 = vpack.c.bf16 %v5142, %v5117
      %v5493 = vpack.c.bf16 %v5143, %v5118
      %v5494 = vpack.c.bf16 %v5144, %v5119
      %v5495 = vpack.c.bf16 %v5145, %v5120
      %v5496 = vpack.c.bf16 %v5146, %v5121
      %v5497 = vpack.c.bf16 %v5147, %v5122
      %v5498 = vpack.c.bf16 %v5148, %v5123
      %v5499 = vpack.c.bf16 %v5149, %v5124
      %v5500 = vpack.c.bf16 %v5150, %v5125
      %v5501 = vpack.c.bf16 %v5151, %v5126
      %v5502 = vpack.c.bf16 %v5152, %v5127
      %v5503 = vpack.c.bf16 %v5153, %v5128
      %v5504 = vpack.c.bf16 %v5154, %v5129
      %v5505 = vpack.c.bf16 %v5155, %v5130
      %v5506 = vpack.c.bf16 %v5156, %v5131
      %v5507 = vpack.c.bf16 %v5157, %v5132
      %v5508 = vpack.c.bf16 %v5183, %v5158
      %v5509 = vpack.c.bf16 %v5184, %v5159
      %v5510 = vpack.c.bf16 %v5185, %v5160
      %v5511 = vpack.c.bf16 %v5186, %v5161
      %v5512 = vpack.c.bf16 %v5187, %v5162
      %v5513 = vpack.c.bf16 %v5188, %v5163
      %v5514 = vpack.c.bf16 %v5189, %v5164
      %v5515 = vpack.c.bf16 %v5190, %v5165
      %v5516 = vpack.c.bf16 %v5191, %v5166
      %v5517 = vpack.c.bf16 %v5192, %v5167
      %v5518 = vpack.c.bf16 %v5193, %v5168
      %v5519 = vpack.c.bf16 %v5194, %v5169
      %v5520 = vpack.c.bf16 %v5195, %v5170
      %v5521 = vpack.c.bf16 %v5196, %v5171
      %v5522 = vpack.c.bf16 %v5197, %v5172
      %v5523 = vpack.c.bf16 %v5198, %v5173
      %v5524 = vpack.c.bf16 %v5199, %v5174
      %v5525 = vpack.c.bf16 %v5200, %v5175
      %v5526 = vpack.c.bf16 %v5201, %v5176
      %v5527 = vpack.c.bf16 %v5202, %v5177
      %v5528 = vpack.c.bf16 %v5203, %v5178
      %v5529 = vpack.c.bf16 %v5204, %v5179
      %v5530 = vpack.c.bf16 %v5205, %v5180
      %v5531 = vpack.c.bf16 %v5206, %v5181
      %v5532 = vpack.c.bf16 %v5207, %v5182
      %v5533 = vpack.c.bf16 %v5233, %v5208
      %v5534 = vpack.c.bf16 %v5234, %v5209
      %v5535 = vpack.c.bf16 %v5235, %v5210
      %v5536 = vpack.c.bf16 %v5236, %v5211
      %v5537 = vpack.c.bf16 %v5237, %v5212
      %v5538 = vpack.c.bf16 %v5238, %v5213
      %v5539 = vpack.c.bf16 %v5239, %v5214
      %v5540 = vpack.c.bf16 %v5240, %v5215
      %v5541 = vpack.c.bf16 %v5241, %v5216
      %v5542 = vpack.c.bf16 %v5242, %v5217
      %v5543 = vpack.c.bf16 %v5243, %v5218
      %v5544 = vpack.c.bf16 %v5244, %v5219
      %v5545 = vpack.c.bf16 %v5245, %v5220
      %v5546 = vpack.c.bf16 %v5246, %v5221
      %v5547 = vpack.c.bf16 %v5247, %v5222
      %v5548 = vpack.c.bf16 %v5248, %v5223
      %v5549 = vpack.c.bf16 %v5249, %v5224
      %v5550 = vpack.c.bf16 %v5250, %v5225
      %v5551 = vpack.c.bf16 %v5251, %v5226
      %v5552 = vpack.c.bf16 %v5252, %v5227
      %v5553 = vpack.c.bf16 %v5253, %v5228
      %v5554 = vpack.c.bf16 %v5254, %v5229
      %v5555 = vpack.c.bf16 %v5255, %v5230
      %v5556 = vpack.c.bf16 %v5256, %v5231
      %v5557 = vpack.c.bf16 %v5257, %v5232
      %v5558 = vpack.c.bf16 %v5283, %v5258
      %v5559 = vpack.c.bf16 %v5284, %v5259
      %v5560 = vpack.c.bf16 %v5285, %v5260
      %v5561 = vpack.c.bf16 %v5286, %v5261
      %v5562 = vpack.c.bf16 %v5287, %v5262
      %v5563 = vpack.c.bf16 %v5288, %v5263
      %v5564 = vpack.c.bf16 %v5289, %v5264
      %v5565 = vpack.c.bf16 %v5290, %v5265
      %v5566 = vpack.c.bf16 %v5291, %v5266
      %v5567 = vpack.c.bf16 %v5292, %v5267
      %v5568 = vpack.c.bf16 %v5293, %v5268
      %v5569 = vpack.c.bf16 %v5294, %v5269
      %v5570 = vpack.c.bf16 %v5295, %v5270
      %v5571 = vpack.c.bf16 %v5296, %v5271
      %v5572 = vpack.c.bf16 %v5297, %v5272
      %v5573 = vpack.c.bf16 %v5298, %v5273
      %v5574 = vpack.c.bf16 %v5299, %v5274
      %v5575 = vpack.c.bf16 %v5300, %v5275
      %v5576 = vpack.c.bf16 %v5301, %v5276
      %v5577 = vpack.c.bf16 %v5302, %v5277
      %v5578 = vpack.c.bf16 %v5303, %v5278
      %v5579 = vpack.c.bf16 %v5304, %v5279
      %v5580 = vpack.c.bf16 %v5305, %v5280
      %v5581 = vpack.c.bf16 %v5306, %v5281
      %v5582 = vpack.c.bf16 %v5307, %v5282
      %v5583 = vpack.c.bf16 %v5333, %v5308
      %v5584 = vpack.c.bf16 %v5334, %v5309
      %v5585 = vpack.c.bf16 %v5335, %v5310
      %v5586 = vpack.c.bf16 %v5336, %v5311
      %v5587 = vpack.c.bf16 %v5337, %v5312
      %v5588 = vpack.c.bf16 %v5338, %v5313
      %v5589 = vpack.c.bf16 %v5339, %v5314
      %v5590 = vpack.c.bf16 %v5340, %v5315
      %v5591 = vpack.c.bf16 %v5341, %v5316
      %v5592 = vpack.c.bf16 %v5342, %v5317
      %v5593 = vpack.c.bf16 %v5343, %v5318
      %v5594 = vpack.c.bf16 %v5344, %v5319
      %v5595 = vpack.c.bf16 %v5345, %v5320
      %v5596 = vpack.c.bf16 %v5346, %v5321
      %v5597 = vpack.c.bf16 %v5347, %v5322
      %v5598 = vpack.c.bf16 %v5348, %v5323
      %v5599 = vpack.c.bf16 %v5349, %v5324
      %v5600 = vpack.c.bf16 %v5350, %v5325
      %v5601 = vpack.c.bf16 %v5351, %v5326
      %v5602 = vpack.c.bf16 %v5352, %v5327
      %v5603 = vpack.c.bf16 %v5353, %v5328
      %v5604 = vpack.c.bf16 %v5354, %v5329
      %v5605 = vpack.c.bf16 %v5355, %v5330
      %v5606 = vpack.c.bf16 %v5356, %v5331
      %v5607 = vpack.c.bf16 %v5357, %v5332
      %v5608 = vpack.c.bf16 %v5383, %v5358
      %v5609 = vpack.c.bf16 %v5384, %v5359
      %v5610 = vpack.c.bf16 %v5385, %v5360
      %v5611 = vpack.c.bf16 %v5386, %v5361
      %v5612 = vpack.c.bf16 %v5387, %v5362
      %v5613 = vpack.c.bf16 %v5388, %v5363
      %v5614 = vpack.c.bf16 %v5389, %v5364
      %v5615 = vpack.c.bf16 %v5390, %v5365
      %v5616 = vpack.c.bf16 %v5391, %v5366
      %v5617 = vpack.c.bf16 %v5392, %v5367
      %v5618 = vpack.c.bf16 %v5393, %v5368
      %v5619 = vpack.c.bf16 %v5394, %v5369
      %v5620 = vpack.c.bf16 %v5395, %v5370
      %v5621 = vpack.c.bf16 %v5396, %v5371
      %v5622 = vpack.c.bf16 %v5397, %v5372
      %v5623 = vpack.c.bf16 %v5398, %v5373
      %v5624 = vpack.c.bf16 %v5399, %v5374
      %v5625 = vpack.c.bf16 %v5400, %v5375
      %v5626 = vpack.c.bf16 %v5401, %v5376
      %v5627 = vpack.c.bf16 %v5402, %v5377
      %v5628 = vpack.c.bf16 %v5403, %v5378
      %v5629 = vpack.c.bf16 %v5404, %v5379
      %v5630 = vpack.c.bf16 %v5405, %v5380
      %v5631 = vpack.c.bf16 %v5406, %v5381
      %v5632 = vpack.c.bf16 %v5407, %v5382
      %v5633 = vpack.c.bf16 %v5433, %v5408
      %v5634 = vpack.c.bf16 %v5434, %v5409
      %v5635 = vpack.c.bf16 %v5435, %v5410
      %v5636 = vpack.c.bf16 %v5436, %v5411
      %v5637 = vpack.c.bf16 %v5437, %v5412
      %v5638 = vpack.c.bf16 %v5438, %v5413
      %v5639 = vpack.c.bf16 %v5439, %v5414
      %v5640 = vpack.c.bf16 %v5440, %v5415
      %v5641 = vpack.c.bf16 %v5441, %v5416
      %v5642 = vpack.c.bf16 %v5442, %v5417
      %v5643 = vpack.c.bf16 %v5443, %v5418
      %v5644 = vpack.c.bf16 %v5444, %v5419
      %v5645 = vpack.c.bf16 %v5445, %v5420
      %v5646 = vpack.c.bf16 %v5446, %v5421
      %v5647 = vpack.c.bf16 %v5447, %v5422
      %v5648 = vpack.c.bf16 %v5448, %v5423
      %v5649 = vpack.c.bf16 %v5449, %v5424
      %v5650 = vpack.c.bf16 %v5450, %v5425
      %v5651 = vpack.c.bf16 %v5451, %v5426
      %v5652 = vpack.c.bf16 %v5452, %v5427
      %v5653 = vpack.c.bf16 %v5453, %v5428
      %v5654 = vpack.c.bf16 %v5454, %v5429
      %v5655 = vpack.c.bf16 %v5455, %v5430
      %v5656 = vpack.c.bf16 %v5456, %v5431
      %v5657 = vpack.c.bf16 %v5457, %v5432
      %v5665 = vcombine.high %v241, %v241
      %v5667 = vunpack.c.l.s4 1983009808
      %v5668 = vunpack.c.0.s8 %v5667
      %v5669 = vlaneseq
      %v5670 = vshrl.u32 %v5669, 7
      %v5671 = vsub.s32 %v5668, %v5670
      %v5672 = vrot.slane %v241, %v5671
      %v5674 = vunpack.c.l.s4 1983009808
      %v5675 = vunpack.c.0.s8 %v5674
      %v5676 = vlaneseq
      %v5677 = vshrl.u32 %v5676, 7
      %v5678 = vsub.s32 %v5675, %v5677
      %v5679 = vrot.slane %v5665, %v5678
      %v5680 = vcombine.high %v5672, %v5672
      %v5681 = vcombine.high %v5679, %v5679
      %v5682 = vcombine.high %v242, %v242
      %v5684 = vunpack.c.l.s4 1983009808
      %v5685 = vunpack.c.0.s8 %v5684
      %v5686 = vlaneseq
      %v5687 = vshrl.u32 %v5686, 7
      %v5688 = vsub.s32 %v5685, %v5687
      %v5689 = vrot.slane %v242, %v5688
      %v5691 = vunpack.c.l.s4 1983009808
      %v5692 = vunpack.c.0.s8 %v5691
      %v5693 = vlaneseq
      %v5694 = vshrl.u32 %v5693, 7
      %v5695 = vsub.s32 %v5692, %v5694
      %v5696 = vrot.slane %v5682, %v5695
      %v5697 = vcombine.high %v5689, %v5689
      %v5698 = vcombine.high %v5696, %v5696
      %v5699 = vcombine.high %v243, %v243
      %v5701 = vunpack.c.l.s4 1983009808
      %v5702 = vunpack.c.0.s8 %v5701
      %v5703 = vlaneseq
      %v5704 = vshrl.u32 %v5703, 7
      %v5705 = vsub.s32 %v5702, %v5704
      %v5706 = vrot.slane %v243, %v5705
      %v5708 = vunpack.c.l.s4 1983009808
      %v5709 = vunpack.c.0.s8 %v5708
      %v5710 = vlaneseq
      %v5711 = vshrl.u32 %v5710, 7
      %v5712 = vsub.s32 %v5709, %v5711
      %v5713 = vrot.slane %v5699, %v5712
      %v5714 = vcombine.high %v5706, %v5706
      %v5715 = vcombine.high %v5713, %v5713
      %v5716 = vcombine.high %v244, %v244
      %v5718 = vunpack.c.l.s4 1983009808
      %v5719 = vunpack.c.0.s8 %v5718
      %v5720 = vlaneseq
      %v5721 = vshrl.u32 %v5720, 7
      %v5722 = vsub.s32 %v5719, %v5721
      %v5723 = vrot.slane %v244, %v5722
      %v5725 = vunpack.c.l.s4 1983009808
      %v5726 = vunpack.c.0.s8 %v5725
      %v5727 = vlaneseq
      %v5728 = vshrl.u32 %v5727, 7
      %v5729 = vsub.s32 %v5726, %v5728
      %v5730 = vrot.slane %v5716, %v5729
      %v5731 = vcombine.high %v5723, %v5723
      %v5732 = vcombine.high %v5730, %v5730
      %v5733 = vcombine.high %v245, %v245
      %v5735 = vunpack.c.l.s4 1983009808
      %v5736 = vunpack.c.0.s8 %v5735
      %v5737 = vlaneseq
      %v5738 = vshrl.u32 %v5737, 7
      %v5739 = vsub.s32 %v5736, %v5738
      %v5740 = vrot.slane %v245, %v5739
      %v5742 = vunpack.c.l.s4 1983009808
      %v5743 = vunpack.c.0.s8 %v5742
      %v5744 = vlaneseq
      %v5745 = vshrl.u32 %v5744, 7
      %v5746 = vsub.s32 %v5743, %v5745
      %v5747 = vrot.slane %v5733, %v5746
      %v5748 = vcombine.high %v5740, %v5740
      %v5749 = vcombine.high %v5747, %v5747
      %v5750 = vcombine.high %v246, %v246
      %v5752 = vunpack.c.l.s4 1983009808
      %v5753 = vunpack.c.0.s8 %v5752
      %v5754 = vlaneseq
      %v5755 = vshrl.u32 %v5754, 7
      %v5756 = vsub.s32 %v5753, %v5755
      %v5757 = vrot.slane %v246, %v5756
      %v5759 = vunpack.c.l.s4 1983009808
      %v5760 = vunpack.c.0.s8 %v5759
      %v5761 = vlaneseq
      %v5762 = vshrl.u32 %v5761, 7
      %v5763 = vsub.s32 %v5760, %v5762
      %v5764 = vrot.slane %v5750, %v5763
      %v5765 = vcombine.high %v5757, %v5757
      %v5766 = vcombine.high %v5764, %v5764
      %v5768 = vunpack.c.l.s4 1983009808
      %v5769 = vunpack.c.0.s8 %v5768
      %v5770 = vlaneseq
      %v5771 = vshrl.u32 %v5770, 7
      %v5772 = vsub.s32 %v5769, %v5771
      %v5773 = vrot.slane %v247, %v5772
      %v5799 = vsel %vm2600, %v5773, 0
      %v5802 = vsel %vm2600, %v5482, 0
      %v5805 = vsel %vm2600, %v5507, 0
      %v5808 = vsel %vm2600, %v5532, 0
      %v5811 = vsel %vm2600, %v5557, 0
      %5813 = vmatprep.subr.bf16.mxu0 %v5459
      %5814 = vmatpush1.bf16.xpose.msra.mxu0 %v5458
      %5815 = vmatprep.subr.bf16.mxu0 %v5484
      %5816 = vmatpush1.bf16.xpose.msra.mxu0 %v5483
      %5817 = vmatprep.subr.bf16.mxu0 %v5509
      %5818 = vmatpush1.bf16.xpose.msra.mxu0 %v5508
      %5819 = vmatprep.subr.bf16.mxu0 %v5534
      %5820 = vmatpush1.bf16.xpose.msra.mxu0 %v5533
      %5821 = vmatprep.subr.bf16.mxu0 0
      %5822 = vmatpush1.bf16.xpose.msra.mxu0 0
      %5823 = vmatprep.subr.bf16.mxu0 0
      %5824 = vmatpush1.bf16.xpose.msra.mxu0 0
      %5825 = vmatprep.subr.bf16.mxu0 0
      %5826 = vmatpush1.bf16.xpose.msra.mxu0 0
      %5827 = vmatprep.subr.bf16.mxu0 0
      %5828 = vmatpush1.bf16.xpose.msra.mxu0 0
      %5829 = vmatprep.subr.bf16.mxu0 0
      %5830 = vmatpush1.bf16.xpose.msra.mxu0 0
      %5831 = vmatprep.subr.bf16.mxu0 0
      %5832 = vmatpush1.bf16.xpose.msra.mxu0 0
      %5833 = vmatprep.subr.bf16.mxu0 0
      %5834 = vmatpush1.bf16.xpose.msra.mxu0 0
      %5835 = vmatprep.subr.bf16.mxu0 0
      %5836 = vmatpush1.bf16.xpose.msra.mxu0 0
      %5837 = vmatprep.subr.bf16.mxu0 0
      %5838 = vmatpush1.bf16.xpose.msra.mxu0 0
      %5839 = vmatprep.subr.bf16.mxu0 0
      %5840 = vmatpush1.bf16.xpose.msra.mxu0 0
      %5841 = vmatprep.subr.bf16.mxu0 0
      %5842 = vmatpush1.bf16.xpose.msra.mxu0 0
      %5843 = vmatprep.subr.bf16.mxu0 0
      %5844 = vmatpush1.bf16.xpose.msra.mxu0 0
      %5845 = vmatprep.mubr.bf16.mxu0 %v5680
      %5846 = vmatmul.mubr.bf16.gmra.mrb[0].mxu0 %v5672
      %v5847 = vpop.f32.mrb[0].mxu0
      %v5848 = vadd.f32 0.0, %v5847
      %v5849 = vpop.f32.mrb[0].mxu0
      %v5850 = vpop.f32.mrb[0].mxu0
      %v5851 = vpop.f32.mrb[0].mxu0
      %5852 = vdwg.mxu0
      %5853 = vmatprep.subr.bf16.mxu0 %v5461
      %5854 = vmatpush1.bf16.xpose.msra.mxu0 %v5460
      %5855 = vmatprep.subr.bf16.mxu0 %v5486
      %5856 = vmatpush1.bf16.xpose.msra.mxu0 %v5485
      %5857 = vmatprep.subr.bf16.mxu0 %v5511
      %5858 = vmatpush1.bf16.xpose.msra.mxu0 %v5510
      %5859 = vmatprep.subr.bf16.mxu0 %v5536
      %5860 = vmatpush1.bf16.xpose.msra.mxu0 %v5535
      %5861 = vmatprep.subr.bf16.mxu0 0
      %5862 = vmatpush1.bf16.xpose.msra.mxu0 0
      %5863 = vmatprep.subr.bf16.mxu0 0
      %5864 = vmatpush1.bf16.xpose.msra.mxu0 0
      %5865 = vmatprep.subr.bf16.mxu0 0
      %5866 = vmatpush1.bf16.xpose.msra.mxu0 0
      %5867 = vmatprep.subr.bf16.mxu0 0
      %5868 = vmatpush1.bf16.xpose.msra.mxu0 0
      %5869 = vmatprep.subr.bf16.mxu0 0
      %5870 = vmatpush1.bf16.xpose.msra.mxu0 0
      %5871 = vmatprep.subr.bf16.mxu0 0
      %5872 = vmatpush1.bf16.xpose.msra.mxu0 0
      %5873 = vmatprep.subr.bf16.mxu0 0
      %5874 = vmatpush1.bf16.xpose.msra.mxu0 0
      %5875 = vmatprep.subr.bf16.mxu0 0
      %5876 = vmatpush1.bf16.xpose.msra.mxu0 0
      %5877 = vmatprep.subr.bf16.mxu0 0
      %5878 = vmatpush1.bf16.xpose.msra.mxu0 0
      %5879 = vmatprep.subr.bf16.mxu0 0
      %5880 = vmatpush1.bf16.xpose.msra.mxu0 0
      %5881 = vmatprep.subr.bf16.mxu0 0
      %5882 = vmatpush1.bf16.xpose.msra.mxu0 0
      %5883 = vmatprep.subr.bf16.mxu0 0
      %5884 = vmatpush1.bf16.xpose.msra.mxu0 0
      %5885 = vmatprep.mubr.bf16.mxu0 %v5681
      %5886 = vmatmul.mubr.bf16.gmra.mrb[0].mxu0 %v5679
      %v5887 = vpop.f32.mrb[0].mxu0
      %v5888 = vadd.f32 %v5848, %v5887
      %v5889 = vpop.f32.mrb[0].mxu0
      %v5890 = vpop.f32.mrb[0].mxu0
      %v5891 = vpop.f32.mrb[0].mxu0
      %5892 = vdwg.mxu0
      %5893 = vmatprep.subr.bf16.mxu0 %v5463
      %5894 = vmatpush1.bf16.xpose.msra.mxu0 %v5462
      %5895 = vmatprep.subr.bf16.mxu0 %v5488
      %5896 = vmatpush1.bf16.xpose.msra.mxu0 %v5487
      %5897 = vmatprep.subr.bf16.mxu0 %v5513
      %5898 = vmatpush1.bf16.xpose.msra.mxu0 %v5512
      %5899 = vmatprep.subr.bf16.mxu0 %v5538
      %5900 = vmatpush1.bf16.xpose.msra.mxu0 %v5537
      %5901 = vmatprep.subr.bf16.mxu0 0
      %5902 = vmatpush1.bf16.xpose.msra.mxu0 0
      %5903 = vmatprep.subr.bf16.mxu0 0
      %5904 = vmatpush1.bf16.xpose.msra.mxu0 0
      %5905 = vmatprep.subr.bf16.mxu0 0
      %5906 = vmatpush1.bf16.xpose.msra.mxu0 0
      %5907 = vmatprep.subr.bf16.mxu0 0
      %5908 = vmatpush1.bf16.xpose.msra.mxu0 0
      %5909 = vmatprep.subr.bf16.mxu0 0
      %5910 = vmatpush1.bf16.xpose.msra.mxu0 0
      %5911 = vmatprep.subr.bf16.mxu0 0
      %5912 = vmatpush1.bf16.xpose.msra.mxu0 0
      %5913 = vmatprep.subr.bf16.mxu0 0
      %5914 = vmatpush1.bf16.xpose.msra.mxu0 0
      %5915 = vmatprep.subr.bf16.mxu0 0
      %5916 = vmatpush1.bf16.xpose.msra.mxu0 0
      %5917 = vmatprep.subr.bf16.mxu0 0
      %5918 = vmatpush1.bf16.xpose.msra.mxu0 0
      %5919 = vmatprep.subr.bf16.mxu0 0
      %5920 = vmatpush1.bf16.xpose.msra.mxu0 0
      %5921 = vmatprep.subr.bf16.mxu0 0
      %5922 = vmatpush1.bf16.xpose.msra.mxu0 0
      %5923 = vmatprep.subr.bf16.mxu0 0
      %5924 = vmatpush1.bf16.xpose.msra.mxu0 0
      %5925 = vmatprep.mubr.bf16.mxu0 %v5697
      %5926 = vmatmul.mubr.bf16.gmra.mrb[0].mxu0 %v5689
      %v5927 = vpop.f32.mrb[0].mxu0
      %v5928 = vadd.f32 %v5888, %v5927
      %v5929 = vpop.f32.mrb[0].mxu0
      %v5930 = vpop.f32.mrb[0].mxu0
      %v5931 = vpop.f32.mrb[0].mxu0
      %5932 = vdwg.mxu0
      %5933 = vmatprep.subr.bf16.mxu0 %v5465
      %5934 = vmatpush1.bf16.xpose.msra.mxu0 %v5464
      %5935 = vmatprep.subr.bf16.mxu0 %v5490
      %5936 = vmatpush1.bf16.xpose.msra.mxu0 %v5489
      %5937 = vmatprep.subr.bf16.mxu0 %v5515
      %5938 = vmatpush1.bf16.xpose.msra.mxu0 %v5514
      %5939 = vmatprep.subr.bf16.mxu0 %v5540
      %5940 = vmatpush1.bf16.xpose.msra.mxu0 %v5539
      %5941 = vmatprep.subr.bf16.mxu0 0
      %5942 = vmatpush1.bf16.xpose.msra.mxu0 0
      %5943 = vmatprep.subr.bf16.mxu0 0
      %5944 = vmatpush1.bf16.xpose.msra.mxu0 0
      %5945 = vmatprep.subr.bf16.mxu0 0
      %5946 = vmatpush1.bf16.xpose.msra.mxu0 0
      %5947 = vmatprep.subr.bf16.mxu0 0
      %5948 = vmatpush1.bf16.xpose.msra.mxu0 0
      %5949 = vmatprep.subr.bf16.mxu0 0
      %5950 = vmatpush1.bf16.xpose.msra.mxu0 0
      %5951 = vmatprep.subr.bf16.mxu0 0
      %5952 = vmatpush1.bf16.xpose.msra.mxu0 0
      %5953 = vmatprep.subr.bf16.mxu0 0
      %5954 = vmatpush1.bf16.xpose.msra.mxu0 0
      %5955 = vmatprep.subr.bf16.mxu0 0
      %5956 = vmatpush1.bf16.xpose.msra.mxu0 0
      %5957 = vmatprep.subr.bf16.mxu0 0
      %5958 = vmatpush1.bf16.xpose.msra.mxu0 0
      %5959 = vmatprep.subr.bf16.mxu0 0
      %5960 = vmatpush1.bf16.xpose.msra.mxu0 0
      %5961 = vmatprep.subr.bf16.mxu0 0
      %5962 = vmatpush1.bf16.xpose.msra.mxu0 0
      %5963 = vmatprep.subr.bf16.mxu0 0
      %5964 = vmatpush1.bf16.xpose.msra.mxu0 0
      %5965 = vmatprep.mubr.bf16.mxu0 %v5698
      %5966 = vmatmul.mubr.bf16.gmra.mrb[0].mxu0 %v5696
      %v5967 = vpop.f32.mrb[0].mxu0
      %v5968 = vadd.f32 %v5928, %v5967
      %v5969 = vpop.f32.mrb[0].mxu0
      %v5970 = vpop.f32.mrb[0].mxu0
      %v5971 = vpop.f32.mrb[0].mxu0
      %5972 = vdwg.mxu0
      %5973 = vmatprep.subr.bf16.mxu0 %v5467
      %5974 = vmatpush1.bf16.xpose.msra.mxu0 %v5466
      %5975 = vmatprep.subr.bf16.mxu0 %v5492
      %5976 = vmatpush1.bf16.xpose.msra.mxu0 %v5491
      %5977 = vmatprep.subr.bf16.mxu0 %v5517
      %5978 = vmatpush1.bf16.xpose.msra.mxu0 %v5516
      %5979 = vmatprep.subr.bf16.mxu0 %v5542
      %5980 = vmatpush1.bf16.xpose.msra.mxu0 %v5541
      %5981 = vmatprep.subr.bf16.mxu0 0
      %5982 = vmatpush1.bf16.xpose.msra.mxu0 0
      %5983 = vmatprep.subr.bf16.mxu0 0
      %5984 = vmatpush1.bf16.xpose.msra.mxu0 0
      %5985 = vmatprep.subr.bf16.mxu0 0
      %5986 = vmatpush1.bf16.xpose.msra.mxu0 0
      %5987 = vmatprep.subr.bf16.mxu0 0
      %5988 = vmatpush1.bf16.xpose.msra.mxu0 0
      %5989 = vmatprep.subr.bf16.mxu0 0
      %5990 = vmatpush1.bf16.xpose.msra.mxu0 0
      %5991 = vmatprep.subr.bf16.mxu0 0
      %5992 = vmatpush1.bf16.xpose.msra.mxu0 0
      %5993 = vmatprep.subr.bf16.mxu0 0
      %5994 = vmatpush1.bf16.xpose.msra.mxu0 0
      %5995 = vmatprep.subr.bf16.mxu0 0
      %5996 = vmatpush1.bf16.xpose.msra.mxu0 0
      %5997 = vmatprep.subr.bf16.mxu0 0
      %5998 = vmatpush1.bf16.xpose.msra.mxu0 0
      %5999 = vmatprep.subr.bf16.mxu0 0
      %6000 = vmatpush1.bf16.xpose.msra.mxu0 0
      %6001 = vmatprep.subr.bf16.mxu0 0
      %6002 = vmatpush1.bf16.xpose.msra.mxu0 0
      %6003 = vmatprep.subr.bf16.mxu0 0
      %6004 = vmatpush1.bf16.xpose.msra.mxu0 0
      %6005 = vmatprep.mubr.bf16.mxu0 %v5714
      %6006 = vmatmul.mubr.bf16.gmra.mrb[0].mxu0 %v5706
      %v6007 = vpop.f32.mrb[0].mxu0
      %v6008 = vadd.f32 %v5968, %v6007
      %v6009 = vpop.f32.mrb[0].mxu0
      %v6010 = vpop.f32.mrb[0].mxu0
      %v6011 = vpop.f32.mrb[0].mxu0
      %6012 = vdwg.mxu0
      %6013 = vmatprep.subr.bf16.mxu0 %v5469
      %6014 = vmatpush1.bf16.xpose.msra.mxu0 %v5468
      %6015 = vmatprep.subr.bf16.mxu0 %v5494
      %6016 = vmatpush1.bf16.xpose.msra.mxu0 %v5493
      %6017 = vmatprep.subr.bf16.mxu0 %v5519
      %6018 = vmatpush1.bf16.xpose.msra.mxu0 %v5518
      %6019 = vmatprep.subr.bf16.mxu0 %v5544
      %6020 = vmatpush1.bf16.xpose.msra.mxu0 %v5543
      %6021 = vmatprep.subr.bf16.mxu0 0
      %6022 = vmatpush1.bf16.xpose.msra.mxu0 0
      %6023 = vmatprep.subr.bf16.mxu0 0
      %6024 = vmatpush1.bf16.xpose.msra.mxu0 0
      %6025 = vmatprep.subr.bf16.mxu0 0
      %6026 = vmatpush1.bf16.xpose.msra.mxu0 0
      %6027 = vmatprep.subr.bf16.mxu0 0
      %6028 = vmatpush1.bf16.xpose.msra.mxu0 0
      %6029 = vmatprep.subr.bf16.mxu0 0
      %6030 = vmatpush1.bf16.xpose.msra.mxu0 0
      %6031 = vmatprep.subr.bf16.mxu0 0
      %6032 = vmatpush1.bf16.xpose.msra.mxu0 0
      %6033 = vmatprep.subr.bf16.mxu0 0
      %6034 = vmatpush1.bf16.xpose.msra.mxu0 0
      %6035 = vmatprep.subr.bf16.mxu0 0
      %6036 = vmatpush1.bf16.xpose.msra.mxu0 0
      %6037 = vmatprep.subr.bf16.mxu0 0
      %6038 = vmatpush1.bf16.xpose.msra.mxu0 0
      %6039 = vmatprep.subr.bf16.mxu0 0
      %6040 = vmatpush1.bf16.xpose.msra.mxu0 0
      %6041 = vmatprep.subr.bf16.mxu0 0
      %6042 = vmatpush1.bf16.xpose.msra.mxu0 0
      %6043 = vmatprep.subr.bf16.mxu0 0
      %6044 = vmatpush1.bf16.xpose.msra.mxu0 0
      %6045 = vmatprep.mubr.bf16.mxu0 %v5715
      %6046 = vmatmul.mubr.bf16.gmra.mrb[0].mxu0 %v5713
      %v6047 = vpop.f32.mrb[0].mxu0
      %v6048 = vadd.f32 %v6008, %v6047
      %v6049 = vpop.f32.mrb[0].mxu0
      %v6050 = vpop.f32.mrb[0].mxu0
      %v6051 = vpop.f32.mrb[0].mxu0
      %6052 = vdwg.mxu0
      %6053 = vmatprep.subr.bf16.mxu0 %v5471
      %6054 = vmatpush1.bf16.xpose.msra.mxu0 %v5470
      %6055 = vmatprep.subr.bf16.mxu0 %v5496
      %6056 = vmatpush1.bf16.xpose.msra.mxu0 %v5495
      %6057 = vmatprep.subr.bf16.mxu0 %v5521
      %6058 = vmatpush1.bf16.xpose.msra.mxu0 %v5520
      %6059 = vmatprep.subr.bf16.mxu0 %v5546
      %6060 = vmatpush1.bf16.xpose.msra.mxu0 %v5545
      %6061 = vmatprep.subr.bf16.mxu0 0
      %6062 = vmatpush1.bf16.xpose.msra.mxu0 0
      %6063 = vmatprep.subr.bf16.mxu0 0
      %6064 = vmatpush1.bf16.xpose.msra.mxu0 0
      %6065 = vmatprep.subr.bf16.mxu0 0
      %6066 = vmatpush1.bf16.xpose.msra.mxu0 0
      %6067 = vmatprep.subr.bf16.mxu0 0
      %6068 = vmatpush1.bf16.xpose.msra.mxu0 0
      %6069 = vmatprep.subr.bf16.mxu0 0
      %6070 = vmatpush1.bf16.xpose.msra.mxu0 0
      %6071 = vmatprep.subr.bf16.mxu0 0
      %6072 = vmatpush1.bf16.xpose.msra.mxu0 0
      %6073 = vmatprep.subr.bf16.mxu0 0
      %6074 = vmatpush1.bf16.xpose.msra.mxu0 0
      %6075 = vmatprep.subr.bf16.mxu0 0
      %6076 = vmatpush1.bf16.xpose.msra.mxu0 0
      %6077 = vmatprep.subr.bf16.mxu0 0
      %6078 = vmatpush1.bf16.xpose.msra.mxu0 0
      %6079 = vmatprep.subr.bf16.mxu0 0
      %6080 = vmatpush1.bf16.xpose.msra.mxu0 0
      %6081 = vmatprep.subr.bf16.mxu0 0
      %6082 = vmatpush1.bf16.xpose.msra.mxu0 0
      %6083 = vmatprep.subr.bf16.mxu0 0
      %6084 = vmatpush1.bf16.xpose.msra.mxu0 0
      %6085 = vmatprep.mubr.bf16.mxu0 %v5731
      %6086 = vmatmul.mubr.bf16.gmra.mrb[0].mxu0 %v5723
      %v6087 = vpop.f32.mrb[0].mxu0
      %v6088 = vadd.f32 %v6048, %v6087
      %v6089 = vpop.f32.mrb[0].mxu0
      %v6090 = vpop.f32.mrb[0].mxu0
      %v6091 = vpop.f32.mrb[0].mxu0
      %6092 = vdwg.mxu0
      %6093 = vmatprep.subr.bf16.mxu0 %v5473
      %6094 = vmatpush1.bf16.xpose.msra.mxu0 %v5472
      %6095 = vmatprep.subr.bf16.mxu0 %v5498
      %6096 = vmatpush1.bf16.xpose.msra.mxu0 %v5497
      %6097 = vmatprep.subr.bf16.mxu0 %v5523
      %6098 = vmatpush1.bf16.xpose.msra.mxu0 %v5522
      %6099 = vmatprep.subr.bf16.mxu0 %v5548
      %6100 = vmatpush1.bf16.xpose.msra.mxu0 %v5547
      %6101 = vmatprep.subr.bf16.mxu0 0
      %6102 = vmatpush1.bf16.xpose.msra.mxu0 0
      %6103 = vmatprep.subr.bf16.mxu0 0
      %6104 = vmatpush1.bf16.xpose.msra.mxu0 0
      %6105 = vmatprep.subr.bf16.mxu0 0
      %6106 = vmatpush1.bf16.xpose.msra.mxu0 0
      %6107 = vmatprep.subr.bf16.mxu0 0
      %6108 = vmatpush1.bf16.xpose.msra.mxu0 0
      %6109 = vmatprep.subr.bf16.mxu0 0
      %6110 = vmatpush1.bf16.xpose.msra.mxu0 0
      %6111 = vmatprep.subr.bf16.mxu0 0
      %6112 = vmatpush1.bf16.xpose.msra.mxu0 0
      %6113 = vmatprep.subr.bf16.mxu0 0
      %6114 = vmatpush1.bf16.xpose.msra.mxu0 0
      %6115 = vmatprep.subr.bf16.mxu0 0
      %6116 = vmatpush1.bf16.xpose.msra.mxu0 0
      %6117 = vmatprep.subr.bf16.mxu0 0
      %6118 = vmatpush1.bf16.xpose.msra.mxu0 0
      %6119 = vmatprep.subr.bf16.mxu0 0
      %6120 = vmatpush1.bf16.xpose.msra.mxu0 0
      %6121 = vmatprep.subr.bf16.mxu0 0
      %6122 = vmatpush1.bf16.xpose.msra.mxu0 0
      %6123 = vmatprep.subr.bf16.mxu0 0
      %6124 = vmatpush1.bf16.xpose.msra.mxu0 0
      %6125 = vmatprep.mubr.bf16.mxu0 %v5732
      %6126 = vmatmul.mubr.bf16.gmra.mrb[0].mxu0 %v5730
      %v6127 = vpop.f32.mrb[0].mxu0
      %v6128 = vadd.f32 %v6088, %v6127
      %v6129 = vpop.f32.mrb[0].mxu0
      %v6130 = vpop.f32.mrb[0].mxu0
      %v6131 = vpop.f32.mrb[0].mxu0
      %6132 = vdwg.mxu0
      %6133 = vmatprep.subr.bf16.mxu0 %v5475
      %6134 = vmatpush1.bf16.xpose.msra.mxu0 %v5474
      %6135 = vmatprep.subr.bf16.mxu0 %v5500
      %6136 = vmatpush1.bf16.xpose.msra.mxu0 %v5499
      %6137 = vmatprep.subr.bf16.mxu0 %v5525
      %6138 = vmatpush1.bf16.xpose.msra.mxu0 %v5524
      %6139 = vmatprep.subr.bf16.mxu0 %v5550
      %6140 = vmatpush1.bf16.xpose.msra.mxu0 %v5549
      %6141 = vmatprep.subr.bf16.mxu0 0
      %6142 = vmatpush1.bf16.xpose.msra.mxu0 0
      %6143 = vmatprep.subr.bf16.mxu0 0
      %6144 = vmatpush1.bf16.xpose.msra.mxu0 0
      %6145 = vmatprep.subr.bf16.mxu0 0
      %6146 = vmatpush1.bf16.xpose.msra.mxu0 0
      %6147 = vmatprep.subr.bf16.mxu0 0
      %6148 = vmatpush1.bf16.xpose.msra.mxu0 0
      %6149 = vmatprep.subr.bf16.mxu0 0
      %6150 = vmatpush1.bf16.xpose.msra.mxu0 0
      %6151 = vmatprep.subr.bf16.mxu0 0
      %6152 = vmatpush1.bf16.xpose.msra.mxu0 0
      %6153 = vmatprep.subr.bf16.mxu0 0
      %6154 = vmatpush1.bf16.xpose.msra.mxu0 0
      %6155 = vmatprep.subr.bf16.mxu0 0
      %6156 = vmatpush1.bf16.xpose.msra.mxu0 0
      %6157 = vmatprep.subr.bf16.mxu0 0
      %6158 = vmatpush1.bf16.xpose.msra.mxu0 0
      %6159 = vmatprep.subr.bf16.mxu0 0
      %6160 = vmatpush1.bf16.xpose.msra.mxu0 0
      %6161 = vmatprep.subr.bf16.mxu0 0
      %6162 = vmatpush1.bf16.xpose.msra.mxu0 0
      %6163 = vmatprep.subr.bf16.mxu0 0
      %6164 = vmatpush1.bf16.xpose.msra.mxu0 0
      %6165 = vmatprep.mubr.bf16.mxu0 %v5748
      %6166 = vmatmul.mubr.bf16.gmra.mrb[0].mxu0 %v5740
      %v6167 = vpop.f32.mrb[0].mxu0
      %v6168 = vadd.f32 %v6128, %v6167
      %v6169 = vpop.f32.mrb[0].mxu0
      %v6170 = vpop.f32.mrb[0].mxu0
      %v6171 = vpop.f32.mrb[0].mxu0
      %6172 = vdwg.mxu0
      %6173 = vmatprep.subr.bf16.mxu0 %v5477
      %6174 = vmatpush1.bf16.xpose.msra.mxu0 %v5476
      %6175 = vmatprep.subr.bf16.mxu0 %v5502
      %6176 = vmatpush1.bf16.xpose.msra.mxu0 %v5501
      %6177 = vmatprep.subr.bf16.mxu0 %v5527
      %6178 = vmatpush1.bf16.xpose.msra.mxu0 %v5526
      %6179 = vmatprep.subr.bf16.mxu0 %v5552
      %6180 = vmatpush1.bf16.xpose.msra.mxu0 %v5551
      %6181 = vmatprep.subr.bf16.mxu0 0
      %6182 = vmatpush1.bf16.xpose.msra.mxu0 0
      %6183 = vmatprep.subr.bf16.mxu0 0
      %6184 = vmatpush1.bf16.xpose.msra.mxu0 0
      %6185 = vmatprep.subr.bf16.mxu0 0
      %6186 = vmatpush1.bf16.xpose.msra.mxu0 0
      %6187 = vmatprep.subr.bf16.mxu0 0
      %6188 = vmatpush1.bf16.xpose.msra.mxu0 0
      %6189 = vmatprep.subr.bf16.mxu0 0
      %6190 = vmatpush1.bf16.xpose.msra.mxu0 0
      %6191 = vmatprep.subr.bf16.mxu0 0
      %6192 = vmatpush1.bf16.xpose.msra.mxu0 0
      %6193 = vmatprep.subr.bf16.mxu0 0
      %6194 = vmatpush1.bf16.xpose.msra.mxu0 0
      %6195 = vmatprep.subr.bf16.mxu0 0
      %6196 = vmatpush1.bf16.xpose.msra.mxu0 0
      %6197 = vmatprep.subr.bf16.mxu0 0
      %6198 = vmatpush1.bf16.xpose.msra.mxu0 0
      %6199 = vmatprep.subr.bf16.mxu0 0
      %6200 = vmatpush1.bf16.xpose.msra.mxu0 0
      %6201 = vmatprep.subr.bf16.mxu0 0
      %6202 = vmatpush1.bf16.xpose.msra.mxu0 0
      %6203 = vmatprep.subr.bf16.mxu0 0
      %6204 = vmatpush1.bf16.xpose.msra.mxu0 0
      %6205 = vmatprep.mubr.bf16.mxu0 %v5749
      %6206 = vmatmul.mubr.bf16.gmra.mrb[0].mxu0 %v5747
      %v6207 = vpop.f32.mrb[0].mxu0
      %v6208 = vadd.f32 %v6168, %v6207
      %v6209 = vpop.f32.mrb[0].mxu0
      %v6210 = vpop.f32.mrb[0].mxu0
      %v6211 = vpop.f32.mrb[0].mxu0
      %6212 = vdwg.mxu0
      %6213 = vmatprep.subr.bf16.mxu0 %v5479
      %6214 = vmatpush1.bf16.xpose.msra.mxu0 %v5478
      %6215 = vmatprep.subr.bf16.mxu0 %v5504
      %6216 = vmatpush1.bf16.xpose.msra.mxu0 %v5503
      %6217 = vmatprep.subr.bf16.mxu0 %v5529
      %6218 = vmatpush1.bf16.xpose.msra.mxu0 %v5528
      %6219 = vmatprep.subr.bf16.mxu0 %v5554
      %6220 = vmatpush1.bf16.xpose.msra.mxu0 %v5553
      %6221 = vmatprep.subr.bf16.mxu0 0
      %6222 = vmatpush1.bf16.xpose.msra.mxu0 0
      %6223 = vmatprep.subr.bf16.mxu0 0
      %6224 = vmatpush1.bf16.xpose.msra.mxu0 0
      %6225 = vmatprep.subr.bf16.mxu0 0
      %6226 = vmatpush1.bf16.xpose.msra.mxu0 0
      %6227 = vmatprep.subr.bf16.mxu0 0
      %6228 = vmatpush1.bf16.xpose.msra.mxu0 0
      %6229 = vmatprep.subr.bf16.mxu0 0
      %6230 = vmatpush1.bf16.xpose.msra.mxu0 0
      %6231 = vmatprep.subr.bf16.mxu0 0
      %6232 = vmatpush1.bf16.xpose.msra.mxu0 0
      %6233 = vmatprep.subr.bf16.mxu0 0
      %6234 = vmatpush1.bf16.xpose.msra.mxu0 0
      %6235 = vmatprep.subr.bf16.mxu0 0
      %6236 = vmatpush1.bf16.xpose.msra.mxu0 0
      %6237 = vmatprep.subr.bf16.mxu0 0
      %6238 = vmatpush1.bf16.xpose.msra.mxu0 0
      %6239 = vmatprep.subr.bf16.mxu0 0
      %6240 = vmatpush1.bf16.xpose.msra.mxu0 0
      %6241 = vmatprep.subr.bf16.mxu0 0
      %6242 = vmatpush1.bf16.xpose.msra.mxu0 0
      %6243 = vmatprep.subr.bf16.mxu0 0
      %6244 = vmatpush1.bf16.xpose.msra.mxu0 0
      %6245 = vmatprep.mubr.bf16.mxu0 %v5765
      %6246 = vmatmul.mubr.bf16.gmra.mrb[0].mxu0 %v5757
      %v6247 = vpop.f32.mrb[0].mxu0
      %v6248 = vadd.f32 %v6208, %v6247
      %v6249 = vpop.f32.mrb[0].mxu0
      %v6250 = vpop.f32.mrb[0].mxu0
      %v6251 = vpop.f32.mrb[0].mxu0
      %6252 = vdwg.mxu0
      %6253 = vmatprep.subr.bf16.mxu0 %v5481
      %6254 = vmatpush1.bf16.xpose.msra.mxu0 %v5480
      %6255 = vmatprep.subr.bf16.mxu0 %v5506
      %6256 = vmatpush1.bf16.xpose.msra.mxu0 %v5505
      %6257 = vmatprep.subr.bf16.mxu0 %v5531
      %6258 = vmatpush1.bf16.xpose.msra.mxu0 %v5530
      %6259 = vmatprep.subr.bf16.mxu0 %v5556
      %6260 = vmatpush1.bf16.xpose.msra.mxu0 %v5555
      %6261 = vmatprep.subr.bf16.mxu0 0
      %6262 = vmatpush1.bf16.xpose.msra.mxu0 0
      %6263 = vmatprep.subr.bf16.mxu0 0
      %6264 = vmatpush1.bf16.xpose.msra.mxu0 0
      %6265 = vmatprep.subr.bf16.mxu0 0
      %6266 = vmatpush1.bf16.xpose.msra.mxu0 0
      %6267 = vmatprep.subr.bf16.mxu0 0
      %6268 = vmatpush1.bf16.xpose.msra.mxu0 0
      %6269 = vmatprep.subr.bf16.mxu0 0
      %6270 = vmatpush1.bf16.xpose.msra.mxu0 0
      %6271 = vmatprep.subr.bf16.mxu0 0
      %6272 = vmatpush1.bf16.xpose.msra.mxu0 0
      %6273 = vmatprep.subr.bf16.mxu0 0
      %6274 = vmatpush1.bf16.xpose.msra.mxu0 0
      %6275 = vmatprep.subr.bf16.mxu0 0
      %6276 = vmatpush1.bf16.xpose.msra.mxu0 0
      %6277 = vmatprep.subr.bf16.mxu0 0
      %6278 = vmatpush1.bf16.xpose.msra.mxu0 0
      %6279 = vmatprep.subr.bf16.mxu0 0
      %6280 = vmatpush1.bf16.xpose.msra.mxu0 0
      %6281 = vmatprep.subr.bf16.mxu0 0
      %6282 = vmatpush1.bf16.xpose.msra.mxu0 0
      %6283 = vmatprep.subr.bf16.mxu0 0
      %6284 = vmatpush1.bf16.xpose.msra.mxu0 0
      %6285 = vmatprep.mubr.bf16.mxu0 %v5766
      %6286 = vmatmul.mubr.bf16.gmra.mrb[0].mxu0 %v5764
      %v6287 = vpop.f32.mrb[0].mxu0
      %v6288 = vadd.f32 %v6248, %v6287
      %v6289 = vpop.f32.mrb[0].mxu0
      %v6290 = vpop.f32.mrb[0].mxu0
      %v6291 = vpop.f32.mrb[0].mxu0
      %6292 = vdwg.mxu0
      %6293 = vmatprep.subr.bf16.mxu0 0
      %6294 = vmatpush1.bf16.xpose.msra.mxu0 %v5802
      %6295 = vmatprep.subr.bf16.mxu0 0
      %6296 = vmatpush1.bf16.xpose.msra.mxu0 %v5805
      %6297 = vmatprep.subr.bf16.mxu0 0
      %6298 = vmatpush1.bf16.xpose.msra.mxu0 %v5808
      %6299 = vmatprep.subr.bf16.mxu0 0
      %6300 = vmatpush1.bf16.xpose.msra.mxu0 %v5811
      %6301 = vmatprep.subr.bf16.mxu0 0
      %6302 = vmatpush1.bf16.xpose.msra.mxu0 0
      %6303 = vmatprep.subr.bf16.mxu0 0
      %6304 = vmatpush1.bf16.xpose.msra.mxu0 0
      %6305 = vmatprep.subr.bf16.mxu0 0
      %6306 = vmatpush1.bf16.xpose.msra.mxu0 0
      %6307 = vmatprep.subr.bf16.mxu0 0
      %6308 = vmatpush1.bf16.xpose.msra.mxu0 0
      %6309 = vmatprep.subr.bf16.mxu0 0
      %6310 = vmatpush1.bf16.xpose.msra.mxu0 0
      %6311 = vmatprep.subr.bf16.mxu0 0
      %6312 = vmatpush1.bf16.xpose.msra.mxu0 0
      %6313 = vmatprep.subr.bf16.mxu0 0
      %6314 = vmatpush1.bf16.xpose.msra.mxu0 0
      %6315 = vmatprep.subr.bf16.mxu0 0
      %6316 = vmatpush1.bf16.xpose.msra.mxu0 0
      %6317 = vmatprep.subr.bf16.mxu0 0
      %6318 = vmatpush1.bf16.xpose.msra.mxu0 0
      %6319 = vmatprep.subr.bf16.mxu0 0
      %6320 = vmatpush1.bf16.xpose.msra.mxu0 0
      %6321 = vmatprep.subr.bf16.mxu0 0
      %6322 = vmatpush1.bf16.xpose.msra.mxu0 0
      %6323 = vmatprep.subr.bf16.mxu0 0
      %6324 = vmatpush1.bf16.xpose.msra.mxu0 0
      %6325 = vmatprep.mubr.bf16.mxu0 0
      %6326 = vmatmul.mubr.bf16.gmra.mrb[0].mxu0 %v5799
      %v6327 = vpop.f32.mrb[0].mxu0
      %v6328 = vadd.f32 %v6288, %v6327
      %v6329 = vpop.f32.mrb[0].mxu0
      %v6330 = vpop.f32.mrb[0].mxu0
      %v6331 = vpop.f32.mrb[0].mxu0
      %6332 = vdwg.mxu0
      %v6340 = vcombine.high %v248, %v248
      %v6342 = vunpack.c.l.s4 1983009808
      %v6343 = vunpack.c.0.s8 %v6342
      %v6344 = vlaneseq
      %v6345 = vshrl.u32 %v6344, 7
      %v6346 = vsub.s32 %v6343, %v6345
      %v6347 = vrot.slane %v248, %v6346
      %v6349 = vunpack.c.l.s4 1983009808
      %v6350 = vunpack.c.0.s8 %v6349
      %v6351 = vlaneseq
      %v6352 = vshrl.u32 %v6351, 7
      %v6353 = vsub.s32 %v6350, %v6352
      %v6354 = vrot.slane %v6340, %v6353
      %v6355 = vcombine.high %v6347, %v6347
      %v6356 = vcombine.high %v6354, %v6354
      %v6357 = vcombine.high %v249, %v249
      %v6359 = vunpack.c.l.s4 1983009808
      %v6360 = vunpack.c.0.s8 %v6359
      %v6361 = vlaneseq
      %v6362 = vshrl.u32 %v6361, 7
      %v6363 = vsub.s32 %v6360, %v6362
      %v6364 = vrot.slane %v249, %v6363
      %v6366 = vunpack.c.l.s4 1983009808
      %v6367 = vunpack.c.0.s8 %v6366
      %v6368 = vlaneseq
      %v6369 = vshrl.u32 %v6368, 7
      %v6370 = vsub.s32 %v6367, %v6369
      %v6371 = vrot.slane %v6357, %v6370
      %v6372 = vcombine.high %v6364, %v6364
      %v6373 = vcombine.high %v6371, %v6371
      %v6374 = vcombine.high %v250, %v250
      %v6376 = vunpack.c.l.s4 1983009808
      %v6377 = vunpack.c.0.s8 %v6376
      %v6378 = vlaneseq
      %v6379 = vshrl.u32 %v6378, 7
      %v6380 = vsub.s32 %v6377, %v6379
      %v6381 = vrot.slane %v250, %v6380
      %v6383 = vunpack.c.l.s4 1983009808
      %v6384 = vunpack.c.0.s8 %v6383
      %v6385 = vlaneseq
      %v6386 = vshrl.u32 %v6385, 7
      %v6387 = vsub.s32 %v6384, %v6386
      %v6388 = vrot.slane %v6374, %v6387
      %v6389 = vcombine.high %v6381, %v6381
      %v6390 = vcombine.high %v6388, %v6388
      %v6391 = vcombine.high %v251, %v251
      %v6393 = vunpack.c.l.s4 1983009808
      %v6394 = vunpack.c.0.s8 %v6393
      %v6395 = vlaneseq
      %v6396 = vshrl.u32 %v6395, 7
      %v6397 = vsub.s32 %v6394, %v6396
      %v6398 = vrot.slane %v251, %v6397
      %v6400 = vunpack.c.l.s4 1983009808
      %v6401 = vunpack.c.0.s8 %v6400
      %v6402 = vlaneseq
      %v6403 = vshrl.u32 %v6402, 7
      %v6404 = vsub.s32 %v6401, %v6403
      %v6405 = vrot.slane %v6391, %v6404
      %v6406 = vcombine.high %v6398, %v6398
      %v6407 = vcombine.high %v6405, %v6405
      %v6408 = vcombine.high %v252, %v252
      %v6410 = vunpack.c.l.s4 1983009808
      %v6411 = vunpack.c.0.s8 %v6410
      %v6412 = vlaneseq
      %v6413 = vshrl.u32 %v6412, 7
      %v6414 = vsub.s32 %v6411, %v6413
      %v6415 = vrot.slane %v252, %v6414
      %v6417 = vunpack.c.l.s4 1983009808
      %v6418 = vunpack.c.0.s8 %v6417
      %v6419 = vlaneseq
      %v6420 = vshrl.u32 %v6419, 7
      %v6421 = vsub.s32 %v6418, %v6420
      %v6422 = vrot.slane %v6408, %v6421
      %v6423 = vcombine.high %v6415, %v6415
      %v6424 = vcombine.high %v6422, %v6422
      %v6425 = vcombine.high %v253, %v253
      %v6427 = vunpack.c.l.s4 1983009808
      %v6428 = vunpack.c.0.s8 %v6427
      %v6429 = vlaneseq
      %v6430 = vshrl.u32 %v6429, 7
      %v6431 = vsub.s32 %v6428, %v6430
      %v6432 = vrot.slane %v253, %v6431
      %v6434 = vunpack.c.l.s4 1983009808
      %v6435 = vunpack.c.0.s8 %v6434
      %v6436 = vlaneseq
      %v6437 = vshrl.u32 %v6436, 7
      %v6438 = vsub.s32 %v6435, %v6437
      %v6439 = vrot.slane %v6425, %v6438
      %v6440 = vcombine.high %v6432, %v6432
      %v6441 = vcombine.high %v6439, %v6439
      %v6443 = vunpack.c.l.s4 1983009808
      %v6444 = vunpack.c.0.s8 %v6443
      %v6445 = vlaneseq
      %v6446 = vshrl.u32 %v6445, 7
      %v6447 = vsub.s32 %v6444, %v6446
      %v6448 = vrot.slane %v254, %v6447
      %v6474 = vsel %vm2600, %v6448, 0
      %v6477 = vsel %vm2600, %v5582, 0
      %v6480 = vsel %vm2600, %v5607, 0
      %v6483 = vsel %vm2600, %v5632, 0
      %v6486 = vsel %vm2600, %v5657, 0
      %6488 = vmatprep.subr.bf16.mxu0 %v5559
      %6489 = vmatpush1.bf16.xpose.msra.mxu0 %v5558
      %6490 = vmatprep.subr.bf16.mxu0 %v5584
      %6491 = vmatpush1.bf16.xpose.msra.mxu0 %v5583
      %6492 = vmatprep.subr.bf16.mxu0 %v5609
      %6493 = vmatpush1.bf16.xpose.msra.mxu0 %v5608
      %6494 = vmatprep.subr.bf16.mxu0 %v5634
      %6495 = vmatpush1.bf16.xpose.msra.mxu0 %v5633
      %6496 = vmatprep.subr.bf16.mxu0 0
      %6497 = vmatpush1.bf16.xpose.msra.mxu0 0
      %6498 = vmatprep.subr.bf16.mxu0 0
      %6499 = vmatpush1.bf16.xpose.msra.mxu0 0
      %6500 = vmatprep.subr.bf16.mxu0 0
      %6501 = vmatpush1.bf16.xpose.msra.mxu0 0
      %6502 = vmatprep.subr.bf16.mxu0 0
      %6503 = vmatpush1.bf16.xpose.msra.mxu0 0
      %6504 = vmatprep.subr.bf16.mxu0 0
      %6505 = vmatpush1.bf16.xpose.msra.mxu0 0
      %6506 = vmatprep.subr.bf16.mxu0 0
      %6507 = vmatpush1.bf16.xpose.msra.mxu0 0
      %6508 = vmatprep.subr.bf16.mxu0 0
      %6509 = vmatpush1.bf16.xpose.msra.mxu0 0
      %6510 = vmatprep.subr.bf16.mxu0 0
      %6511 = vmatpush1.bf16.xpose.msra.mxu0 0
      %6512 = vmatprep.subr.bf16.mxu0 0
      %6513 = vmatpush1.bf16.xpose.msra.mxu0 0
      %6514 = vmatprep.subr.bf16.mxu0 0
      %6515 = vmatpush1.bf16.xpose.msra.mxu0 0
      %6516 = vmatprep.subr.bf16.mxu0 0
      %6517 = vmatpush1.bf16.xpose.msra.mxu0 0
      %6518 = vmatprep.subr.bf16.mxu0 0
      %6519 = vmatpush1.bf16.xpose.msra.mxu0 0
      %6520 = vmatprep.mubr.bf16.mxu0 %v6355
      %6521 = vmatmul.mubr.bf16.gmra.mrb[0].mxu0 %v6347
      %v6522 = vpop.f32.mrb[0].mxu0
      %v6523 = vadd.f32 0.0, %v6522
      %v6524 = vpop.f32.mrb[0].mxu0
      %v6525 = vpop.f32.mrb[0].mxu0
      %v6526 = vpop.f32.mrb[0].mxu0
      %6527 = vdwg.mxu0
      %6528 = vmatprep.subr.bf16.mxu0 %v5561
      %6529 = vmatpush1.bf16.xpose.msra.mxu0 %v5560
      %6530 = vmatprep.subr.bf16.mxu0 %v5586
      %6531 = vmatpush1.bf16.xpose.msra.mxu0 %v5585
      %6532 = vmatprep.subr.bf16.mxu0 %v5611
      %6533 = vmatpush1.bf16.xpose.msra.mxu0 %v5610
      %6534 = vmatprep.subr.bf16.mxu0 %v5636
      %6535 = vmatpush1.bf16.xpose.msra.mxu0 %v5635
      %6536 = vmatprep.subr.bf16.mxu0 0
      %6537 = vmatpush1.bf16.xpose.msra.mxu0 0
      %6538 = vmatprep.subr.bf16.mxu0 0
      %6539 = vmatpush1.bf16.xpose.msra.mxu0 0
      %6540 = vmatprep.subr.bf16.mxu0 0
      %6541 = vmatpush1.bf16.xpose.msra.mxu0 0
      %6542 = vmatprep.subr.bf16.mxu0 0
      %6543 = vmatpush1.bf16.xpose.msra.mxu0 0
      %6544 = vmatprep.subr.bf16.mxu0 0
      %6545 = vmatpush1.bf16.xpose.msra.mxu0 0
      %6546 = vmatprep.subr.bf16.mxu0 0
      %6547 = vmatpush1.bf16.xpose.msra.mxu0 0
      %6548 = vmatprep.subr.bf16.mxu0 0
      %6549 = vmatpush1.bf16.xpose.msra.mxu0 0
      %6550 = vmatprep.subr.bf16.mxu0 0
      %6551 = vmatpush1.bf16.xpose.msra.mxu0 0
      %6552 = vmatprep.subr.bf16.mxu0 0
      %6553 = vmatpush1.bf16.xpose.msra.mxu0 0
      %6554 = vmatprep.subr.bf16.mxu0 0
      %6555 = vmatpush1.bf16.xpose.msra.mxu0 0
      %6556 = vmatprep.subr.bf16.mxu0 0
      %6557 = vmatpush1.bf16.xpose.msra.mxu0 0
      %6558 = vmatprep.subr.bf16.mxu0 0
      %6559 = vmatpush1.bf16.xpose.msra.mxu0 0
      %6560 = vmatprep.mubr.bf16.mxu0 %v6356
      %6561 = vmatmul.mubr.bf16.gmra.mrb[0].mxu0 %v6354
      %v6562 = vpop.f32.mrb[0].mxu0
      %v6563 = vadd.f32 %v6523, %v6562
      %v6564 = vpop.f32.mrb[0].mxu0
      %v6565 = vpop.f32.mrb[0].mxu0
      %v6566 = vpop.f32.mrb[0].mxu0
      %6567 = vdwg.mxu0
      %6568 = vmatprep.subr.bf16.mxu0 %v5563
      %6569 = vmatpush1.bf16.xpose.msra.mxu0 %v5562
      %6570 = vmatprep.subr.bf16.mxu0 %v5588
      %6571 = vmatpush1.bf16.xpose.msra.mxu0 %v5587
      %6572 = vmatprep.subr.bf16.mxu0 %v5613
      %6573 = vmatpush1.bf16.xpose.msra.mxu0 %v5612
      %6574 = vmatprep.subr.bf16.mxu0 %v5638
      %6575 = vmatpush1.bf16.xpose.msra.mxu0 %v5637
      %6576 = vmatprep.subr.bf16.mxu0 0
      %6577 = vmatpush1.bf16.xpose.msra.mxu0 0
      %6578 = vmatprep.subr.bf16.mxu0 0
      %6579 = vmatpush1.bf16.xpose.msra.mxu0 0
      %6580 = vmatprep.subr.bf16.mxu0 0
      %6581 = vmatpush1.bf16.xpose.msra.mxu0 0
      %6582 = vmatprep.subr.bf16.mxu0 0
      %6583 = vmatpush1.bf16.xpose.msra.mxu0 0
      %6584 = vmatprep.subr.bf16.mxu0 0
      %6585 = vmatpush1.bf16.xpose.msra.mxu0 0
      %6586 = vmatprep.subr.bf16.mxu0 0
      %6587 = vmatpush1.bf16.xpose.msra.mxu0 0
      %6588 = vmatprep.subr.bf16.mxu0 0
      %6589 = vmatpush1.bf16.xpose.msra.mxu0 0
      %6590 = vmatprep.subr.bf16.mxu0 0
      %6591 = vmatpush1.bf16.xpose.msra.mxu0 0
      %6592 = vmatprep.subr.bf16.mxu0 0
      %6593 = vmatpush1.bf16.xpose.msra.mxu0 0
      %6594 = vmatprep.subr.bf16.mxu0 0
      %6595 = vmatpush1.bf16.xpose.msra.mxu0 0
      %6596 = vmatprep.subr.bf16.mxu0 0
      %6597 = vmatpush1.bf16.xpose.msra.mxu0 0
      %6598 = vmatprep.subr.bf16.mxu0 0
      %6599 = vmatpush1.bf16.xpose.msra.mxu0 0
      %6600 = vmatprep.mubr.bf16.mxu0 %v6372
      %6601 = vmatmul.mubr.bf16.gmra.mrb[0].mxu0 %v6364
      %v6602 = vpop.f32.mrb[0].mxu0
      %v6603 = vadd.f32 %v6563, %v6602
      %v6604 = vpop.f32.mrb[0].mxu0
      %v6605 = vpop.f32.mrb[0].mxu0
      %v6606 = vpop.f32.mrb[0].mxu0
      %6607 = vdwg.mxu0
      %6608 = vmatprep.subr.bf16.mxu0 %v5565
      %6609 = vmatpush1.bf16.xpose.msra.mxu0 %v5564
      %6610 = vmatprep.subr.bf16.mxu0 %v5590
      %6611 = vmatpush1.bf16.xpose.msra.mxu0 %v5589
      %6612 = vmatprep.subr.bf16.mxu0 %v5615
      %6613 = vmatpush1.bf16.xpose.msra.mxu0 %v5614
      %6614 = vmatprep.subr.bf16.mxu0 %v5640
      %6615 = vmatpush1.bf16.xpose.msra.mxu0 %v5639
      %6616 = vmatprep.subr.bf16.mxu0 0
      %6617 = vmatpush1.bf16.xpose.msra.mxu0 0
      %6618 = vmatprep.subr.bf16.mxu0 0
      %6619 = vmatpush1.bf16.xpose.msra.mxu0 0
      %6620 = vmatprep.subr.bf16.mxu0 0
      %6621 = vmatpush1.bf16.xpose.msra.mxu0 0
      %6622 = vmatprep.subr.bf16.mxu0 0
      %6623 = vmatpush1.bf16.xpose.msra.mxu0 0
      %6624 = vmatprep.subr.bf16.mxu0 0
      %6625 = vmatpush1.bf16.xpose.msra.mxu0 0
      %6626 = vmatprep.subr.bf16.mxu0 0
      %6627 = vmatpush1.bf16.xpose.msra.mxu0 0
      %6628 = vmatprep.subr.bf16.mxu0 0
      %6629 = vmatpush1.bf16.xpose.msra.mxu0 0
      %6630 = vmatprep.subr.bf16.mxu0 0
      %6631 = vmatpush1.bf16.xpose.msra.mxu0 0
      %6632 = vmatprep.subr.bf16.mxu0 0
      %6633 = vmatpush1.bf16.xpose.msra.mxu0 0
      %6634 = vmatprep.subr.bf16.mxu0 0
      %6635 = vmatpush1.bf16.xpose.msra.mxu0 0
      %6636 = vmatprep.subr.bf16.mxu0 0
      %6637 = vmatpush1.bf16.xpose.msra.mxu0 0
      %6638 = vmatprep.subr.bf16.mxu0 0
      %6639 = vmatpush1.bf16.xpose.msra.mxu0 0
      %6640 = vmatprep.mubr.bf16.mxu0 %v6373
      %6641 = vmatmul.mubr.bf16.gmra.mrb[0].mxu0 %v6371
      %v6642 = vpop.f32.mrb[0].mxu0
      %v6643 = vadd.f32 %v6603, %v6642
      %v6644 = vpop.f32.mrb[0].mxu0
      %v6645 = vpop.f32.mrb[0].mxu0
      %v6646 = vpop.f32.mrb[0].mxu0
      %6647 = vdwg.mxu0
      %6648 = vmatprep.subr.bf16.mxu0 %v5567
      %6649 = vmatpush1.bf16.xpose.msra.mxu0 %v5566
      %6650 = vmatprep.subr.bf16.mxu0 %v5592
      %6651 = vmatpush1.bf16.xpose.msra.mxu0 %v5591
      %6652 = vmatprep.subr.bf16.mxu0 %v5617
      %6653 = vmatpush1.bf16.xpose.msra.mxu0 %v5616
      %6654 = vmatprep.subr.bf16.mxu0 %v5642
      %6655 = vmatpush1.bf16.xpose.msra.mxu0 %v5641
      %6656 = vmatprep.subr.bf16.mxu0 0
      %6657 = vmatpush1.bf16.xpose.msra.mxu0 0
      %6658 = vmatprep.subr.bf16.mxu0 0
      %6659 = vmatpush1.bf16.xpose.msra.mxu0 0
      %6660 = vmatprep.subr.bf16.mxu0 0
      %6661 = vmatpush1.bf16.xpose.msra.mxu0 0
      %6662 = vmatprep.subr.bf16.mxu0 0
      %6663 = vmatpush1.bf16.xpose.msra.mxu0 0
      %6664 = vmatprep.subr.bf16.mxu0 0
      %6665 = vmatpush1.bf16.xpose.msra.mxu0 0
      %6666 = vmatprep.subr.bf16.mxu0 0
      %6667 = vmatpush1.bf16.xpose.msra.mxu0 0
      %6668 = vmatprep.subr.bf16.mxu0 0
      %6669 = vmatpush1.bf16.xpose.msra.mxu0 0
      %6670 = vmatprep.subr.bf16.mxu0 0
      %6671 = vmatpush1.bf16.xpose.msra.mxu0 0
      %6672 = vmatprep.subr.bf16.mxu0 0
      %6673 = vmatpush1.bf16.xpose.msra.mxu0 0
      %6674 = vmatprep.subr.bf16.mxu0 0
      %6675 = vmatpush1.bf16.xpose.msra.mxu0 0
      %6676 = vmatprep.subr.bf16.mxu0 0
      %6677 = vmatpush1.bf16.xpose.msra.mxu0 0
      %6678 = vmatprep.subr.bf16.mxu0 0
      %6679 = vmatpush1.bf16.xpose.msra.mxu0 0
      %6680 = vmatprep.mubr.bf16.mxu0 %v6389
      %6681 = vmatmul.mubr.bf16.gmra.mrb[0].mxu0 %v6381
      %v6682 = vpop.f32.mrb[0].mxu0
      %v6683 = vadd.f32 %v6643, %v6682
      %v6684 = vpop.f32.mrb[0].mxu0
      %v6685 = vpop.f32.mrb[0].mxu0
      %v6686 = vpop.f32.mrb[0].mxu0
      %6687 = vdwg.mxu0
      %6688 = vmatprep.subr.bf16.mxu0 %v5569
      %6689 = vmatpush1.bf16.xpose.msra.mxu0 %v5568
      %6690 = vmatprep.subr.bf16.mxu0 %v5594
      %6691 = vmatpush1.bf16.xpose.msra.mxu0 %v5593
      %6692 = vmatprep.subr.bf16.mxu0 %v5619
      %6693 = vmatpush1.bf16.xpose.msra.mxu0 %v5618
      %6694 = vmatprep.subr.bf16.mxu0 %v5644
      %6695 = vmatpush1.bf16.xpose.msra.mxu0 %v5643
      %6696 = vmatprep.subr.bf16.mxu0 0
      %6697 = vmatpush1.bf16.xpose.msra.mxu0 0
      %6698 = vmatprep.subr.bf16.mxu0 0
      %6699 = vmatpush1.bf16.xpose.msra.mxu0 0
      %6700 = vmatprep.subr.bf16.mxu0 0
      %6701 = vmatpush1.bf16.xpose.msra.mxu0 0
      %6702 = vmatprep.subr.bf16.mxu0 0
      %6703 = vmatpush1.bf16.xpose.msra.mxu0 0
      %6704 = vmatprep.subr.bf16.mxu0 0
      %6705 = vmatpush1.bf16.xpose.msra.mxu0 0
      %6706 = vmatprep.subr.bf16.mxu0 0
      %6707 = vmatpush1.bf16.xpose.msra.mxu0 0
      %6708 = vmatprep.subr.bf16.mxu0 0
      %6709 = vmatpush1.bf16.xpose.msra.mxu0 0
      %6710 = vmatprep.subr.bf16.mxu0 0
      %6711 = vmatpush1.bf16.xpose.msra.mxu0 0
      %6712 = vmatprep.subr.bf16.mxu0 0
      %6713 = vmatpush1.bf16.xpose.msra.mxu0 0
      %6714 = vmatprep.subr.bf16.mxu0 0
      %6715 = vmatpush1.bf16.xpose.msra.mxu0 0
      %6716 = vmatprep.subr.bf16.mxu0 0
      %6717 = vmatpush1.bf16.xpose.msra.mxu0 0
      %6718 = vmatprep.subr.bf16.mxu0 0
      %6719 = vmatpush1.bf16.xpose.msra.mxu0 0
      %6720 = vmatprep.mubr.bf16.mxu0 %v6390
      %6721 = vmatmul.mubr.bf16.gmra.mrb[0].mxu0 %v6388
      %v6722 = vpop.f32.mrb[0].mxu0
      %v6723 = vadd.f32 %v6683, %v6722
      %v6724 = vpop.f32.mrb[0].mxu0
      %v6725 = vpop.f32.mrb[0].mxu0
      %v6726 = vpop.f32.mrb[0].mxu0
      %6727 = vdwg.mxu0
      %6728 = vmatprep.subr.bf16.mxu0 %v5571
      %6729 = vmatpush1.bf16.xpose.msra.mxu0 %v5570
      %6730 = vmatprep.subr.bf16.mxu0 %v5596
      %6731 = vmatpush1.bf16.xpose.msra.mxu0 %v5595
      %6732 = vmatprep.subr.bf16.mxu0 %v5621
      %6733 = vmatpush1.bf16.xpose.msra.mxu0 %v5620
      %6734 = vmatprep.subr.bf16.mxu0 %v5646
      %6735 = vmatpush1.bf16.xpose.msra.mxu0 %v5645
      %6736 = vmatprep.subr.bf16.mxu0 0
      %6737 = vmatpush1.bf16.xpose.msra.mxu0 0
      %6738 = vmatprep.subr.bf16.mxu0 0
      %6739 = vmatpush1.bf16.xpose.msra.mxu0 0
      %6740 = vmatprep.subr.bf16.mxu0 0
      %6741 = vmatpush1.bf16.xpose.msra.mxu0 0
      %6742 = vmatprep.subr.bf16.mxu0 0
      %6743 = vmatpush1.bf16.xpose.msra.mxu0 0
      %6744 = vmatprep.subr.bf16.mxu0 0
      %6745 = vmatpush1.bf16.xpose.msra.mxu0 0
      %6746 = vmatprep.subr.bf16.mxu0 0
      %6747 = vmatpush1.bf16.xpose.msra.mxu0 0
      %6748 = vmatprep.subr.bf16.mxu0 0
      %6749 = vmatpush1.bf16.xpose.msra.mxu0 0
      %6750 = vmatprep.subr.bf16.mxu0 0
      %6751 = vmatpush1.bf16.xpose.msra.mxu0 0
      %6752 = vmatprep.subr.bf16.mxu0 0
      %6753 = vmatpush1.bf16.xpose.msra.mxu0 0
      %6754 = vmatprep.subr.bf16.mxu0 0
      %6755 = vmatpush1.bf16.xpose.msra.mxu0 0
      %6756 = vmatprep.subr.bf16.mxu0 0
      %6757 = vmatpush1.bf16.xpose.msra.mxu0 0
      %6758 = vmatprep.subr.bf16.mxu0 0
      %6759 = vmatpush1.bf16.xpose.msra.mxu0 0
      %6760 = vmatprep.mubr.bf16.mxu0 %v6406
      %6761 = vmatmul.mubr.bf16.gmra.mrb[0].mxu0 %v6398
      %v6762 = vpop.f32.mrb[0].mxu0
      %v6763 = vadd.f32 %v6723, %v6762
      %v6764 = vpop.f32.mrb[0].mxu0
      %v6765 = vpop.f32.mrb[0].mxu0
      %v6766 = vpop.f32.mrb[0].mxu0
      %6767 = vdwg.mxu0
      %6768 = vmatprep.subr.bf16.mxu0 %v5573
      %6769 = vmatpush1.bf16.xpose.msra.mxu0 %v5572
      %6770 = vmatprep.subr.bf16.mxu0 %v5598
      %6771 = vmatpush1.bf16.xpose.msra.mxu0 %v5597
      %6772 = vmatprep.subr.bf16.mxu0 %v5623
      %6773 = vmatpush1.bf16.xpose.msra.mxu0 %v5622
      %6774 = vmatprep.subr.bf16.mxu0 %v5648
      %6775 = vmatpush1.bf16.xpose.msra.mxu0 %v5647
      %6776 = vmatprep.subr.bf16.mxu0 0
      %6777 = vmatpush1.bf16.xpose.msra.mxu0 0
      %6778 = vmatprep.subr.bf16.mxu0 0
      %6779 = vmatpush1.bf16.xpose.msra.mxu0 0
      %6780 = vmatprep.subr.bf16.mxu0 0
      %6781 = vmatpush1.bf16.xpose.msra.mxu0 0
      %6782 = vmatprep.subr.bf16.mxu0 0
      %6783 = vmatpush1.bf16.xpose.msra.mxu0 0
      %6784 = vmatprep.subr.bf16.mxu0 0
      %6785 = vmatpush1.bf16.xpose.msra.mxu0 0
      %6786 = vmatprep.subr.bf16.mxu0 0
      %6787 = vmatpush1.bf16.xpose.msra.mxu0 0
      %6788 = vmatprep.subr.bf16.mxu0 0
      %6789 = vmatpush1.bf16.xpose.msra.mxu0 0
      %6790 = vmatprep.subr.bf16.mxu0 0
      %6791 = vmatpush1.bf16.xpose.msra.mxu0 0
      %6792 = vmatprep.subr.bf16.mxu0 0
      %6793 = vmatpush1.bf16.xpose.msra.mxu0 0
      %6794 = vmatprep.subr.bf16.mxu0 0
      %6795 = vmatpush1.bf16.xpose.msra.mxu0 0
      %6796 = vmatprep.subr.bf16.mxu0 0
      %6797 = vmatpush1.bf16.xpose.msra.mxu0 0
      %6798 = vmatprep.subr.bf16.mxu0 0
      %6799 = vmatpush1.bf16.xpose.msra.mxu0 0
      %6800 = vmatprep.mubr.bf16.mxu0 %v6407
      %6801 = vmatmul.mubr.bf16.gmra.mrb[0].mxu0 %v6405
      %v6802 = vpop.f32.mrb[0].mxu0
      %v6803 = vadd.f32 %v6763, %v6802
      %v6804 = vpop.f32.mrb[0].mxu0
      %v6805 = vpop.f32.mrb[0].mxu0
      %v6806 = vpop.f32.mrb[0].mxu0
      %6807 = vdwg.mxu0
      %6808 = vmatprep.subr.bf16.mxu0 %v5575
      %6809 = vmatpush1.bf16.xpose.msra.mxu0 %v5574
      %6810 = vmatprep.subr.bf16.mxu0 %v5600
      %6811 = vmatpush1.bf16.xpose.msra.mxu0 %v5599
      %6812 = vmatprep.subr.bf16.mxu0 %v5625
      %6813 = vmatpush1.bf16.xpose.msra.mxu0 %v5624
      %6814 = vmatprep.subr.bf16.mxu0 %v5650
      %6815 = vmatpush1.bf16.xpose.msra.mxu0 %v5649
      %6816 = vmatprep.subr.bf16.mxu0 0
      %6817 = vmatpush1.bf16.xpose.msra.mxu0 0
      %6818 = vmatprep.subr.bf16.mxu0 0
      %6819 = vmatpush1.bf16.xpose.msra.mxu0 0
      %6820 = vmatprep.subr.bf16.mxu0 0
      %6821 = vmatpush1.bf16.xpose.msra.mxu0 0
      %6822 = vmatprep.subr.bf16.mxu0 0
      %6823 = vmatpush1.bf16.xpose.msra.mxu0 0
      %6824 = vmatprep.subr.bf16.mxu0 0
      %6825 = vmatpush1.bf16.xpose.msra.mxu0 0
      %6826 = vmatprep.subr.bf16.mxu0 0
      %6827 = vmatpush1.bf16.xpose.msra.mxu0 0
      %6828 = vmatprep.subr.bf16.mxu0 0
      %6829 = vmatpush1.bf16.xpose.msra.mxu0 0
      %6830 = vmatprep.subr.bf16.mxu0 0
      %6831 = vmatpush1.bf16.xpose.msra.mxu0 0
      %6832 = vmatprep.subr.bf16.mxu0 0
      %6833 = vmatpush1.bf16.xpose.msra.mxu0 0
      %6834 = vmatprep.subr.bf16.mxu0 0
      %6835 = vmatpush1.bf16.xpose.msra.mxu0 0
      %6836 = vmatprep.subr.bf16.mxu0 0
      %6837 = vmatpush1.bf16.xpose.msra.mxu0 0
      %6838 = vmatprep.subr.bf16.mxu0 0
      %6839 = vmatpush1.bf16.xpose.msra.mxu0 0
      %6840 = vmatprep.mubr.bf16.mxu0 %v6423
      %6841 = vmatmul.mubr.bf16.gmra.mrb[0].mxu0 %v6415
      %v6842 = vpop.f32.mrb[0].mxu0
      %v6843 = vadd.f32 %v6803, %v6842
      %v6844 = vpop.f32.mrb[0].mxu0
      %v6845 = vpop.f32.mrb[0].mxu0
      %v6846 = vpop.f32.mrb[0].mxu0
      %6847 = vdwg.mxu0
      %6848 = vmatprep.subr.bf16.mxu0 %v5577
      %6849 = vmatpush1.bf16.xpose.msra.mxu0 %v5576
      %6850 = vmatprep.subr.bf16.mxu0 %v5602
      %6851 = vmatpush1.bf16.xpose.msra.mxu0 %v5601
      %6852 = vmatprep.subr.bf16.mxu0 %v5627
      %6853 = vmatpush1.bf16.xpose.msra.mxu0 %v5626
      %6854 = vmatprep.subr.bf16.mxu0 %v5652
      %6855 = vmatpush1.bf16.xpose.msra.mxu0 %v5651
      %6856 = vmatprep.subr.bf16.mxu0 0
      %6857 = vmatpush1.bf16.xpose.msra.mxu0 0
      %6858 = vmatprep.subr.bf16.mxu0 0
      %6859 = vmatpush1.bf16.xpose.msra.mxu0 0
      %6860 = vmatprep.subr.bf16.mxu0 0
      %6861 = vmatpush1.bf16.xpose.msra.mxu0 0
      %6862 = vmatprep.subr.bf16.mxu0 0
      %6863 = vmatpush1.bf16.xpose.msra.mxu0 0
      %6864 = vmatprep.subr.bf16.mxu0 0
      %6865 = vmatpush1.bf16.xpose.msra.mxu0 0
      %6866 = vmatprep.subr.bf16.mxu0 0
      %6867 = vmatpush1.bf16.xpose.msra.mxu0 0
      %6868 = vmatprep.subr.bf16.mxu0 0
      %6869 = vmatpush1.bf16.xpose.msra.mxu0 0
      %6870 = vmatprep.subr.bf16.mxu0 0
      %6871 = vmatpush1.bf16.xpose.msra.mxu0 0
      %6872 = vmatprep.subr.bf16.mxu0 0
      %6873 = vmatpush1.bf16.xpose.msra.mxu0 0
      %6874 = vmatprep.subr.bf16.mxu0 0
      %6875 = vmatpush1.bf16.xpose.msra.mxu0 0
      %6876 = vmatprep.subr.bf16.mxu0 0
      %6877 = vmatpush1.bf16.xpose.msra.mxu0 0
      %6878 = vmatprep.subr.bf16.mxu0 0
      %6879 = vmatpush1.bf16.xpose.msra.mxu0 0
      %6880 = vmatprep.mubr.bf16.mxu0 %v6424
      %6881 = vmatmul.mubr.bf16.gmra.mrb[0].mxu0 %v6422
      %v6882 = vpop.f32.mrb[0].mxu0
      %v6883 = vadd.f32 %v6843, %v6882
      %v6884 = vpop.f32.mrb[0].mxu0
      %v6885 = vpop.f32.mrb[0].mxu0
      %v6886 = vpop.f32.mrb[0].mxu0
      %6887 = vdwg.mxu0
      %6888 = vmatprep.subr.bf16.mxu0 %v5579
      %6889 = vmatpush1.bf16.xpose.msra.mxu0 %v5578
      %6890 = vmatprep.subr.bf16.mxu0 %v5604
      %6891 = vmatpush1.bf16.xpose.msra.mxu0 %v5603
      %6892 = vmatprep.subr.bf16.mxu0 %v5629
      %6893 = vmatpush1.bf16.xpose.msra.mxu0 %v5628
      %6894 = vmatprep.subr.bf16.mxu0 %v5654
      %6895 = vmatpush1.bf16.xpose.msra.mxu0 %v5653
      %6896 = vmatprep.subr.bf16.mxu0 0
      %6897 = vmatpush1.bf16.xpose.msra.mxu0 0
      %6898 = vmatprep.subr.bf16.mxu0 0
      %6899 = vmatpush1.bf16.xpose.msra.mxu0 0
      %6900 = vmatprep.subr.bf16.mxu0 0
      %6901 = vmatpush1.bf16.xpose.msra.mxu0 0
      %6902 = vmatprep.subr.bf16.mxu0 0
      %6903 = vmatpush1.bf16.xpose.msra.mxu0 0
      %6904 = vmatprep.subr.bf16.mxu0 0
      %6905 = vmatpush1.bf16.xpose.msra.mxu0 0
      %6906 = vmatprep.subr.bf16.mxu0 0
      %6907 = vmatpush1.bf16.xpose.msra.mxu0 0
      %6908 = vmatprep.subr.bf16.mxu0 0
      %6909 = vmatpush1.bf16.xpose.msra.mxu0 0
      %6910 = vmatprep.subr.bf16.mxu0 0
      %6911 = vmatpush1.bf16.xpose.msra.mxu0 0
      %6912 = vmatprep.subr.bf16.mxu0 0
      %6913 = vmatpush1.bf16.xpose.msra.mxu0 0
      %6914 = vmatprep.subr.bf16.mxu0 0
      %6915 = vmatpush1.bf16.xpose.msra.mxu0 0
      %6916 = vmatprep.subr.bf16.mxu0 0
      %6917 = vmatpush1.bf16.xpose.msra.mxu0 0
      %6918 = vmatprep.subr.bf16.mxu0 0
      %6919 = vmatpush1.bf16.xpose.msra.mxu0 0
      %6920 = vmatprep.mubr.bf16.mxu0 %v6440
      %6921 = vmatmul.mubr.bf16.gmra.mrb[0].mxu0 %v6432
      %v6922 = vpop.f32.mrb[0].mxu0
      %v6923 = vadd.f32 %v6883, %v6922
      %v6924 = vpop.f32.mrb[0].mxu0
      %v6925 = vpop.f32.mrb[0].mxu0
      %v6926 = vpop.f32.mrb[0].mxu0
      %6927 = vdwg.mxu0
      %6928 = vmatprep.subr.bf16.mxu0 %v5581
      %6929 = vmatpush1.bf16.xpose.msra.mxu0 %v5580
      %6930 = vmatprep.subr.bf16.mxu0 %v5606
      %6931 = vmatpush1.bf16.xpose.msra.mxu0 %v5605
      %6932 = vmatprep.subr.bf16.mxu0 %v5631
      %6933 = vmatpush1.bf16.xpose.msra.mxu0 %v5630
      %6934 = vmatprep.subr.bf16.mxu0 %v5656
      %6935 = vmatpush1.bf16.xpose.msra.mxu0 %v5655
      %6936 = vmatprep.subr.bf16.mxu0 0
      %6937 = vmatpush1.bf16.xpose.msra.mxu0 0
      %6938 = vmatprep.subr.bf16.mxu0 0
      %6939 = vmatpush1.bf16.xpose.msra.mxu0 0
      %6940 = vmatprep.subr.bf16.mxu0 0
      %6941 = vmatpush1.bf16.xpose.msra.mxu0 0
      %6942 = vmatprep.subr.bf16.mxu0 0
      %6943 = vmatpush1.bf16.xpose.msra.mxu0 0
      %6944 = vmatprep.subr.bf16.mxu0 0
      %6945 = vmatpush1.bf16.xpose.msra.mxu0 0
      %6946 = vmatprep.subr.bf16.mxu0 0
      %6947 = vmatpush1.bf16.xpose.msra.mxu0 0
      %6948 = vmatprep.subr.bf16.mxu0 0
      %6949 = vmatpush1.bf16.xpose.msra.mxu0 0
      %6950 = vmatprep.subr.bf16.mxu0 0
      %6951 = vmatpush1.bf16.xpose.msra.mxu0 0
      %6952 = vmatprep.subr.bf16.mxu0 0
      %6953 = vmatpush1.bf16.xpose.msra.mxu0 0
      %6954 = vmatprep.subr.bf16.mxu0 0
      %6955 = vmatpush1.bf16.xpose.msra.mxu0 0
      %6956 = vmatprep.subr.bf16.mxu0 0
      %6957 = vmatpush1.bf16.xpose.msra.mxu0 0
      %6958 = vmatprep.subr.bf16.mxu0 0
      %6959 = vmatpush1.bf16.xpose.msra.mxu0 0
      %6960 = vmatprep.mubr.bf16.mxu0 %v6441
      %6961 = vmatmul.mubr.bf16.gmra.mrb[0].mxu0 %v6439
      %v6962 = vpop.f32.mrb[0].mxu0
      %v6963 = vadd.f32 %v6923, %v6962
      %v6964 = vpop.f32.mrb[0].mxu0
      %v6965 = vpop.f32.mrb[0].mxu0
      %v6966 = vpop.f32.mrb[0].mxu0
      %6967 = vdwg.mxu0
      %6968 = vmatprep.subr.bf16.mxu0 0
      %6969 = vmatpush1.bf16.xpose.msra.mxu0 %v6477
      %6970 = vmatprep.subr.bf16.mxu0 0
      %6971 = vmatpush1.bf16.xpose.msra.mxu0 %v6480
      %6972 = vmatprep.subr.bf16.mxu0 0
      %6973 = vmatpush1.bf16.xpose.msra.mxu0 %v6483
      %6974 = vmatprep.subr.bf16.mxu0 0
      %6975 = vmatpush1.bf16.xpose.msra.mxu0 %v6486
      %6976 = vmatprep.subr.bf16.mxu0 0
      %6977 = vmatpush1.bf16.xpose.msra.mxu0 0
      %6978 = vmatprep.subr.bf16.mxu0 0
      %6979 = vmatpush1.bf16.xpose.msra.mxu0 0
      %6980 = vmatprep.subr.bf16.mxu0 0
      %6981 = vmatpush1.bf16.xpose.msra.mxu0 0
      %6982 = vmatprep.subr.bf16.mxu0 0
      %6983 = vmatpush1.bf16.xpose.msra.mxu0 0
      %6984 = vmatprep.subr.bf16.mxu0 0
      %6985 = vmatpush1.bf16.xpose.msra.mxu0 0
      %6986 = vmatprep.subr.bf16.mxu0 0
      %6987 = vmatpush1.bf16.xpose.msra.mxu0 0
      %6988 = vmatprep.subr.bf16.mxu0 0
      %6989 = vmatpush1.bf16.xpose.msra.mxu0 0
      %6990 = vmatprep.subr.bf16.mxu0 0
      %6991 = vmatpush1.bf16.xpose.msra.mxu0 0
      %6992 = vmatprep.subr.bf16.mxu0 0
      %6993 = vmatpush1.bf16.xpose.msra.mxu0 0
      %6994 = vmatprep.subr.bf16.mxu0 0
      %6995 = vmatpush1.bf16.xpose.msra.mxu0 0
      %6996 = vmatprep.subr.bf16.mxu0 0
      %6997 = vmatpush1.bf16.xpose.msra.mxu0 0
      %6998 = vmatprep.subr.bf16.mxu0 0
      %6999 = vmatpush1.bf16.xpose.msra.mxu0 0
      %7000 = vmatprep.mubr.bf16.mxu0 0
      %7001 = vmatmul.mubr.bf16.gmra.mrb[0].mxu0 %v6474
      %v7002 = vpop.f32.mrb[0].mxu0
      %v7003 = vadd.f32 %v6963, %v7002
      %v7004 = vpop.f32.mrb[0].mxu0
      %v7005 = vpop.f32.mrb[0].mxu0
      %v7006 = vpop.f32.mrb[0].mxu0
      %7007 = vdwg.mxu0
      %vm7008 = vcmask 519168
      %7009 = vst.msk [vmem:[%s222] sm:$0xf] %vm7008, %v6328
      %7010 = vst.msk [vmem:[%s222 + $0x4] sm:$0xf] %vm7008, %v7003
      %s7011 = smul.u32 2, %s14
      %p7012 = scmp.lt.s32.totalorder %s7011, 15
      %s7013 = scalar_select %p7012, %s7011, 15
      %s7014 = smul.addr %s7013, 4
      %s7015 = scalar_lea.vmem %s3, %s7014
      // Predicated region
      $region33: #{swa_forward.1} parent=31 // pred_check
        %p7016 = pneg %p110
      $region34: #{swa_forward.1} parent=31 // pred_check_branch
        %7018 = sbr.rel (%p7016) target = $region36
      $region35: #{swa_forward.1} parent=31 // pred_region
        %s7019 = smul.u32 2, %s14
      $region36: #{swa_forward.1} parent=31 // pred_fallthru
        _
    $region32: #{swa_forward.1} parent=5 // pred_fallthru
      _
    %p7020 = scmp.le.s32.totalorder 2, %s9
    // Predicated region
    $region37: #{swa_forward.1} parent=5 // pred_check
      %p7021 = pneg %p7020
    $region38: #{swa_forward.1} parent=5 // pred_check_branch
      %7023 = sbr.rel (%p7021) target = $region40
    $region39: #{swa_forward.1} parent=5 // pred_region
      %s7024 = ssub.s32 %s9, 2
      // Predicated region
      $region41: #{swa_forward.1} parent=39 // pred_check
        %p7025 = pneg %p116
      $region42: #{swa_forward.1} parent=39 // pred_check_branch
        %7027 = sbr.rel (%p7025) target = $region44
      $region43: #{swa_forward.1} parent=39 // pred_region
        %s7028 = smul.u32 2, %s15
        %p7029 = scmp.lt.s32.totalorder %s7028, 15
        %s7030 = scalar_select %p7029, %s7028, 15
        %s7031 = smul.addr %s7030, 4
        %s7032 = scalar_lea.vmem %s3, %s7031
      $region44: #{swa_forward.1} parent=39 // pred_fallthru
        _
    $region40: #{swa_forward.1} parent=5 // pred_fallthru
      _
  $region6: #{swa_forward.1} parent=0 // loop_footer
    %s13 = sadd.s32 1, %s9
  $region7: #{swa_forward.1} parent=0 // loop_footer_branch
    %8 = sbr.rel target = $region3
  $region8: #{swa_forward.1} parent=0 // loop_exit
    _

</llo_original>
